<compile_context>
chip_gen: v6e
topology: v6e:2x2x1
jax: 0.10.0
libtpu: 0.0.40
codegen_flags: <defaults>
</compile_context>

<pallas_src>
import functools

import jax
import jax.numpy as jnp
from jax.experimental import pallas as pl
from jax.experimental.pallas import tpu as pltpu


# ----------------------------------------------------------------------------- utils
def _round_up(x, m):
    return ((x + m - 1) // m) * m


def _pick_tm(m):
    """M tile: as large as comfortably fits VMEM (<=2048 rows), multiple of 16 for
    bf16 sublane packing; prefer >=2 tiles so v7x's two TensorCores split the grid."""
    mp = _round_up(m, 16)
    tm = min(2048, mp)
    if mp // tm < 2 and mp > 256 and (mp // 2) % 16 == 0:
        tm = mp // 2
    mp = _round_up(mp, tm)
    return tm, mp


# --------------------------------------------------------------------- conv kernels
def _matmul1_kernel(a_ref, w_ref, b_ref, o_ref, *, epilogue):
    """Single-K-step conv matmul: out = a @ w + b, optional fused epilogue."""
    acc = jnp.dot(a_ref[...], w_ref[...], preferred_element_type=jnp.float32)
    acc = acc + b_ref[...]
    if epilogue is not None:
        acc = epilogue(acc)
    o_ref[...] = acc.astype(o_ref.dtype)


def _matmul2_kernel(a1_ref, a2_ref, w1_ref, w2_ref, b_ref, o_ref, *, epilogue):
    """Two-operand conv matmul (feat-part + hoisted lr-part), single K step each."""
    acc = jnp.dot(a1_ref[...], w1_ref[...], preferred_element_type=jnp.float32)
    acc = acc + jnp.dot(a2_ref[...], w2_ref[...], preferred_element_type=jnp.float32)
    acc = acc + b_ref[...]
    if epilogue is not None:
        acc = epilogue(acc)
    o_ref[...] = acc.astype(o_ref.dtype)


def _convlstm_kernel(a_x_ref, a_h_ref, w_x_ref, w_h_ref, b_ref, c_ref,
                     h_ref, c_out_ref, *, kn):
    """ConvLSTM gates matmul at natural width N=4*kn with the nonlinearities and
    cell update fused in the epilogue (kn-wide lane slices)."""
    g = jnp.dot(a_x_ref[...], w_x_ref[...], preferred_element_type=jnp.float32)
    g = g + jnp.dot(a_h_ref[...], w_h_ref[...], preferred_element_type=jnp.float32)
    g = g + b_ref[...]
    in_gate = jax.nn.sigmoid(g[:, 0 * kn:1 * kn])
    rem_gate = jax.nn.sigmoid(g[:, 1 * kn:2 * kn])
    out_gate = jax.nn.sigmoid(g[:, 2 * kn:3 * kn])
    cell_gate = jnp.tanh(g[:, 3 * kn:4 * kn])
    c_new = rem_gate * c_ref[...] + in_gate * cell_gate
    c_out_ref[...] = c_new
    h_ref[...] = (out_gate * jnp.tanh(c_new)).astype(h_ref.dtype)


# ------------------------------------------------------------------ fused epilogues
def _clamp_epilogue(acc):
    return jnp.clip(acc, 0.0, 255.0)


def _make_offset_mod_epilogue(mod_start):
    """Lanes >= mod_start are the modulator channels -> 2*sigmoid, fused in-kernel."""
    def ep(acc):
        lane = jax.lax.broadcasted_iota(jnp.int32, acc.shape, 1)
        return jnp.where(lane >= mod_start, 2.0 * jax.nn.sigmoid(acc), acc)
    return ep


# -------------------------------------------------------------------- matmul wrapper
def pallas_conv_matmul(a_parts, w_parts, bias, out_dtype, epilogue=None):
    """a_parts: list of (M,Ki) bf16 cols; w_parts: list of (Ki,N) bf16; bias (N,) f32.
    Single K step per part, M-tiled grid, output written at true N width."""
    M = a_parts[0].shape[0]
    N = w_parts[0].shape[1]
    tm, Mp = _pick_tm(M)
    if Mp != M:
        a_parts = [jnp.pad(a, ((0, Mp - M), (0, 0))) for a in a_parts]
    bias2 = bias.reshape(1, N).astype(jnp.float32)

    a_specs = [pl.BlockSpec((tm, a.shape[1]), lambda i: (i, 0)) for a in a_parts]
    w_specs = [pl.BlockSpec((w.shape[0], N), lambda i: (0, 0)) for w in w_parts]
    b_spec = pl.BlockSpec((1, N), lambda i: (0, 0))
    kernel = _matmul1_kernel if len(a_parts) == 1 else _matmul2_kernel

    out = pl.pallas_call(
        functools.partial(kernel, epilogue=epilogue),
        grid=(Mp // tm,),
        in_specs=a_specs + w_specs + [b_spec],
        out_specs=pl.BlockSpec((tm, N), lambda i: (i, 0)),
        out_shape=jax.ShapeDtypeStruct((Mp, N), out_dtype),
        compiler_params=pltpu.CompilerParams(dimension_semantics=("parallel",)),
    )(*a_parts, *w_parts, bias2)
    return out if Mp == M else out[:M]


# --------------------------------------------------------------------------- im2col
def _im2col_nhwc(x, kh, kw, ph, pw):
    """x:(B,H,W,C) bf16 -> (B*Ho*Wo, kh*kw*C), stride 1, tap-major / channel-minor K."""
    B, H, W, C = x.shape
    xp = jnp.pad(x, ((0, 0), (ph, ph), (pw, pw), (0, 0)))
    Ho = H + 2 * ph - kh + 1
    Wo = W + 2 * pw - kw + 1
    # TODO(synk): the im2col tap slabs are still materialized by XLA; fusing the
    # kh*kw taps into the matmul K axis (shifted-slab DMA per step) is not done.
    cols = jnp.concatenate(
        [xp[:, i:i + Ho, j:j + Wo, :] for i in range(kh) for j in range(kw)], axis=-1)
    return cols.reshape(B * Ho * Wo, kh * kw * C), Ho, Wo


def _weight_to_mat(w):
    """torch OIHW (Cout,Cin,kh,kw) -> (kh*kw*Cin, Cout) bf16, matching im2col order."""
    cout = w.shape[0]
    return jnp.transpose(w, (2, 3, 1, 0)).reshape(-1, cout).astype(jnp.bfloat16)


def _split_weight_mats(w, c1):
    """Split an OIHW weight along Cin into the first-c1-channel part and the rest,
    each in im2col (tap-major, channel-minor) row order."""
    w4 = jnp.transpose(w, (2, 3, 1, 0))              # (kh, kw, Cin, Cout)
    kh, kw, cin, cout = w4.shape
    w1 = w4[:, :, :c1, :].reshape(kh * kw * c1, cout).astype(jnp.bfloat16)
    w2 = w4[:, :, c1:, :].reshape(kh * kw * (cin - c1), cout).astype(jnp.bfloat16)
    return w1, w2


# -------------------------------------------------------------------- ConvLSTM cell
def convlstm_cell_nhwc(x_cols, h_prev, c_prev, w_gates, b_gates, pad,
                       in_channels, hidden_size, ks, B, H, W):
    Kn = hidden_size
    M = B * H * W
    h_cols, _, _ = _im2col_nhwc(h_prev, ks, ks, pad, pad)        # bf16
    w_x, w_h = _split_weight_mats(w_gates, in_channels)          # (9C,4Kn),(9Kn,4Kn)
    bias = b_gates.reshape(1, 4 * Kn).astype(jnp.float32)
    c_flat = c_prev.reshape(M, Kn).astype(jnp.float32)

    tm, Mp = _pick_tm(M)

    def pad_m(a):
        return a if Mp == M else jnp.pad(a, ((0, Mp - M), (0, 0)))

    a_x, a_h, c_m = pad_m(x_cols), pad_m(h_cols), pad_m(c_flat)
    K1, K2 = a_x.shape[1], a_h.shape[1]

    h_out, c_out = pl.pallas_call(
        functools.partial(_convlstm_kernel, kn=Kn),
        grid=(Mp // tm,),
        in_specs=[pl.BlockSpec((tm, K1), lambda i: (i, 0)),
                  pl.BlockSpec((tm, K2), lambda i: (i, 0)),
                  pl.BlockSpec((K1, 4 * Kn), lambda i: (0, 0)),
                  pl.BlockSpec((K2, 4 * Kn), lambda i: (0, 0)),
                  pl.BlockSpec((1, 4 * Kn), lambda i: (0, 0)),
                  pl.BlockSpec((tm, Kn), lambda i: (i, 0))],
        out_specs=(pl.BlockSpec((tm, Kn), lambda i: (i, 0)),
                   pl.BlockSpec((tm, Kn), lambda i: (i, 0))),
        out_shape=(jax.ShapeDtypeStruct((Mp, Kn), jnp.bfloat16),   # hidden h
                   jax.ShapeDtypeStruct((Mp, Kn), jnp.float32)),   # cell c
        compiler_params=pltpu.CompilerParams(dimension_semantics=("parallel",)),
    )(a_x, a_h, w_x, w_h, bias, c_m)

    h = (h_out if Mp == M else h_out[:M]).reshape(B, H, W, Kn)
    c = (c_out if Mp == M else c_out[:M]).reshape(B, H, W, Kn)
    return h, c


# --------------------------------------------------------------- deformable conv 2d
def _deform_sample(src, offsets, modulator, ksize, pad):
    """Modulated bilinear sampling (torchvision deform_conv2d semantics).
    src bf16 (B,H,W,Cs); offsets/modulator f32.  Returns (B*H*W, kk*Cs) bf16."""
    B, H, W, Cs = src.shape
    kk = ksize * ksize
    hs = jnp.arange(H, dtype=jnp.float32)
    ws = jnp.arange(W, dtype=jnp.float32)
    src_flat = src.reshape(B, H * W, Cs)
    cols = []
    # TODO(synk): the per-pixel data-dependent gather has no clean Pallas TPU form;
    # it stays in XLA (bf16 source, modulator folded into the corner weights) and
    # only the reduction matmul runs on the MXU.
    for k in range(kk):
        i, j = k // ksize, k % ksize
        py = hs[None, :, None] + float(i - pad) + offsets[..., 2 * k]
        px = ws[None, None, :] + float(j - pad) + offsets[..., 2 * k + 1]
        y0 = jnp.floor(py)
        x0 = jnp.floor(px)
        wy1 = py - y0
        wx1 = px - x0
        wy0 = 1.0 - wy1
        wx0 = 1.0 - wx1
        mod = modulator[..., k]

        def corner(yy, xx, wgt):
            valid = (yy >= 0) & (yy <= H - 1) & (xx >= 0) & (xx <= W - 1)
            yc = jnp.clip(yy, 0, H - 1).astype(jnp.int32)
            xc = jnp.clip(xx, 0, W - 1).astype(jnp.int32)
            idx = (yc * W + xc).reshape(B, H * W, 1)
            g = jnp.take_along_axis(
                src_flat, jnp.broadcast_to(idx, (B, H * W, Cs)), axis=1)
            w_eff = (wgt * mod * valid.astype(jnp.float32)).astype(src.dtype)
            return g.reshape(B, H, W, Cs) * w_eff[..., None]

        v = (corner(y0, x0, wy0 * wx0) + corner(y0, x0 + 1.0, wy0 * wx1)
             + corner(y0 + 1.0, x0, wy1 * wx0) + corner(y0 + 1.0, x0 + 1.0, wy1 * wx1))
        cols.append(v)
    return jnp.concatenate(cols, axis=-1).reshape(B * H * W, kk * Cs)


def deformable_conv2d_nhwc(feat, lr, lr_cols, p, ksize, pad):
    """DCNv2-style deformable conv on cat(feat, lr).  Offset+modulator conv is a
    2-operand matmul (per-layer feat cols + hoisted lr cols) with the split and
    2*sigmoid fused in the epilogue; the regular conv is a Pallas matmul over the
    sampled columns."""
    B, H, W, Kn = feat.shape
    kk = ksize * ksize
    feat_cols, _, _ = _im2col_nhwc(feat, ksize, ksize, pad, pad)

    w_om_f, w_om_l = _split_weight_mats(p['om_w'], Kn)
    om = pallas_conv_matmul([feat_cols, lr_cols], [w_om_f, w_om_l], p['om_b'],
                            jnp.float32,
                            epilogue=_make_offset_mod_epilogue(2 * kk))
    om = om.reshape(B, H, W, 3 * kk)
    offsets = om[..., :2 * kk]          # f32 (floor-sensitive, keep full precision)
    modulator = om[..., 2 * kk:]        # 2*sigmoid already applied in-kernel

    src = jnp.concatenate([feat, lr], axis=-1)                   # bf16 (B,H,W,Kn+C)
    cols = _deform_sample(src, offsets, modulator, ksize, pad)   # bf16 (M, kk*(Kn+C))

    out = pallas_conv_matmul([cols], [_weight_to_mat(p['reg_w'])], p['reg_b'],
                             jnp.bfloat16)
    return out.reshape(B, H, W, -1)


# --------------------------------------------------------------------- pixel shuffle
def pixel_shuffle_nhwc(x, scale):
    B, H, W, Crr = x.shape
    C = Crr // (scale * scale)
    x = x.reshape(B, H, W, C, scale, scale)
    x = x.transpose(0, 1, 4, 2, 5, 3)
    return x.reshape(B, H * scale, W * scale, C)


# ------------------------------------------------------------------- full forward
@functools.partial(jax.jit, static_argnums=(2, 3, 4, 5))
def mduvsr_forward(X, params, num_channels, num_kernels, ksize, scale):
    pad = (ksize - 1) // 2
    B, C, H, W = X.shape
    Kn = num_kernels

    x = jnp.transpose(X, (0, 2, 3, 1))              # single NCHW->NHWC transpose
    lr = x.astype(jnp.bfloat16)                     # bf16 activations (cast-then-pad)
    # lr im2col hoisted once; reused by the ConvLSTM, 6 om convs and the final conv.
    lr_cols, _, _ = _im2col_nhwc(lr, ksize, ksize, pad, pad)

    h0 = jnp.zeros((B, H, W, Kn), jnp.bfloat16)     # state=None
    c0 = jnp.zeros((B, H, W, Kn), jnp.float32)

    # 1) ConvLSTM cell (gates matmul at natural 4*Kn width, fused nonlinearities)
    hidden, cell = convlstm_cell_nhwc(lr_cols, h0, c0, params['lstm_w'],
                                      params['lstm_b'], pad, C, Kn, ksize, B, H, W)

    # 2) six deformable convs on cat(feat, lr)
    feat = hidden
    for dp in params['deform']:
        feat = deformable_conv2d_nhwc(feat, lr, lr_cols, dp, ksize, pad)

    # 3) final conv (out = C*scale^2) with fused clamp(0,255) epilogue
    feat_cols, _, _ = _im2col_nhwc(feat, ksize, ksize, pad, pad)
    w_f, w_l = _split_weight_mats(params['conv_w'], Kn)
    y = pallas_conv_matmul([feat_cols, lr_cols], [w_f, w_l], params['conv_b'],
                           jnp.float32, epilogue=_clamp_epilogue)
    y = y.reshape(B, H, W, C * scale * scale)

    # 4) pixel shuffle, back to NCHW
    out = pixel_shuffle_nhwc(y, scale)
    output = jnp.transpose(out, (0, 3, 1, 2))
    hidden_nchw = jnp.transpose(hidden.astype(jnp.float32), (0, 3, 1, 2))
    cell_nchw = jnp.transpose(cell, (0, 3, 1, 2))
    return output, (hidden_nchw, cell_nchw)


# ---------------------------------------------------------------- parameter init
def init_params(key, num_channels, num_kernels, ksize, scale):
    keys = iter(jax.random.split(key, 64))

    def rand(shape, sc=0.02):
        return jax.random.normal(next(keys), shape, jnp.float32) * sc

    C, Kn, ks = num_channels, num_kernels, ksize
    kk = ks * ks
    p = {}
    # ConvLSTMCell gates conv: in = C + Kn (x first, h second), out = 4*Kn
    p['lstm_w'] = rand((4 * Kn, C + Kn, ks, ks))
    p['lstm_b'] = rand((4 * Kn,), 0.01)
    # 6x DeformableConv2d (in = Kn + C, out = Kn); offset+modulator convs fused.
    deform = []
    for _ in range(6):
        cin = Kn + C
        om_w = jnp.concatenate([rand((2 * kk, cin, ks, ks), 0.001),   # offsets
                                rand((kk, cin, ks, ks), 0.01)], 0)    # modulator
        deform.append(dict(
            om_w=om_w,
            om_b=jnp.zeros((3 * kk,), jnp.float32),
            reg_w=rand((Kn, cin, ks, ks), 0.05),
            reg_b=rand((Kn,), 0.01),
        ))
    p['deform'] = deform
    # final conv: in = Kn + C, out = C*scale^2 (feeds PixelShuffle)
    p['conv_w'] = rand((C * scale * scale, Kn + C, ks, ks), 0.05)
    p['conv_b'] = rand((C * scale * scale,), 0.01)
    return p


if __name__ == "__main__":
    B, C, Kn, ks, scale = 2, 4, 32, 3, 2
    H = W = 16
    key = jax.random.PRNGKey(0)
    kx, kp = jax.random.split(key)
    X = jax.random.uniform(kx, (B, C, H, W), jnp.float32) * 255.0
    params = init_params(kp, C, Kn, ks, scale)

    output, (hidden, cell) = mduvsr_forward(X, params, C, Kn, ks, scale)
    jax.block_until_ready((output, hidden, cell))

    assert output.shape == (B, C, H * scale, W * scale)
    assert hidden.shape == (B, Kn, H, W) and cell.shape == (B, Kn, H, W)
    assert float(jnp.min(output)) >= 0.0 and float(jnp.max(output)) <= 255.0
    assert bool(jnp.all(jnp.isfinite(output)))
    print("KERNEL_OK")
</pallas_src>

<mosaic_0001>
module attributes {stable_mosaic.version = 11 : i64} {
  func.func @_convlstm_kernel(%arg0: i32, %arg1: memref<256x36xbf16, #tpu.memory_space<vmem>>, %arg2: memref<256x288xbf16, #tpu.memory_space<vmem>>, %arg3: memref<36x128xbf16, #tpu.memory_space<vmem>>, %arg4: memref<288x128xbf16, #tpu.memory_space<vmem>>, %arg5: memref<1x128xf32, #tpu.memory_space<vmem>>, %arg6: memref<256x32xf32, #tpu.memory_space<vmem>>, %arg7: memref<256x32xbf16, #tpu.memory_space<vmem>>, %arg8: memref<256x32xf32, #tpu.memory_space<vmem>>) attributes {dimension_semantics = [#tpu.dimension_semantics<parallel>], iteration_bounds = array<i64: 2>, scalar_prefetch = 0 : i64, scratch_operands = 0 : i64, tpu.core_type = #tpu.core_type<tc>, window_params = [{transform_indices = @transform_0, window_bounds = array<i64: 256, 36>}, {transform_indices = @transform_1, window_bounds = array<i64: 256, 288>}, {pipeline_mode = #tpu.pipeline_mode<synchronous>, transform_indices = @transform_2, window_bounds = array<i64: 36, 128>}, {pipeline_mode = #tpu.pipeline_mode<synchronous>, transform_indices = @transform_3, window_bounds = array<i64: 288, 128>}, {pipeline_mode = #tpu.pipeline_mode<synchronous>, transform_indices = @transform_4, window_bounds = array<i64: 1, 128>}, {transform_indices = @transform_5, window_bounds = array<i64: 256, 32>}, {transform_indices = @transform_6, window_bounds = array<i64: 256, 32>}, {transform_indices = @transform_7, window_bounds = array<i64: 256, 32>}]} {
    %c0 = arith.constant 0 : index
    %c0_0 = arith.constant 0 : index
    %0 = vector.load %arg1[%c0, %c0_0] : memref<256x36xbf16, #tpu.memory_space<vmem>>, vector<256x36xbf16>
    %c0_1 = arith.constant 0 : index
    %c0_2 = arith.constant 0 : index
    %1 = vector.load %arg3[%c0_1, %c0_2] : memref<36x128xbf16, #tpu.memory_space<vmem>>, vector<36x128xbf16>
    %cst = arith.constant dense<0.000000e+00> : vector<256x128xf32>
    %2 = tpu.matmul %0, %1, %cst {dimension_numbers = #tpu.dot_dimension_numbers<[1], [0], [0], [1], [0, 0, 1, 1], [], []>} : vector<256x36xbf16>, vector<36x128xbf16>, vector<256x128xf32> -> vector<256x128xf32>
    %c0_3 = arith.constant 0 : index
    %c0_4 = arith.constant 0 : index
    %3 = vector.load %arg2[%c0_3, %c0_4] : memref<256x288xbf16, #tpu.memory_space<vmem>>, vector<256x288xbf16>
    %c0_5 = arith.constant 0 : index
    %c0_6 = arith.constant 0 : index
    %4 = vector.load %arg4[%c0_5, %c0_6] : memref<288x128xbf16, #tpu.memory_space<vmem>>, vector<288x128xbf16>
    %cst_7 = arith.constant dense<0.000000e+00> : vector<256x128xf32>
    %5 = tpu.matmul %3, %4, %cst_7 {dimension_numbers = #tpu.dot_dimension_numbers<[1], [0], [0], [1], [0, 0, 1, 1], [], []>} : vector<256x288xbf16>, vector<288x128xbf16>, vector<256x128xf32> -> vector<256x128xf32>
    %6 = arith.addf %2, %5 : vector<256x128xf32>
    %c0_8 = arith.constant 0 : index
    %c0_9 = arith.constant 0 : index
    %7 = vector.load %arg5[%c0_8, %c0_9] : memref<1x128xf32, #tpu.memory_space<vmem>>, vector<1x128xf32>
    %8 = vector.broadcast %7 : vector<1x128xf32> to vector<256x128xf32>
    %9 = arith.addf %6, %8 : vector<256x128xf32>
    %10 = vector.extract_strided_slice %9 {offsets = [0, 0], sizes = [256, 32], strides = [1, 1]} : vector<256x128xf32> to vector<256x32xf32>
    %11 = arith.negf %10 : vector<256x32xf32>
    %12 = math.exp %11 : vector<256x32xf32>
    %cst_10 = arith.constant 1.000000e+00 : f32
    %13 = vector.broadcast %cst_10 : f32 to vector<256x32xf32>
    %14 = arith.addf %13, %12 : vector<256x32xf32>
    %15 = arith.divf %13, %14 : vector<256x32xf32>
    %16 = vector.extract_strided_slice %9 {offsets = [0, 32], sizes = [256, 32], strides = [1, 1]} : vector<256x128xf32> to vector<256x32xf32>
    %17 = arith.negf %16 : vector<256x32xf32>
    %18 = math.exp %17 : vector<256x32xf32>
    %cst_11 = arith.constant 1.000000e+00 : f32
    %19 = vector.broadcast %cst_11 : f32 to vector<256x32xf32>
    %20 = arith.addf %19, %18 : vector<256x32xf32>
    %21 = arith.divf %19, %20 : vector<256x32xf32>
    %22 = vector.extract_strided_slice %9 {offsets = [0, 64], sizes = [256, 32], strides = [1, 1]} : vector<256x128xf32> to vector<256x32xf32>
    %23 = arith.negf %22 : vector<256x32xf32>
    %24 = math.exp %23 : vector<256x32xf32>
    %cst_12 = arith.constant 1.000000e+00 : f32
    %25 = vector.broadcast %cst_12 : f32 to vector<256x32xf32>
    %26 = arith.addf %25, %24 : vector<256x32xf32>
    %27 = arith.divf %25, %26 : vector<256x32xf32>
    %28 = vector.extract_strided_slice %9 {offsets = [0, 96], sizes = [256, 32], strides = [1, 1]} : vector<256x128xf32> to vector<256x32xf32>
    %29 = math.tanh %28 : vector<256x32xf32>
    %c0_13 = arith.constant 0 : index
    %c0_14 = arith.constant 0 : index
    %30 = vector.load %arg6[%c0_13, %c0_14] : memref<256x32xf32, #tpu.memory_space<vmem>>, vector<256x32xf32>
    %31 = arith.mulf %21, %30 : vector<256x32xf32>
    %32 = arith.mulf %15, %29 : vector<256x32xf32>
    %33 = arith.addf %31, %32 : vector<256x32xf32>
    %c0_15 = arith.constant 0 : index
    %c0_16 = arith.constant 0 : index
    %34 = vector.load %arg8[%c0_15, %c0_16] : memref<256x32xf32, #tpu.memory_space<vmem>>, vector<256x32xf32>
    tpu.vector_store %arg8[%c0_15, %c0_16], %33 {strides = array<i32>} : memref<256x32xf32, #tpu.memory_space<vmem>>, vector<256x32xf32>,
    %35 = math.tanh %33 : vector<256x32xf32>
    %36 = arith.mulf %27, %35 : vector<256x32xf32>
    %37 = arith.truncf %36 : vector<256x32xf32> to vector<256x32xbf16>
    %c0_17 = arith.constant 0 : index
    %c0_18 = arith.constant 0 : index
    %38 = vector.load %arg7[%c0_17, %c0_18] : memref<256x32xbf16, #tpu.memory_space<vmem>>, vector<256x32xbf16>
    tpu.vector_store %arg7[%c0_17, %c0_18], %37 {strides = array<i32>} : memref<256x32xbf16, #tpu.memory_space<vmem>>, vector<256x32xbf16>,
    return
  }
  func.func @transform_0(%arg0: i32) -> (i32, i32) {
    %c0_i32 = arith.constant 0 : i32
    %c0_i32_0 = arith.constant 0 : i32
    return %arg0, %c0_i32 : i32, i32
  }
  func.func @transform_1(%arg0: i32) -> (i32, i32) {
    %c0_i32 = arith.constant 0 : i32
    %c0_i32_0 = arith.constant 0 : i32
    return %arg0, %c0_i32 : i32, i32
  }
  func.func @transform_2(%arg0: i32) -> (i32, i32) {
    %c0_i32 = arith.constant 0 : i32
    %c0_i32_0 = arith.constant 0 : i32
    %c0_i32_1 = arith.constant 0 : i32
    return %c0_i32, %c0_i32_0 : i32, i32
  }
  func.func @transform_3(%arg0: i32) -> (i32, i32) {
    %c0_i32 = arith.constant 0 : i32
    %c0_i32_0 = arith.constant 0 : i32
    %c0_i32_1 = arith.constant 0 : i32
    return %c0_i32, %c0_i32_0 : i32, i32
  }
  func.func @transform_4(%arg0: i32) -> (i32, i32) {
    %c0_i32 = arith.constant 0 : i32
    %c0_i32_0 = arith.constant 0 : i32
    %c0_i32_1 = arith.constant 0 : i32
    return %c0_i32, %c0_i32_0 : i32, i32
  }
  func.func @transform_5(%arg0: i32) -> (i32, i32) {
    %c0_i32 = arith.constant 0 : i32
    %c0_i32_0 = arith.constant 0 : i32
    return %arg0, %c0_i32 : i32, i32
  }
  func.func @transform_6(%arg0: i32) -> (i32, i32) {
    %c0_i32 = arith.constant 0 : i32
    %c0_i32_0 = arith.constant 0 : i32
    return %arg0, %c0_i32 : i32, i32
  }
  func.func @transform_7(%arg0: i32) -> (i32, i32) {
    %c0_i32 = arith.constant 0 : i32
    %c0_i32_0 = arith.constant 0 : i32
    return %arg0, %c0_i32 : i32, i32
  }
}

module attributes {stable_mosaic.version = 11 : i64} {
  func.func @_matmul2_kernel(%arg0: i32, %arg1: memref<256x288xbf16, #tpu.memory_space<vmem>>, %arg2: memref<256x36xbf16, #tpu.memory_space<vmem>>, %arg3: memref<288x27xbf16, #tpu.memory_space<vmem>>, %arg4: memref<36x27xbf16, #tpu.memory_space<vmem>>, %arg5: memref<1x27xf32, #tpu.memory_space<vmem>>, %arg6: memref<256x27xf32, #tpu.memory_space<vmem>>) attributes {dimension_semantics = [#tpu.dimension_semantics<parallel>], iteration_bounds = array<i64: 2>, scalar_prefetch = 0 : i64, scratch_operands = 0 : i64, tpu.core_type = #tpu.core_type<tc>, window_params = [{transform_indices = @transform_0, window_bounds = array<i64: 256, 288>}, {transform_indices = @transform_1, window_bounds = array<i64: 256, 36>}, {pipeline_mode = #tpu.pipeline_mode<synchronous>, transform_indices = @transform_2, window_bounds = array<i64: 288, 27>}, {pipeline_mode = #tpu.pipeline_mode<synchronous>, transform_indices = @transform_3, window_bounds = array<i64: 36, 27>}, {pipeline_mode = #tpu.pipeline_mode<synchronous>, transform_indices = @transform_4, window_bounds = array<i64: 1, 27>}, {transform_indices = @transform_5, window_bounds = array<i64: 256, 27>}]} {
    %c0 = arith.constant 0 : index
    %c0_0 = arith.constant 0 : index
    %0 = vector.load %arg1[%c0, %c0_0] : memref<256x288xbf16, #tpu.memory_space<vmem>>, vector<256x288xbf16>
    %c0_1 = arith.constant 0 : index
    %c0_2 = arith.constant 0 : index
    %1 = vector.load %arg3[%c0_1, %c0_2] : memref<288x27xbf16, #tpu.memory_space<vmem>>, vector<288x27xbf16>
    %cst = arith.constant dense<0.000000e+00> : vector<256x27xf32>
    %2 = tpu.matmul %0, %1, %cst {dimension_numbers = #tpu.dot_dimension_numbers<[1], [0], [0], [1], [0, 0, 1, 1], [], []>} : vector<256x288xbf16>, vector<288x27xbf16>, vector<256x27xf32> -> vector<256x27xf32>
    %c0_3 = arith.constant 0 : index
    %c0_4 = arith.constant 0 : index
    %3 = vector.load %arg2[%c0_3, %c0_4] : memref<256x36xbf16, #tpu.memory_space<vmem>>, vector<256x36xbf16>
    %c0_5 = arith.constant 0 : index
    %c0_6 = arith.constant 0 : index
    %4 = vector.load %arg4[%c0_5, %c0_6] : memref<36x27xbf16, #tpu.memory_space<vmem>>, vector<36x27xbf16>
    %cst_7 = arith.constant dense<0.000000e+00> : vector<256x27xf32>
    %5 = tpu.matmul %3, %4, %cst_7 {dimension_numbers = #tpu.dot_dimension_numbers<[1], [0], [0], [1], [0, 0, 1, 1], [], []>} : vector<256x36xbf16>, vector<36x27xbf16>, vector<256x27xf32> -> vector<256x27xf32>
    %6 = arith.addf %2, %5 : vector<256x27xf32>
    %c0_8 = arith.constant 0 : index
    %c0_9 = arith.constant 0 : index
    %7 = vector.load %arg5[%c0_8, %c0_9] : memref<1x27xf32, #tpu.memory_space<vmem>>, vector<1x27xf32>
    %8 = vector.broadcast %7 : vector<1x27xf32> to vector<256x27xf32>
    %9 = arith.addf %6, %8 : vector<256x27xf32>
    %10 = tpu.iota {dimensions = array<i32: 1>} : vector<256x27xi32>
    %c18_i32 = arith.constant 18 : i32
    %11 = vector.broadcast %c18_i32 : i32 to vector<256x27xi32>
    %12 = arith.cmpi sge, %10, %11 : vector<256x27xi32>
    %13 = arith.negf %9 : vector<256x27xf32>
    %14 = math.exp %13 : vector<256x27xf32>
    %cst_10 = arith.constant 1.000000e+00 : f32
    %15 = vector.broadcast %cst_10 : f32 to vector<256x27xf32>
    %16 = arith.addf %15, %14 : vector<256x27xf32>
    %17 = arith.divf %15, %16 : vector<256x27xf32>
    %cst_11 = arith.constant 2.000000e+00 : f32
    %18 = vector.broadcast %cst_11 : f32 to vector<256x27xf32>
    %19 = arith.mulf %18, %17 : vector<256x27xf32>
    %20 = arith.select %12, %19, %9 : vector<256x27xi1>, vector<256x27xf32>
    %c0_12 = arith.constant 0 : index
    %c0_13 = arith.constant 0 : index
    %21 = vector.load %arg6[%c0_12, %c0_13] : memref<256x27xf32, #tpu.memory_space<vmem>>, vector<256x27xf32>
    tpu.vector_store %arg6[%c0_12, %c0_13], %20 {strides = array<i32>} : memref<256x27xf32, #tpu.memory_space<vmem>>, vector<256x27xf32>,
    return
  }
  func.func @transform_0(%arg0: i32) -> (i32, i32) {
    %c0_i32 = arith.constant 0 : i32
    %c0_i32_0 = arith.constant 0 : i32
    return %arg0, %c0_i32 : i32, i32
  }
  func.func @transform_1(%arg0: i32) -> (i32, i32) {
    %c0_i32 = arith.constant 0 : i32
    %c0_i32_0 = arith.constant 0 : i32
    return %arg0, %c0_i32 : i32, i32
  }
  func.func @transform_2(%arg0: i32) -> (i32, i32) {
    %c0_i32 = arith.constant 0 : i32
    %c0_i32_0 = arith.constant 0 : i32
    %c0_i32_1 = arith.constant 0 : i32
    return %c0_i32, %c0_i32_0 : i32, i32
  }
  func.func @transform_3(%arg0: i32) -> (i32, i32) {
    %c0_i32 = arith.constant 0 : i32
    %c0_i32_0 = arith.constant 0 : i32
    %c0_i32_1 = arith.constant 0 : i32
    return %c0_i32, %c0_i32_0 : i32, i32
  }
  func.func @transform_4(%arg0: i32) -> (i32, i32) {
    %c0_i32 = arith.constant 0 : i32
    %c0_i32_0 = arith.constant 0 : i32
    %c0_i32_1 = arith.constant 0 : i32
    return %c0_i32, %c0_i32_0 : i32, i32
  }
  func.func @transform_5(%arg0: i32) -> (i32, i32) {
    %c0_i32 = arith.constant 0 : i32
    %c0_i32_0 = arith.constant 0 : i32
    return %arg0, %c0_i32 : i32, i32
  }
}

module attributes {stable_mosaic.version = 11 : i64} {
  func.func @_matmul1_kernel(%arg0: i32, %arg1: memref<256x324xbf16, #tpu.memory_space<vmem>>, %arg2: memref<324x32xbf16, #tpu.memory_space<vmem>>, %arg3: memref<1x32xf32, #tpu.memory_space<vmem>>, %arg4: memref<256x32xbf16, #tpu.memory_space<vmem>>) attributes {dimension_semantics = [#tpu.dimension_semantics<parallel>], iteration_bounds = array<i64: 2>, scalar_prefetch = 0 : i64, scratch_operands = 0 : i64, tpu.core_type = #tpu.core_type<tc>, window_params = [{transform_indices = @transform_0, window_bounds = array<i64: 256, 324>}, {pipeline_mode = #tpu.pipeline_mode<synchronous>, transform_indices = @transform_1, window_bounds = array<i64: 324, 32>}, {pipeline_mode = #tpu.pipeline_mode<synchronous>, transform_indices = @transform_2, window_bounds = array<i64: 1, 32>}, {transform_indices = @transform_3, window_bounds = array<i64: 256, 32>}]} {
    %c0 = arith.constant 0 : index
    %c0_0 = arith.constant 0 : index
    %0 = vector.load %arg1[%c0, %c0_0] : memref<256x324xbf16, #tpu.memory_space<vmem>>, vector<256x324xbf16>
    %c0_1 = arith.constant 0 : index
    %c0_2 = arith.constant 0 : index
    %1 = vector.load %arg2[%c0_1, %c0_2] : memref<324x32xbf16, #tpu.memory_space<vmem>>, vector<324x32xbf16>
    %cst = arith.constant dense<0.000000e+00> : vector<256x32xf32>
    %2 = tpu.matmul %0, %1, %cst {dimension_numbers = #tpu.dot_dimension_numbers<[1], [0], [0], [1], [0, 0, 1, 1], [], []>} : vector<256x324xbf16>, vector<324x32xbf16>, vector<256x32xf32> -> vector<256x32xf32>
    %c0_3 = arith.constant 0 : index
    %c0_4 = arith.constant 0 : index
    %3 = vector.load %arg3[%c0_3, %c0_4] : memref<1x32xf32, #tpu.memory_space<vmem>>, vector<1x32xf32>
    %4 = vector.broadcast %3 : vector<1x32xf32> to vector<256x32xf32>
    %5 = arith.addf %2, %4 : vector<256x32xf32>
    %6 = arith.truncf %5 : vector<256x32xf32> to vector<256x32xbf16>
    %c0_5 = arith.constant 0 : index
    %c0_6 = arith.constant 0 : index
    %7 = vector.load %arg4[%c0_5, %c0_6] : memref<256x32xbf16, #tpu.memory_space<vmem>>, vector<256x32xbf16>
    tpu.vector_store %arg4[%c0_5, %c0_6], %6 {strides = array<i32>} : memref<256x32xbf16, #tpu.memory_space<vmem>>, vector<256x32xbf16>,
    return
  }
  func.func @transform_0(%arg0: i32) -> (i32, i32) {
    %c0_i32 = arith.constant 0 : i32
    %c0_i32_0 = arith.constant 0 : i32
    return %arg0, %c0_i32 : i32, i32
  }
  func.func @transform_1(%arg0: i32) -> (i32, i32) {
    %c0_i32 = arith.constant 0 : i32
    %c0_i32_0 = arith.constant 0 : i32
    %c0_i32_1 = arith.constant 0 : i32
    return %c0_i32, %c0_i32_0 : i32, i32
  }
  func.func @transform_2(%arg0: i32) -> (i32, i32) {
    %c0_i32 = arith.constant 0 : i32
    %c0_i32_0 = arith.constant 0 : i32
    %c0_i32_1 = arith.constant 0 : i32
    return %c0_i32, %c0_i32_0 : i32, i32
  }
  func.func @transform_3(%arg0: i32) -> (i32, i32) {
    %c0_i32 = arith.constant 0 : i32
    %c0_i32_0 = arith.constant 0 : i32
    return %arg0, %c0_i32 : i32, i32
  }
}

module attributes {stable_mosaic.version = 11 : i64} {
  func.func @_matmul2_kernel(%arg0: i32, %arg1: memref<256x288xbf16, #tpu.memory_space<vmem>>, %arg2: memref<256x36xbf16, #tpu.memory_space<vmem>>, %arg3: memref<288x16xbf16, #tpu.memory_space<vmem>>, %arg4: memref<36x16xbf16, #tpu.memory_space<vmem>>, %arg5: memref<1x16xf32, #tpu.memory_space<vmem>>, %arg6: memref<256x16xf32, #tpu.memory_space<vmem>>) attributes {dimension_semantics = [#tpu.dimension_semantics<parallel>], iteration_bounds = array<i64: 2>, scalar_prefetch = 0 : i64, scratch_operands = 0 : i64, tpu.core_type = #tpu.core_type<tc>, window_params = [{transform_indices = @transform_0, window_bounds = array<i64: 256, 288>}, {transform_indices = @transform_1, window_bounds = array<i64: 256, 36>}, {pipeline_mode = #tpu.pipeline_mode<synchronous>, transform_indices = @transform_2, window_bounds = array<i64: 288, 16>}, {pipeline_mode = #tpu.pipeline_mode<synchronous>, transform_indices = @transform_3, window_bounds = array<i64: 36, 16>}, {pipeline_mode = #tpu.pipeline_mode<synchronous>, transform_indices = @transform_4, window_bounds = array<i64: 1, 16>}, {transform_indices = @transform_5, window_bounds = array<i64: 256, 16>}]} {
    %c0 = arith.constant 0 : index
    %c0_0 = arith.constant 0 : index
    %0 = vector.load %arg1[%c0, %c0_0] : memref<256x288xbf16, #tpu.memory_space<vmem>>, vector<256x288xbf16>
    %c0_1 = arith.constant 0 : index
    %c0_2 = arith.constant 0 : index
    %1 = vector.load %arg3[%c0_1, %c0_2] : memref<288x16xbf16, #tpu.memory_space<vmem>>, vector<288x16xbf16>
    %cst = arith.constant dense<0.000000e+00> : vector<256x16xf32>
    %2 = tpu.matmul %0, %1, %cst {dimension_numbers = #tpu.dot_dimension_numbers<[1], [0], [0], [1], [0, 0, 1, 1], [], []>} : vector<256x288xbf16>, vector<288x16xbf16>, vector<256x16xf32> -> vector<256x16xf32>
    %c0_3 = arith.constant 0 : index
    %c0_4 = arith.constant 0 : index
    %3 = vector.load %arg2[%c0_3, %c0_4] : memref<256x36xbf16, #tpu.memory_space<vmem>>, vector<256x36xbf16>
    %c0_5 = arith.constant 0 : index
    %c0_6 = arith.constant 0 : index
    %4 = vector.load %arg4[%c0_5, %c0_6] : memref<36x16xbf16, #tpu.memory_space<vmem>>, vector<36x16xbf16>
    %cst_7 = arith.constant dense<0.000000e+00> : vector<256x16xf32>
    %5 = tpu.matmul %3, %4, %cst_7 {dimension_numbers = #tpu.dot_dimension_numbers<[1], [0], [0], [1], [0, 0, 1, 1], [], []>} : vector<256x36xbf16>, vector<36x16xbf16>, vector<256x16xf32> -> vector<256x16xf32>
    %6 = arith.addf %2, %5 : vector<256x16xf32>
    %c0_8 = arith.constant 0 : index
    %c0_9 = arith.constant 0 : index
    %7 = vector.load %arg5[%c0_8, %c0_9] : memref<1x16xf32, #tpu.memory_space<vmem>>, vector<1x16xf32>
    %8 = vector.broadcast %7 : vector<1x16xf32> to vector<256x16xf32>
    %9 = arith.addf %6, %8 : vector<256x16xf32>
    %cst_10 = arith.constant 0.000000e+00 : f32
    %cst_11 = arith.constant 2.550000e+02 : f32
    %10 = vector.broadcast %cst_10 : f32 to vector<256x16xf32>
    %11 = arith.maximumf %10, %9 : vector<256x16xf32>
    %12 = vector.broadcast %cst_11 : f32 to vector<256x16xf32>
    %13 = arith.minimumf %12, %11 : vector<256x16xf32>
    %c0_12 = arith.constant 0 : index
    %c0_13 = arith.constant 0 : index
    %14 = vector.load %arg6[%c0_12, %c0_13] : memref<256x16xf32, #tpu.memory_space<vmem>>, vector<256x16xf32>
    tpu.vector_store %arg6[%c0_12, %c0_13], %13 {strides = array<i32>} : memref<256x16xf32, #tpu.memory_space<vmem>>, vector<256x16xf32>,
    return
  }
  func.func @transform_0(%arg0: i32) -> (i32, i32) {
    %c0_i32 = arith.constant 0 : i32
    %c0_i32_0 = arith.constant 0 : i32
    return %arg0, %c0_i32 : i32, i32
  }
  func.func @transform_1(%arg0: i32) -> (i32, i32) {
    %c0_i32 = arith.constant 0 : i32
    %c0_i32_0 = arith.constant 0 : i32
    return %arg0, %c0_i32 : i32, i32
  }
  func.func @transform_2(%arg0: i32) -> (i32, i32) {
    %c0_i32 = arith.constant 0 : i32
    %c0_i32_0 = arith.constant 0 : i32
    %c0_i32_1 = arith.constant 0 : i32
    return %c0_i32, %c0_i32_0 : i32, i32
  }
  func.func @transform_3(%arg0: i32) -> (i32, i32) {
    %c0_i32 = arith.constant 0 : i32
    %c0_i32_0 = arith.constant 0 : i32
    %c0_i32_1 = arith.constant 0 : i32
    return %c0_i32, %c0_i32_0 : i32, i32
  }
  func.func @transform_4(%arg0: i32) -> (i32, i32) {
    %c0_i32 = arith.constant 0 : i32
    %c0_i32_0 = arith.constant 0 : i32
    %c0_i32_1 = arith.constant 0 : i32
    return %c0_i32, %c0_i32_0 : i32, i32
  }
  func.func @transform_5(%arg0: i32) -> (i32, i32) {
    %c0_i32 = arith.constant 0 : i32
    %c0_i32_0 = arith.constant 0 : i32
    return %arg0, %c0_i32 : i32, i32
  }
}

</mosaic_0001>

<llo_original>
// kernel: mduvsr_forward.14
$region0: #{mduvsr_forward.14}
  #allocation0 [shape = 'u32[]', space=smem, size = 0x4, offset = 0x4, fixed_abs, tag = 'smem constant byte address 0x4 - core index']
  #allocation1 [shape = 'u32[144,128]{1,0:T(1,128)}', space=vmem, size = 0x12000, scoped, tag = 'internal scratch']
  %s0 = inlined_call_operand.vmem [shape: bf16[512,36], index: 0, kind: input, shape index: {}]
  %s1 = inlined_call_operand.vmem [shape: bf16[512,288], index: 1, kind: input, shape index: {}]
  %s2 = inlined_call_operand.vmem [shape: bf16[36,128], index: 2, kind: input, shape index: {}]
  %s3 = inlined_call_operand.vmem [shape: bf16[288,128], index: 3, kind: input, shape index: {}]
  %s4 = inlined_call_operand.vmem [shape: f32[1,128], index: 4, kind: input, shape index: {}]
  %s5 = inlined_call_operand.vmem [shape: f32[512,32], index: 5, kind: input, shape index: {}]
  %s6 = inlined_call_operand.vmem [shape: bf16[512,32], index: 6, kind: output, shape index: {0}]
  %s7 = inlined_call_operand.hbm [shape: f32[512,32], index: 7, kind: output, shape index: {1}]
  %8 = xla_tuple %s6, %s7
  %s9 = sld [smem:[#allocation0]]
  $region65: #{mduvsr_forward.14} parent=0
    _
  %s11 = ssub.s32 1, %s9
  %s12 = scalar_select 0, %s11, %s9
  $region1: #{mduvsr_forward.14} parent=0
    #allocation2 [shape = 'u8[262144]{0}', space=vmem, size = 0x40000, scoped, tag = 'output window, operand 1']
    #allocation3 [shape = 's32[2]{0}', space=sflag, size = 0x8, scoped, tag = 'scoped memory for mduvsr_forward.14']
    %13 = vsyncpa [#allocation3], 0
    %s14 = scalar_lea.sflag [#allocation3], 1
    %15 = vsyncpa %s14, 0
    loop: start=0, step=1, limit=4
    $region2: #{mduvsr_forward.14} parent=1 // loop_pre_header
      _
    $region3: #{mduvsr_forward.14} parent=1 // loop_header
      %s17 = sphi 0, %s21
      %p18 = scmp.ge.s32.totalorder %s17, 4
      %s27 = sphi 0, %s29
      %s30 = sphi 0, %s27
      %s31 = sphi 0, %s30
      %s47 = sphi 0, %s31
      %s53 = sphi 0, %s55
      %s56 = sphi 0, %s53
      %s57 = sphi 0, %s56
      %s73 = sphi 0, %s57
      %s77 = sphi 0, %s77
      %s79 = sphi 0, %s77
      %s80 = sphi 0, %s79
      %s94 = sphi 0, %s80
      %s98 = sphi 0, %s98
      %s100 = sphi 0, %s98
      %s101 = sphi 0, %s100
      %s115 = sphi 0, %s101
      %s119 = sphi 0, %s119
      %s121 = sphi 0, %s119
      %s122 = sphi 0, %s121
      %s136 = sphi 0, %s122
      %s142 = sphi 0, %s144
      %s145 = sphi 0, %s142
      %s146 = sphi 0, %s145
      %s162 = sphi 0, %s146
      %s168 = sphi 0, %s170
      %s171 = sphi 0, %s168
      %s172 = sphi 0, %s171
      %s188 = sphi 0, %s172
      %s194 = sphi 0, %s196
      %s197 = sphi 0, %s194
      %s198 = sphi 0, %s197
      %s214 = sphi 0, %s198
    $region4: #{mduvsr_forward.14} parent=1 // loop_header_branch
      %20 = sbr.rel (%p18) target = $region8
    $region5: #{mduvsr_forward.14} parent=1 // loop_body
      %s22 = ssub.s32 %s17, 1
      %s23 = ssub.s32 %s17, 2
      %s24 = sadd.s32 %s17, 1
      %s25 = ssub.s32 %s17, %s24
      %p26 = scmp.eq.s32.totalorder %s25, 0
      %s28 = sadd.s32 %s27, 1
      %s29 = scalar_select %p26, %s27, %s28
      %p32 = pneg %p26
      %p33 = scmp.eq.s32.totalorder %s17, 1
      %p34 = por %p32, %p33
      %p35 = scmp.ne.s32.totalorder %s27, %s30
      %p36 = scmp.eq.s32.totalorder %s17, 0
      %p37 = por %p35, %p36
      %p38 = scmp.ne.s32.totalorder %s27, %s30
      %p39 = scmp.eq.s32.totalorder %s22, 1
      %p40 = por %p38, %p39
      %p41 = scmp.ne.s32.totalorder %s30, %s31
      %p42 = scmp.eq.s32.totalorder %s22, 0
      %p43 = por %p41, %p42
      %p44 = scmp.ne.s32.totalorder %s30, %s31
      %p45 = scmp.eq.s32.totalorder %s23, 1
      %p46 = por %p44, %p45
      %p48 = scmp.ne.s32.totalorder %s31, %s47
      %p49 = scmp.eq.s32.totalorder %s23, 0
      %p50 = por %p48, %p49
      %s51 = ssub.s32 %s17, %s24
      %p52 = scmp.eq.s32.totalorder %s51, 0
      %s54 = sadd.s32 %s53, 1
      %s55 = scalar_select %p52, %s53, %s54
      %p58 = pneg %p52
      %p59 = scmp.eq.s32.totalorder %s17, 1
      %p60 = por %p58, %p59
      %p61 = scmp.ne.s32.totalorder %s53, %s56
      %p62 = scmp.eq.s32.totalorder %s17, 0
      %p63 = por %p61, %p62
      %p64 = scmp.ne.s32.totalorder %s53, %s56
      %p65 = scmp.eq.s32.totalorder %s22, 1
      %p66 = por %p64, %p65
      %p67 = scmp.ne.s32.totalorder %s56, %s57
      %p68 = scmp.eq.s32.totalorder %s22, 0
      %p69 = por %p67, %p68
      %p70 = scmp.ne.s32.totalorder %s56, %s57
      %p71 = scmp.eq.s32.totalorder %s23, 1
      %p72 = por %p70, %p71
      %p74 = scmp.ne.s32.totalorder %s57, %s73
      %p75 = scmp.eq.s32.totalorder %s23, 0
      %p76 = por %p74, %p75
      %s78 = sadd.s32 %s77, 1
      %p81 = scmp.eq.s32.totalorder %s17, 1
      %p82 = scmp.ne.s32.totalorder %s77, %s79
      %p83 = scmp.eq.s32.totalorder %s17, 0
      %p84 = por %p82, %p83
      %p85 = scmp.ne.s32.totalorder %s77, %s79
      %p86 = scmp.eq.s32.totalorder %s22, 1
      %p87 = por %p85, %p86
      %p88 = scmp.ne.s32.totalorder %s79, %s80
      %p89 = scmp.eq.s32.totalorder %s22, 0
      %p90 = por %p88, %p89
      %p91 = scmp.ne.s32.totalorder %s79, %s80
      %p92 = scmp.eq.s32.totalorder %s23, 1
      %p93 = por %p91, %p92
      %p95 = scmp.ne.s32.totalorder %s80, %s94
      %p96 = scmp.eq.s32.totalorder %s23, 0
      %p97 = por %p95, %p96
      %s99 = sadd.s32 %s98, 1
      %p102 = scmp.eq.s32.totalorder %s17, 1
      %p103 = scmp.ne.s32.totalorder %s98, %s100
      %p104 = scmp.eq.s32.totalorder %s17, 0
      %p105 = por %p103, %p104
      %p106 = scmp.ne.s32.totalorder %s98, %s100
      %p107 = scmp.eq.s32.totalorder %s22, 1
      %p108 = por %p106, %p107
      %p109 = scmp.ne.s32.totalorder %s100, %s101
      %p110 = scmp.eq.s32.totalorder %s22, 0
      %p111 = por %p109, %p110
      %p112 = scmp.ne.s32.totalorder %s100, %s101
      %p113 = scmp.eq.s32.totalorder %s23, 1
      %p114 = por %p112, %p113
      %p116 = scmp.ne.s32.totalorder %s101, %s115
      %p117 = scmp.eq.s32.totalorder %s23, 0
      %p118 = por %p116, %p117
      %s120 = sadd.s32 %s119, 1
      %p123 = scmp.eq.s32.totalorder %s17, 1
      %p124 = scmp.ne.s32.totalorder %s119, %s121
      %p125 = scmp.eq.s32.totalorder %s17, 0
      %p126 = por %p124, %p125
      %p127 = scmp.ne.s32.totalorder %s119, %s121
      %p128 = scmp.eq.s32.totalorder %s22, 1
      %p129 = por %p127, %p128
      %p130 = scmp.ne.s32.totalorder %s121, %s122
      %p131 = scmp.eq.s32.totalorder %s22, 0
      %p132 = por %p130, %p131
      %p133 = scmp.ne.s32.totalorder %s121, %s122
      %p134 = scmp.eq.s32.totalorder %s23, 1
      %p135 = por %p133, %p134
      %p137 = scmp.ne.s32.totalorder %s122, %s136
      %p138 = scmp.eq.s32.totalorder %s23, 0
      %p139 = por %p137, %p138
      %s140 = ssub.s32 %s17, %s24
      %p141 = scmp.eq.s32.totalorder %s140, 0
      %s143 = sadd.s32 %s142, 1
      %s144 = scalar_select %p141, %s142, %s143
      %p147 = pneg %p141
      %p148 = scmp.eq.s32.totalorder %s17, 1
      %p149 = por %p147, %p148
      %p150 = scmp.ne.s32.totalorder %s142, %s145
      %p151 = scmp.eq.s32.totalorder %s17, 0
      %p152 = por %p150, %p151
      %p153 = scmp.ne.s32.totalorder %s142, %s145
      %p154 = scmp.eq.s32.totalorder %s22, 1
      %p155 = por %p153, %p154
      %p156 = scmp.ne.s32.totalorder %s145, %s146
      %p157 = scmp.eq.s32.totalorder %s22, 0
      %p158 = por %p156, %p157
      %p159 = scmp.ne.s32.totalorder %s145, %s146
      %p160 = scmp.eq.s32.totalorder %s23, 1
      %p161 = por %p159, %p160
      %p163 = scmp.ne.s32.totalorder %s146, %s162
      %p164 = scmp.eq.s32.totalorder %s23, 0
      %p165 = por %p163, %p164
      %s166 = ssub.s32 %s17, %s24
      %p167 = scmp.eq.s32.totalorder %s166, 0
      %s169 = sadd.s32 %s168, 1
      %s170 = scalar_select %p167, %s168, %s169
      %p173 = pneg %p167
      %p174 = scmp.eq.s32.totalorder %s17, 1
      %p175 = por %p173, %p174
      %p176 = scmp.ne.s32.totalorder %s168, %s171
      %p177 = scmp.eq.s32.totalorder %s17, 0
      %p178 = por %p176, %p177
      %p179 = scmp.ne.s32.totalorder %s168, %s171
      %p180 = scmp.eq.s32.totalorder %s22, 1
      %p181 = por %p179, %p180
      %p182 = scmp.ne.s32.totalorder %s171, %s172
      %p183 = scmp.eq.s32.totalorder %s22, 0
      %p184 = por %p182, %p183
      %p185 = scmp.ne.s32.totalorder %s171, %s172
      %p186 = scmp.eq.s32.totalorder %s23, 1
      %p187 = por %p185, %p186
      %p189 = scmp.ne.s32.totalorder %s172, %s188
      %p190 = scmp.eq.s32.totalorder %s23, 0
      %p191 = por %p189, %p190
      %s192 = ssub.s32 %s17, %s24
      %p193 = scmp.eq.s32.totalorder %s192, 0
      %s195 = sadd.s32 %s194, 1
      %s196 = scalar_select %p193, %s194, %s195
      %p199 = pneg %p193
      %p200 = scmp.eq.s32.totalorder %s17, 1
      %p201 = por %p199, %p200
      %p202 = scmp.ne.s32.totalorder %s194, %s197
      %p203 = scmp.eq.s32.totalorder %s17, 0
      %p204 = por %p202, %p203
      %p205 = scmp.ne.s32.totalorder %s194, %s197
      %p206 = scmp.eq.s32.totalorder %s22, 1
      %p207 = por %p205, %p206
      %p208 = scmp.ne.s32.totalorder %s197, %s198
      %p209 = scmp.eq.s32.totalorder %s22, 0
      %p210 = por %p208, %p209
      %p211 = scmp.ne.s32.totalorder %s197, %s198
      %p212 = scmp.eq.s32.totalorder %s23, 1
      %p213 = por %p211, %p212
      %p215 = scmp.ne.s32.totalorder %s198, %s214
      %p216 = scmp.eq.s32.totalorder %s23, 0
      %p217 = por %p215, %p216
      %p218 = scmp.le.s32.totalorder 1, %s17
      %p219 = scmp.lt.s32.totalorder %s17, 3
      %p220 = pnand %p218, %p219
      %p221 = pneg %p220
      // Predicated region
      $region9: #{mduvsr_forward.14} parent=5 // pred_check
        _
      $region10: #{mduvsr_forward.14} parent=5 // pred_check_branch
        %223 = sbr.rel (%p220) target = $region12
      $region11: #{mduvsr_forward.14} parent=5 // pred_region
        %s224 = ssub.s32 %s17, 1
        // Predicated region
        $region13: #{mduvsr_forward.14} parent=11 // pred_check
          %p225 = pneg %p90
        $region14: #{mduvsr_forward.14} parent=11 // pred_check_branch
          %227 = sbr.rel (%p225) target = $region16
        $region15: #{mduvsr_forward.14} parent=11 // pred_region
          _
        $region16: #{mduvsr_forward.14} parent=11 // pred_fallthru
          _
        // Predicated region
        $region17: #{mduvsr_forward.14} parent=11 // pred_check
          %p228 = pneg %p111
        $region18: #{mduvsr_forward.14} parent=11 // pred_check_branch
          %230 = sbr.rel (%p228) target = $region20
        $region19: #{mduvsr_forward.14} parent=11 // pred_region
          _
        $region20: #{mduvsr_forward.14} parent=11 // pred_fallthru
          _
        // Predicated region
        $region21: #{mduvsr_forward.14} parent=11 // pred_check
          %p231 = pneg %p132
        $region22: #{mduvsr_forward.14} parent=11 // pred_check_branch
          %233 = sbr.rel (%p231) target = $region24
        $region23: #{mduvsr_forward.14} parent=11 // pred_region
          _
        $region24: #{mduvsr_forward.14} parent=11 // pred_fallthru
          _
      $region12: #{mduvsr_forward.14} parent=5 // pred_fallthru
        _
      %p234 = scmp.lt.s32.totalorder %s17, 2
      // Predicated region
      $region25: #{mduvsr_forward.14} parent=5 // pred_check
        %p235 = pneg %p234
      $region26: #{mduvsr_forward.14} parent=5 // pred_check_branch
        %237 = sbr.rel (%p235) target = $region28
      $region27: #{mduvsr_forward.14} parent=5 // pred_region
        // Predicated region
        $region29: #{mduvsr_forward.14} parent=27 // pred_check
          %p238 = pneg %p37
        $region30: #{mduvsr_forward.14} parent=27 // pred_check_branch
          %240 = sbr.rel (%p238) target = $region32
        $region31: #{mduvsr_forward.14} parent=27 // pred_region
          %s241 = smul.u32 32, %s17
          %p242 = scmp.lt.s32.totalorder %s241, 63
          %s243 = scalar_select %p242, %s241, 63
          %s244 = smul.addr %s243, 4
          %s245 = scalar_lea.vmem %s0, %s244
          %s246 = smul.u32 32, %s17
        $region32: #{mduvsr_forward.14} parent=27 // pred_fallthru
          _
        // Predicated region
        $region33: #{mduvsr_forward.14} parent=27 // pred_check
          %p247 = pneg %p63
        $region34: #{mduvsr_forward.14} parent=27 // pred_check_branch
          %249 = sbr.rel (%p247) target = $region36
        $region35: #{mduvsr_forward.14} parent=27 // pred_region
          %s250 = smul.u32 32, %s17
          %p251 = scmp.lt.s32.totalorder %s250, 63
          %s252 = scalar_select %p251, %s250, 63
          %s253 = smul.addr %s252, 3
          %s254 = smul.addr %s253, 4
          %s255 = scalar_lea.vmem %s1, %s254
          %s256 = smul.u32 32, %s17
        $region36: #{mduvsr_forward.14} parent=27 // pred_fallthru
          _
        // Predicated region
        $region37: #{mduvsr_forward.14} parent=27 // pred_check
          %p257 = pneg %p152
        $region38: #{mduvsr_forward.14} parent=27 // pred_check_branch
          %259 = sbr.rel (%p257) target = $region40
        $region39: #{mduvsr_forward.14} parent=27 // pred_region
          %s260 = smul.u32 32, %s17
          %p261 = scmp.lt.s32.totalorder %s260, 63
          %s262 = scalar_select %p261, %s260, 63
          %s263 = smul.addr %s262, 8
          %s264 = scalar_lea.vmem %s5, %s263
          %s265 = smul.u32 32, %s17
        $region40: #{mduvsr_forward.14} parent=27 // pred_fallthru
          _
      $region28: #{mduvsr_forward.14} parent=5 // pred_fallthru
        _
      %p266 = scmp.le.s32.totalorder 1, %s17
      %p267 = scmp.lt.s32.totalorder %s17, 3
      %p268 = pnand %p266, %p267
      %p269 = pneg %p268
      // Predicated region
      $region41: #{mduvsr_forward.14} parent=5 // pred_check
        _
      $region42: #{mduvsr_forward.14} parent=5 // pred_check_branch
        %271 = sbr.rel (%p268) target = $region44
      $region43: #{mduvsr_forward.14} parent=5 // pred_region
        %s272 = ssub.s32 %s17, 1
        %s273 = smul.u32 32, %s22
        %p274 = scmp.lt.s32.totalorder %s273, 63
        %s275 = scalar_select %p274, %s273, 63
        %s276 = smul.addr %s275, 4
        %s277 = scalar_lea.vmem %s0, %s276
        %p278 = pneg %p43
        %p279 = pneg %p40
        %s280 = smul.u32 32, %s22
        %p281 = scmp.lt.s32.totalorder %s280, 63
        %s282 = scalar_select %p281, %s280, 63
        %s283 = smul.addr %s282, 3
        %s284 = smul.addr %s283, 4
        %s285 = scalar_lea.vmem %s1, %s284
        %p286 = pneg %p69
        %p287 = pneg %p66
        %p288 = pneg %p90
        %p289 = pneg %p87
        %p290 = pneg %p111
        %p291 = pneg %p108
        %p292 = pneg %p132
        %p293 = pneg %p129
        %s294 = smul.u32 32, %s22
        %p295 = scmp.lt.s32.totalorder %s294, 63
        %s296 = scalar_select %p295, %s294, 63
        %s297 = smul.addr %s296, 8
        %s298 = scalar_lea.vmem %s5, %s297
        %p299 = pneg %p158
        %p300 = pneg %p155
        %p301 = pneg %p184
        %p302 = pneg %p181
        %s303 = smul.u32 32, %s22
        %p304 = scmp.lt.s32.totalorder %s303, 63
        %s305 = scalar_select %p304, %s303, 63
        %s306 = smul.addr %s305, 4
        %s307 = scalar_lea.vmem %s6, %s306
        %p308 = pneg %p210
        %p309 = pneg %p207
        %s310 = sand.u32 %s197, 1
        %s311 = scalar_lea.sflag [#allocation3], %s310
        %s312 = sand.u32 %s197, 1
        %s313 = smul.addr %s312, 256
        %s314 = scalar_lea.vmem [#allocation2], %s313
        %s315 = smul.u32 32, %s22
        %p316 = scmp.lt.s32.totalorder %s315, 63
        %s317 = scalar_select %p316, %s315, 63
        %s318 = smul.addr %s317, 4
        %s319 = scalar_lea.vmem %s0, %s318
        %s320 = smul.u32 32, %s22
        %s321 = smul.u32 32, %s22
        %p322 = scmp.lt.s32.totalorder %s321, 63
        %s323 = scalar_select %p322, %s321, 63
        %s324 = smul.addr %s323, 3
        %s325 = smul.addr %s324, 4
        %s326 = scalar_lea.vmem %s1, %s325
        %s327 = smul.u32 32, %s22
        %s328 = smul.u32 32, %s22
        %p329 = scmp.lt.s32.totalorder %s328, 63
        %s330 = scalar_select %p329, %s328, 63
        %s331 = smul.addr %s330, 8
        %s332 = scalar_lea.vmem %s5, %s331
        %s333 = smul.u32 32, %s22
        %s334 = smul.u32 32, %s22
        %p335 = scmp.lt.s32.totalorder %s334, 63
        %s336 = scalar_select %p335, %s334, 63
        %s337 = smul.addr %s336, 4
        %s338 = scalar_lea.vmem %s6, %s337
        %s339 = smul.u32 32, %s22
        %s340 = smul.u32 32, %s22
        %v342 = vld [vmem:[%s319] sm:$0xf]
        %v343 = vld [vmem:[%s319 + $0x4] sm:$0xf]
        %v344 = vld [vmem:[%s319 + $0x8] sm:$0xf]
        %v345 = vld [vmem:[%s319 + $0xc] sm:$0xf]
        %v346 = vld [vmem:[%s319 + $0x10] sm:$0xf]
        %v347 = vld [vmem:[%s319 + $0x14] sm:$0xf]
        %v348 = vld [vmem:[%s319 + $0x18] sm:$0xf]
        %v349 = vld [vmem:[%s319 + $0x1c] sm:$0xf]
        %v350 = vld [vmem:[%s319 + $0x20] sm:$0xf]
        %v351 = vld [vmem:[%s319 + $0x24] sm:$0xf]
        %v352 = vld [vmem:[%s319 + $0x28] sm:$0xf]
        %v353 = vld [vmem:[%s319 + $0x2c] sm:$0xf]
        %v354 = vld [vmem:[%s319 + $0x30] sm:$0xf]
        %v355 = vld [vmem:[%s319 + $0x34] sm:$0xf]
        %v356 = vld [vmem:[%s319 + $0x38] sm:$0xf]
        %v357 = vld [vmem:[%s319 + $0x3c] sm:$0xf]
        %v358 = vld [vmem:[%s319 + $0x40] sm:$0xf]
        %v359 = vld [vmem:[%s319 + $0x44] sm:$0xf]
        %v360 = vld [vmem:[%s319 + $0x48] sm:$0xf]
        %v361 = vld [vmem:[%s319 + $0x4c] sm:$0xf]
        %v362 = vld [vmem:[%s319 + $0x50] sm:$0xf]
        %v363 = vld [vmem:[%s319 + $0x54] sm:$0xf]
        %v364 = vld [vmem:[%s319 + $0x58] sm:$0xf]
        %v365 = vld [vmem:[%s319 + $0x5c] sm:$0xf]
        %v366 = vld [vmem:[%s319 + $0x60] sm:$0xf]
        %v367 = vld [vmem:[%s319 + $0x64] sm:$0xf]
        %v368 = vld [vmem:[%s319 + $0x68] sm:$0xf]
        %v369 = vld [vmem:[%s319 + $0x6c] sm:$0xf]
        %v370 = vld [vmem:[%s319 + $0x70] sm:$0xf]
        %v371 = vld [vmem:[%s319 + $0x74] sm:$0xf]
        %v372 = vld [vmem:[%s319 + $0x78] sm:$0xf]
        %v373 = vld [vmem:[%s319 + $0x7c] sm:$0xf]
        %v374 = vld [vmem:[%s2] sm:$0xf]
        %v375 = vld [vmem:[%s2 + $0x4] sm:$0xf]
        %v376 = vld [vmem:[%s2 + $0x8] sm:$0xf]
        %v377 = vld [vmem:[%s2 + $0xc] sm:$0xf]
        %v378 = vld [vmem:[%s2 + $0x10] sm:$0x3]
        %v379 = vld [vmem:[%s326] sm:$0xff]
        %v380 = vld [vmem:[%s326 + $0x8] sm:$0xf]
        %v381 = vld [vmem:[%s326 + $0xc] sm:$0xff]
        %v382 = vld [vmem:[%s326 + $0x14] sm:$0xf]
        %v383 = vld [vmem:[%s326 + $0x18] sm:$0xff]
        %v384 = vld [vmem:[%s326 + $0x20] sm:$0xf]
        %v385 = vld [vmem:[%s326 + $0x24] sm:$0xff]
        %v386 = vld [vmem:[%s326 + $0x2c] sm:$0xf]
        %v387 = vld [vmem:[%s326 + $0x30] sm:$0xff]
        %v388 = vld [vmem:[%s326 + $0x38] sm:$0xf]
        %v389 = vld [vmem:[%s326 + $0x3c] sm:$0xff]
        %v390 = vld [vmem:[%s326 + $0x44] sm:$0xf]
        %v391 = vld [vmem:[%s326 + $0x48] sm:$0xff]
        %v392 = vld [vmem:[%s326 + $0x50] sm:$0xf]
        %v393 = vld [vmem:[%s326 + $0x54] sm:$0xff]
        %v394 = vld [vmem:[%s326 + $0x5c] sm:$0xf]
        %v395 = vld [vmem:[%s326 + $0x60] sm:$0xff]
        %v396 = vld [vmem:[%s326 + $0x68] sm:$0xf]
        %v397 = vld [vmem:[%s326 + $0x6c] sm:$0xff]
        %v398 = vld [vmem:[%s326 + $0x74] sm:$0xf]
        %v399 = vld [vmem:[%s326 + $0x78] sm:$0xff]
        %v400 = vld [vmem:[%s326 + $0x80] sm:$0xf]
        %v401 = vld [vmem:[%s326 + $0x84] sm:$0xff]
        %v402 = vld [vmem:[%s326 + $0x8c] sm:$0xf]
        %v403 = vld [vmem:[%s326 + $0x90] sm:$0xff]
        %v404 = vld [vmem:[%s326 + $0x98] sm:$0xf]
        %v405 = vld [vmem:[%s326 + $0x9c] sm:$0xff]
        %v406 = vld [vmem:[%s326 + $0xa4] sm:$0xf]
        %v407 = vld [vmem:[%s326 + $0xa8] sm:$0xff]
        %v408 = vld [vmem:[%s326 + $0xb0] sm:$0xf]
        %v409 = vld [vmem:[%s326 + $0xb4] sm:$0xff]
        %v410 = vld [vmem:[%s326 + $0xbc] sm:$0xf]
        %v411 = vld [vmem:[%s326 + $0xc0] sm:$0xff]
        %v412 = vld [vmem:[%s326 + $0xc8] sm:$0xf]
        %v413 = vld [vmem:[%s326 + $0xcc] sm:$0xff]
        %v414 = vld [vmem:[%s326 + $0xd4] sm:$0xf]
        %v415 = vld [vmem:[%s326 + $0xd8] sm:$0xff]
        %v416 = vld [vmem:[%s326 + $0xe0] sm:$0xf]
        %v417 = vld [vmem:[%s326 + $0xe4] sm:$0xff]
        %v418 = vld [vmem:[%s326 + $0xec] sm:$0xf]
        %v419 = vld [vmem:[%s326 + $0xf0] sm:$0xff]
        %v420 = vld [vmem:[%s326 + $0xf8] sm:$0xf]
        %v421 = vld [vmem:[%s326 + $0xfc] sm:$0xff]
        %v422 = vld [vmem:[%s326 + $0x104] sm:$0xf]
        %v423 = vld [vmem:[%s326 + $0x108] sm:$0xff]
        %v424 = vld [vmem:[%s326 + $0x110] sm:$0xf]
        %v425 = vld [vmem:[%s326 + $0x114] sm:$0xff]
        %v426 = vld [vmem:[%s326 + $0x11c] sm:$0xf]
        %v427 = vld [vmem:[%s326 + $0x120] sm:$0xff]
        %v428 = vld [vmem:[%s326 + $0x128] sm:$0xf]
        %v429 = vld [vmem:[%s326 + $0x12c] sm:$0xff]
        %v430 = vld [vmem:[%s326 + $0x134] sm:$0xf]
        %v431 = vld [vmem:[%s326 + $0x138] sm:$0xff]
        %v432 = vld [vmem:[%s326 + $0x140] sm:$0xf]
        %v433 = vld [vmem:[%s326 + $0x144] sm:$0xff]
        %v434 = vld [vmem:[%s326 + $0x14c] sm:$0xf]
        %v435 = vld [vmem:[%s326 + $0x150] sm:$0xff]
        %v436 = vld [vmem:[%s326 + $0x158] sm:$0xf]
        %v437 = vld [vmem:[%s326 + $0x15c] sm:$0xff]
        %v438 = vld [vmem:[%s326 + $0x164] sm:$0xf]
        %v439 = vld [vmem:[%s326 + $0x168] sm:$0xff]
        %v440 = vld [vmem:[%s326 + $0x170] sm:$0xf]
        %v441 = vld [vmem:[%s326 + $0x174] sm:$0xff]
        %v442 = vld [vmem:[%s326 + $0x17c] sm:$0xf]
        %v443 = vld [vmem:[%s3] sm:$0xf]
        %v444 = vld [vmem:[%s3 + $0x4] sm:$0xf]
        %v445 = vld [vmem:[%s3 + $0x8] sm:$0xf]
        %v446 = vld [vmem:[%s3 + $0xc] sm:$0xf]
        %v447 = vld [vmem:[%s3 + $0x10] sm:$0xf]
        %v448 = vld [vmem:[%s3 + $0x14] sm:$0xf]
        %v449 = vld [vmem:[%s3 + $0x18] sm:$0xf]
        %v450 = vld [vmem:[%s3 + $0x1c] sm:$0xf]
        %v451 = vld [vmem:[%s3 + $0x20] sm:$0xf]
        %v452 = vld [vmem:[%s3 + $0x24] sm:$0xf]
        %v453 = vld [vmem:[%s3 + $0x28] sm:$0xf]
        %v454 = vld [vmem:[%s3 + $0x2c] sm:$0xf]
        %v455 = vld [vmem:[%s3 + $0x30] sm:$0xf]
        %v456 = vld [vmem:[%s3 + $0x34] sm:$0xf]
        %v457 = vld [vmem:[%s3 + $0x38] sm:$0xf]
        %v458 = vld [vmem:[%s3 + $0x3c] sm:$0xf]
        %v459 = vld [vmem:[%s3 + $0x40] sm:$0xf]
        %v460 = vld [vmem:[%s3 + $0x44] sm:$0xf]
        %v461 = vld [vmem:[%s3 + $0x48] sm:$0xf]
        %v462 = vld [vmem:[%s3 + $0x4c] sm:$0xf]
        %v463 = vld [vmem:[%s3 + $0x50] sm:$0xf]
        %v464 = vld [vmem:[%s3 + $0x54] sm:$0xf]
        %v465 = vld [vmem:[%s3 + $0x58] sm:$0xf]
        %v466 = vld [vmem:[%s3 + $0x5c] sm:$0xf]
        %v467 = vld [vmem:[%s3 + $0x60] sm:$0xf]
        %v468 = vld [vmem:[%s3 + $0x64] sm:$0xf]
        %v469 = vld [vmem:[%s3 + $0x68] sm:$0xf]
        %v470 = vld [vmem:[%s3 + $0x6c] sm:$0xf]
        %v471 = vld [vmem:[%s3 + $0x70] sm:$0xf]
        %v472 = vld [vmem:[%s3 + $0x74] sm:$0xf]
        %v473 = vld [vmem:[%s3 + $0x78] sm:$0xf]
        %v474 = vld [vmem:[%s3 + $0x7c] sm:$0xf]
        %v475 = vld [vmem:[%s3 + $0x80] sm:$0xf]
        %v476 = vld [vmem:[%s3 + $0x84] sm:$0xf]
        %v477 = vld [vmem:[%s3 + $0x88] sm:$0xf]
        %v478 = vld [vmem:[%s3 + $0x8c] sm:$0xf]
        %v543 = vunpack.c.l.b16 %v379
        %v544 = vunpack.c.h.b16 %v379
        %v545 = vunpack.c.l.b16 %v380
        %v546 = vunpack.c.l.b16 %v381
        %v547 = vunpack.c.h.b16 %v381
        %v548 = vunpack.c.l.b16 %v382
        %v549 = vunpack.c.l.b16 %v383
        %v550 = vunpack.c.h.b16 %v383
        %v551 = vunpack.c.l.b16 %v384
        %v552 = vunpack.c.l.b16 %v385
        %v553 = vunpack.c.h.b16 %v385
        %v554 = vunpack.c.l.b16 %v386
        %v555 = vunpack.c.l.b16 %v387
        %v556 = vunpack.c.h.b16 %v387
        %v557 = vunpack.c.l.b16 %v388
        %v558 = vunpack.c.l.b16 %v389
        %v559 = vunpack.c.h.b16 %v389
        %v560 = vunpack.c.l.b16 %v390
        %v561 = vunpack.c.l.b16 %v391
        %v562 = vunpack.c.h.b16 %v391
        %v563 = vunpack.c.l.b16 %v392
        %v564 = vunpack.c.l.b16 %v393
        %v565 = vunpack.c.h.b16 %v393
        %v566 = vunpack.c.l.b16 %v394
        %v567 = vunpack.c.l.b16 %v395
        %v568 = vunpack.c.h.b16 %v395
        %v569 = vunpack.c.l.b16 %v396
        %v570 = vunpack.c.l.b16 %v397
        %v571 = vunpack.c.h.b16 %v397
        %v572 = vunpack.c.l.b16 %v398
        %v573 = vunpack.c.l.b16 %v399
        %v574 = vunpack.c.h.b16 %v399
        %v575 = vunpack.c.l.b16 %v400
        %v576 = vunpack.c.l.b16 %v401
        %v577 = vunpack.c.h.b16 %v401
        %v578 = vunpack.c.l.b16 %v402
        %v579 = vunpack.c.l.b16 %v403
        %v580 = vunpack.c.h.b16 %v403
        %v581 = vunpack.c.l.b16 %v404
        %v582 = vunpack.c.l.b16 %v405
        %v583 = vunpack.c.h.b16 %v405
        %v584 = vunpack.c.l.b16 %v406
        %v585 = vunpack.c.l.b16 %v407
        %v586 = vunpack.c.h.b16 %v407
        %v587 = vunpack.c.l.b16 %v408
        %v588 = vunpack.c.l.b16 %v409
        %v589 = vunpack.c.h.b16 %v409
        %v590 = vunpack.c.l.b16 %v410
        %v591 = vunpack.c.l.b16 %v411
        %v592 = vunpack.c.h.b16 %v411
        %v593 = vunpack.c.l.b16 %v412
        %v594 = vunpack.c.l.b16 %v413
        %v595 = vunpack.c.h.b16 %v413
        %v596 = vunpack.c.l.b16 %v414
        %v597 = vunpack.c.l.b16 %v415
        %v598 = vunpack.c.h.b16 %v415
        %v599 = vunpack.c.l.b16 %v416
        %v600 = vunpack.c.l.b16 %v417
        %v601 = vunpack.c.h.b16 %v417
        %v602 = vunpack.c.l.b16 %v418
        %v603 = vunpack.c.l.b16 %v419
        %v604 = vunpack.c.h.b16 %v419
        %v605 = vunpack.c.l.b16 %v420
        %v606 = vunpack.c.l.b16 %v421
        %v607 = vunpack.c.h.b16 %v421
        %v608 = vunpack.c.l.b16 %v422
        %v609 = vunpack.c.l.b16 %v423
        %v610 = vunpack.c.h.b16 %v423
        %v611 = vunpack.c.l.b16 %v424
        %v612 = vunpack.c.l.b16 %v425
        %v613 = vunpack.c.h.b16 %v425
        %v614 = vunpack.c.l.b16 %v426
        %v615 = vunpack.c.l.b16 %v427
        %v616 = vunpack.c.h.b16 %v427
        %v617 = vunpack.c.l.b16 %v428
        %v618 = vunpack.c.l.b16 %v429
        %v619 = vunpack.c.h.b16 %v429
        %v620 = vunpack.c.l.b16 %v430
        %v621 = vunpack.c.l.b16 %v431
        %v622 = vunpack.c.h.b16 %v431
        %v623 = vunpack.c.l.b16 %v432
        %v624 = vunpack.c.l.b16 %v433
        %v625 = vunpack.c.h.b16 %v433
        %v626 = vunpack.c.l.b16 %v434
        %v627 = vunpack.c.l.b16 %v435
        %v628 = vunpack.c.h.b16 %v435
        %v629 = vunpack.c.l.b16 %v436
        %v630 = vunpack.c.l.b16 %v437
        %v631 = vunpack.c.h.b16 %v437
        %v632 = vunpack.c.l.b16 %v438
        %v633 = vunpack.c.l.b16 %v439
        %v634 = vunpack.c.h.b16 %v439
        %v635 = vunpack.c.l.b16 %v440
        %v636 = vunpack.c.l.b16 %v441
        %v637 = vunpack.c.h.b16 %v441
        %v638 = vunpack.c.l.b16 %v442
        %v639 = vpack.c.b16 %v546, %v543
        %v640 = vpack.c.b16 %v547, %v544
        %v641 = vpack.c.b16 %v548, %v545
        %v642 = vpack.c.b16 %v552, %v549
        %v643 = vpack.c.b16 %v553, %v550
        %v644 = vpack.c.b16 %v554, %v551
        %v645 = vpack.c.b16 %v558, %v555
        %v646 = vpack.c.b16 %v559, %v556
        %v647 = vpack.c.b16 %v560, %v557
        %v648 = vpack.c.b16 %v564, %v561
        %v649 = vpack.c.b16 %v565, %v562
        %v650 = vpack.c.b16 %v566, %v563
        %v651 = vpack.c.b16 %v570, %v567
        %v652 = vpack.c.b16 %v571, %v568
        %v653 = vpack.c.b16 %v572, %v569
        %v654 = vpack.c.b16 %v576, %v573
        %v655 = vpack.c.b16 %v577, %v574
        %v656 = vpack.c.b16 %v578, %v575
        %v657 = vpack.c.b16 %v582, %v579
        %v658 = vpack.c.b16 %v583, %v580
        %v659 = vpack.c.b16 %v584, %v581
        %v660 = vpack.c.b16 %v588, %v585
        %v661 = vpack.c.b16 %v589, %v586
        %v662 = vpack.c.b16 %v590, %v587
        %v663 = vpack.c.b16 %v594, %v591
        %v664 = vpack.c.b16 %v595, %v592
        %v665 = vpack.c.b16 %v596, %v593
        %v666 = vpack.c.b16 %v600, %v597
        %v667 = vpack.c.b16 %v601, %v598
        %v668 = vpack.c.b16 %v602, %v599
        %v669 = vpack.c.b16 %v606, %v603
        %v670 = vpack.c.b16 %v607, %v604
        %v671 = vpack.c.b16 %v608, %v605
        %v672 = vpack.c.b16 %v612, %v609
        %v673 = vpack.c.b16 %v613, %v610
        %v674 = vpack.c.b16 %v614, %v611
        %v675 = vpack.c.b16 %v618, %v615
        %v676 = vpack.c.b16 %v619, %v616
        %v677 = vpack.c.b16 %v620, %v617
        %v678 = vpack.c.b16 %v624, %v621
        %v679 = vpack.c.b16 %v625, %v622
        %v680 = vpack.c.b16 %v626, %v623
        %v681 = vpack.c.b16 %v630, %v627
        %v682 = vpack.c.b16 %v631, %v628
        %v683 = vpack.c.b16 %v632, %v629
        %v684 = vpack.c.b16 %v636, %v633
        %v685 = vpack.c.b16 %v637, %v634
        %v686 = vpack.c.b16 %v638, %v635
        %v755 = vunpack.c.l.b16 %v443
        %v756 = vunpack.c.l.b16 %v444
        %v757 = vunpack.c.l.b16 %v445
        %v758 = vunpack.c.l.b16 %v446
        %v759 = vunpack.c.l.b16 %v447
        %v760 = vunpack.c.l.b16 %v448
        %v761 = vunpack.c.l.b16 %v449
        %v762 = vunpack.c.l.b16 %v450
        %v763 = vunpack.c.l.b16 %v451
        %v764 = vunpack.c.l.b16 %v452
        %v765 = vunpack.c.l.b16 %v453
        %v766 = vunpack.c.l.b16 %v454
        %v767 = vunpack.c.l.b16 %v455
        %v768 = vunpack.c.l.b16 %v456
        %v769 = vunpack.c.l.b16 %v457
        %v770 = vunpack.c.l.b16 %v458
        %v771 = vunpack.c.l.b16 %v459
        %v772 = vunpack.c.l.b16 %v460
        %v773 = vunpack.c.l.b16 %v461
        %v774 = vunpack.c.l.b16 %v462
        %v775 = vunpack.c.l.b16 %v463
        %v776 = vunpack.c.l.b16 %v464
        %v777 = vunpack.c.l.b16 %v465
        %v778 = vunpack.c.l.b16 %v466
        %v779 = vunpack.c.l.b16 %v467
        %v780 = vunpack.c.l.b16 %v468
        %v781 = vunpack.c.l.b16 %v469
        %v782 = vunpack.c.l.b16 %v470
        %v783 = vunpack.c.l.b16 %v471
        %v784 = vunpack.c.l.b16 %v472
        %v785 = vunpack.c.l.b16 %v473
        %v786 = vunpack.c.l.b16 %v474
        %v787 = vunpack.c.l.b16 %v475
        %v788 = vunpack.c.l.b16 %v476
        %v789 = vunpack.c.l.b16 %v477
        %v790 = vunpack.c.l.b16 %v478
        %v791 = vpack.c.b16 %v756, %v755
        %v792 = vpack.c.b16 %v758, %v757
        %v793 = vpack.c.b16 %v760, %v759
        %v794 = vpack.c.b16 %v762, %v761
        %v795 = vpack.c.b16 %v764, %v763
        %v796 = vpack.c.b16 %v766, %v765
        %v797 = vpack.c.b16 %v768, %v767
        %v798 = vpack.c.b16 %v770, %v769
        %v799 = vpack.c.b16 %v772, %v771
        %v800 = vpack.c.b16 %v774, %v773
        %v801 = vpack.c.b16 %v776, %v775
        %v802 = vpack.c.b16 %v778, %v777
        %v803 = vpack.c.b16 %v780, %v779
        %v804 = vpack.c.b16 %v782, %v781
        %v805 = vpack.c.b16 %v784, %v783
        %v806 = vpack.c.b16 %v786, %v785
        %v807 = vpack.c.b16 %v788, %v787
        %v808 = vpack.c.b16 %v790, %v789
        %vm827 = vcmask 261120
        %v829 = vsel %vm827, %v641, 0
        %v832 = vsel %vm827, %v644, 0
        %v835 = vsel %vm827, %v647, 0
        %v838 = vsel %vm827, %v650, 0
        %v841 = vsel %vm827, %v653, 0
        %v844 = vsel %vm827, %v656, 0
        %v847 = vsel %vm827, %v659, 0
        %v850 = vsel %vm827, %v662, 0
        %v853 = vsel %vm827, %v665, 0
        %v856 = vsel %vm827, %v668, 0
        %v859 = vsel %vm827, %v671, 0
        %v862 = vsel %vm827, %v674, 0
        %v865 = vsel %vm827, %v677, 0
        %v868 = vsel %vm827, %v680, 0
        %v871 = vsel %vm827, %v683, 0
        %v874 = vsel %vm827, %v686, 0
        %876 = vmatprep.subr.bf16.mxu0 0
        %877 = vmatpush1.bf16.msra.mxu0 %v798
        %878 = vmatprep.subr.bf16.mxu0 0
        %879 = vmatpush1.bf16.msra.mxu0 %v797
        %880 = vmatprep.subr.bf16.mxu0 0
        %881 = vmatpush1.bf16.msra.mxu0 %v796
        %882 = vmatprep.subr.bf16.mxu0 0
        %883 = vmatpush1.bf16.msra.mxu0 %v795
        %884 = vmatprep.subr.bf16.mxu0 0
        %885 = vmatpush1.bf16.msra.mxu0 %v794
        %886 = vmatprep.subr.bf16.mxu0 0
        %887 = vmatpush1.bf16.msra.mxu0 %v793
        %888 = vmatprep.subr.bf16.mxu0 0
        %889 = vmatpush1.bf16.msra.mxu0 %v792
        %890 = vmatprep.subr.bf16.mxu0 0
        %891 = vmatpush1.bf16.msra.mxu0 %v791
        %892 = vmatprep.subr.bf16.mxu0 0
        %893 = vmatpush2.bf16.msra.mxu0 %v806
        %894 = vmatprep.subr.bf16.mxu0 0
        %895 = vmatpush2.bf16.msra.mxu0 %v805
        %896 = vmatprep.subr.bf16.mxu0 0
        %897 = vmatpush2.bf16.msra.mxu0 %v804
        %898 = vmatprep.subr.bf16.mxu0 0
        %899 = vmatpush2.bf16.msra.mxu0 %v803
        %900 = vmatprep.subr.bf16.mxu0 0
        %901 = vmatpush2.bf16.msra.mxu0 %v802
        %902 = vmatprep.subr.bf16.mxu0 0
        %903 = vmatpush2.bf16.msra.mxu0 %v801
        %904 = vmatprep.subr.bf16.mxu0 0
        %905 = vmatpush2.bf16.msra.mxu0 %v800
        %906 = vmatprep.subr.bf16.mxu0 0
        %907 = vmatpush2.bf16.msra.mxu0 %v799
        %908 = vmatprep.mubr.bf16.mxu0 %v640
        %909 = vmatmul.mubr.bf16.gmra.mxu0 %v639
        %v910 = vpop.f32.mrf.mxu0
        %v911 = vadd.f32 0.0, %v910
        %v912 = vpop.f32.mrf.mxu0
        %v913 = vpop.f32.mrf.mxu0
        %v914 = vadd.f32 0.0, %v913
        %v915 = vpop.f32.mrf.mxu0
        %916 = vmatprep.mubr.bf16.mxu0 %v643
        %917 = vmatmul.mubr.bf16.gmra.mxu0 %v642
        %v918 = vpop.f32.mrf.mxu0
        %v919 = vadd.f32 0.0, %v918
        %v920 = vpop.f32.mrf.mxu0
        %v921 = vpop.f32.mrf.mxu0
        %v922 = vadd.f32 0.0, %v921
        %v923 = vpop.f32.mrf.mxu0
        %924 = vmatprep.mubr.bf16.mxu0 %v646
        %925 = vmatmul.mubr.bf16.gmra.mxu0 %v645
        %v926 = vpop.f32.mrf.mxu0
        %v927 = vadd.f32 0.0, %v926
        %v928 = vpop.f32.mrf.mxu0
        %v929 = vpop.f32.mrf.mxu0
        %v930 = vadd.f32 0.0, %v929
        %v931 = vpop.f32.mrf.mxu0
        %932 = vmatprep.mubr.bf16.mxu0 %v649
        %933 = vmatmul.mubr.bf16.gmra.mxu0 %v648
        %v934 = vpop.f32.mrf.mxu0
        %v935 = vadd.f32 0.0, %v934
        %v936 = vpop.f32.mrf.mxu0
        %v937 = vpop.f32.mrf.mxu0
        %v938 = vadd.f32 0.0, %v937
        %v939 = vpop.f32.mrf.mxu0
        %940 = vmatprep.mubr.bf16.mxu0 %v652
        %941 = vmatmul.mubr.bf16.gmra.mxu0 %v651
        %v942 = vpop.f32.mrf.mxu0
        %v943 = vadd.f32 0.0, %v942
        %v944 = vpop.f32.mrf.mxu0
        %v945 = vpop.f32.mrf.mxu0
        %v946 = vadd.f32 0.0, %v945
        %v947 = vpop.f32.mrf.mxu0
        %948 = vmatprep.mubr.bf16.mxu0 %v655
        %949 = vmatmul.mubr.bf16.gmra.mxu0 %v654
        %v950 = vpop.f32.mrf.mxu0
        %v951 = vadd.f32 0.0, %v950
        %v952 = vpop.f32.mrf.mxu0
        %v953 = vpop.f32.mrf.mxu0
        %v954 = vadd.f32 0.0, %v953
        %v955 = vpop.f32.mrf.mxu0
        %956 = vmatprep.mubr.bf16.mxu0 %v658
        %957 = vmatmul.mubr.bf16.gmra.mxu0 %v657
        %v958 = vpop.f32.mrf.mxu0
        %v959 = vadd.f32 0.0, %v958
        %v960 = vpop.f32.mrf.mxu0
        %v961 = vpop.f32.mrf.mxu0
        %v962 = vadd.f32 0.0, %v961
        %v963 = vpop.f32.mrf.mxu0
        %964 = vmatprep.mubr.bf16.mxu0 %v661
        %965 = vmatmul.mubr.bf16.gmra.mxu0 %v660
        %v966 = vpop.f32.mrf.mxu0
        %v967 = vadd.f32 0.0, %v966
        %v968 = vpop.f32.mrf.mxu0
        %v969 = vpop.f32.mrf.mxu0
        %v970 = vadd.f32 0.0, %v969
        %v971 = vpop.f32.mrf.mxu0
        %972 = vmatprep.mubr.bf16.mxu0 %v664
        %973 = vmatmul.mubr.bf16.gmra.mxu0 %v663
        %v974 = vpop.f32.mrf.mxu0
        %v975 = vadd.f32 0.0, %v974
        %v976 = vpop.f32.mrf.mxu0
        %v977 = vpop.f32.mrf.mxu0
        %v978 = vadd.f32 0.0, %v977
        %v979 = vpop.f32.mrf.mxu0
        %980 = vmatprep.mubr.bf16.mxu0 %v667
        %981 = vmatmul.mubr.bf16.gmra.mxu0 %v666
        %v982 = vpop.f32.mrf.mxu0
        %v983 = vadd.f32 0.0, %v982
        %v984 = vpop.f32.mrf.mxu0
        %v985 = vpop.f32.mrf.mxu0
        %v986 = vadd.f32 0.0, %v985
        %v987 = vpop.f32.mrf.mxu0
        %988 = vmatprep.mubr.bf16.mxu0 %v670
        %989 = vmatmul.mubr.bf16.gmra.mxu0 %v669
        %v990 = vpop.f32.mrf.mxu0
        %v991 = vadd.f32 0.0, %v990
        %v992 = vpop.f32.mrf.mxu0
        %v993 = vpop.f32.mrf.mxu0
        %v994 = vadd.f32 0.0, %v993
        %v995 = vpop.f32.mrf.mxu0
        %996 = vmatprep.mubr.bf16.mxu0 %v673
        %997 = vmatmul.mubr.bf16.gmra.mxu0 %v672
        %v998 = vpop.f32.mrf.mxu0
        %v999 = vadd.f32 0.0, %v998
        %v1000 = vpop.f32.mrf.mxu0
        %v1001 = vpop.f32.mrf.mxu0
        %v1002 = vadd.f32 0.0, %v1001
        %v1003 = vpop.f32.mrf.mxu0
        %1004 = vmatprep.mubr.bf16.mxu0 %v676
        %1005 = vmatmul.mubr.bf16.gmra.mxu0 %v675
        %v1006 = vpop.f32.mrf.mxu0
        %v1007 = vadd.f32 0.0, %v1006
        %v1008 = vpop.f32.mrf.mxu0
        %v1009 = vpop.f32.mrf.mxu0
        %v1010 = vadd.f32 0.0, %v1009
        %v1011 = vpop.f32.mrf.mxu0
        %1012 = vmatprep.mubr.bf16.mxu0 %v679
        %1013 = vmatmul.mubr.bf16.gmra.mxu0 %v678
        %v1014 = vpop.f32.mrf.mxu0
        %v1015 = vadd.f32 0.0, %v1014
        %v1016 = vpop.f32.mrf.mxu0
        %v1017 = vpop.f32.mrf.mxu0
        %v1018 = vadd.f32 0.0, %v1017
        %v1019 = vpop.f32.mrf.mxu0
        %1020 = vmatprep.mubr.bf16.mxu0 %v682
        %1021 = vmatmul.mubr.bf16.gmra.mxu0 %v681
        %v1022 = vpop.f32.mrf.mxu0
        %v1023 = vadd.f32 0.0, %v1022
        %v1024 = vpop.f32.mrf.mxu0
        %v1025 = vpop.f32.mrf.mxu0
        %v1026 = vadd.f32 0.0, %v1025
        %v1027 = vpop.f32.mrf.mxu0
        %1028 = vmatprep.mubr.bf16.mxu0 %v685
        %1029 = vmatmul.mubr.bf16.gmra.mxu0 %v684
        %v1030 = vpop.f32.mrf.mxu0
        %v1031 = vadd.f32 0.0, %v1030
        %v1032 = vpop.f32.mrf.mxu0
        %v1033 = vpop.f32.mrf.mxu0
        %v1034 = vadd.f32 0.0, %v1033
        %v1035 = vpop.f32.mrf.mxu0
        %1036 = vdwg.mxu0
        %1037 = vmatprep.subr.bf16.mxu0 0
        %1038 = vmatpush1.bf16.msra.mxu0 0
        %1039 = vmatprep.subr.bf16.mxu0 0
        %1040 = vmatpush1.bf16.msra.mxu0 0
        %1041 = vmatprep.subr.bf16.mxu0 0
        %1042 = vmatpush1.bf16.msra.mxu0 0
        %1043 = vmatprep.subr.bf16.mxu0 0
        %1044 = vmatpush1.bf16.msra.mxu0 0
        %1045 = vmatprep.subr.bf16.mxu0 0
        %1046 = vmatpush1.bf16.msra.mxu0 0
        %1047 = vmatprep.subr.bf16.mxu0 0
        %1048 = vmatpush1.bf16.msra.mxu0 0
        %1049 = vmatprep.subr.bf16.mxu0 0
        %1050 = vmatpush1.bf16.msra.mxu0 %v808
        %1051 = vmatprep.subr.bf16.mxu0 0
        %1052 = vmatpush1.bf16.msra.mxu0 %v807
        %1053 = vmatprep.subr.bf16.mxu0 0
        %1054 = vmatpush2.bf16.msra.mxu0 0
        %1055 = vmatprep.subr.bf16.mxu0 0
        %1056 = vmatpush2.bf16.msra.mxu0 0
        %1057 = vmatprep.subr.bf16.mxu0 0
        %1058 = vmatpush2.bf16.msra.mxu0 0
        %1059 = vmatprep.subr.bf16.mxu0 0
        %1060 = vmatpush2.bf16.msra.mxu0 0
        %1061 = vmatprep.subr.bf16.mxu0 0
        %1062 = vmatpush2.bf16.msra.mxu0 0
        %1063 = vmatprep.subr.bf16.mxu0 0
        %1064 = vmatpush2.bf16.msra.mxu0 0
        %1065 = vmatprep.subr.bf16.mxu0 0
        %1066 = vmatpush2.bf16.msra.mxu0 0
        %1067 = vmatprep.subr.bf16.mxu0 0
        %1068 = vmatpush2.bf16.msra.mxu0 0
        %1069 = vmatprep.mubr.bf16.mxu0 0
        %1070 = vmatmul.mubr.bf16.gmra.mxu0 %v829
        %v1071 = vpop.f32.mrf.mxu0
        %v1072 = vadd.f32 %v911, %v1071
        %v1073 = vpop.f32.mrf.mxu0
        %v1074 = vpop.f32.mrf.mxu0
        %v1075 = vadd.f32 %v914, %v1074
        %v1076 = vpop.f32.mrf.mxu0
        %1077 = vmatprep.mubr.bf16.mxu0 0
        %1078 = vmatmul.mubr.bf16.gmra.mxu0 %v832
        %v1079 = vpop.f32.mrf.mxu0
        %v1080 = vadd.f32 %v919, %v1079
        %v1081 = vpop.f32.mrf.mxu0
        %v1082 = vpop.f32.mrf.mxu0
        %v1083 = vadd.f32 %v922, %v1082
        %v1084 = vpop.f32.mrf.mxu0
        %1085 = vmatprep.mubr.bf16.mxu0 0
        %1086 = vmatmul.mubr.bf16.gmra.mxu0 %v835
        %v1087 = vpop.f32.mrf.mxu0
        %v1088 = vadd.f32 %v927, %v1087
        %v1089 = vpop.f32.mrf.mxu0
        %v1090 = vpop.f32.mrf.mxu0
        %v1091 = vadd.f32 %v930, %v1090
        %v1092 = vpop.f32.mrf.mxu0
        %1093 = vmatprep.mubr.bf16.mxu0 0
        %1094 = vmatmul.mubr.bf16.gmra.mxu0 %v838
        %v1095 = vpop.f32.mrf.mxu0
        %v1096 = vadd.f32 %v935, %v1095
        %v1097 = vpop.f32.mrf.mxu0
        %v1098 = vpop.f32.mrf.mxu0
        %v1099 = vadd.f32 %v938, %v1098
        %v1100 = vpop.f32.mrf.mxu0
        %1101 = vmatprep.mubr.bf16.mxu0 0
        %1102 = vmatmul.mubr.bf16.gmra.mxu0 %v841
        %v1103 = vpop.f32.mrf.mxu0
        %v1104 = vadd.f32 %v943, %v1103
        %v1105 = vpop.f32.mrf.mxu0
        %v1106 = vpop.f32.mrf.mxu0
        %v1107 = vadd.f32 %v946, %v1106
        %v1108 = vpop.f32.mrf.mxu0
        %1109 = vmatprep.mubr.bf16.mxu0 0
        %1110 = vmatmul.mubr.bf16.gmra.mxu0 %v844
        %v1111 = vpop.f32.mrf.mxu0
        %v1112 = vadd.f32 %v951, %v1111
        %v1113 = vpop.f32.mrf.mxu0
        %v1114 = vpop.f32.mrf.mxu0
        %v1115 = vadd.f32 %v954, %v1114
        %v1116 = vpop.f32.mrf.mxu0
        %1117 = vmatprep.mubr.bf16.mxu0 0
        %1118 = vmatmul.mubr.bf16.gmra.mxu0 %v847
        %v1119 = vpop.f32.mrf.mxu0
        %v1120 = vadd.f32 %v959, %v1119
        %v1121 = vpop.f32.mrf.mxu0
        %v1122 = vpop.f32.mrf.mxu0
        %v1123 = vadd.f32 %v962, %v1122
        %v1124 = vpop.f32.mrf.mxu0
        %1125 = vmatprep.mubr.bf16.mxu0 0
        %1126 = vmatmul.mubr.bf16.gmra.mxu0 %v850
        %v1127 = vpop.f32.mrf.mxu0
        %v1128 = vadd.f32 %v967, %v1127
        %v1129 = vpop.f32.mrf.mxu0
        %v1130 = vpop.f32.mrf.mxu0
        %v1131 = vadd.f32 %v970, %v1130
        %v1132 = vpop.f32.mrf.mxu0
        %1133 = vmatprep.mubr.bf16.mxu0 0
        %1134 = vmatmul.mubr.bf16.gmra.mxu0 %v853
        %v1135 = vpop.f32.mrf.mxu0
        %v1136 = vadd.f32 %v975, %v1135
        %v1137 = vpop.f32.mrf.mxu0
        %v1138 = vpop.f32.mrf.mxu0
        %v1139 = vadd.f32 %v978, %v1138
        %v1140 = vpop.f32.mrf.mxu0
        %1141 = vmatprep.mubr.bf16.mxu0 0
        %1142 = vmatmul.mubr.bf16.gmra.mxu0 %v856
        %v1143 = vpop.f32.mrf.mxu0
        %v1144 = vadd.f32 %v983, %v1143
        %v1145 = vpop.f32.mrf.mxu0
        %v1146 = vpop.f32.mrf.mxu0
        %v1147 = vadd.f32 %v986, %v1146
        %v1148 = vpop.f32.mrf.mxu0
        %1149 = vmatprep.mubr.bf16.mxu0 0
        %1150 = vmatmul.mubr.bf16.gmra.mxu0 %v859
        %v1151 = vpop.f32.mrf.mxu0
        %v1152 = vadd.f32 %v991, %v1151
        %v1153 = vpop.f32.mrf.mxu0
        %v1154 = vpop.f32.mrf.mxu0
        %v1155 = vadd.f32 %v994, %v1154
        %v1156 = vpop.f32.mrf.mxu0
        %1157 = vmatprep.mubr.bf16.mxu0 0
        %1158 = vmatmul.mubr.bf16.gmra.mxu0 %v862
        %v1159 = vpop.f32.mrf.mxu0
        %v1160 = vadd.f32 %v999, %v1159
        %v1161 = vpop.f32.mrf.mxu0
        %v1162 = vpop.f32.mrf.mxu0
        %v1163 = vadd.f32 %v1002, %v1162
        %v1164 = vpop.f32.mrf.mxu0
        %1165 = vmatprep.mubr.bf16.mxu0 0
        %1166 = vmatmul.mubr.bf16.gmra.mxu0 %v865
        %v1167 = vpop.f32.mrf.mxu0
        %v1168 = vadd.f32 %v1007, %v1167
        %v1169 = vpop.f32.mrf.mxu0
        %v1170 = vpop.f32.mrf.mxu0
        %v1171 = vadd.f32 %v1010, %v1170
        %v1172 = vpop.f32.mrf.mxu0
        %1173 = vmatprep.mubr.bf16.mxu0 0
        %1174 = vmatmul.mubr.bf16.gmra.mxu0 %v868
        %v1175 = vpop.f32.mrf.mxu0
        %v1176 = vadd.f32 %v1015, %v1175
        %v1177 = vpop.f32.mrf.mxu0
        %v1178 = vpop.f32.mrf.mxu0
        %v1179 = vadd.f32 %v1018, %v1178
        %v1180 = vpop.f32.mrf.mxu0
        %1181 = vmatprep.mubr.bf16.mxu0 0
        %1182 = vmatmul.mubr.bf16.gmra.mxu0 %v871
        %v1183 = vpop.f32.mrf.mxu0
        %v1184 = vadd.f32 %v1023, %v1183
        %v1185 = vpop.f32.mrf.mxu0
        %v1186 = vpop.f32.mrf.mxu0
        %v1187 = vadd.f32 %v1026, %v1186
        %v1188 = vpop.f32.mrf.mxu0
        %1189 = vmatprep.mubr.bf16.mxu0 0
        %1190 = vmatmul.mubr.bf16.gmra.mxu0 %v874
        %v1191 = vpop.f32.mrf.mxu0
        %v1192 = vadd.f32 %v1031, %v1191
        %v1193 = vpop.f32.mrf.mxu0
        %v1194 = vpop.f32.mrf.mxu0
        %v1195 = vadd.f32 %v1034, %v1194
        %v1196 = vpop.f32.mrf.mxu0
        %1197 = vdwg.mxu0
        %v1230 = vunpack.c.l.b16 %v342
        %v1231 = vunpack.c.l.b16 %v343
        %v1232 = vunpack.c.l.b16 %v344
        %v1233 = vunpack.c.l.b16 %v345
        %v1234 = vunpack.c.l.b16 %v346
        %v1235 = vunpack.c.l.b16 %v347
        %v1236 = vunpack.c.l.b16 %v348
        %v1237 = vunpack.c.l.b16 %v349
        %v1238 = vunpack.c.l.b16 %v350
        %v1239 = vunpack.c.l.b16 %v351
        %v1240 = vunpack.c.l.b16 %v352
        %v1241 = vunpack.c.l.b16 %v353
        %v1242 = vunpack.c.l.b16 %v354
        %v1243 = vunpack.c.l.b16 %v355
        %v1244 = vunpack.c.l.b16 %v356
        %v1245 = vunpack.c.l.b16 %v357
        %v1246 = vunpack.c.l.b16 %v358
        %v1247 = vunpack.c.l.b16 %v359
        %v1248 = vunpack.c.l.b16 %v360
        %v1249 = vunpack.c.l.b16 %v361
        %v1250 = vunpack.c.l.b16 %v362
        %v1251 = vunpack.c.l.b16 %v363
        %v1252 = vunpack.c.l.b16 %v364
        %v1253 = vunpack.c.l.b16 %v365
        %v1254 = vunpack.c.l.b16 %v366
        %v1255 = vunpack.c.l.b16 %v367
        %v1256 = vunpack.c.l.b16 %v368
        %v1257 = vunpack.c.l.b16 %v369
        %v1258 = vunpack.c.l.b16 %v370
        %v1259 = vunpack.c.l.b16 %v371
        %v1260 = vunpack.c.l.b16 %v372
        %v1261 = vunpack.c.l.b16 %v373
        %v1262 = vpack.c.b16 %v1231, %v1230
        %v1263 = vpack.c.b16 %v1233, %v1232
        %v1264 = vpack.c.b16 %v1235, %v1234
        %v1265 = vpack.c.b16 %v1237, %v1236
        %v1266 = vpack.c.b16 %v1239, %v1238
        %v1267 = vpack.c.b16 %v1241, %v1240
        %v1268 = vpack.c.b16 %v1243, %v1242
        %v1269 = vpack.c.b16 %v1245, %v1244
        %v1270 = vpack.c.b16 %v1247, %v1246
        %v1271 = vpack.c.b16 %v1249, %v1248
        %v1272 = vpack.c.b16 %v1251, %v1250
        %v1273 = vpack.c.b16 %v1253, %v1252
        %v1274 = vpack.c.b16 %v1255, %v1254
        %v1275 = vpack.c.b16 %v1257, %v1256
        %v1276 = vpack.c.b16 %v1259, %v1258
        %v1277 = vpack.c.b16 %v1261, %v1260
        %v1283 = vunpack.c.l.b16 %v374
        %v1284 = vunpack.c.l.b16 %v375
        %v1285 = vunpack.c.l.b16 %v376
        %v1286 = vunpack.c.l.b16 %v377
        %v1287 = vunpack.c.l.b16 %v378
        %v1288 = vpack.c.b16 %v1284, %v1283
        %v1289 = vpack.c.b16 %v1286, %v1285
        %v1290 = vpack.c.b16 %v1287, %v1287
        %vm1293 = vcmask 293888
        %v1295 = vsel %vm1293, %v1262, 0
        %v1298 = vsel %vm1293, %v1263, 0
        %v1301 = vsel %vm1293, %v1264, 0
        %v1304 = vsel %vm1293, %v1265, 0
        %v1307 = vsel %vm1293, %v1266, 0
        %v1310 = vsel %vm1293, %v1267, 0
        %v1313 = vsel %vm1293, %v1268, 0
        %v1316 = vsel %vm1293, %v1269, 0
        %v1319 = vsel %vm1293, %v1270, 0
        %v1322 = vsel %vm1293, %v1271, 0
        %v1325 = vsel %vm1293, %v1272, 0
        %v1328 = vsel %vm1293, %v1273, 0
        %v1331 = vsel %vm1293, %v1274, 0
        %v1334 = vsel %vm1293, %v1275, 0
        %v1337 = vsel %vm1293, %v1276, 0
        %v1340 = vsel %vm1293, %v1277, 0
        %vm1342 = vcmask 1041408
        %v1344 = vsel %vm1342, %v1290, 0
        %1346 = vmatprep.subr.bf16.mxu0 0
        %1347 = vmatpush1.bf16.msra.mxu0 0
        %1348 = vmatprep.subr.bf16.mxu0 0
        %1349 = vmatpush1.bf16.msra.mxu0 0
        %1350 = vmatprep.subr.bf16.mxu0 0
        %1351 = vmatpush1.bf16.msra.mxu0 0
        %1352 = vmatprep.subr.bf16.mxu0 0
        %1353 = vmatpush1.bf16.msra.mxu0 0
        %1354 = vmatprep.subr.bf16.mxu0 0
        %1355 = vmatpush1.bf16.msra.mxu0 0
        %1356 = vmatprep.subr.bf16.mxu0 0
        %1357 = vmatpush1.bf16.msra.mxu0 %v1344
        %1358 = vmatprep.subr.bf16.mxu0 0
        %1359 = vmatpush1.bf16.msra.mxu0 %v1289
        %1360 = vmatprep.subr.bf16.mxu0 0
        %1361 = vmatpush1.bf16.msra.mxu0 %v1288
        %1362 = vmatprep.subr.bf16.mxu0 0
        %1363 = vmatpush2.bf16.msra.mxu0 0
        %1364 = vmatprep.subr.bf16.mxu0 0
        %1365 = vmatpush2.bf16.msra.mxu0 0
        %1366 = vmatprep.subr.bf16.mxu0 0
        %1367 = vmatpush2.bf16.msra.mxu0 0
        %1368 = vmatprep.subr.bf16.mxu0 0
        %1369 = vmatpush2.bf16.msra.mxu0 0
        %1370 = vmatprep.subr.bf16.mxu0 0
        %1371 = vmatpush2.bf16.msra.mxu0 0
        %1372 = vmatprep.subr.bf16.mxu0 0
        %1373 = vmatpush2.bf16.msra.mxu0 0
        %1374 = vmatprep.subr.bf16.mxu0 0
        %1375 = vmatpush2.bf16.msra.mxu0 0
        %1376 = vmatprep.subr.bf16.mxu0 0
        %1377 = vmatpush2.bf16.msra.mxu0 0
        %1378 = vmatprep.mubr.bf16.mxu0 0
        %1379 = vmatmul.mubr.bf16.gmra.mxu0 %v1295
        %v1380 = vpop.f32.mrf.mxu0
        %v1381 = vadd.f32 %v1072, %v1380
        %v1382 = vpop.f32.mrf.mxu0
        %v1383 = vpop.f32.mrf.mxu0
        %v1384 = vadd.f32 %v1075, %v1383
        %v1385 = vpop.f32.mrf.mxu0
        %1386 = vmatprep.mubr.bf16.mxu0 0
        %1387 = vmatmul.mubr.bf16.gmra.mxu0 %v1298
        %v1388 = vpop.f32.mrf.mxu0
        %v1389 = vadd.f32 %v1080, %v1388
        %v1390 = vpop.f32.mrf.mxu0
        %v1391 = vpop.f32.mrf.mxu0
        %v1392 = vadd.f32 %v1083, %v1391
        %v1393 = vpop.f32.mrf.mxu0
        %1394 = vmatprep.mubr.bf16.mxu0 0
        %1395 = vmatmul.mubr.bf16.gmra.mxu0 %v1301
        %v1396 = vpop.f32.mrf.mxu0
        %v1397 = vadd.f32 %v1088, %v1396
        %v1398 = vpop.f32.mrf.mxu0
        %v1399 = vpop.f32.mrf.mxu0
        %v1400 = vadd.f32 %v1091, %v1399
        %v1401 = vpop.f32.mrf.mxu0
        %1402 = vmatprep.mubr.bf16.mxu0 0
        %1403 = vmatmul.mubr.bf16.gmra.mxu0 %v1304
        %v1404 = vpop.f32.mrf.mxu0
        %v1405 = vadd.f32 %v1096, %v1404
        %v1406 = vpop.f32.mrf.mxu0
        %v1407 = vpop.f32.mrf.mxu0
        %v1408 = vadd.f32 %v1099, %v1407
        %v1409 = vpop.f32.mrf.mxu0
        %1410 = vmatprep.mubr.bf16.mxu0 0
        %1411 = vmatmul.mubr.bf16.gmra.mxu0 %v1307
        %v1412 = vpop.f32.mrf.mxu0
        %v1413 = vadd.f32 %v1104, %v1412
        %v1414 = vpop.f32.mrf.mxu0
        %v1415 = vpop.f32.mrf.mxu0
        %v1416 = vadd.f32 %v1107, %v1415
        %v1417 = vpop.f32.mrf.mxu0
        %1418 = vmatprep.mubr.bf16.mxu0 0
        %1419 = vmatmul.mubr.bf16.gmra.mxu0 %v1310
        %v1420 = vpop.f32.mrf.mxu0
        %v1421 = vadd.f32 %v1112, %v1420
        %v1422 = vpop.f32.mrf.mxu0
        %v1423 = vpop.f32.mrf.mxu0
        %v1424 = vadd.f32 %v1115, %v1423
        %v1425 = vpop.f32.mrf.mxu0
        %1426 = vmatprep.mubr.bf16.mxu0 0
        %1427 = vmatmul.mubr.bf16.gmra.mxu0 %v1313
        %v1428 = vpop.f32.mrf.mxu0
        %v1429 = vadd.f32 %v1120, %v1428
        %v1430 = vpop.f32.mrf.mxu0
        %v1431 = vpop.f32.mrf.mxu0
        %v1432 = vadd.f32 %v1123, %v1431
        %v1433 = vpop.f32.mrf.mxu0
        %1434 = vmatprep.mubr.bf16.mxu0 0
        %1435 = vmatmul.mubr.bf16.gmra.mxu0 %v1316
        %v1436 = vpop.f32.mrf.mxu0
        %v1437 = vadd.f32 %v1128, %v1436
        %v1438 = vpop.f32.mrf.mxu0
        %v1439 = vpop.f32.mrf.mxu0
        %v1440 = vadd.f32 %v1131, %v1439
        %v1441 = vpop.f32.mrf.mxu0
        %1442 = vmatprep.mubr.bf16.mxu0 0
        %1443 = vmatmul.mubr.bf16.gmra.mxu0 %v1319
        %v1444 = vpop.f32.mrf.mxu0
        %v1445 = vadd.f32 %v1136, %v1444
        %v1446 = vpop.f32.mrf.mxu0
        %v1447 = vpop.f32.mrf.mxu0
        %v1448 = vadd.f32 %v1139, %v1447
        %v1449 = vpop.f32.mrf.mxu0
        %1450 = vmatprep.mubr.bf16.mxu0 0
        %1451 = vmatmul.mubr.bf16.gmra.mxu0 %v1322
        %v1452 = vpop.f32.mrf.mxu0
        %v1453 = vadd.f32 %v1144, %v1452
        %v1454 = vpop.f32.mrf.mxu0
        %v1455 = vpop.f32.mrf.mxu0
        %v1456 = vadd.f32 %v1147, %v1455
        %v1457 = vpop.f32.mrf.mxu0
        %1458 = vmatprep.mubr.bf16.mxu0 0
        %1459 = vmatmul.mubr.bf16.gmra.mxu0 %v1325
        %v1460 = vpop.f32.mrf.mxu0
        %v1461 = vadd.f32 %v1152, %v1460
        %v1462 = vpop.f32.mrf.mxu0
        %v1463 = vpop.f32.mrf.mxu0
        %v1464 = vadd.f32 %v1155, %v1463
        %v1465 = vpop.f32.mrf.mxu0
        %1466 = vmatprep.mubr.bf16.mxu0 0
        %1467 = vmatmul.mubr.bf16.gmra.mxu0 %v1328
        %v1468 = vpop.f32.mrf.mxu0
        %v1469 = vadd.f32 %v1160, %v1468
        %v1470 = vpop.f32.mrf.mxu0
        %v1471 = vpop.f32.mrf.mxu0
        %v1472 = vadd.f32 %v1163, %v1471
        %v1473 = vpop.f32.mrf.mxu0
        %1474 = vmatprep.mubr.bf16.mxu0 0
        %1475 = vmatmul.mubr.bf16.gmra.mxu0 %v1331
        %v1476 = vpop.f32.mrf.mxu0
        %v1477 = vadd.f32 %v1168, %v1476
        %v1478 = vpop.f32.mrf.mxu0
        %v1479 = vpop.f32.mrf.mxu0
        %v1480 = vadd.f32 %v1171, %v1479
        %v1481 = vpop.f32.mrf.mxu0
        %1482 = vmatprep.mubr.bf16.mxu0 0
        %1483 = vmatmul.mubr.bf16.gmra.mxu0 %v1334
        %v1484 = vpop.f32.mrf.mxu0
        %v1485 = vadd.f32 %v1176, %v1484
        %v1486 = vpop.f32.mrf.mxu0
        %v1487 = vpop.f32.mrf.mxu0
        %v1488 = vadd.f32 %v1179, %v1487
        %v1489 = vpop.f32.mrf.mxu0
        %1490 = vmatprep.mubr.bf16.mxu0 0
        %1491 = vmatmul.mubr.bf16.gmra.mxu0 %v1337
        %v1492 = vpop.f32.mrf.mxu0
        %v1493 = vadd.f32 %v1184, %v1492
        %v1494 = vpop.f32.mrf.mxu0
        %v1495 = vpop.f32.mrf.mxu0
        %v1496 = vadd.f32 %v1187, %v1495
        %v1497 = vpop.f32.mrf.mxu0
        %1498 = vmatprep.mubr.bf16.mxu0 0
        %1499 = vmatmul.mubr.bf16.gmra.mxu0 %v1340
        %v1500 = vpop.f32.mrf.mxu0
        %v1501 = vadd.f32 %v1192, %v1500
        %v1502 = vpop.f32.mrf.mxu0
        %v1503 = vpop.f32.mrf.mxu0
        %v1504 = vadd.f32 %v1195, %v1503
        %v1505 = vpop.f32.mrf.mxu0
        %1506 = vdwg.mxu0
        %v1507 = vld [vmem:[%s4] sm:$0x1]
        %v1509 = vlaneseq
        %v1510 = vshrl.u32 %v1509, 7
        %v1511 = vsub.s32 0, %v1510
        %v1512 = vrot.slane %v1507, %v1511
        %v1514 = vadd.f32 %v1381, %v1512
        %v1515 = vadd.f32 %v1384, %v1512
        %v1516 = vadd.f32 %v1389, %v1512
        %v1517 = vadd.f32 %v1392, %v1512
        %v1518 = vadd.f32 %v1397, %v1512
        %v1519 = vadd.f32 %v1400, %v1512
        %v1520 = vadd.f32 %v1405, %v1512
        %v1521 = vadd.f32 %v1408, %v1512
        %v1522 = vadd.f32 %v1413, %v1512
        %v1523 = vadd.f32 %v1416, %v1512
        %v1524 = vadd.f32 %v1421, %v1512
        %v1525 = vadd.f32 %v1424, %v1512
        %v1526 = vadd.f32 %v1429, %v1512
        %v1527 = vadd.f32 %v1432, %v1512
        %v1528 = vadd.f32 %v1437, %v1512
        %v1529 = vadd.f32 %v1440, %v1512
        %v1530 = vadd.f32 %v1445, %v1512
        %v1531 = vadd.f32 %v1448, %v1512
        %v1532 = vadd.f32 %v1453, %v1512
        %v1533 = vadd.f32 %v1456, %v1512
        %v1534 = vadd.f32 %v1461, %v1512
        %v1535 = vadd.f32 %v1464, %v1512
        %v1536 = vadd.f32 %v1469, %v1512
        %v1537 = vadd.f32 %v1472, %v1512
        %v1538 = vadd.f32 %v1477, %v1512
        %v1539 = vadd.f32 %v1480, %v1512
        %v1540 = vadd.f32 %v1485, %v1512
        %v1541 = vadd.f32 %v1488, %v1512
        %v1542 = vadd.f32 %v1493, %v1512
        %v1543 = vadd.f32 %v1496, %v1512
        %v1544 = vadd.f32 %v1501, %v1512
        %v1545 = vadd.f32 %v1504, %v1512
        %v1546 = vxor.u32 %v1514, 2147483648
        %v1547 = vxor.u32 %v1515, 2147483648
        %v1548 = vxor.u32 %v1516, 2147483648
        %v1549 = vxor.u32 %v1517, 2147483648
        %v1550 = vxor.u32 %v1518, 2147483648
        %v1551 = vxor.u32 %v1519, 2147483648
        %v1552 = vxor.u32 %v1520, 2147483648
        %v1553 = vxor.u32 %v1521, 2147483648
        %v1554 = vxor.u32 %v1522, 2147483648
        %v1555 = vxor.u32 %v1523, 2147483648
        %v1556 = vxor.u32 %v1524, 2147483648
        %v1557 = vxor.u32 %v1525, 2147483648
        %v1558 = vxor.u32 %v1526, 2147483648
        %v1559 = vxor.u32 %v1527, 2147483648
        %v1560 = vxor.u32 %v1528, 2147483648
        %v1561 = vxor.u32 %v1529, 2147483648
        %v1562 = vxor.u32 %v1530, 2147483648
        %v1563 = vxor.u32 %v1531, 2147483648
        %v1564 = vxor.u32 %v1532, 2147483648
        %v1565 = vxor.u32 %v1533, 2147483648
        %v1566 = vxor.u32 %v1534, 2147483648
        %v1567 = vxor.u32 %v1535, 2147483648
        %v1568 = vxor.u32 %v1536, 2147483648
        %v1569 = vxor.u32 %v1537, 2147483648
        %v1570 = vxor.u32 %v1538, 2147483648
        %v1571 = vxor.u32 %v1539, 2147483648
        %v1572 = vxor.u32 %v1540, 2147483648
        %v1573 = vxor.u32 %v1541, 2147483648
        %v1574 = vxor.u32 %v1542, 2147483648
        %v1575 = vxor.u32 %v1543, 2147483648
        %v1576 = vxor.u32 %v1544, 2147483648
        %v1577 = vxor.u32 %v1545, 2147483648
        %v1578 = vmul.f32 %v1546, 1.442695
        %v1579 = vpow.pop %v1578
        %v1580 = vmul.f32 %v1547, 1.442695
        %v1581 = vpow.pop %v1580
        %v1582 = vmul.f32 %v1548, 1.442695
        %v1583 = vpow.pop %v1582
        %v1584 = vmul.f32 %v1549, 1.442695
        %v1585 = vpow.pop %v1584
        %v1586 = vmul.f32 %v1550, 1.442695
        %v1587 = vpow.pop %v1586
        %v1588 = vmul.f32 %v1551, 1.442695
        %v1589 = vpow.pop %v1588
        %v1590 = vmul.f32 %v1552, 1.442695
        %v1591 = vpow.pop %v1590
        %v1592 = vmul.f32 %v1553, 1.442695
        %v1593 = vpow.pop %v1592
        %v1594 = vmul.f32 %v1554, 1.442695
        %v1595 = vpow.pop %v1594
        %v1596 = vmul.f32 %v1555, 1.442695
        %v1597 = vpow.pop %v1596
        %v1598 = vmul.f32 %v1556, 1.442695
        %v1599 = vpow.pop %v1598
        %v1600 = vmul.f32 %v1557, 1.442695
        %v1601 = vpow.pop %v1600
        %v1602 = vmul.f32 %v1558, 1.442695
        %v1603 = vpow.pop %v1602
        %v1604 = vmul.f32 %v1559, 1.442695
        %v1605 = vpow.pop %v1604
        %v1606 = vmul.f32 %v1560, 1.442695
        %v1607 = vpow.pop %v1606
        %v1608 = vmul.f32 %v1561, 1.442695
        %v1609 = vpow.pop %v1608
        %v1610 = vmul.f32 %v1562, 1.442695
        %v1611 = vpow.pop %v1610
        %v1612 = vmul.f32 %v1563, 1.442695
        %v1613 = vpow.pop %v1612
        %v1614 = vmul.f32 %v1564, 1.442695
        %v1615 = vpow.pop %v1614
        %v1616 = vmul.f32 %v1565, 1.442695
        %v1617 = vpow.pop %v1616
        %v1618 = vmul.f32 %v1566, 1.442695
        %v1619 = vpow.pop %v1618
        %v1620 = vmul.f32 %v1567, 1.442695
        %v1621 = vpow.pop %v1620
        %v1622 = vmul.f32 %v1568, 1.442695
        %v1623 = vpow.pop %v1622
        %v1624 = vmul.f32 %v1569, 1.442695
        %v1625 = vpow.pop %v1624
        %v1626 = vmul.f32 %v1570, 1.442695
        %v1627 = vpow.pop %v1626
        %v1628 = vmul.f32 %v1571, 1.442695
        %v1629 = vpow.pop %v1628
        %v1630 = vmul.f32 %v1572, 1.442695
        %v1631 = vpow.pop %v1630
        %v1632 = vmul.f32 %v1573, 1.442695
        %v1633 = vpow.pop %v1632
        %v1634 = vmul.f32 %v1574, 1.442695
        %v1635 = vpow.pop %v1634
        %v1636 = vmul.f32 %v1575, 1.442695
        %v1637 = vpow.pop %v1636
        %v1638 = vmul.f32 %v1576, 1.442695
        %v1639 = vpow.pop %v1638
        %v1640 = vmul.f32 %v1577, 1.442695
        %v1641 = vpow.pop %v1640
        %v1642 = vadd.f32 %v1579, 1.0
        %v1643 = vadd.f32 %v1581, 1.0
        %v1644 = vadd.f32 %v1583, 1.0
        %v1645 = vadd.f32 %v1585, 1.0
        %v1646 = vadd.f32 %v1587, 1.0
        %v1647 = vadd.f32 %v1589, 1.0
        %v1648 = vadd.f32 %v1591, 1.0
        %v1649 = vadd.f32 %v1593, 1.0
        %v1650 = vadd.f32 %v1595, 1.0
        %v1651 = vadd.f32 %v1597, 1.0
        %v1652 = vadd.f32 %v1599, 1.0
        %v1653 = vadd.f32 %v1601, 1.0
        %v1654 = vadd.f32 %v1603, 1.0
        %v1655 = vadd.f32 %v1605, 1.0
        %v1656 = vadd.f32 %v1607, 1.0
        %v1657 = vadd.f32 %v1609, 1.0
        %v1658 = vadd.f32 %v1611, 1.0
        %v1659 = vadd.f32 %v1613, 1.0
        %v1660 = vadd.f32 %v1615, 1.0
        %v1661 = vadd.f32 %v1617, 1.0
        %v1662 = vadd.f32 %v1619, 1.0
        %v1663 = vadd.f32 %v1621, 1.0
        %v1664 = vadd.f32 %v1623, 1.0
        %v1665 = vadd.f32 %v1625, 1.0
        %v1666 = vadd.f32 %v1627, 1.0
        %v1667 = vadd.f32 %v1629, 1.0
        %v1668 = vadd.f32 %v1631, 1.0
        %v1669 = vadd.f32 %v1633, 1.0
        %v1670 = vadd.f32 %v1635, 1.0
        %v1671 = vadd.f32 %v1637, 1.0
        %v1672 = vadd.f32 %v1639, 1.0
        %v1673 = vadd.f32 %v1641, 1.0
        %v1674 = vrcp.pop %v1642
        %v1675 = vmul.f32 1.0, %v1674
        %v1676 = vrcp.pop %v1643
        %v1677 = vmul.f32 1.0, %v1676
        %v1678 = vrcp.pop %v1644
        %v1679 = vmul.f32 1.0, %v1678
        %v1680 = vrcp.pop %v1645
        %v1681 = vmul.f32 1.0, %v1680
        %v1682 = vrcp.pop %v1646
        %v1683 = vmul.f32 1.0, %v1682
        %v1684 = vrcp.pop %v1647
        %v1685 = vmul.f32 1.0, %v1684
        %v1686 = vrcp.pop %v1648
        %v1687 = vmul.f32 1.0, %v1686
        %v1688 = vrcp.pop %v1649
        %v1689 = vmul.f32 1.0, %v1688
        %v1690 = vrcp.pop %v1650
        %v1691 = vmul.f32 1.0, %v1690
        %v1692 = vrcp.pop %v1651
        %v1693 = vmul.f32 1.0, %v1692
        %v1694 = vrcp.pop %v1652
        %v1695 = vmul.f32 1.0, %v1694
        %v1696 = vrcp.pop %v1653
        %v1697 = vmul.f32 1.0, %v1696
        %v1698 = vrcp.pop %v1654
        %v1699 = vmul.f32 1.0, %v1698
        %v1700 = vrcp.pop %v1655
        %v1701 = vmul.f32 1.0, %v1700
        %v1702 = vrcp.pop %v1656
        %v1703 = vmul.f32 1.0, %v1702
        %v1704 = vrcp.pop %v1657
        %v1705 = vmul.f32 1.0, %v1704
        %v1706 = vrcp.pop %v1658
        %v1707 = vmul.f32 1.0, %v1706
        %v1708 = vrcp.pop %v1659
        %v1709 = vmul.f32 1.0, %v1708
        %v1710 = vrcp.pop %v1660
        %v1711 = vmul.f32 1.0, %v1710
        %v1712 = vrcp.pop %v1661
        %v1713 = vmul.f32 1.0, %v1712
        %v1714 = vrcp.pop %v1662
        %v1715 = vmul.f32 1.0, %v1714
        %v1716 = vrcp.pop %v1663
        %v1717 = vmul.f32 1.0, %v1716
        %v1718 = vrcp.pop %v1664
        %v1719 = vmul.f32 1.0, %v1718
        %v1720 = vrcp.pop %v1665
        %v1721 = vmul.f32 1.0, %v1720
        %v1722 = vrcp.pop %v1666
        %v1723 = vmul.f32 1.0, %v1722
        %v1724 = vrcp.pop %v1667
        %v1725 = vmul.f32 1.0, %v1724
        %v1726 = vrcp.pop %v1668
        %v1727 = vmul.f32 1.0, %v1726
        %v1728 = vrcp.pop %v1669
        %v1729 = vmul.f32 1.0, %v1728
        %v1730 = vrcp.pop %v1670
        %v1731 = vmul.f32 1.0, %v1730
        %v1732 = vrcp.pop %v1671
        %v1733 = vmul.f32 1.0, %v1732
        %v1734 = vrcp.pop %v1672
        %v1735 = vmul.f32 1.0, %v1734
        %v1736 = vrcp.pop %v1673
        %v1737 = vmul.f32 1.0, %v1736
        %v1738 = vtanh.pop %v1514
        %v1739 = vtanh.pop %v1515
        %v1740 = vtanh.pop %v1516
        %v1741 = vtanh.pop %v1517
        %v1742 = vtanh.pop %v1518
        %v1743 = vtanh.pop %v1519
        %v1744 = vtanh.pop %v1520
        %v1745 = vtanh.pop %v1521
        %v1746 = vtanh.pop %v1522
        %v1747 = vtanh.pop %v1523
        %v1748 = vtanh.pop %v1524
        %v1749 = vtanh.pop %v1525
        %v1750 = vtanh.pop %v1526
        %v1751 = vtanh.pop %v1527
        %v1752 = vtanh.pop %v1528
        %v1753 = vtanh.pop %v1529
        %v1754 = vtanh.pop %v1530
        %v1755 = vtanh.pop %v1531
        %v1756 = vtanh.pop %v1532
        %v1757 = vtanh.pop %v1533
        %v1758 = vtanh.pop %v1534
        %v1759 = vtanh.pop %v1535
        %v1760 = vtanh.pop %v1536
        %v1761 = vtanh.pop %v1537
        %v1762 = vtanh.pop %v1538
        %v1763 = vtanh.pop %v1539
        %v1764 = vtanh.pop %v1540
        %v1765 = vtanh.pop %v1541
        %v1766 = vtanh.pop %v1542
        %v1767 = vtanh.pop %v1543
        %v1768 = vtanh.pop %v1544
        %v1769 = vtanh.pop %v1545
        %v1770 = vld [vmem:[%s332] sm:$0xff]
        %v1771 = vld [vmem:[%s332 + $0x8] sm:$0xff]
        %v1772 = vld [vmem:[%s332 + $0x10] sm:$0xff]
        %v1773 = vld [vmem:[%s332 + $0x18] sm:$0xff]
        %v1774 = vld [vmem:[%s332 + $0x20] sm:$0xff]
        %v1775 = vld [vmem:[%s332 + $0x28] sm:$0xff]
        %v1776 = vld [vmem:[%s332 + $0x30] sm:$0xff]
        %v1777 = vld [vmem:[%s332 + $0x38] sm:$0xff]
        %v1778 = vld [vmem:[%s332 + $0x40] sm:$0xff]
        %v1779 = vld [vmem:[%s332 + $0x48] sm:$0xff]
        %v1780 = vld [vmem:[%s332 + $0x50] sm:$0xff]
        %v1781 = vld [vmem:[%s332 + $0x58] sm:$0xff]
        %v1782 = vld [vmem:[%s332 + $0x60] sm:$0xff]
        %v1783 = vld [vmem:[%s332 + $0x68] sm:$0xff]
        %v1784 = vld [vmem:[%s332 + $0x70] sm:$0xff]
        %v1785 = vld [vmem:[%s332 + $0x78] sm:$0xff]
        %v1786 = vld [vmem:[%s332 + $0x80] sm:$0xff]
        %v1787 = vld [vmem:[%s332 + $0x88] sm:$0xff]
        %v1788 = vld [vmem:[%s332 + $0x90] sm:$0xff]
        %v1789 = vld [vmem:[%s332 + $0x98] sm:$0xff]
        %v1790 = vld [vmem:[%s332 + $0xa0] sm:$0xff]
        %v1791 = vld [vmem:[%s332 + $0xa8] sm:$0xff]
        %v1792 = vld [vmem:[%s332 + $0xb0] sm:$0xff]
        %v1793 = vld [vmem:[%s332 + $0xb8] sm:$0xff]
        %v1794 = vld [vmem:[%s332 + $0xc0] sm:$0xff]
        %v1795 = vld [vmem:[%s332 + $0xc8] sm:$0xff]
        %v1796 = vld [vmem:[%s332 + $0xd0] sm:$0xff]
        %v1797 = vld [vmem:[%s332 + $0xd8] sm:$0xff]
        %v1798 = vld [vmem:[%s332 + $0xe0] sm:$0xff]
        %v1799 = vld [vmem:[%s332 + $0xe8] sm:$0xff]
        %v1800 = vld [vmem:[%s332 + $0xf0] sm:$0xff]
        %v1801 = vld [vmem:[%s332 + $0xf8] sm:$0xff]
        %1834 = vrot.lane.b32.xlu0 %v1770, 32
        %v1835 = vpop.permute.xlu0 %1834
        %1836 = vrot.lane.b32.xlu0 %v1771, 32
        %v1837 = vpop.permute.xlu0 %1836
        %1838 = vrot.lane.b32.xlu0 %v1772, 32
        %v1839 = vpop.permute.xlu0 %1838
        %1840 = vrot.lane.b32.xlu0 %v1773, 32
        %v1841 = vpop.permute.xlu0 %1840
        %1842 = vrot.lane.b32.xlu0 %v1774, 32
        %v1843 = vpop.permute.xlu0 %1842
        %1844 = vrot.lane.b32.xlu0 %v1775, 32
        %v1845 = vpop.permute.xlu0 %1844
        %1846 = vrot.lane.b32.xlu0 %v1776, 32
        %v1847 = vpop.permute.xlu0 %1846
        %1848 = vrot.lane.b32.xlu0 %v1777, 32
        %v1849 = vpop.permute.xlu0 %1848
        %1850 = vrot.lane.b32.xlu0 %v1778, 32
        %v1851 = vpop.permute.xlu0 %1850
        %1852 = vrot.lane.b32.xlu0 %v1779, 32
        %v1853 = vpop.permute.xlu0 %1852
        %1854 = vrot.lane.b32.xlu0 %v1780, 32
        %v1855 = vpop.permute.xlu0 %1854
        %1856 = vrot.lane.b32.xlu0 %v1781, 32
        %v1857 = vpop.permute.xlu0 %1856
        %1858 = vrot.lane.b32.xlu0 %v1782, 32
        %v1859 = vpop.permute.xlu0 %1858
        %1860 = vrot.lane.b32.xlu0 %v1783, 32
        %v1861 = vpop.permute.xlu0 %1860
        %1862 = vrot.lane.b32.xlu0 %v1784, 32
        %v1863 = vpop.permute.xlu0 %1862
        %1864 = vrot.lane.b32.xlu0 %v1785, 32
        %v1865 = vpop.permute.xlu0 %1864
        %1866 = vrot.lane.b32.xlu0 %v1786, 32
        %v1867 = vpop.permute.xlu0 %1866
        %1868 = vrot.lane.b32.xlu0 %v1787, 32
        %v1869 = vpop.permute.xlu0 %1868
        %1870 = vrot.lane.b32.xlu0 %v1788, 32
        %v1871 = vpop.permute.xlu0 %1870
        %1872 = vrot.lane.b32.xlu0 %v1789, 32
        %v1873 = vpop.permute.xlu0 %1872
        %1874 = vrot.lane.b32.xlu0 %v1790, 32
        %v1875 = vpop.permute.xlu0 %1874
        %1876 = vrot.lane.b32.xlu0 %v1791, 32
        %v1877 = vpop.permute.xlu0 %1876
        %1878 = vrot.lane.b32.xlu0 %v1792, 32
        %v1879 = vpop.permute.xlu0 %1878
        %1880 = vrot.lane.b32.xlu0 %v1793, 32
        %v1881 = vpop.permute.xlu0 %1880
        %1882 = vrot.lane.b32.xlu0 %v1794, 32
        %v1883 = vpop.permute.xlu0 %1882
        %1884 = vrot.lane.b32.xlu0 %v1795, 32
        %v1885 = vpop.permute.xlu0 %1884
        %1886 = vrot.lane.b32.xlu0 %v1796, 32
        %v1887 = vpop.permute.xlu0 %1886
        %1888 = vrot.lane.b32.xlu0 %v1797, 32
        %v1889 = vpop.permute.xlu0 %1888
        %1890 = vrot.lane.b32.xlu0 %v1798, 32
        %v1891 = vpop.permute.xlu0 %1890
        %1892 = vrot.lane.b32.xlu0 %v1799, 32
        %v1893 = vpop.permute.xlu0 %1892
        %1894 = vrot.lane.b32.xlu0 %v1800, 32
        %v1895 = vpop.permute.xlu0 %1894
        %1896 = vrot.lane.b32.xlu0 %v1801, 32
        %v1897 = vpop.permute.xlu0 %1896
        %v1930 = vmul.f32 %v1675, %v1835
        %v1931 = vmul.f32 %v1677, %v1837
        %v1932 = vmul.f32 %v1679, %v1839
        %v1933 = vmul.f32 %v1681, %v1841
        %v1934 = vmul.f32 %v1683, %v1843
        %v1935 = vmul.f32 %v1685, %v1845
        %v1936 = vmul.f32 %v1687, %v1847
        %v1937 = vmul.f32 %v1689, %v1849
        %v1938 = vmul.f32 %v1691, %v1851
        %v1939 = vmul.f32 %v1693, %v1853
        %v1940 = vmul.f32 %v1695, %v1855
        %v1941 = vmul.f32 %v1697, %v1857
        %v1942 = vmul.f32 %v1699, %v1859
        %v1943 = vmul.f32 %v1701, %v1861
        %v1944 = vmul.f32 %v1703, %v1863
        %v1945 = vmul.f32 %v1705, %v1865
        %v1946 = vmul.f32 %v1707, %v1867
        %v1947 = vmul.f32 %v1709, %v1869
        %v1948 = vmul.f32 %v1711, %v1871
        %v1949 = vmul.f32 %v1713, %v1873
        %v1950 = vmul.f32 %v1715, %v1875
        %v1951 = vmul.f32 %v1717, %v1877
        %v1952 = vmul.f32 %v1719, %v1879
        %v1953 = vmul.f32 %v1721, %v1881
        %v1954 = vmul.f32 %v1723, %v1883
        %v1955 = vmul.f32 %v1725, %v1885
        %v1956 = vmul.f32 %v1727, %v1887
        %v1957 = vmul.f32 %v1729, %v1889
        %v1958 = vmul.f32 %v1731, %v1891
        %v1959 = vmul.f32 %v1733, %v1893
        %v1960 = vmul.f32 %v1735, %v1895
        %v1961 = vmul.f32 %v1737, %v1897
        %1994 = vrot.lane.b32.xlu0 %v1738, 32
        %v1995 = vpop.permute.xlu0 %1994
        %1996 = vrot.lane.b32.xlu0 %v1739, 32
        %v1997 = vpop.permute.xlu0 %1996
        %1998 = vrot.lane.b32.xlu0 %v1740, 32
        %v1999 = vpop.permute.xlu0 %1998
        %2000 = vrot.lane.b32.xlu0 %v1741, 32
        %v2001 = vpop.permute.xlu0 %2000
        %2002 = vrot.lane.b32.xlu0 %v1742, 32
        %v2003 = vpop.permute.xlu0 %2002
        %2004 = vrot.lane.b32.xlu0 %v1743, 32
        %v2005 = vpop.permute.xlu0 %2004
        %2006 = vrot.lane.b32.xlu0 %v1744, 32
        %v2007 = vpop.permute.xlu0 %2006
        %2008 = vrot.lane.b32.xlu0 %v1745, 32
        %v2009 = vpop.permute.xlu0 %2008
        %2010 = vrot.lane.b32.xlu0 %v1746, 32
        %v2011 = vpop.permute.xlu0 %2010
        %2012 = vrot.lane.b32.xlu0 %v1747, 32
        %v2013 = vpop.permute.xlu0 %2012
        %2014 = vrot.lane.b32.xlu0 %v1748, 32
        %v2015 = vpop.permute.xlu0 %2014
        %2016 = vrot.lane.b32.xlu0 %v1749, 32
        %v2017 = vpop.permute.xlu0 %2016
        %2018 = vrot.lane.b32.xlu0 %v1750, 32
        %v2019 = vpop.permute.xlu0 %2018
        %2020 = vrot.lane.b32.xlu0 %v1751, 32
        %v2021 = vpop.permute.xlu0 %2020
        %2022 = vrot.lane.b32.xlu0 %v1752, 32
        %v2023 = vpop.permute.xlu0 %2022
        %2024 = vrot.lane.b32.xlu0 %v1753, 32
        %v2025 = vpop.permute.xlu0 %2024
        %2026 = vrot.lane.b32.xlu0 %v1754, 32
        %v2027 = vpop.permute.xlu0 %2026
        %2028 = vrot.lane.b32.xlu0 %v1755, 32
        %v2029 = vpop.permute.xlu0 %2028
        %2030 = vrot.lane.b32.xlu0 %v1756, 32
        %v2031 = vpop.permute.xlu0 %2030
        %2032 = vrot.lane.b32.xlu0 %v1757, 32
        %v2033 = vpop.permute.xlu0 %2032
        %2034 = vrot.lane.b32.xlu0 %v1758, 32
        %v2035 = vpop.permute.xlu0 %2034
        %2036 = vrot.lane.b32.xlu0 %v1759, 32
        %v2037 = vpop.permute.xlu0 %2036
        %2038 = vrot.lane.b32.xlu0 %v1760, 32
        %v2039 = vpop.permute.xlu0 %2038
        %2040 = vrot.lane.b32.xlu0 %v1761, 32
        %v2041 = vpop.permute.xlu0 %2040
        %2042 = vrot.lane.b32.xlu0 %v1762, 32
        %v2043 = vpop.permute.xlu0 %2042
        %2044 = vrot.lane.b32.xlu0 %v1763, 32
        %v2045 = vpop.permute.xlu0 %2044
        %2046 = vrot.lane.b32.xlu0 %v1764, 32
        %v2047 = vpop.permute.xlu0 %2046
        %2048 = vrot.lane.b32.xlu0 %v1765, 32
        %v2049 = vpop.permute.xlu0 %2048
        %2050 = vrot.lane.b32.xlu0 %v1766, 32
        %v2051 = vpop.permute.xlu0 %2050
        %2052 = vrot.lane.b32.xlu0 %v1767, 32
        %v2053 = vpop.permute.xlu0 %2052
        %2054 = vrot.lane.b32.xlu0 %v1768, 32
        %v2055 = vpop.permute.xlu0 %2054
        %2056 = vrot.lane.b32.xlu0 %v1769, 32
        %v2057 = vpop.permute.xlu0 %2056
        %v2090 = vmul.f32 %v1675, %v1995
        %v2091 = vmul.f32 %v1677, %v1997
        %v2092 = vmul.f32 %v1679, %v1999
        %v2093 = vmul.f32 %v1681, %v2001
        %v2094 = vmul.f32 %v1683, %v2003
        %v2095 = vmul.f32 %v1685, %v2005
        %v2096 = vmul.f32 %v1687, %v2007
        %v2097 = vmul.f32 %v1689, %v2009
        %v2098 = vmul.f32 %v1691, %v2011
        %v2099 = vmul.f32 %v1693, %v2013
        %v2100 = vmul.f32 %v1695, %v2015
        %v2101 = vmul.f32 %v1697, %v2017
        %v2102 = vmul.f32 %v1699, %v2019
        %v2103 = vmul.f32 %v1701, %v2021
        %v2104 = vmul.f32 %v1703, %v2023
        %v2105 = vmul.f32 %v1705, %v2025
        %v2106 = vmul.f32 %v1707, %v2027
        %v2107 = vmul.f32 %v1709, %v2029
        %v2108 = vmul.f32 %v1711, %v2031
        %v2109 = vmul.f32 %v1713, %v2033
        %v2110 = vmul.f32 %v1715, %v2035
        %v2111 = vmul.f32 %v1717, %v2037
        %v2112 = vmul.f32 %v1719, %v2039
        %v2113 = vmul.f32 %v1721, %v2041
        %v2114 = vmul.f32 %v1723, %v2043
        %v2115 = vmul.f32 %v1725, %v2045
        %v2116 = vmul.f32 %v1727, %v2047
        %v2117 = vmul.f32 %v1729, %v2049
        %v2118 = vmul.f32 %v1731, %v2051
        %v2119 = vmul.f32 %v1733, %v2053
        %v2120 = vmul.f32 %v1735, %v2055
        %v2121 = vmul.f32 %v1737, %v2057
        %2154 = vrot.lane.b32.xlu0 %v2090, 32
        %v2155 = vpop.permute.xlu0 %2154
        %2156 = vrot.lane.b32.xlu0 %v2091, 32
        %v2157 = vpop.permute.xlu0 %2156
        %2158 = vrot.lane.b32.xlu0 %v2092, 32
        %v2159 = vpop.permute.xlu0 %2158
        %2160 = vrot.lane.b32.xlu0 %v2093, 32
        %v2161 = vpop.permute.xlu0 %2160
        %2162 = vrot.lane.b32.xlu0 %v2094, 32
        %v2163 = vpop.permute.xlu0 %2162
        %2164 = vrot.lane.b32.xlu0 %v2095, 32
        %v2165 = vpop.permute.xlu0 %2164
        %2166 = vrot.lane.b32.xlu0 %v2096, 32
        %v2167 = vpop.permute.xlu0 %2166
        %2168 = vrot.lane.b32.xlu0 %v2097, 32
        %v2169 = vpop.permute.xlu0 %2168
        %2170 = vrot.lane.b32.xlu0 %v2098, 32
        %v2171 = vpop.permute.xlu0 %2170
        %2172 = vrot.lane.b32.xlu0 %v2099, 32
        %v2173 = vpop.permute.xlu0 %2172
        %2174 = vrot.lane.b32.xlu0 %v2100, 32
        %v2175 = vpop.permute.xlu0 %2174
        %2176 = vrot.lane.b32.xlu0 %v2101, 32
        %v2177 = vpop.permute.xlu0 %2176
        %2178 = vrot.lane.b32.xlu0 %v2102, 32
        %v2179 = vpop.permute.xlu0 %2178
        %2180 = vrot.lane.b32.xlu0 %v2103, 32
        %v2181 = vpop.permute.xlu0 %2180
        %2182 = vrot.lane.b32.xlu0 %v2104, 32
        %v2183 = vpop.permute.xlu0 %2182
        %2184 = vrot.lane.b32.xlu0 %v2105, 32
        %v2185 = vpop.permute.xlu0 %2184
        %2186 = vrot.lane.b32.xlu0 %v2106, 32
        %v2187 = vpop.permute.xlu0 %2186
        %2188 = vrot.lane.b32.xlu0 %v2107, 32
        %v2189 = vpop.permute.xlu0 %2188
        %2190 = vrot.lane.b32.xlu0 %v2108, 32
        %v2191 = vpop.permute.xlu0 %2190
        %2192 = vrot.lane.b32.xlu0 %v2109, 32
        %v2193 = vpop.permute.xlu0 %2192
        %2194 = vrot.lane.b32.xlu0 %v2110, 32
        %v2195 = vpop.permute.xlu0 %2194
        %2196 = vrot.lane.b32.xlu0 %v2111, 32
        %v2197 = vpop.permute.xlu0 %2196
        %2198 = vrot.lane.b32.xlu0 %v2112, 32
        %v2199 = vpop.permute.xlu0 %2198
        %2200 = vrot.lane.b32.xlu0 %v2113, 32
        %v2201 = vpop.permute.xlu0 %2200
        %2202 = vrot.lane.b32.xlu0 %v2114, 32
        %v2203 = vpop.permute.xlu0 %2202
        %2204 = vrot.lane.b32.xlu0 %v2115, 32
        %v2205 = vpop.permute.xlu0 %2204
        %2206 = vrot.lane.b32.xlu0 %v2116, 32
        %v2207 = vpop.permute.xlu0 %2206
        %2208 = vrot.lane.b32.xlu0 %v2117, 32
        %v2209 = vpop.permute.xlu0 %2208
        %2210 = vrot.lane.b32.xlu0 %v2118, 32
        %v2211 = vpop.permute.xlu0 %2210
        %2212 = vrot.lane.b32.xlu0 %v2119, 32
        %v2213 = vpop.permute.xlu0 %2212
        %2214 = vrot.lane.b32.xlu0 %v2120, 32
        %v2215 = vpop.permute.xlu0 %2214
        %2216 = vrot.lane.b32.xlu0 %v2121, 32
        %v2217 = vpop.permute.xlu0 %2216
        %v2250 = vadd.f32 %v1930, %v2155
        %v2251 = vadd.f32 %v1931, %v2157
        %v2252 = vadd.f32 %v1932, %v2159
        %v2253 = vadd.f32 %v1933, %v2161
        %v2254 = vadd.f32 %v1934, %v2163
        %v2255 = vadd.f32 %v1935, %v2165
        %v2256 = vadd.f32 %v1936, %v2167
        %v2257 = vadd.f32 %v1937, %v2169
        %v2258 = vadd.f32 %v1938, %v2171
        %v2259 = vadd.f32 %v1939, %v2173
        %v2260 = vadd.f32 %v1940, %v2175
        %v2261 = vadd.f32 %v1941, %v2177
        %v2262 = vadd.f32 %v1942, %v2179
        %v2263 = vadd.f32 %v1943, %v2181
        %v2264 = vadd.f32 %v1944, %v2183
        %v2265 = vadd.f32 %v1945, %v2185
        %v2266 = vadd.f32 %v1946, %v2187
        %v2267 = vadd.f32 %v1947, %v2189
        %v2268 = vadd.f32 %v1948, %v2191
        %v2269 = vadd.f32 %v1949, %v2193
        %v2270 = vadd.f32 %v1950, %v2195
        %v2271 = vadd.f32 %v1951, %v2197
        %v2272 = vadd.f32 %v1952, %v2199
        %v2273 = vadd.f32 %v1953, %v2201
        %v2274 = vadd.f32 %v1954, %v2203
        %v2275 = vadd.f32 %v1955, %v2205
        %v2276 = vadd.f32 %v1956, %v2207
        %v2277 = vadd.f32 %v1957, %v2209
        %v2278 = vadd.f32 %v1958, %v2211
        %v2279 = vadd.f32 %v1959, %v2213
        %v2280 = vadd.f32 %v1960, %v2215
        %v2281 = vadd.f32 %v1961, %v2217
        %2314 = vrot.lane.b32.xlu0 %v2250, 96
        %v2315 = vpop.permute.xlu0 %2314
        %2316 = vrot.lane.b32.xlu0 %v2251, 96
        %v2317 = vpop.permute.xlu0 %2316
        %2318 = vrot.lane.b32.xlu0 %v2252, 96
        %v2319 = vpop.permute.xlu0 %2318
        %2320 = vrot.lane.b32.xlu0 %v2253, 96
        %v2321 = vpop.permute.xlu0 %2320
        %2322 = vrot.lane.b32.xlu0 %v2254, 96
        %v2323 = vpop.permute.xlu0 %2322
        %2324 = vrot.lane.b32.xlu0 %v2255, 96
        %v2325 = vpop.permute.xlu0 %2324
        %2326 = vrot.lane.b32.xlu0 %v2256, 96
        %v2327 = vpop.permute.xlu0 %2326
        %2328 = vrot.lane.b32.xlu0 %v2257, 96
        %v2329 = vpop.permute.xlu0 %2328
        %2330 = vrot.lane.b32.xlu0 %v2258, 96
        %v2331 = vpop.permute.xlu0 %2330
        %2332 = vrot.lane.b32.xlu0 %v2259, 96
        %v2333 = vpop.permute.xlu0 %2332
        %2334 = vrot.lane.b32.xlu0 %v2260, 96
        %v2335 = vpop.permute.xlu0 %2334
        %2336 = vrot.lane.b32.xlu0 %v2261, 96
        %v2337 = vpop.permute.xlu0 %2336
        %2338 = vrot.lane.b32.xlu0 %v2262, 96
        %v2339 = vpop.permute.xlu0 %2338
        %2340 = vrot.lane.b32.xlu0 %v2263, 96
        %v2341 = vpop.permute.xlu0 %2340
        %2342 = vrot.lane.b32.xlu0 %v2264, 96
        %v2343 = vpop.permute.xlu0 %2342
        %2344 = vrot.lane.b32.xlu0 %v2265, 96
        %v2345 = vpop.permute.xlu0 %2344
        %2346 = vrot.lane.b32.xlu0 %v2266, 96
        %v2347 = vpop.permute.xlu0 %2346
        %2348 = vrot.lane.b32.xlu0 %v2267, 96
        %v2349 = vpop.permute.xlu0 %2348
        %2350 = vrot.lane.b32.xlu0 %v2268, 96
        %v2351 = vpop.permute.xlu0 %2350
        %2352 = vrot.lane.b32.xlu0 %v2269, 96
        %v2353 = vpop.permute.xlu0 %2352
        %2354 = vrot.lane.b32.xlu0 %v2270, 96
        %v2355 = vpop.permute.xlu0 %2354
        %2356 = vrot.lane.b32.xlu0 %v2271, 96
        %v2357 = vpop.permute.xlu0 %2356
        %2358 = vrot.lane.b32.xlu0 %v2272, 96
        %v2359 = vpop.permute.xlu0 %2358
        %2360 = vrot.lane.b32.xlu0 %v2273, 96
        %v2361 = vpop.permute.xlu0 %2360
        %2362 = vrot.lane.b32.xlu0 %v2274, 96
        %v2363 = vpop.permute.xlu0 %2362
        %2364 = vrot.lane.b32.xlu0 %v2275, 96
        %v2365 = vpop.permute.xlu0 %2364
        %2366 = vrot.lane.b32.xlu0 %v2276, 96
        %v2367 = vpop.permute.xlu0 %2366
        %2368 = vrot.lane.b32.xlu0 %v2277, 96
        %v2369 = vpop.permute.xlu0 %2368
        %2370 = vrot.lane.b32.xlu0 %v2278, 96
        %v2371 = vpop.permute.xlu0 %2370
        %2372 = vrot.lane.b32.xlu0 %v2279, 96
        %v2373 = vpop.permute.xlu0 %2372
        %2374 = vrot.lane.b32.xlu0 %v2280, 96
        %v2375 = vpop.permute.xlu0 %2374
        %2376 = vrot.lane.b32.xlu0 %v2281, 96
        %v2377 = vpop.permute.xlu0 %2376
        %2410 = vst.msk [vmem:[%s314] sm:$0xff] %vm827, %v2315
        %2411 = vst.msk [vmem:[%s314 + $0x8] sm:$0xff] %vm827, %v2317
        %2412 = vst.msk [vmem:[%s314 + $0x10] sm:$0xff] %vm827, %v2319
        %2413 = vst.msk [vmem:[%s314 + $0x18] sm:$0xff] %vm827, %v2321
        %2414 = vst.msk [vmem:[%s314 + $0x20] sm:$0xff] %vm827, %v2323
        %2415 = vst.msk [vmem:[%s314 + $0x28] sm:$0xff] %vm827, %v2325
        %2416 = vst.msk [vmem:[%s314 + $0x30] sm:$0xff] %vm827, %v2327
        %2417 = vst.msk [vmem:[%s314 + $0x38] sm:$0xff] %vm827, %v2329
        %2418 = vst.msk [vmem:[%s314 + $0x40] sm:$0xff] %vm827, %v2331
        %2419 = vst.msk [vmem:[%s314 + $0x48] sm:$0xff] %vm827, %v2333
        %2420 = vst.msk [vmem:[%s314 + $0x50] sm:$0xff] %vm827, %v2335
        %2421 = vst.msk [vmem:[%s314 + $0x58] sm:$0xff] %vm827, %v2337
        %2422 = vst.msk [vmem:[%s314 + $0x60] sm:$0xff] %vm827, %v2339
        %2423 = vst.msk [vmem:[%s314 + $0x68] sm:$0xff] %vm827, %v2341
        %2424 = vst.msk [vmem:[%s314 + $0x70] sm:$0xff] %vm827, %v2343
        %2425 = vst.msk [vmem:[%s314 + $0x78] sm:$0xff] %vm827, %v2345
        %2426 = vst.msk [vmem:[%s314 + $0x80] sm:$0xff] %vm827, %v2347
        %2427 = vst.msk [vmem:[%s314 + $0x88] sm:$0xff] %vm827, %v2349
        %2428 = vst.msk [vmem:[%s314 + $0x90] sm:$0xff] %vm827, %v2351
        %2429 = vst.msk [vmem:[%s314 + $0x98] sm:$0xff] %vm827, %v2353
        %2430 = vst.msk [vmem:[%s314 + $0xa0] sm:$0xff] %vm827, %v2355
        %2431 = vst.msk [vmem:[%s314 + $0xa8] sm:$0xff] %vm827, %v2357
        %2432 = vst.msk [vmem:[%s314 + $0xb0] sm:$0xff] %vm827, %v2359
        %2433 = vst.msk [vmem:[%s314 + $0xb8] sm:$0xff] %vm827, %v2361
        %2434 = vst.msk [vmem:[%s314 + $0xc0] sm:$0xff] %vm827, %v2363
        %2435 = vst.msk [vmem:[%s314 + $0xc8] sm:$0xff] %vm827, %v2365
        %2436 = vst.msk [vmem:[%s314 + $0xd0] sm:$0xff] %vm827, %v2367
        %2437 = vst.msk [vmem:[%s314 + $0xd8] sm:$0xff] %vm827, %v2369
        %2438 = vst.msk [vmem:[%s314 + $0xe0] sm:$0xff] %vm827, %v2371
        %2439 = vst.msk [vmem:[%s314 + $0xe8] sm:$0xff] %vm827, %v2373
        %2440 = vst.msk [vmem:[%s314 + $0xf0] sm:$0xff] %vm827, %v2375
        %2441 = vst.msk [vmem:[%s314 + $0xf8] sm:$0xff] %vm827, %v2377
        %v2442 = vtanh.pop %v2250
        %v2443 = vtanh.pop %v2251
        %v2444 = vtanh.pop %v2252
        %v2445 = vtanh.pop %v2253
        %v2446 = vtanh.pop %v2254
        %v2447 = vtanh.pop %v2255
        %v2448 = vtanh.pop %v2256
        %v2449 = vtanh.pop %v2257
        %v2450 = vtanh.pop %v2258
        %v2451 = vtanh.pop %v2259
        %v2452 = vtanh.pop %v2260
        %v2453 = vtanh.pop %v2261
        %v2454 = vtanh.pop %v2262
        %v2455 = vtanh.pop %v2263
        %v2456 = vtanh.pop %v2264
        %v2457 = vtanh.pop %v2265
        %v2458 = vtanh.pop %v2266
        %v2459 = vtanh.pop %v2267
        %v2460 = vtanh.pop %v2268
        %v2461 = vtanh.pop %v2269
        %v2462 = vtanh.pop %v2270
        %v2463 = vtanh.pop %v2271
        %v2464 = vtanh.pop %v2272
        %v2465 = vtanh.pop %v2273
        %v2466 = vtanh.pop %v2274
        %v2467 = vtanh.pop %v2275
        %v2468 = vtanh.pop %v2276
        %v2469 = vtanh.pop %v2277
        %v2470 = vtanh.pop %v2278
        %v2471 = vtanh.pop %v2279
        %v2472 = vtanh.pop %v2280
        %v2473 = vtanh.pop %v2281
        %2506 = vrot.lane.b32.xlu0 %v2442, 32
        %v2507 = vpop.permute.xlu0 %2506
        %2508 = vrot.lane.b32.xlu0 %v2443, 32
        %v2509 = vpop.permute.xlu0 %2508
        %2510 = vrot.lane.b32.xlu0 %v2444, 32
        %v2511 = vpop.permute.xlu0 %2510
        %2512 = vrot.lane.b32.xlu0 %v2445, 32
        %v2513 = vpop.permute.xlu0 %2512
        %2514 = vrot.lane.b32.xlu0 %v2446, 32
        %v2515 = vpop.permute.xlu0 %2514
        %2516 = vrot.lane.b32.xlu0 %v2447, 32
        %v2517 = vpop.permute.xlu0 %2516
        %2518 = vrot.lane.b32.xlu0 %v2448, 32
        %v2519 = vpop.permute.xlu0 %2518
        %2520 = vrot.lane.b32.xlu0 %v2449, 32
        %v2521 = vpop.permute.xlu0 %2520
        %2522 = vrot.lane.b32.xlu0 %v2450, 32
        %v2523 = vpop.permute.xlu0 %2522
        %2524 = vrot.lane.b32.xlu0 %v2451, 32
        %v2525 = vpop.permute.xlu0 %2524
        %2526 = vrot.lane.b32.xlu0 %v2452, 32
        %v2527 = vpop.permute.xlu0 %2526
        %2528 = vrot.lane.b32.xlu0 %v2453, 32
        %v2529 = vpop.permute.xlu0 %2528
        %2530 = vrot.lane.b32.xlu0 %v2454, 32
        %v2531 = vpop.permute.xlu0 %2530
        %2532 = vrot.lane.b32.xlu0 %v2455, 32
        %v2533 = vpop.permute.xlu0 %2532
        %2534 = vrot.lane.b32.xlu0 %v2456, 32
        %v2535 = vpop.permute.xlu0 %2534
        %2536 = vrot.lane.b32.xlu0 %v2457, 32
        %v2537 = vpop.permute.xlu0 %2536
        %2538 = vrot.lane.b32.xlu0 %v2458, 32
        %v2539 = vpop.permute.xlu0 %2538
        %2540 = vrot.lane.b32.xlu0 %v2459, 32
        %v2541 = vpop.permute.xlu0 %2540
        %2542 = vrot.lane.b32.xlu0 %v2460, 32
        %v2543 = vpop.permute.xlu0 %2542
        %2544 = vrot.lane.b32.xlu0 %v2461, 32
        %v2545 = vpop.permute.xlu0 %2544
        %2546 = vrot.lane.b32.xlu0 %v2462, 32
        %v2547 = vpop.permute.xlu0 %2546
        %2548 = vrot.lane.b32.xlu0 %v2463, 32
        %v2549 = vpop.permute.xlu0 %2548
        %2550 = vrot.lane.b32.xlu0 %v2464, 32
        %v2551 = vpop.permute.xlu0 %2550
        %2552 = vrot.lane.b32.xlu0 %v2465, 32
        %v2553 = vpop.permute.xlu0 %2552
        %2554 = vrot.lane.b32.xlu0 %v2466, 32
        %v2555 = vpop.permute.xlu0 %2554
        %2556 = vrot.lane.b32.xlu0 %v2467, 32
        %v2557 = vpop.permute.xlu0 %2556
        %2558 = vrot.lane.b32.xlu0 %v2468, 32
        %v2559 = vpop.permute.xlu0 %2558
        %2560 = vrot.lane.b32.xlu0 %v2469, 32
        %v2561 = vpop.permute.xlu0 %2560
        %2562 = vrot.lane.b32.xlu0 %v2470, 32
        %v2563 = vpop.permute.xlu0 %2562
        %2564 = vrot.lane.b32.xlu0 %v2471, 32
        %v2565 = vpop.permute.xlu0 %2564
        %2566 = vrot.lane.b32.xlu0 %v2472, 32
        %v2567 = vpop.permute.xlu0 %2566
        %2568 = vrot.lane.b32.xlu0 %v2473, 32
        %v2569 = vpop.permute.xlu0 %2568
        %v2602 = vmul.f32 %v1675, %v2507
        %v2603 = vmul.f32 %v1677, %v2509
        %v2604 = vmul.f32 %v1679, %v2511
        %v2605 = vmul.f32 %v1681, %v2513
        %v2606 = vmul.f32 %v1683, %v2515
        %v2607 = vmul.f32 %v1685, %v2517
        %v2608 = vmul.f32 %v1687, %v2519
        %v2609 = vmul.f32 %v1689, %v2521
        %v2610 = vmul.f32 %v1691, %v2523
        %v2611 = vmul.f32 %v1693, %v2525
        %v2612 = vmul.f32 %v1695, %v2527
        %v2613 = vmul.f32 %v1697, %v2529
        %v2614 = vmul.f32 %v1699, %v2531
        %v2615 = vmul.f32 %v1701, %v2533
        %v2616 = vmul.f32 %v1703, %v2535
        %v2617 = vmul.f32 %v1705, %v2537
        %v2618 = vmul.f32 %v1707, %v2539
        %v2619 = vmul.f32 %v1709, %v2541
        %v2620 = vmul.f32 %v1711, %v2543
        %v2621 = vmul.f32 %v1713, %v2545
        %v2622 = vmul.f32 %v1715, %v2547
        %v2623 = vmul.f32 %v1717, %v2549
        %v2624 = vmul.f32 %v1719, %v2551
        %v2625 = vmul.f32 %v1721, %v2553
        %v2626 = vmul.f32 %v1723, %v2555
        %v2627 = vmul.f32 %v1725, %v2557
        %v2628 = vmul.f32 %v1727, %v2559
        %v2629 = vmul.f32 %v1729, %v2561
        %v2630 = vmul.f32 %v1731, %v2563
        %v2631 = vmul.f32 %v1733, %v2565
        %v2632 = vmul.f32 %v1735, %v2567
        %v2633 = vmul.f32 %v1737, %v2569
        %v2634 = vpack.c.bf16 %v2603, %v2602
        %v2635 = vpack.c.bf16 %v2605, %v2604
        %v2636 = vpack.c.bf16 %v2607, %v2606
        %v2637 = vpack.c.bf16 %v2609, %v2608
        %v2638 = vpack.c.bf16 %v2611, %v2610
        %v2639 = vpack.c.bf16 %v2613, %v2612
        %v2640 = vpack.c.bf16 %v2615, %v2614
        %v2641 = vpack.c.bf16 %v2617, %v2616
        %v2642 = vpack.c.bf16 %v2619, %v2618
        %v2643 = vpack.c.bf16 %v2621, %v2620
        %v2644 = vpack.c.bf16 %v2623, %v2622
        %v2645 = vpack.c.bf16 %v2625, %v2624
        %v2646 = vpack.c.bf16 %v2627, %v2626
        %v2647 = vpack.c.bf16 %v2629, %v2628
        %v2648 = vpack.c.bf16 %v2631, %v2630
        %v2649 = vpack.c.bf16 %v2633, %v2632
        %v2666 = vunpack.c.l.b16 %v2634
        %v2667 = vunpack.c.h.b16 %v2634
        %v2668 = vunpack.c.l.b16 %v2635
        %v2669 = vunpack.c.h.b16 %v2635
        %v2670 = vunpack.c.l.b16 %v2636
        %v2671 = vunpack.c.h.b16 %v2636
        %v2672 = vunpack.c.l.b16 %v2637
        %v2673 = vunpack.c.h.b16 %v2637
        %v2674 = vunpack.c.l.b16 %v2638
        %v2675 = vunpack.c.h.b16 %v2638
        %v2676 = vunpack.c.l.b16 %v2639
        %v2677 = vunpack.c.h.b16 %v2639
        %v2678 = vunpack.c.l.b16 %v2640
        %v2679 = vunpack.c.h.b16 %v2640
        %v2680 = vunpack.c.l.b16 %v2641
        %v2681 = vunpack.c.h.b16 %v2641
        %v2682 = vunpack.c.l.b16 %v2642
        %v2683 = vunpack.c.h.b16 %v2642
        %v2684 = vunpack.c.l.b16 %v2643
        %v2685 = vunpack.c.h.b16 %v2643
        %v2686 = vunpack.c.l.b16 %v2644
        %v2687 = vunpack.c.h.b16 %v2644
        %v2688 = vunpack.c.l.b16 %v2645
        %v2689 = vunpack.c.h.b16 %v2645
        %v2690 = vunpack.c.l.b16 %v2646
        %v2691 = vunpack.c.h.b16 %v2646
        %v2692 = vunpack.c.l.b16 %v2647
        %v2693 = vunpack.c.h.b16 %v2647
        %v2694 = vunpack.c.l.b16 %v2648
        %v2695 = vunpack.c.h.b16 %v2648
        %v2696 = vunpack.c.l.b16 %v2649
        %v2697 = vunpack.c.h.b16 %v2649
        %v2698 = vpack.c.b16 %v2666, %v2666
        %v2699 = vpack.c.b16 %v2667, %v2667
        %v2700 = vpack.c.b16 %v2668, %v2668
        %v2701 = vpack.c.b16 %v2669, %v2669
        %v2702 = vpack.c.b16 %v2670, %v2670
        %v2703 = vpack.c.b16 %v2671, %v2671
        %v2704 = vpack.c.b16 %v2672, %v2672
        %v2705 = vpack.c.b16 %v2673, %v2673
        %v2706 = vpack.c.b16 %v2674, %v2674
        %v2707 = vpack.c.b16 %v2675, %v2675
        %v2708 = vpack.c.b16 %v2676, %v2676
        %v2709 = vpack.c.b16 %v2677, %v2677
        %v2710 = vpack.c.b16 %v2678, %v2678
        %v2711 = vpack.c.b16 %v2679, %v2679
        %v2712 = vpack.c.b16 %v2680, %v2680
        %v2713 = vpack.c.b16 %v2681, %v2681
        %v2714 = vpack.c.b16 %v2682, %v2682
        %v2715 = vpack.c.b16 %v2683, %v2683
        %v2716 = vpack.c.b16 %v2684, %v2684
        %v2717 = vpack.c.b16 %v2685, %v2685
        %v2718 = vpack.c.b16 %v2686, %v2686
        %v2719 = vpack.c.b16 %v2687, %v2687
        %v2720 = vpack.c.b16 %v2688, %v2688
        %v2721 = vpack.c.b16 %v2689, %v2689
        %v2722 = vpack.c.b16 %v2690, %v2690
        %v2723 = vpack.c.b16 %v2691, %v2691
        %v2724 = vpack.c.b16 %v2692, %v2692
        %v2725 = vpack.c.b16 %v2693, %v2693
        %v2726 = vpack.c.b16 %v2694, %v2694
        %v2727 = vpack.c.b16 %v2695, %v2695
        %v2728 = vpack.c.b16 %v2696, %v2696
        %v2729 = vpack.c.b16 %v2697, %v2697
        %2730 = vrot.lane.b32.xlu0 %v2698, 64
        %v2731 = vpop.permute.xlu0 %2730
        %2732 = vrot.lane.b32.xlu0 %v2699, 64
        %v2733 = vpop.permute.xlu0 %2732
        %2734 = vrot.lane.b32.xlu0 %v2700, 64
        %v2735 = vpop.permute.xlu0 %2734
        %2736 = vrot.lane.b32.xlu0 %v2701, 64
        %v2737 = vpop.permute.xlu0 %2736
        %2738 = vrot.lane.b32.xlu0 %v2702, 64
        %v2739 = vpop.permute.xlu0 %2738
        %2740 = vrot.lane.b32.xlu0 %v2703, 64
        %v2741 = vpop.permute.xlu0 %2740
        %2742 = vrot.lane.b32.xlu0 %v2704, 64
        %v2743 = vpop.permute.xlu0 %2742
        %2744 = vrot.lane.b32.xlu0 %v2705, 64
        %v2745 = vpop.permute.xlu0 %2744
        %2746 = vrot.lane.b32.xlu0 %v2706, 64
        %v2747 = vpop.permute.xlu0 %2746
        %2748 = vrot.lane.b32.xlu0 %v2707, 64
        %v2749 = vpop.permute.xlu0 %2748
        %2750 = vrot.lane.b32.xlu0 %v2708, 64
        %v2751 = vpop.permute.xlu0 %2750
        %2752 = vrot.lane.b32.xlu0 %v2709, 64
        %v2753 = vpop.permute.xlu0 %2752
        %2754 = vrot.lane.b32.xlu0 %v2710, 64
        %v2755 = vpop.permute.xlu0 %2754
        %2756 = vrot.lane.b32.xlu0 %v2711, 64
        %v2757 = vpop.permute.xlu0 %2756
        %2758 = vrot.lane.b32.xlu0 %v2712, 64
        %v2759 = vpop.permute.xlu0 %2758
        %2760 = vrot.lane.b32.xlu0 %v2713, 64
        %v2761 = vpop.permute.xlu0 %2760
        %2762 = vrot.lane.b32.xlu0 %v2714, 64
        %v2763 = vpop.permute.xlu0 %2762
        %2764 = vrot.lane.b32.xlu0 %v2715, 64
        %v2765 = vpop.permute.xlu0 %2764
        %2766 = vrot.lane.b32.xlu0 %v2716, 64
        %v2767 = vpop.permute.xlu0 %2766
        %2768 = vrot.lane.b32.xlu0 %v2717, 64
        %v2769 = vpop.permute.xlu0 %2768
        %2770 = vrot.lane.b32.xlu0 %v2718, 64
        %v2771 = vpop.permute.xlu0 %2770
        %2772 = vrot.lane.b32.xlu0 %v2719, 64
        %v2773 = vpop.permute.xlu0 %2772
        %2774 = vrot.lane.b32.xlu0 %v2720, 64
        %v2775 = vpop.permute.xlu0 %2774
        %2776 = vrot.lane.b32.xlu0 %v2721, 64
        %v2777 = vpop.permute.xlu0 %2776
        %2778 = vrot.lane.b32.xlu0 %v2722, 64
        %v2779 = vpop.permute.xlu0 %2778
        %2780 = vrot.lane.b32.xlu0 %v2723, 64
        %v2781 = vpop.permute.xlu0 %2780
        %2782 = vrot.lane.b32.xlu0 %v2724, 64
        %v2783 = vpop.permute.xlu0 %2782
        %2784 = vrot.lane.b32.xlu0 %v2725, 64
        %v2785 = vpop.permute.xlu0 %2784
        %2786 = vrot.lane.b32.xlu0 %v2726, 64
        %v2787 = vpop.permute.xlu0 %2786
        %2788 = vrot.lane.b32.xlu0 %v2727, 64
        %v2789 = vpop.permute.xlu0 %2788
        %2790 = vrot.lane.b32.xlu0 %v2728, 64
        %v2791 = vpop.permute.xlu0 %2790
        %2792 = vrot.lane.b32.xlu0 %v2729, 64
        %v2793 = vpop.permute.xlu0 %2792
        %vm2826 = vcmask 257024
        %2827 = vst.msk [vmem:[%s338] sm:$0xf] %vm2826, %v2731
        %2828 = vst.msk [vmem:[%s338 + $0x4] sm:$0xf] %vm2826, %v2733
        %2829 = vst.msk [vmem:[%s338 + $0x8] sm:$0xf] %vm2826, %v2735
        %2830 = vst.msk [vmem:[%s338 + $0xc] sm:$0xf] %vm2826, %v2737
        %2831 = vst.msk [vmem:[%s338 + $0x10] sm:$0xf] %vm2826, %v2739
        %2832 = vst.msk [vmem:[%s338 + $0x14] sm:$0xf] %vm2826, %v2741
        %2833 = vst.msk [vmem:[%s338 + $0x18] sm:$0xf] %vm2826, %v2743
        %2834 = vst.msk [vmem:[%s338 + $0x1c] sm:$0xf] %vm2826, %v2745
        %2835 = vst.msk [vmem:[%s338 + $0x20] sm:$0xf] %vm2826, %v2747
        %2836 = vst.msk [vmem:[%s338 + $0x24] sm:$0xf] %vm2826, %v2749
        %2837 = vst.msk [vmem:[%s338 + $0x28] sm:$0xf] %vm2826, %v2751
        %2838 = vst.msk [vmem:[%s338 + $0x2c] sm:$0xf] %vm2826, %v2753
        %2839 = vst.msk [vmem:[%s338 + $0x30] sm:$0xf] %vm2826, %v2755
        %2840 = vst.msk [vmem:[%s338 + $0x34] sm:$0xf] %vm2826, %v2757
        %2841 = vst.msk [vmem:[%s338 + $0x38] sm:$0xf] %vm2826, %v2759
        %2842 = vst.msk [vmem:[%s338 + $0x3c] sm:$0xf] %vm2826, %v2761
        %2843 = vst.msk [vmem:[%s338 + $0x40] sm:$0xf] %vm2826, %v2763
        %2844 = vst.msk [vmem:[%s338 + $0x44] sm:$0xf] %vm2826, %v2765
        %2845 = vst.msk [vmem:[%s338 + $0x48] sm:$0xf] %vm2826, %v2767
        %2846 = vst.msk [vmem:[%s338 + $0x4c] sm:$0xf] %vm2826, %v2769
        %2847 = vst.msk [vmem:[%s338 + $0x50] sm:$0xf] %vm2826, %v2771
        %2848 = vst.msk [vmem:[%s338 + $0x54] sm:$0xf] %vm2826, %v2773
        %2849 = vst.msk [vmem:[%s338 + $0x58] sm:$0xf] %vm2826, %v2775
        %2850 = vst.msk [vmem:[%s338 + $0x5c] sm:$0xf] %vm2826, %v2777
        %2851 = vst.msk [vmem:[%s338 + $0x60] sm:$0xf] %vm2826, %v2779
        %2852 = vst.msk [vmem:[%s338 + $0x64] sm:$0xf] %vm2826, %v2781
        %2853 = vst.msk [vmem:[%s338 + $0x68] sm:$0xf] %vm2826, %v2783
        %2854 = vst.msk [vmem:[%s338 + $0x6c] sm:$0xf] %vm2826, %v2785
        %2855 = vst.msk [vmem:[%s338 + $0x70] sm:$0xf] %vm2826, %v2787
        %2856 = vst.msk [vmem:[%s338 + $0x74] sm:$0xf] %vm2826, %v2789
        %2857 = vst.msk [vmem:[%s338 + $0x78] sm:$0xf] %vm2826, %v2791
        %2858 = vst.msk [vmem:[%s338 + $0x7c] sm:$0xf] %vm2826, %v2793
        %s2859 = smul.u32 32, %s22
        %p2860 = scmp.lt.s32.totalorder %s2859, 63
        %s2861 = scalar_select %p2860, %s2859, 63
        %s2862 = smul.addr %s2861, 4
        %s2863 = scalar_lea.vmem %s6, %s2862
        %s2864 = sand.u32 %s197, 1
        %s2865 = scalar_lea.sflag [#allocation3], %s2864
        %s2866 = sand.u32 %s197, 1
        %s2867 = smul.addr %s2866, 256
        %s2868 = scalar_lea.vmem [#allocation2], %s2867
        // Predicated region
        $region45: #{mduvsr_forward.14} parent=43 // pred_check
          %p2869 = pneg %p181
        $region46: #{mduvsr_forward.14} parent=43 // pred_check_branch
          %2871 = sbr.rel (%p2869) target = $region48
        $region47: #{mduvsr_forward.14} parent=43 // pred_region
          %s2872 = smul.u32 32, %s22
        $region48: #{mduvsr_forward.14} parent=43 // pred_fallthru
          _
        // Predicated region
        $region49: #{mduvsr_forward.14} parent=43 // pred_check
          %p2873 = pneg %p207
        $region50: #{mduvsr_forward.14} parent=43 // pred_check_branch
          %2875 = sbr.rel (%p2873) target = $region52
        $region51: #{mduvsr_forward.14} parent=43 // pred_region
          %s2876 = smul.u32 32, %s22
          %s2878 = ssub.s32 4096, 4096
          %2879 = vsyncadd %s2865, %s2878
          %s2880 = smul.addr %s2876, 128
          %s2881 = scalar_lea.hbm %s7, %s2880
          %s2882 = sshll.u32 %s2868, 4
          %s2883 = int_to_ptr.vmem [resolvable:$true] %s2882
          %2888 = dma.vmem_to_hbm [thread:$0]  %s2883, 4096, %s2881, %s2865, 128, 128, 8
        $region52: #{mduvsr_forward.14} parent=43 // pred_fallthru
          _
      $region44: #{mduvsr_forward.14} parent=5 // pred_fallthru
        _
      %p2889 = scmp.le.s32.totalorder 2, %s17
      // Predicated region
      $region53: #{mduvsr_forward.14} parent=5 // pred_check
        %p2890 = pneg %p2889
      $region54: #{mduvsr_forward.14} parent=5 // pred_check_branch
        %2892 = sbr.rel (%p2890) target = $region56
      $region55: #{mduvsr_forward.14} parent=5 // pred_region
        %s2893 = ssub.s32 %s17, 2
        // Predicated region
        $region57: #{mduvsr_forward.14} parent=55 // pred_check
          %p2894 = pneg %p187
        $region58: #{mduvsr_forward.14} parent=55 // pred_check_branch
          %2896 = sbr.rel (%p2894) target = $region60
        $region59: #{mduvsr_forward.14} parent=55 // pred_region
          %s2897 = smul.u32 32, %s23
          %p2898 = scmp.lt.s32.totalorder %s2897, 63
          %s2899 = scalar_select %p2898, %s2897, 63
          %s2900 = smul.addr %s2899, 4
          %s2901 = scalar_lea.vmem %s6, %s2900
        $region60: #{mduvsr_forward.14} parent=55 // pred_fallthru
          _
        // Predicated region
        $region61: #{mduvsr_forward.14} parent=55 // pred_check
          %p2902 = pneg %p213
        $region62: #{mduvsr_forward.14} parent=55 // pred_check_branch
          %2904 = sbr.rel (%p2902) target = $region64
        $region63: #{mduvsr_forward.14} parent=55 // pred_region
          %s2905 = sand.u32 %s198, 1
          %s2906 = scalar_lea.sflag [#allocation3], %s2905
          %s2907 = sand.u32 %s198, 1
          %s2908 = smul.addr %s2907, 256
          %s2909 = scalar_lea.vmem [#allocation2], %s2908
          %2910 = dma.done %s2906, 4096
        $region64: #{mduvsr_forward.14} parent=55 // pred_fallthru
          _
      $region56: #{mduvsr_forward.14} parent=5 // pred_fallthru
        _
    $region6: #{mduvsr_forward.14} parent=1 // loop_footer
      %s21 = sadd.s32 1, %s17
    $region7: #{mduvsr_forward.14} parent=1 // loop_footer_branch
      %16 = sbr.rel target = $region3
    $region8: #{mduvsr_forward.14} parent=1 // loop_exit
      _
    %2911 = vsyncpa [#allocation3], 1
    %s2912 = scalar_lea.sflag [#allocation3], 1
    %2913 = vsyncpa %s2912, 1

// kernel: mduvsr_forward.15
$region0: #{mduvsr_forward.15}
  #allocation0 [shape = 'u32[]', space=smem, size = 0x4, offset = 0x4, fixed_abs, tag = 'smem constant byte address 0x4 - core index']
  #allocation1 [shape = 'u32[144,128]{1,0:T(1,128)}', space=vmem, size = 0x12000, scoped, tag = 'internal scratch']
  %s0 = inlined_call_operand.vmem [shape: bf16[512,288], index: 0, kind: input, shape index: {}]
  %s1 = inlined_call_operand.vmem [shape: bf16[512,36], index: 1, kind: input, shape index: {}]
  %s2 = inlined_call_operand.vmem [shape: bf16[288,27], index: 2, kind: input, shape index: {}]
  %s3 = inlined_call_operand.vmem [shape: bf16[36,27], index: 3, kind: input, shape index: {}]
  %s4 = inlined_call_operand.vmem [shape: f32[1,27], index: 4, kind: input, shape index: {}]
  %s5 = inlined_call_operand.vmem [shape: f32[512,27], index: 5, kind: output, shape index: {}]
  %s6 = sld [smem:[#allocation0]]
  $region53: #{mduvsr_forward.15} parent=0
    _
  %s8 = ssub.s32 1, %s6
  %s9 = scalar_select 0, %s8, %s6
  loop: start=0, step=1, limit=4
  $region2: #{mduvsr_forward.15} parent=0 // loop_pre_header
    _
  $region3: #{mduvsr_forward.15} parent=0 // loop_header
    %s11 = sphi 0, %s15
    %p12 = scmp.ge.s32.totalorder %s11, 4
    %s21 = sphi 0, %s23
    %s24 = sphi 0, %s21
    %s25 = sphi 0, %s24
    %s41 = sphi 0, %s25
    %s47 = sphi 0, %s49
    %s50 = sphi 0, %s47
    %s51 = sphi 0, %s50
    %s67 = sphi 0, %s51
    %s71 = sphi 0, %s71
    %s73 = sphi 0, %s71
    %s74 = sphi 0, %s73
    %s88 = sphi 0, %s74
    %s92 = sphi 0, %s92
    %s94 = sphi 0, %s92
    %s95 = sphi 0, %s94
    %s109 = sphi 0, %s95
    %s113 = sphi 0, %s113
    %s115 = sphi 0, %s113
    %s116 = sphi 0, %s115
    %s130 = sphi 0, %s116
    %s136 = sphi 0, %s138
    %s139 = sphi 0, %s136
    %s140 = sphi 0, %s139
    %s156 = sphi 0, %s140
  $region4: #{mduvsr_forward.15} parent=0 // loop_header_branch
    %14 = sbr.rel (%p12) target = $region8
  $region5: #{mduvsr_forward.15} parent=0 // loop_body
    %s16 = ssub.s32 %s11, 1
    %s17 = ssub.s32 %s11, 2
    %s18 = sadd.s32 %s11, 1
    %s19 = ssub.s32 %s11, %s18
    %p20 = scmp.eq.s32.totalorder %s19, 0
    %s22 = sadd.s32 %s21, 1
    %s23 = scalar_select %p20, %s21, %s22
    %p26 = pneg %p20
    %p27 = scmp.eq.s32.totalorder %s11, 1
    %p28 = por %p26, %p27
    %p29 = scmp.ne.s32.totalorder %s21, %s24
    %p30 = scmp.eq.s32.totalorder %s11, 0
    %p31 = por %p29, %p30
    %p32 = scmp.ne.s32.totalorder %s21, %s24
    %p33 = scmp.eq.s32.totalorder %s16, 1
    %p34 = por %p32, %p33
    %p35 = scmp.ne.s32.totalorder %s24, %s25
    %p36 = scmp.eq.s32.totalorder %s16, 0
    %p37 = por %p35, %p36
    %p38 = scmp.ne.s32.totalorder %s24, %s25
    %p39 = scmp.eq.s32.totalorder %s17, 1
    %p40 = por %p38, %p39
    %p42 = scmp.ne.s32.totalorder %s25, %s41
    %p43 = scmp.eq.s32.totalorder %s17, 0
    %p44 = por %p42, %p43
    %s45 = ssub.s32 %s11, %s18
    %p46 = scmp.eq.s32.totalorder %s45, 0
    %s48 = sadd.s32 %s47, 1
    %s49 = scalar_select %p46, %s47, %s48
    %p52 = pneg %p46
    %p53 = scmp.eq.s32.totalorder %s11, 1
    %p54 = por %p52, %p53
    %p55 = scmp.ne.s32.totalorder %s47, %s50
    %p56 = scmp.eq.s32.totalorder %s11, 0
    %p57 = por %p55, %p56
    %p58 = scmp.ne.s32.totalorder %s47, %s50
    %p59 = scmp.eq.s32.totalorder %s16, 1
    %p60 = por %p58, %p59
    %p61 = scmp.ne.s32.totalorder %s50, %s51
    %p62 = scmp.eq.s32.totalorder %s16, 0
    %p63 = por %p61, %p62
    %p64 = scmp.ne.s32.totalorder %s50, %s51
    %p65 = scmp.eq.s32.totalorder %s17, 1
    %p66 = por %p64, %p65
    %p68 = scmp.ne.s32.totalorder %s51, %s67
    %p69 = scmp.eq.s32.totalorder %s17, 0
    %p70 = por %p68, %p69
    %s72 = sadd.s32 %s71, 1
    %p75 = scmp.eq.s32.totalorder %s11, 1
    %p76 = scmp.ne.s32.totalorder %s71, %s73
    %p77 = scmp.eq.s32.totalorder %s11, 0
    %p78 = por %p76, %p77
    %p79 = scmp.ne.s32.totalorder %s71, %s73
    %p80 = scmp.eq.s32.totalorder %s16, 1
    %p81 = por %p79, %p80
    %p82 = scmp.ne.s32.totalorder %s73, %s74
    %p83 = scmp.eq.s32.totalorder %s16, 0
    %p84 = por %p82, %p83
    %p85 = scmp.ne.s32.totalorder %s73, %s74
    %p86 = scmp.eq.s32.totalorder %s17, 1
    %p87 = por %p85, %p86
    %p89 = scmp.ne.s32.totalorder %s74, %s88
    %p90 = scmp.eq.s32.totalorder %s17, 0
    %p91 = por %p89, %p90
    %s93 = sadd.s32 %s92, 1
    %p96 = scmp.eq.s32.totalorder %s11, 1
    %p97 = scmp.ne.s32.totalorder %s92, %s94
    %p98 = scmp.eq.s32.totalorder %s11, 0
    %p99 = por %p97, %p98
    %p100 = scmp.ne.s32.totalorder %s92, %s94
    %p101 = scmp.eq.s32.totalorder %s16, 1
    %p102 = por %p100, %p101
    %p103 = scmp.ne.s32.totalorder %s94, %s95
    %p104 = scmp.eq.s32.totalorder %s16, 0
    %p105 = por %p103, %p104
    %p106 = scmp.ne.s32.totalorder %s94, %s95
    %p107 = scmp.eq.s32.totalorder %s17, 1
    %p108 = por %p106, %p107
    %p110 = scmp.ne.s32.totalorder %s95, %s109
    %p111 = scmp.eq.s32.totalorder %s17, 0
    %p112 = por %p110, %p111
    %s114 = sadd.s32 %s113, 1
    %p117 = scmp.eq.s32.totalorder %s11, 1
    %p118 = scmp.ne.s32.totalorder %s113, %s115
    %p119 = scmp.eq.s32.totalorder %s11, 0
    %p120 = por %p118, %p119
    %p121 = scmp.ne.s32.totalorder %s113, %s115
    %p122 = scmp.eq.s32.totalorder %s16, 1
    %p123 = por %p121, %p122
    %p124 = scmp.ne.s32.totalorder %s115, %s116
    %p125 = scmp.eq.s32.totalorder %s16, 0
    %p126 = por %p124, %p125
    %p127 = scmp.ne.s32.totalorder %s115, %s116
    %p128 = scmp.eq.s32.totalorder %s17, 1
    %p129 = por %p127, %p128
    %p131 = scmp.ne.s32.totalorder %s116, %s130
    %p132 = scmp.eq.s32.totalorder %s17, 0
    %p133 = por %p131, %p132
    %s134 = ssub.s32 %s11, %s18
    %p135 = scmp.eq.s32.totalorder %s134, 0
    %s137 = sadd.s32 %s136, 1
    %s138 = scalar_select %p135, %s136, %s137
    %p141 = pneg %p135
    %p142 = scmp.eq.s32.totalorder %s11, 1
    %p143 = por %p141, %p142
    %p144 = scmp.ne.s32.totalorder %s136, %s139
    %p145 = scmp.eq.s32.totalorder %s11, 0
    %p146 = por %p144, %p145
    %p147 = scmp.ne.s32.totalorder %s136, %s139
    %p148 = scmp.eq.s32.totalorder %s16, 1
    %p149 = por %p147, %p148
    %p150 = scmp.ne.s32.totalorder %s139, %s140
    %p151 = scmp.eq.s32.totalorder %s16, 0
    %p152 = por %p150, %p151
    %p153 = scmp.ne.s32.totalorder %s139, %s140
    %p154 = scmp.eq.s32.totalorder %s17, 1
    %p155 = por %p153, %p154
    %p157 = scmp.ne.s32.totalorder %s140, %s156
    %p158 = scmp.eq.s32.totalorder %s17, 0
    %p159 = por %p157, %p158
    %p160 = scmp.le.s32.totalorder 1, %s11
    %p161 = scmp.lt.s32.totalorder %s11, 3
    %p162 = pnand %p160, %p161
    %p163 = pneg %p162
    // Predicated region
    $region9: #{mduvsr_forward.15} parent=5 // pred_check
      _
    $region10: #{mduvsr_forward.15} parent=5 // pred_check_branch
      %165 = sbr.rel (%p162) target = $region12
    $region11: #{mduvsr_forward.15} parent=5 // pred_region
      %s166 = ssub.s32 %s11, 1
      // Predicated region
      $region13: #{mduvsr_forward.15} parent=11 // pred_check
        %p167 = pneg %p84
      $region14: #{mduvsr_forward.15} parent=11 // pred_check_branch
        %169 = sbr.rel (%p167) target = $region16
      $region15: #{mduvsr_forward.15} parent=11 // pred_region
        _
      $region16: #{mduvsr_forward.15} parent=11 // pred_fallthru
        _
      // Predicated region
      $region17: #{mduvsr_forward.15} parent=11 // pred_check
        %p170 = pneg %p105
      $region18: #{mduvsr_forward.15} parent=11 // pred_check_branch
        %172 = sbr.rel (%p170) target = $region20
      $region19: #{mduvsr_forward.15} parent=11 // pred_region
        _
      $region20: #{mduvsr_forward.15} parent=11 // pred_fallthru
        _
      // Predicated region
      $region21: #{mduvsr_forward.15} parent=11 // pred_check
        %p173 = pneg %p126
      $region22: #{mduvsr_forward.15} parent=11 // pred_check_branch
        %175 = sbr.rel (%p173) target = $region24
      $region23: #{mduvsr_forward.15} parent=11 // pred_region
        _
      $region24: #{mduvsr_forward.15} parent=11 // pred_fallthru
        _
    $region12: #{mduvsr_forward.15} parent=5 // pred_fallthru
      _
    %p176 = scmp.lt.s32.totalorder %s11, 2
    // Predicated region
    $region25: #{mduvsr_forward.15} parent=5 // pred_check
      %p177 = pneg %p176
    $region26: #{mduvsr_forward.15} parent=5 // pred_check_branch
      %179 = sbr.rel (%p177) target = $region28
    $region27: #{mduvsr_forward.15} parent=5 // pred_region
      // Predicated region
      $region29: #{mduvsr_forward.15} parent=27 // pred_check
        %p180 = pneg %p31
      $region30: #{mduvsr_forward.15} parent=27 // pred_check_branch
        %182 = sbr.rel (%p180) target = $region32
      $region31: #{mduvsr_forward.15} parent=27 // pred_region
        %s183 = smul.u32 32, %s11
        %p184 = scmp.lt.s32.totalorder %s183, 63
        %s185 = scalar_select %p184, %s183, 63
        %s186 = smul.addr %s185, 3
        %s187 = smul.addr %s186, 4
        %s188 = scalar_lea.vmem %s0, %s187
        %s189 = smul.u32 32, %s11
      $region32: #{mduvsr_forward.15} parent=27 // pred_fallthru
        _
      // Predicated region
      $region33: #{mduvsr_forward.15} parent=27 // pred_check
        %p190 = pneg %p57
      $region34: #{mduvsr_forward.15} parent=27 // pred_check_branch
        %192 = sbr.rel (%p190) target = $region36
      $region35: #{mduvsr_forward.15} parent=27 // pred_region
        %s193 = smul.u32 32, %s11
        %p194 = scmp.lt.s32.totalorder %s193, 63
        %s195 = scalar_select %p194, %s193, 63
        %s196 = smul.addr %s195, 4
        %s197 = scalar_lea.vmem %s1, %s196
        %s198 = smul.u32 32, %s11
      $region36: #{mduvsr_forward.15} parent=27 // pred_fallthru
        _
    $region28: #{mduvsr_forward.15} parent=5 // pred_fallthru
      _
    %p199 = scmp.le.s32.totalorder 1, %s11
    %p200 = scmp.lt.s32.totalorder %s11, 3
    %p201 = pnand %p199, %p200
    %p202 = pneg %p201
    // Predicated region
    $region37: #{mduvsr_forward.15} parent=5 // pred_check
      _
    $region38: #{mduvsr_forward.15} parent=5 // pred_check_branch
      %204 = sbr.rel (%p201) target = $region40
    $region39: #{mduvsr_forward.15} parent=5 // pred_region
      %s205 = ssub.s32 %s11, 1
      %s206 = smul.u32 32, %s16
      %p207 = scmp.lt.s32.totalorder %s206, 63
      %s208 = scalar_select %p207, %s206, 63
      %s209 = smul.addr %s208, 3
      %s210 = smul.addr %s209, 4
      %s211 = scalar_lea.vmem %s0, %s210
      %p212 = pneg %p37
      %p213 = pneg %p34
      %s214 = smul.u32 32, %s16
      %p215 = scmp.lt.s32.totalorder %s214, 63
      %s216 = scalar_select %p215, %s214, 63
      %s217 = smul.addr %s216, 4
      %s218 = scalar_lea.vmem %s1, %s217
      %p219 = pneg %p63
      %p220 = pneg %p60
      %p221 = pneg %p84
      %p222 = pneg %p81
      %p223 = pneg %p105
      %p224 = pneg %p102
      %p225 = pneg %p126
      %p226 = pneg %p123
      %p227 = pneg %p152
      %p228 = pneg %p149
      %s229 = smul.u32 32, %s16
      %p230 = scmp.lt.s32.totalorder %s229, 63
      %s231 = scalar_select %p230, %s229, 63
      %s232 = smul.addr %s231, 8
      %s233 = scalar_lea.vmem %s5, %s232
      %s234 = smul.u32 32, %s16
      %p235 = scmp.lt.s32.totalorder %s234, 63
      %s236 = scalar_select %p235, %s234, 63
      %s237 = smul.addr %s236, 3
      %s238 = smul.addr %s237, 4
      %s239 = scalar_lea.vmem %s0, %s238
      %s240 = smul.u32 32, %s16
      %s241 = smul.u32 32, %s16
      %p242 = scmp.lt.s32.totalorder %s241, 63
      %s243 = scalar_select %p242, %s241, 63
      %s244 = smul.addr %s243, 4
      %s245 = scalar_lea.vmem %s1, %s244
      %s246 = smul.u32 32, %s16
      %s247 = smul.u32 32, %s16
      %p248 = scmp.lt.s32.totalorder %s247, 63
      %s249 = scalar_select %p248, %s247, 63
      %s250 = smul.addr %s249, 8
      %s251 = scalar_lea.vmem %s5, %s250
      %s252 = smul.u32 32, %s16
      %v254 = vld [vmem:[%s239] sm:$0xff]
      %v255 = vld [vmem:[%s239 + $0x8] sm:$0xf]
      %v256 = vld [vmem:[%s239 + $0xc] sm:$0xff]
      %v257 = vld [vmem:[%s239 + $0x14] sm:$0xf]
      %v258 = vld [vmem:[%s239 + $0x18] sm:$0xff]
      %v259 = vld [vmem:[%s239 + $0x20] sm:$0xf]
      %v260 = vld [vmem:[%s239 + $0x24] sm:$0xff]
      %v261 = vld [vmem:[%s239 + $0x2c] sm:$0xf]
      %v262 = vld [vmem:[%s239 + $0x30] sm:$0xff]
      %v263 = vld [vmem:[%s239 + $0x38] sm:$0xf]
      %v264 = vld [vmem:[%s239 + $0x3c] sm:$0xff]
      %v265 = vld [vmem:[%s239 + $0x44] sm:$0xf]
      %v266 = vld [vmem:[%s239 + $0x48] sm:$0xff]
      %v267 = vld [vmem:[%s239 + $0x50] sm:$0xf]
      %v268 = vld [vmem:[%s239 + $0x54] sm:$0xff]
      %v269 = vld [vmem:[%s239 + $0x5c] sm:$0xf]
      %v270 = vld [vmem:[%s239 + $0x60] sm:$0xff]
      %v271 = vld [vmem:[%s239 + $0x68] sm:$0xf]
      %v272 = vld [vmem:[%s239 + $0x6c] sm:$0xff]
      %v273 = vld [vmem:[%s239 + $0x74] sm:$0xf]
      %v274 = vld [vmem:[%s239 + $0x78] sm:$0xff]
      %v275 = vld [vmem:[%s239 + $0x80] sm:$0xf]
      %v276 = vld [vmem:[%s239 + $0x84] sm:$0xff]
      %v277 = vld [vmem:[%s239 + $0x8c] sm:$0xf]
      %v278 = vld [vmem:[%s239 + $0x90] sm:$0xff]
      %v279 = vld [vmem:[%s239 + $0x98] sm:$0xf]
      %v280 = vld [vmem:[%s239 + $0x9c] sm:$0xff]
      %v281 = vld [vmem:[%s239 + $0xa4] sm:$0xf]
      %v282 = vld [vmem:[%s239 + $0xa8] sm:$0xff]
      %v283 = vld [vmem:[%s239 + $0xb0] sm:$0xf]
      %v284 = vld [vmem:[%s239 + $0xb4] sm:$0xff]
      %v285 = vld [vmem:[%s239 + $0xbc] sm:$0xf]
      %v286 = vld [vmem:[%s239 + $0xc0] sm:$0xff]
      %v287 = vld [vmem:[%s239 + $0xc8] sm:$0xf]
      %v288 = vld [vmem:[%s239 + $0xcc] sm:$0xff]
      %v289 = vld [vmem:[%s239 + $0xd4] sm:$0xf]
      %v290 = vld [vmem:[%s239 + $0xd8] sm:$0xff]
      %v291 = vld [vmem:[%s239 + $0xe0] sm:$0xf]
      %v292 = vld [vmem:[%s239 + $0xe4] sm:$0xff]
      %v293 = vld [vmem:[%s239 + $0xec] sm:$0xf]
      %v294 = vld [vmem:[%s239 + $0xf0] sm:$0xff]
      %v295 = vld [vmem:[%s239 + $0xf8] sm:$0xf]
      %v296 = vld [vmem:[%s239 + $0xfc] sm:$0xff]
      %v297 = vld [vmem:[%s239 + $0x104] sm:$0xf]
      %v298 = vld [vmem:[%s239 + $0x108] sm:$0xff]
      %v299 = vld [vmem:[%s239 + $0x110] sm:$0xf]
      %v300 = vld [vmem:[%s239 + $0x114] sm:$0xff]
      %v301 = vld [vmem:[%s239 + $0x11c] sm:$0xf]
      %v302 = vld [vmem:[%s239 + $0x120] sm:$0xff]
      %v303 = vld [vmem:[%s239 + $0x128] sm:$0xf]
      %v304 = vld [vmem:[%s239 + $0x12c] sm:$0xff]
      %v305 = vld [vmem:[%s239 + $0x134] sm:$0xf]
      %v306 = vld [vmem:[%s239 + $0x138] sm:$0xff]
      %v307 = vld [vmem:[%s239 + $0x140] sm:$0xf]
      %v308 = vld [vmem:[%s239 + $0x144] sm:$0xff]
      %v309 = vld [vmem:[%s239 + $0x14c] sm:$0xf]
      %v310 = vld [vmem:[%s239 + $0x150] sm:$0xff]
      %v311 = vld [vmem:[%s239 + $0x158] sm:$0xf]
      %v312 = vld [vmem:[%s239 + $0x15c] sm:$0xff]
      %v313 = vld [vmem:[%s239 + $0x164] sm:$0xf]
      %v314 = vld [vmem:[%s239 + $0x168] sm:$0xff]
      %v315 = vld [vmem:[%s239 + $0x170] sm:$0xf]
      %v316 = vld [vmem:[%s239 + $0x174] sm:$0xff]
      %v317 = vld [vmem:[%s239 + $0x17c] sm:$0xf]
      %v318 = vld [vmem:[%s2] sm:$0xf]
      %v319 = vld [vmem:[%s2 + $0x4] sm:$0xf]
      %v320 = vld [vmem:[%s2 + $0x8] sm:$0xf]
      %v321 = vld [vmem:[%s2 + $0xc] sm:$0xf]
      %v322 = vld [vmem:[%s2 + $0x10] sm:$0xf]
      %v323 = vld [vmem:[%s2 + $0x14] sm:$0xf]
      %v324 = vld [vmem:[%s2 + $0x18] sm:$0xf]
      %v325 = vld [vmem:[%s2 + $0x1c] sm:$0xf]
      %v326 = vld [vmem:[%s2 + $0x20] sm:$0xf]
      %v327 = vld [vmem:[%s2 + $0x24] sm:$0xf]
      %v328 = vld [vmem:[%s2 + $0x28] sm:$0xf]
      %v329 = vld [vmem:[%s2 + $0x2c] sm:$0xf]
      %v330 = vld [vmem:[%s2 + $0x30] sm:$0xf]
      %v331 = vld [vmem:[%s2 + $0x34] sm:$0xf]
      %v332 = vld [vmem:[%s2 + $0x38] sm:$0xf]
      %v333 = vld [vmem:[%s2 + $0x3c] sm:$0xf]
      %v334 = vld [vmem:[%s2 + $0x40] sm:$0xf]
      %v335 = vld [vmem:[%s2 + $0x44] sm:$0xf]
      %v336 = vld [vmem:[%s2 + $0x48] sm:$0xf]
      %v337 = vld [vmem:[%s2 + $0x4c] sm:$0xf]
      %v338 = vld [vmem:[%s2 + $0x50] sm:$0xf]
      %v339 = vld [vmem:[%s2 + $0x54] sm:$0xf]
      %v340 = vld [vmem:[%s2 + $0x58] sm:$0xf]
      %v341 = vld [vmem:[%s2 + $0x5c] sm:$0xf]
      %v342 = vld [vmem:[%s2 + $0x60] sm:$0xf]
      %v343 = vld [vmem:[%s2 + $0x64] sm:$0xf]
      %v344 = vld [vmem:[%s2 + $0x68] sm:$0xf]
      %v345 = vld [vmem:[%s2 + $0x6c] sm:$0xf]
      %v346 = vld [vmem:[%s2 + $0x70] sm:$0xf]
      %v347 = vld [vmem:[%s2 + $0x74] sm:$0xf]
      %v348 = vld [vmem:[%s2 + $0x78] sm:$0xf]
      %v349 = vld [vmem:[%s2 + $0x7c] sm:$0xf]
      %v350 = vld [vmem:[%s2 + $0x80] sm:$0xf]
      %v351 = vld [vmem:[%s2 + $0x84] sm:$0xf]
      %v352 = vld [vmem:[%s2 + $0x88] sm:$0xf]
      %v353 = vld [vmem:[%s2 + $0x8c] sm:$0xf]
      %v354 = vld [vmem:[%s245] sm:$0xf]
      %v355 = vld [vmem:[%s245 + $0x4] sm:$0xf]
      %v356 = vld [vmem:[%s245 + $0x8] sm:$0xf]
      %v357 = vld [vmem:[%s245 + $0xc] sm:$0xf]
      %v358 = vld [vmem:[%s245 + $0x10] sm:$0xf]
      %v359 = vld [vmem:[%s245 + $0x14] sm:$0xf]
      %v360 = vld [vmem:[%s245 + $0x18] sm:$0xf]
      %v361 = vld [vmem:[%s245 + $0x1c] sm:$0xf]
      %v362 = vld [vmem:[%s245 + $0x20] sm:$0xf]
      %v363 = vld [vmem:[%s245 + $0x24] sm:$0xf]
      %v364 = vld [vmem:[%s245 + $0x28] sm:$0xf]
      %v365 = vld [vmem:[%s245 + $0x2c] sm:$0xf]
      %v366 = vld [vmem:[%s245 + $0x30] sm:$0xf]
      %v367 = vld [vmem:[%s245 + $0x34] sm:$0xf]
      %v368 = vld [vmem:[%s245 + $0x38] sm:$0xf]
      %v369 = vld [vmem:[%s245 + $0x3c] sm:$0xf]
      %v370 = vld [vmem:[%s245 + $0x40] sm:$0xf]
      %v371 = vld [vmem:[%s245 + $0x44] sm:$0xf]
      %v372 = vld [vmem:[%s245 + $0x48] sm:$0xf]
      %v373 = vld [vmem:[%s245 + $0x4c] sm:$0xf]
      %v374 = vld [vmem:[%s245 + $0x50] sm:$0xf]
      %v375 = vld [vmem:[%s245 + $0x54] sm:$0xf]
      %v376 = vld [vmem:[%s245 + $0x58] sm:$0xf]
      %v377 = vld [vmem:[%s245 + $0x5c] sm:$0xf]
      %v378 = vld [vmem:[%s245 + $0x60] sm:$0xf]
      %v379 = vld [vmem:[%s245 + $0x64] sm:$0xf]
      %v380 = vld [vmem:[%s245 + $0x68] sm:$0xf]
      %v381 = vld [vmem:[%s245 + $0x6c] sm:$0xf]
      %v382 = vld [vmem:[%s245 + $0x70] sm:$0xf]
      %v383 = vld [vmem:[%s245 + $0x74] sm:$0xf]
      %v384 = vld [vmem:[%s245 + $0x78] sm:$0xf]
      %v385 = vld [vmem:[%s245 + $0x7c] sm:$0xf]
      %v386 = vld [vmem:[%s3] sm:$0xf]
      %v387 = vld [vmem:[%s3 + $0x4] sm:$0xf]
      %v388 = vld [vmem:[%s3 + $0x8] sm:$0xf]
      %v389 = vld [vmem:[%s3 + $0xc] sm:$0xf]
      %v390 = vld [vmem:[%s3 + $0x10] sm:$0x3]
      %v423 = vunpack.c.l.b16 %v354
      %v424 = vunpack.c.l.b16 %v355
      %v425 = vunpack.c.l.b16 %v356
      %v426 = vunpack.c.l.b16 %v357
      %v427 = vunpack.c.l.b16 %v358
      %v428 = vunpack.c.l.b16 %v359
      %v429 = vunpack.c.l.b16 %v360
      %v430 = vunpack.c.l.b16 %v361
      %v431 = vunpack.c.l.b16 %v362
      %v432 = vunpack.c.l.b16 %v363
      %v433 = vunpack.c.l.b16 %v364
      %v434 = vunpack.c.l.b16 %v365
      %v435 = vunpack.c.l.b16 %v366
      %v436 = vunpack.c.l.b16 %v367
      %v437 = vunpack.c.l.b16 %v368
      %v438 = vunpack.c.l.b16 %v369
      %v439 = vunpack.c.l.b16 %v370
      %v440 = vunpack.c.l.b16 %v371
      %v441 = vunpack.c.l.b16 %v372
      %v442 = vunpack.c.l.b16 %v373
      %v443 = vunpack.c.l.b16 %v374
      %v444 = vunpack.c.l.b16 %v375
      %v445 = vunpack.c.l.b16 %v376
      %v446 = vunpack.c.l.b16 %v377
      %v447 = vunpack.c.l.b16 %v378
      %v448 = vunpack.c.l.b16 %v379
      %v449 = vunpack.c.l.b16 %v380
      %v450 = vunpack.c.l.b16 %v381
      %v451 = vunpack.c.l.b16 %v382
      %v452 = vunpack.c.l.b16 %v383
      %v453 = vunpack.c.l.b16 %v384
      %v454 = vunpack.c.l.b16 %v385
      %v455 = vpack.c.b16 %v424, %v423
      %v456 = vpack.c.b16 %v426, %v425
      %v457 = vpack.c.b16 %v428, %v427
      %v458 = vpack.c.b16 %v430, %v429
      %v459 = vpack.c.b16 %v432, %v431
      %v460 = vpack.c.b16 %v434, %v433
      %v461 = vpack.c.b16 %v436, %v435
      %v462 = vpack.c.b16 %v438, %v437
      %v463 = vpack.c.b16 %v440, %v439
      %v464 = vpack.c.b16 %v442, %v441
      %v465 = vpack.c.b16 %v444, %v443
      %v466 = vpack.c.b16 %v446, %v445
      %v467 = vpack.c.b16 %v448, %v447
      %v468 = vpack.c.b16 %v450, %v449
      %v469 = vpack.c.b16 %v452, %v451
      %v470 = vpack.c.b16 %v454, %v453
      %v476 = vunpack.c.l.b16 %v386
      %v477 = vunpack.c.l.b16 %v387
      %v478 = vunpack.c.l.b16 %v388
      %v479 = vunpack.c.l.b16 %v389
      %v480 = vunpack.c.l.b16 %v390
      %v481 = vpack.c.b16 %v477, %v476
      %v482 = vpack.c.b16 %v479, %v478
      %v483 = vpack.c.b16 %v480, %v480
      %vm486 = vcmask 293888
      %v488 = vsel %vm486, %v455, 0
      %v491 = vsel %vm486, %v456, 0
      %v494 = vsel %vm486, %v457, 0
      %v497 = vsel %vm486, %v458, 0
      %v500 = vsel %vm486, %v459, 0
      %v503 = vsel %vm486, %v460, 0
      %v506 = vsel %vm486, %v461, 0
      %v509 = vsel %vm486, %v462, 0
      %v512 = vsel %vm486, %v463, 0
      %v515 = vsel %vm486, %v464, 0
      %v518 = vsel %vm486, %v465, 0
      %v521 = vsel %vm486, %v466, 0
      %v524 = vsel %vm486, %v467, 0
      %v527 = vsel %vm486, %v468, 0
      %v530 = vsel %vm486, %v469, 0
      %v533 = vsel %vm486, %v470, 0
      %vm535 = vcmask 1041408
      %v537 = vsel %vm535, %v483, 0
      %539 = vmatprep.subr.bf16.mxu0 0
      %540 = vmatpush1.bf16.msra.mxu0 0
      %541 = vmatprep.subr.bf16.mxu0 0
      %542 = vmatpush1.bf16.msra.mxu0 0
      %543 = vmatprep.subr.bf16.mxu0 0
      %544 = vmatpush1.bf16.msra.mxu0 0
      %545 = vmatprep.subr.bf16.mxu0 0
      %546 = vmatpush1.bf16.msra.mxu0 0
      %547 = vmatprep.subr.bf16.mxu0 0
      %548 = vmatpush1.bf16.msra.mxu0 0
      %549 = vmatprep.subr.bf16.mxu0 0
      %550 = vmatpush1.bf16.msra.mxu0 %v537
      %551 = vmatprep.subr.bf16.mxu0 0
      %552 = vmatpush1.bf16.msra.mxu0 %v482
      %553 = vmatprep.subr.bf16.mxu0 0
      %554 = vmatpush1.bf16.msra.mxu0 %v481
      %555 = vmatprep.subr.bf16.mxu0 0
      %556 = vmatpush2.bf16.msra.mxu0 0
      %557 = vmatprep.subr.bf16.mxu0 0
      %558 = vmatpush2.bf16.msra.mxu0 0
      %559 = vmatprep.subr.bf16.mxu0 0
      %560 = vmatpush2.bf16.msra.mxu0 0
      %561 = vmatprep.subr.bf16.mxu0 0
      %562 = vmatpush2.bf16.msra.mxu0 0
      %563 = vmatprep.subr.bf16.mxu0 0
      %564 = vmatpush2.bf16.msra.mxu0 0
      %565 = vmatprep.subr.bf16.mxu0 0
      %566 = vmatpush2.bf16.msra.mxu0 0
      %567 = vmatprep.subr.bf16.mxu0 0
      %568 = vmatpush2.bf16.msra.mxu0 0
      %569 = vmatprep.subr.bf16.mxu0 0
      %570 = vmatpush2.bf16.msra.mxu0 0
      %571 = vmatprep.mubr.bf16.mxu0 0
      %572 = vmatmul.mubr.bf16.gmra.mxu0 %v488
      %v573 = vpop.f32.mrf.mxu0
      %v574 = vadd.f32 0.0, %v573
      %v575 = vpop.f32.mrf.mxu0
      %v576 = vpop.f32.mrf.mxu0
      %v577 = vadd.f32 0.0, %v576
      %v578 = vpop.f32.mrf.mxu0
      %579 = vmatprep.mubr.bf16.mxu0 0
      %580 = vmatmul.mubr.bf16.gmra.mxu0 %v491
      %v581 = vpop.f32.mrf.mxu0
      %v582 = vadd.f32 0.0, %v581
      %v583 = vpop.f32.mrf.mxu0
      %v584 = vpop.f32.mrf.mxu0
      %v585 = vadd.f32 0.0, %v584
      %v586 = vpop.f32.mrf.mxu0
      %587 = vmatprep.mubr.bf16.mxu0 0
      %588 = vmatmul.mubr.bf16.gmra.mxu0 %v494
      %v589 = vpop.f32.mrf.mxu0
      %v590 = vadd.f32 0.0, %v589
      %v591 = vpop.f32.mrf.mxu0
      %v592 = vpop.f32.mrf.mxu0
      %v593 = vadd.f32 0.0, %v592
      %v594 = vpop.f32.mrf.mxu0
      %595 = vmatprep.mubr.bf16.mxu0 0
      %596 = vmatmul.mubr.bf16.gmra.mxu0 %v497
      %v597 = vpop.f32.mrf.mxu0
      %v598 = vadd.f32 0.0, %v597
      %v599 = vpop.f32.mrf.mxu0
      %v600 = vpop.f32.mrf.mxu0
      %v601 = vadd.f32 0.0, %v600
      %v602 = vpop.f32.mrf.mxu0
      %603 = vmatprep.mubr.bf16.mxu0 0
      %604 = vmatmul.mubr.bf16.gmra.mxu0 %v500
      %v605 = vpop.f32.mrf.mxu0
      %v606 = vadd.f32 0.0, %v605
      %v607 = vpop.f32.mrf.mxu0
      %v608 = vpop.f32.mrf.mxu0
      %v609 = vadd.f32 0.0, %v608
      %v610 = vpop.f32.mrf.mxu0
      %611 = vmatprep.mubr.bf16.mxu0 0
      %612 = vmatmul.mubr.bf16.gmra.mxu0 %v503
      %v613 = vpop.f32.mrf.mxu0
      %v614 = vadd.f32 0.0, %v613
      %v615 = vpop.f32.mrf.mxu0
      %v616 = vpop.f32.mrf.mxu0
      %v617 = vadd.f32 0.0, %v616
      %v618 = vpop.f32.mrf.mxu0
      %619 = vmatprep.mubr.bf16.mxu0 0
      %620 = vmatmul.mubr.bf16.gmra.mxu0 %v506
      %v621 = vpop.f32.mrf.mxu0
      %v622 = vadd.f32 0.0, %v621
      %v623 = vpop.f32.mrf.mxu0
      %v624 = vpop.f32.mrf.mxu0
      %v625 = vadd.f32 0.0, %v624
      %v626 = vpop.f32.mrf.mxu0
      %627 = vmatprep.mubr.bf16.mxu0 0
      %628 = vmatmul.mubr.bf16.gmra.mxu0 %v509
      %v629 = vpop.f32.mrf.mxu0
      %v630 = vadd.f32 0.0, %v629
      %v631 = vpop.f32.mrf.mxu0
      %v632 = vpop.f32.mrf.mxu0
      %v633 = vadd.f32 0.0, %v632
      %v634 = vpop.f32.mrf.mxu0
      %635 = vmatprep.mubr.bf16.mxu0 0
      %636 = vmatmul.mubr.bf16.gmra.mxu0 %v512
      %v637 = vpop.f32.mrf.mxu0
      %v638 = vadd.f32 0.0, %v637
      %v639 = vpop.f32.mrf.mxu0
      %v640 = vpop.f32.mrf.mxu0
      %v641 = vadd.f32 0.0, %v640
      %v642 = vpop.f32.mrf.mxu0
      %643 = vmatprep.mubr.bf16.mxu0 0
      %644 = vmatmul.mubr.bf16.gmra.mxu0 %v515
      %v645 = vpop.f32.mrf.mxu0
      %v646 = vadd.f32 0.0, %v645
      %v647 = vpop.f32.mrf.mxu0
      %v648 = vpop.f32.mrf.mxu0
      %v649 = vadd.f32 0.0, %v648
      %v650 = vpop.f32.mrf.mxu0
      %651 = vmatprep.mubr.bf16.mxu0 0
      %652 = vmatmul.mubr.bf16.gmra.mxu0 %v518
      %v653 = vpop.f32.mrf.mxu0
      %v654 = vadd.f32 0.0, %v653
      %v655 = vpop.f32.mrf.mxu0
      %v656 = vpop.f32.mrf.mxu0
      %v657 = vadd.f32 0.0, %v656
      %v658 = vpop.f32.mrf.mxu0
      %659 = vmatprep.mubr.bf16.mxu0 0
      %660 = vmatmul.mubr.bf16.gmra.mxu0 %v521
      %v661 = vpop.f32.mrf.mxu0
      %v662 = vadd.f32 0.0, %v661
      %v663 = vpop.f32.mrf.mxu0
      %v664 = vpop.f32.mrf.mxu0
      %v665 = vadd.f32 0.0, %v664
      %v666 = vpop.f32.mrf.mxu0
      %667 = vmatprep.mubr.bf16.mxu0 0
      %668 = vmatmul.mubr.bf16.gmra.mxu0 %v524
      %v669 = vpop.f32.mrf.mxu0
      %v670 = vadd.f32 0.0, %v669
      %v671 = vpop.f32.mrf.mxu0
      %v672 = vpop.f32.mrf.mxu0
      %v673 = vadd.f32 0.0, %v672
      %v674 = vpop.f32.mrf.mxu0
      %675 = vmatprep.mubr.bf16.mxu0 0
      %676 = vmatmul.mubr.bf16.gmra.mxu0 %v527
      %v677 = vpop.f32.mrf.mxu0
      %v678 = vadd.f32 0.0, %v677
      %v679 = vpop.f32.mrf.mxu0
      %v680 = vpop.f32.mrf.mxu0
      %v681 = vadd.f32 0.0, %v680
      %v682 = vpop.f32.mrf.mxu0
      %683 = vmatprep.mubr.bf16.mxu0 0
      %684 = vmatmul.mubr.bf16.gmra.mxu0 %v530
      %v685 = vpop.f32.mrf.mxu0
      %v686 = vadd.f32 0.0, %v685
      %v687 = vpop.f32.mrf.mxu0
      %v688 = vpop.f32.mrf.mxu0
      %v689 = vadd.f32 0.0, %v688
      %v690 = vpop.f32.mrf.mxu0
      %691 = vmatprep.mubr.bf16.mxu0 0
      %692 = vmatmul.mubr.bf16.gmra.mxu0 %v533
      %v693 = vpop.f32.mrf.mxu0
      %v694 = vadd.f32 0.0, %v693
      %v695 = vpop.f32.mrf.mxu0
      %v696 = vpop.f32.mrf.mxu0
      %v697 = vadd.f32 0.0, %v696
      %v698 = vpop.f32.mrf.mxu0
      %699 = vdwg.mxu0
      %v764 = vunpack.c.l.b16 %v254
      %v765 = vunpack.c.h.b16 %v254
      %v766 = vunpack.c.l.b16 %v255
      %v767 = vunpack.c.l.b16 %v256
      %v768 = vunpack.c.h.b16 %v256
      %v769 = vunpack.c.l.b16 %v257
      %v770 = vunpack.c.l.b16 %v258
      %v771 = vunpack.c.h.b16 %v258
      %v772 = vunpack.c.l.b16 %v259
      %v773 = vunpack.c.l.b16 %v260
      %v774 = vunpack.c.h.b16 %v260
      %v775 = vunpack.c.l.b16 %v261
      %v776 = vunpack.c.l.b16 %v262
      %v777 = vunpack.c.h.b16 %v262
      %v778 = vunpack.c.l.b16 %v263
      %v779 = vunpack.c.l.b16 %v264
      %v780 = vunpack.c.h.b16 %v264
      %v781 = vunpack.c.l.b16 %v265
      %v782 = vunpack.c.l.b16 %v266
      %v783 = vunpack.c.h.b16 %v266
      %v784 = vunpack.c.l.b16 %v267
      %v785 = vunpack.c.l.b16 %v268
      %v786 = vunpack.c.h.b16 %v268
      %v787 = vunpack.c.l.b16 %v269
      %v788 = vunpack.c.l.b16 %v270
      %v789 = vunpack.c.h.b16 %v270
      %v790 = vunpack.c.l.b16 %v271
      %v791 = vunpack.c.l.b16 %v272
      %v792 = vunpack.c.h.b16 %v272
      %v793 = vunpack.c.l.b16 %v273
      %v794 = vunpack.c.l.b16 %v274
      %v795 = vunpack.c.h.b16 %v274
      %v796 = vunpack.c.l.b16 %v275
      %v797 = vunpack.c.l.b16 %v276
      %v798 = vunpack.c.h.b16 %v276
      %v799 = vunpack.c.l.b16 %v277
      %v800 = vunpack.c.l.b16 %v278
      %v801 = vunpack.c.h.b16 %v278
      %v802 = vunpack.c.l.b16 %v279
      %v803 = vunpack.c.l.b16 %v280
      %v804 = vunpack.c.h.b16 %v280
      %v805 = vunpack.c.l.b16 %v281
      %v806 = vunpack.c.l.b16 %v282
      %v807 = vunpack.c.h.b16 %v282
      %v808 = vunpack.c.l.b16 %v283
      %v809 = vunpack.c.l.b16 %v284
      %v810 = vunpack.c.h.b16 %v284
      %v811 = vunpack.c.l.b16 %v285
      %v812 = vunpack.c.l.b16 %v286
      %v813 = vunpack.c.h.b16 %v286
      %v814 = vunpack.c.l.b16 %v287
      %v815 = vunpack.c.l.b16 %v288
      %v816 = vunpack.c.h.b16 %v288
      %v817 = vunpack.c.l.b16 %v289
      %v818 = vunpack.c.l.b16 %v290
      %v819 = vunpack.c.h.b16 %v290
      %v820 = vunpack.c.l.b16 %v291
      %v821 = vunpack.c.l.b16 %v292
      %v822 = vunpack.c.h.b16 %v292
      %v823 = vunpack.c.l.b16 %v293
      %v824 = vunpack.c.l.b16 %v294
      %v825 = vunpack.c.h.b16 %v294
      %v826 = vunpack.c.l.b16 %v295
      %v827 = vunpack.c.l.b16 %v296
      %v828 = vunpack.c.h.b16 %v296
      %v829 = vunpack.c.l.b16 %v297
      %v830 = vunpack.c.l.b16 %v298
      %v831 = vunpack.c.h.b16 %v298
      %v832 = vunpack.c.l.b16 %v299
      %v833 = vunpack.c.l.b16 %v300
      %v834 = vunpack.c.h.b16 %v300
      %v835 = vunpack.c.l.b16 %v301
      %v836 = vunpack.c.l.b16 %v302
      %v837 = vunpack.c.h.b16 %v302
      %v838 = vunpack.c.l.b16 %v303
      %v839 = vunpack.c.l.b16 %v304
      %v840 = vunpack.c.h.b16 %v304
      %v841 = vunpack.c.l.b16 %v305
      %v842 = vunpack.c.l.b16 %v306
      %v843 = vunpack.c.h.b16 %v306
      %v844 = vunpack.c.l.b16 %v307
      %v845 = vunpack.c.l.b16 %v308
      %v846 = vunpack.c.h.b16 %v308
      %v847 = vunpack.c.l.b16 %v309
      %v848 = vunpack.c.l.b16 %v310
      %v849 = vunpack.c.h.b16 %v310
      %v850 = vunpack.c.l.b16 %v311
      %v851 = vunpack.c.l.b16 %v312
      %v852 = vunpack.c.h.b16 %v312
      %v853 = vunpack.c.l.b16 %v313
      %v854 = vunpack.c.l.b16 %v314
      %v855 = vunpack.c.h.b16 %v314
      %v856 = vunpack.c.l.b16 %v315
      %v857 = vunpack.c.l.b16 %v316
      %v858 = vunpack.c.h.b16 %v316
      %v859 = vunpack.c.l.b16 %v317
      %v860 = vpack.c.b16 %v767, %v764
      %v861 = vpack.c.b16 %v768, %v765
      %v862 = vpack.c.b16 %v769, %v766
      %v863 = vpack.c.b16 %v773, %v770
      %v864 = vpack.c.b16 %v774, %v771
      %v865 = vpack.c.b16 %v775, %v772
      %v866 = vpack.c.b16 %v779, %v776
      %v867 = vpack.c.b16 %v780, %v777
      %v868 = vpack.c.b16 %v781, %v778
      %v869 = vpack.c.b16 %v785, %v782
      %v870 = vpack.c.b16 %v786, %v783
      %v871 = vpack.c.b16 %v787, %v784
      %v872 = vpack.c.b16 %v791, %v788
      %v873 = vpack.c.b16 %v792, %v789
      %v874 = vpack.c.b16 %v793, %v790
      %v875 = vpack.c.b16 %v797, %v794
      %v876 = vpack.c.b16 %v798, %v795
      %v877 = vpack.c.b16 %v799, %v796
      %v878 = vpack.c.b16 %v803, %v800
      %v879 = vpack.c.b16 %v804, %v801
      %v880 = vpack.c.b16 %v805, %v802
      %v881 = vpack.c.b16 %v809, %v806
      %v882 = vpack.c.b16 %v810, %v807
      %v883 = vpack.c.b16 %v811, %v808
      %v884 = vpack.c.b16 %v815, %v812
      %v885 = vpack.c.b16 %v816, %v813
      %v886 = vpack.c.b16 %v817, %v814
      %v887 = vpack.c.b16 %v821, %v818
      %v888 = vpack.c.b16 %v822, %v819
      %v889 = vpack.c.b16 %v823, %v820
      %v890 = vpack.c.b16 %v827, %v824
      %v891 = vpack.c.b16 %v828, %v825
      %v892 = vpack.c.b16 %v829, %v826
      %v893 = vpack.c.b16 %v833, %v830
      %v894 = vpack.c.b16 %v834, %v831
      %v895 = vpack.c.b16 %v835, %v832
      %v896 = vpack.c.b16 %v839, %v836
      %v897 = vpack.c.b16 %v840, %v837
      %v898 = vpack.c.b16 %v841, %v838
      %v899 = vpack.c.b16 %v845, %v842
      %v900 = vpack.c.b16 %v846, %v843
      %v901 = vpack.c.b16 %v847, %v844
      %v902 = vpack.c.b16 %v851, %v848
      %v903 = vpack.c.b16 %v852, %v849
      %v904 = vpack.c.b16 %v853, %v850
      %v905 = vpack.c.b16 %v857, %v854
      %v906 = vpack.c.b16 %v858, %v855
      %v907 = vpack.c.b16 %v859, %v856
      %v976 = vunpack.c.l.b16 %v318
      %v977 = vunpack.c.l.b16 %v319
      %v978 = vunpack.c.l.b16 %v320
      %v979 = vunpack.c.l.b16 %v321
      %v980 = vunpack.c.l.b16 %v322
      %v981 = vunpack.c.l.b16 %v323
      %v982 = vunpack.c.l.b16 %v324
      %v983 = vunpack.c.l.b16 %v325
      %v984 = vunpack.c.l.b16 %v326
      %v985 = vunpack.c.l.b16 %v327
      %v986 = vunpack.c.l.b16 %v328
      %v987 = vunpack.c.l.b16 %v329
      %v988 = vunpack.c.l.b16 %v330
      %v989 = vunpack.c.l.b16 %v331
      %v990 = vunpack.c.l.b16 %v332
      %v991 = vunpack.c.l.b16 %v333
      %v992 = vunpack.c.l.b16 %v334
      %v993 = vunpack.c.l.b16 %v335
      %v994 = vunpack.c.l.b16 %v336
      %v995 = vunpack.c.l.b16 %v337
      %v996 = vunpack.c.l.b16 %v338
      %v997 = vunpack.c.l.b16 %v339
      %v998 = vunpack.c.l.b16 %v340
      %v999 = vunpack.c.l.b16 %v341
      %v1000 = vunpack.c.l.b16 %v342
      %v1001 = vunpack.c.l.b16 %v343
      %v1002 = vunpack.c.l.b16 %v344
      %v1003 = vunpack.c.l.b16 %v345
      %v1004 = vunpack.c.l.b16 %v346
      %v1005 = vunpack.c.l.b16 %v347
      %v1006 = vunpack.c.l.b16 %v348
      %v1007 = vunpack.c.l.b16 %v349
      %v1008 = vunpack.c.l.b16 %v350
      %v1009 = vunpack.c.l.b16 %v351
      %v1010 = vunpack.c.l.b16 %v352
      %v1011 = vunpack.c.l.b16 %v353
      %v1012 = vpack.c.b16 %v977, %v976
      %v1013 = vpack.c.b16 %v979, %v978
      %v1014 = vpack.c.b16 %v981, %v980
      %v1015 = vpack.c.b16 %v983, %v982
      %v1016 = vpack.c.b16 %v985, %v984
      %v1017 = vpack.c.b16 %v987, %v986
      %v1018 = vpack.c.b16 %v989, %v988
      %v1019 = vpack.c.b16 %v991, %v990
      %v1020 = vpack.c.b16 %v993, %v992
      %v1021 = vpack.c.b16 %v995, %v994
      %v1022 = vpack.c.b16 %v997, %v996
      %v1023 = vpack.c.b16 %v999, %v998
      %v1024 = vpack.c.b16 %v1001, %v1000
      %v1025 = vpack.c.b16 %v1003, %v1002
      %v1026 = vpack.c.b16 %v1005, %v1004
      %v1027 = vpack.c.b16 %v1007, %v1006
      %v1028 = vpack.c.b16 %v1009, %v1008
      %v1029 = vpack.c.b16 %v1011, %v1010
      %vm1048 = vcmask 261120
      %v1050 = vsel %vm1048, %v862, 0
      %v1053 = vsel %vm1048, %v865, 0
      %v1056 = vsel %vm1048, %v868, 0
      %v1059 = vsel %vm1048, %v871, 0
      %v1062 = vsel %vm1048, %v874, 0
      %v1065 = vsel %vm1048, %v877, 0
      %v1068 = vsel %vm1048, %v880, 0
      %v1071 = vsel %vm1048, %v883, 0
      %v1074 = vsel %vm1048, %v886, 0
      %v1077 = vsel %vm1048, %v889, 0
      %v1080 = vsel %vm1048, %v892, 0
      %v1083 = vsel %vm1048, %v895, 0
      %v1086 = vsel %vm1048, %v898, 0
      %v1089 = vsel %vm1048, %v901, 0
      %v1092 = vsel %vm1048, %v904, 0
      %v1095 = vsel %vm1048, %v907, 0
      %1097 = vmatprep.subr.bf16.mxu0 0
      %1098 = vmatpush1.bf16.msra.mxu0 %v1019
      %1099 = vmatprep.subr.bf16.mxu0 0
      %1100 = vmatpush1.bf16.msra.mxu0 %v1018
      %1101 = vmatprep.subr.bf16.mxu0 0
      %1102 = vmatpush1.bf16.msra.mxu0 %v1017
      %1103 = vmatprep.subr.bf16.mxu0 0
      %1104 = vmatpush1.bf16.msra.mxu0 %v1016
      %1105 = vmatprep.subr.bf16.mxu0 0
      %1106 = vmatpush1.bf16.msra.mxu0 %v1015
      %1107 = vmatprep.subr.bf16.mxu0 0
      %1108 = vmatpush1.bf16.msra.mxu0 %v1014
      %1109 = vmatprep.subr.bf16.mxu0 0
      %1110 = vmatpush1.bf16.msra.mxu0 %v1013
      %1111 = vmatprep.subr.bf16.mxu0 0
      %1112 = vmatpush1.bf16.msra.mxu0 %v1012
      %1113 = vmatprep.subr.bf16.mxu0 0
      %1114 = vmatpush2.bf16.msra.mxu0 %v1027
      %1115 = vmatprep.subr.bf16.mxu0 0
      %1116 = vmatpush2.bf16.msra.mxu0 %v1026
      %1117 = vmatprep.subr.bf16.mxu0 0
      %1118 = vmatpush2.bf16.msra.mxu0 %v1025
      %1119 = vmatprep.subr.bf16.mxu0 0
      %1120 = vmatpush2.bf16.msra.mxu0 %v1024
      %1121 = vmatprep.subr.bf16.mxu0 0
      %1122 = vmatpush2.bf16.msra.mxu0 %v1023
      %1123 = vmatprep.subr.bf16.mxu0 0
      %1124 = vmatpush2.bf16.msra.mxu0 %v1022
      %1125 = vmatprep.subr.bf16.mxu0 0
      %1126 = vmatpush2.bf16.msra.mxu0 %v1021
      %1127 = vmatprep.subr.bf16.mxu0 0
      %1128 = vmatpush2.bf16.msra.mxu0 %v1020
      %1129 = vmatprep.mubr.bf16.mxu0 %v861
      %1130 = vmatmul.mubr.bf16.gmra.mxu0 %v860
      %v1131 = vpop.f32.mrf.mxu0
      %v1132 = vadd.f32 %v574, %v1131
      %v1133 = vpop.f32.mrf.mxu0
      %v1134 = vpop.f32.mrf.mxu0
      %v1135 = vadd.f32 %v577, %v1134
      %v1136 = vpop.f32.mrf.mxu0
      %1137 = vmatprep.mubr.bf16.mxu0 %v864
      %1138 = vmatmul.mubr.bf16.gmra.mxu0 %v863
      %v1139 = vpop.f32.mrf.mxu0
      %v1140 = vadd.f32 %v582, %v1139
      %v1141 = vpop.f32.mrf.mxu0
      %v1142 = vpop.f32.mrf.mxu0
      %v1143 = vadd.f32 %v585, %v1142
      %v1144 = vpop.f32.mrf.mxu0
      %1145 = vmatprep.mubr.bf16.mxu0 %v867
      %1146 = vmatmul.mubr.bf16.gmra.mxu0 %v866
      %v1147 = vpop.f32.mrf.mxu0
      %v1148 = vadd.f32 %v590, %v1147
      %v1149 = vpop.f32.mrf.mxu0
      %v1150 = vpop.f32.mrf.mxu0
      %v1151 = vadd.f32 %v593, %v1150
      %v1152 = vpop.f32.mrf.mxu0
      %1153 = vmatprep.mubr.bf16.mxu0 %v870
      %1154 = vmatmul.mubr.bf16.gmra.mxu0 %v869
      %v1155 = vpop.f32.mrf.mxu0
      %v1156 = vadd.f32 %v598, %v1155
      %v1157 = vpop.f32.mrf.mxu0
      %v1158 = vpop.f32.mrf.mxu0
      %v1159 = vadd.f32 %v601, %v1158
      %v1160 = vpop.f32.mrf.mxu0
      %1161 = vmatprep.mubr.bf16.mxu0 %v873
      %1162 = vmatmul.mubr.bf16.gmra.mxu0 %v872
      %v1163 = vpop.f32.mrf.mxu0
      %v1164 = vadd.f32 %v606, %v1163
      %v1165 = vpop.f32.mrf.mxu0
      %v1166 = vpop.f32.mrf.mxu0
      %v1167 = vadd.f32 %v609, %v1166
      %v1168 = vpop.f32.mrf.mxu0
      %1169 = vmatprep.mubr.bf16.mxu0 %v876
      %1170 = vmatmul.mubr.bf16.gmra.mxu0 %v875
      %v1171 = vpop.f32.mrf.mxu0
      %v1172 = vadd.f32 %v614, %v1171
      %v1173 = vpop.f32.mrf.mxu0
      %v1174 = vpop.f32.mrf.mxu0
      %v1175 = vadd.f32 %v617, %v1174
      %v1176 = vpop.f32.mrf.mxu0
      %1177 = vmatprep.mubr.bf16.mxu0 %v879
      %1178 = vmatmul.mubr.bf16.gmra.mxu0 %v878
      %v1179 = vpop.f32.mrf.mxu0
      %v1180 = vadd.f32 %v622, %v1179
      %v1181 = vpop.f32.mrf.mxu0
      %v1182 = vpop.f32.mrf.mxu0
      %v1183 = vadd.f32 %v625, %v1182
      %v1184 = vpop.f32.mrf.mxu0
      %1185 = vmatprep.mubr.bf16.mxu0 %v882
      %1186 = vmatmul.mubr.bf16.gmra.mxu0 %v881
      %v1187 = vpop.f32.mrf.mxu0
      %v1188 = vadd.f32 %v630, %v1187
      %v1189 = vpop.f32.mrf.mxu0
      %v1190 = vpop.f32.mrf.mxu0
      %v1191 = vadd.f32 %v633, %v1190
      %v1192 = vpop.f32.mrf.mxu0
      %1193 = vmatprep.mubr.bf16.mxu0 %v885
      %1194 = vmatmul.mubr.bf16.gmra.mxu0 %v884
      %v1195 = vpop.f32.mrf.mxu0
      %v1196 = vadd.f32 %v638, %v1195
      %v1197 = vpop.f32.mrf.mxu0
      %v1198 = vpop.f32.mrf.mxu0
      %v1199 = vadd.f32 %v641, %v1198
      %v1200 = vpop.f32.mrf.mxu0
      %1201 = vmatprep.mubr.bf16.mxu0 %v888
      %1202 = vmatmul.mubr.bf16.gmra.mxu0 %v887
      %v1203 = vpop.f32.mrf.mxu0
      %v1204 = vadd.f32 %v646, %v1203
      %v1205 = vpop.f32.mrf.mxu0
      %v1206 = vpop.f32.mrf.mxu0
      %v1207 = vadd.f32 %v649, %v1206
      %v1208 = vpop.f32.mrf.mxu0
      %1209 = vmatprep.mubr.bf16.mxu0 %v891
      %1210 = vmatmul.mubr.bf16.gmra.mxu0 %v890
      %v1211 = vpop.f32.mrf.mxu0
      %v1212 = vadd.f32 %v654, %v1211
      %v1213 = vpop.f32.mrf.mxu0
      %v1214 = vpop.f32.mrf.mxu0
      %v1215 = vadd.f32 %v657, %v1214
      %v1216 = vpop.f32.mrf.mxu0
      %1217 = vmatprep.mubr.bf16.mxu0 %v894
      %1218 = vmatmul.mubr.bf16.gmra.mxu0 %v893
      %v1219 = vpop.f32.mrf.mxu0
      %v1220 = vadd.f32 %v662, %v1219
      %v1221 = vpop.f32.mrf.mxu0
      %v1222 = vpop.f32.mrf.mxu0
      %v1223 = vadd.f32 %v665, %v1222
      %v1224 = vpop.f32.mrf.mxu0
      %1225 = vmatprep.mubr.bf16.mxu0 %v897
      %1226 = vmatmul.mubr.bf16.gmra.mxu0 %v896
      %v1227 = vpop.f32.mrf.mxu0
      %v1228 = vadd.f32 %v670, %v1227
      %v1229 = vpop.f32.mrf.mxu0
      %v1230 = vpop.f32.mrf.mxu0
      %v1231 = vadd.f32 %v673, %v1230
      %v1232 = vpop.f32.mrf.mxu0
      %1233 = vmatprep.mubr.bf16.mxu0 %v900
      %1234 = vmatmul.mubr.bf16.gmra.mxu0 %v899
      %v1235 = vpop.f32.mrf.mxu0
      %v1236 = vadd.f32 %v678, %v1235
      %v1237 = vpop.f32.mrf.mxu0
      %v1238 = vpop.f32.mrf.mxu0
      %v1239 = vadd.f32 %v681, %v1238
      %v1240 = vpop.f32.mrf.mxu0
      %1241 = vmatprep.mubr.bf16.mxu0 %v903
      %1242 = vmatmul.mubr.bf16.gmra.mxu0 %v902
      %v1243 = vpop.f32.mrf.mxu0
      %v1244 = vadd.f32 %v686, %v1243
      %v1245 = vpop.f32.mrf.mxu0
      %v1246 = vpop.f32.mrf.mxu0
      %v1247 = vadd.f32 %v689, %v1246
      %v1248 = vpop.f32.mrf.mxu0
      %1249 = vmatprep.mubr.bf16.mxu0 %v906
      %1250 = vmatmul.mubr.bf16.gmra.mxu0 %v905
      %v1251 = vpop.f32.mrf.mxu0
      %v1252 = vadd.f32 %v694, %v1251
      %v1253 = vpop.f32.mrf.mxu0
      %v1254 = vpop.f32.mrf.mxu0
      %v1255 = vadd.f32 %v697, %v1254
      %v1256 = vpop.f32.mrf.mxu0
      %1257 = vdwg.mxu0
      %1258 = vmatprep.subr.bf16.mxu0 0
      %1259 = vmatpush1.bf16.msra.mxu0 0
      %1260 = vmatprep.subr.bf16.mxu0 0
      %1261 = vmatpush1.bf16.msra.mxu0 0
      %1262 = vmatprep.subr.bf16.mxu0 0
      %1263 = vmatpush1.bf16.msra.mxu0 0
      %1264 = vmatprep.subr.bf16.mxu0 0
      %1265 = vmatpush1.bf16.msra.mxu0 0
      %1266 = vmatprep.subr.bf16.mxu0 0
      %1267 = vmatpush1.bf16.msra.mxu0 0
      %1268 = vmatprep.subr.bf16.mxu0 0
      %1269 = vmatpush1.bf16.msra.mxu0 0
      %1270 = vmatprep.subr.bf16.mxu0 0
      %1271 = vmatpush1.bf16.msra.mxu0 %v1029
      %1272 = vmatprep.subr.bf16.mxu0 0
      %1273 = vmatpush1.bf16.msra.mxu0 %v1028
      %1274 = vmatprep.subr.bf16.mxu0 0
      %1275 = vmatpush2.bf16.msra.mxu0 0
      %1276 = vmatprep.subr.bf16.mxu0 0
      %1277 = vmatpush2.bf16.msra.mxu0 0
      %1278 = vmatprep.subr.bf16.mxu0 0
      %1279 = vmatpush2.bf16.msra.mxu0 0
      %1280 = vmatprep.subr.bf16.mxu0 0
      %1281 = vmatpush2.bf16.msra.mxu0 0
      %1282 = vmatprep.subr.bf16.mxu0 0
      %1283 = vmatpush2.bf16.msra.mxu0 0
      %1284 = vmatprep.subr.bf16.mxu0 0
      %1285 = vmatpush2.bf16.msra.mxu0 0
      %1286 = vmatprep.subr.bf16.mxu0 0
      %1287 = vmatpush2.bf16.msra.mxu0 0
      %1288 = vmatprep.subr.bf16.mxu0 0
      %1289 = vmatpush2.bf16.msra.mxu0 0
      %1290 = vmatprep.mubr.bf16.mxu0 0
      %1291 = vmatmul.mubr.bf16.gmra.mxu0 %v1050
      %v1292 = vpop.f32.mrf.mxu0
      %v1293 = vadd.f32 %v1132, %v1292
      %v1294 = vpop.f32.mrf.mxu0
      %v1295 = vpop.f32.mrf.mxu0
      %v1296 = vadd.f32 %v1135, %v1295
      %v1297 = vpop.f32.mrf.mxu0
      %1298 = vmatprep.mubr.bf16.mxu0 0
      %1299 = vmatmul.mubr.bf16.gmra.mxu0 %v1053
      %v1300 = vpop.f32.mrf.mxu0
      %v1301 = vadd.f32 %v1140, %v1300
      %v1302 = vpop.f32.mrf.mxu0
      %v1303 = vpop.f32.mrf.mxu0
      %v1304 = vadd.f32 %v1143, %v1303
      %v1305 = vpop.f32.mrf.mxu0
      %1306 = vmatprep.mubr.bf16.mxu0 0
      %1307 = vmatmul.mubr.bf16.gmra.mxu0 %v1056
      %v1308 = vpop.f32.mrf.mxu0
      %v1309 = vadd.f32 %v1148, %v1308
      %v1310 = vpop.f32.mrf.mxu0
      %v1311 = vpop.f32.mrf.mxu0
      %v1312 = vadd.f32 %v1151, %v1311
      %v1313 = vpop.f32.mrf.mxu0
      %1314 = vmatprep.mubr.bf16.mxu0 0
      %1315 = vmatmul.mubr.bf16.gmra.mxu0 %v1059
      %v1316 = vpop.f32.mrf.mxu0
      %v1317 = vadd.f32 %v1156, %v1316
      %v1318 = vpop.f32.mrf.mxu0
      %v1319 = vpop.f32.mrf.mxu0
      %v1320 = vadd.f32 %v1159, %v1319
      %v1321 = vpop.f32.mrf.mxu0
      %1322 = vmatprep.mubr.bf16.mxu0 0
      %1323 = vmatmul.mubr.bf16.gmra.mxu0 %v1062
      %v1324 = vpop.f32.mrf.mxu0
      %v1325 = vadd.f32 %v1164, %v1324
      %v1326 = vpop.f32.mrf.mxu0
      %v1327 = vpop.f32.mrf.mxu0
      %v1328 = vadd.f32 %v1167, %v1327
      %v1329 = vpop.f32.mrf.mxu0
      %1330 = vmatprep.mubr.bf16.mxu0 0
      %1331 = vmatmul.mubr.bf16.gmra.mxu0 %v1065
      %v1332 = vpop.f32.mrf.mxu0
      %v1333 = vadd.f32 %v1172, %v1332
      %v1334 = vpop.f32.mrf.mxu0
      %v1335 = vpop.f32.mrf.mxu0
      %v1336 = vadd.f32 %v1175, %v1335
      %v1337 = vpop.f32.mrf.mxu0
      %1338 = vmatprep.mubr.bf16.mxu0 0
      %1339 = vmatmul.mubr.bf16.gmra.mxu0 %v1068
      %v1340 = vpop.f32.mrf.mxu0
      %v1341 = vadd.f32 %v1180, %v1340
      %v1342 = vpop.f32.mrf.mxu0
      %v1343 = vpop.f32.mrf.mxu0
      %v1344 = vadd.f32 %v1183, %v1343
      %v1345 = vpop.f32.mrf.mxu0
      %1346 = vmatprep.mubr.bf16.mxu0 0
      %1347 = vmatmul.mubr.bf16.gmra.mxu0 %v1071
      %v1348 = vpop.f32.mrf.mxu0
      %v1349 = vadd.f32 %v1188, %v1348
      %v1350 = vpop.f32.mrf.mxu0
      %v1351 = vpop.f32.mrf.mxu0
      %v1352 = vadd.f32 %v1191, %v1351
      %v1353 = vpop.f32.mrf.mxu0
      %1354 = vmatprep.mubr.bf16.mxu0 0
      %1355 = vmatmul.mubr.bf16.gmra.mxu0 %v1074
      %v1356 = vpop.f32.mrf.mxu0
      %v1357 = vadd.f32 %v1196, %v1356
      %v1358 = vpop.f32.mrf.mxu0
      %v1359 = vpop.f32.mrf.mxu0
      %v1360 = vadd.f32 %v1199, %v1359
      %v1361 = vpop.f32.mrf.mxu0
      %1362 = vmatprep.mubr.bf16.mxu0 0
      %1363 = vmatmul.mubr.bf16.gmra.mxu0 %v1077
      %v1364 = vpop.f32.mrf.mxu0
      %v1365 = vadd.f32 %v1204, %v1364
      %v1366 = vpop.f32.mrf.mxu0
      %v1367 = vpop.f32.mrf.mxu0
      %v1368 = vadd.f32 %v1207, %v1367
      %v1369 = vpop.f32.mrf.mxu0
      %1370 = vmatprep.mubr.bf16.mxu0 0
      %1371 = vmatmul.mubr.bf16.gmra.mxu0 %v1080
      %v1372 = vpop.f32.mrf.mxu0
      %v1373 = vadd.f32 %v1212, %v1372
      %v1374 = vpop.f32.mrf.mxu0
      %v1375 = vpop.f32.mrf.mxu0
      %v1376 = vadd.f32 %v1215, %v1375
      %v1377 = vpop.f32.mrf.mxu0
      %1378 = vmatprep.mubr.bf16.mxu0 0
      %1379 = vmatmul.mubr.bf16.gmra.mxu0 %v1083
      %v1380 = vpop.f32.mrf.mxu0
      %v1381 = vadd.f32 %v1220, %v1380
      %v1382 = vpop.f32.mrf.mxu0
      %v1383 = vpop.f32.mrf.mxu0
      %v1384 = vadd.f32 %v1223, %v1383
      %v1385 = vpop.f32.mrf.mxu0
      %1386 = vmatprep.mubr.bf16.mxu0 0
      %1387 = vmatmul.mubr.bf16.gmra.mxu0 %v1086
      %v1388 = vpop.f32.mrf.mxu0
      %v1389 = vadd.f32 %v1228, %v1388
      %v1390 = vpop.f32.mrf.mxu0
      %v1391 = vpop.f32.mrf.mxu0
      %v1392 = vadd.f32 %v1231, %v1391
      %v1393 = vpop.f32.mrf.mxu0
      %1394 = vmatprep.mubr.bf16.mxu0 0
      %1395 = vmatmul.mubr.bf16.gmra.mxu0 %v1089
      %v1396 = vpop.f32.mrf.mxu0
      %v1397 = vadd.f32 %v1236, %v1396
      %v1398 = vpop.f32.mrf.mxu0
      %v1399 = vpop.f32.mrf.mxu0
      %v1400 = vadd.f32 %v1239, %v1399
      %v1401 = vpop.f32.mrf.mxu0
      %1402 = vmatprep.mubr.bf16.mxu0 0
      %1403 = vmatmul.mubr.bf16.gmra.mxu0 %v1092
      %v1404 = vpop.f32.mrf.mxu0
      %v1405 = vadd.f32 %v1244, %v1404
      %v1406 = vpop.f32.mrf.mxu0
      %v1407 = vpop.f32.mrf.mxu0
      %v1408 = vadd.f32 %v1247, %v1407
      %v1409 = vpop.f32.mrf.mxu0
      %1410 = vmatprep.mubr.bf16.mxu0 0
      %1411 = vmatmul.mubr.bf16.gmra.mxu0 %v1095
      %v1412 = vpop.f32.mrf.mxu0
      %v1413 = vadd.f32 %v1252, %v1412
      %v1414 = vpop.f32.mrf.mxu0
      %v1415 = vpop.f32.mrf.mxu0
      %v1416 = vadd.f32 %v1255, %v1415
      %v1417 = vpop.f32.mrf.mxu0
      %1418 = vdwg.mxu0
      %v1419 = vld [vmem:[%s4] sm:$0x1]
      %v1421 = vlaneseq
      %v1422 = vshrl.u32 %v1421, 7
      %v1423 = vsub.s32 0, %v1422
      %v1424 = vrot.slane %v1419, %v1423
      %v1426 = vadd.f32 %v1293, %v1424
      %v1427 = vadd.f32 %v1296, %v1424
      %v1428 = vadd.f32 %v1301, %v1424
      %v1429 = vadd.f32 %v1304, %v1424
      %v1430 = vadd.f32 %v1309, %v1424
      %v1431 = vadd.f32 %v1312, %v1424
      %v1432 = vadd.f32 %v1317, %v1424
      %v1433 = vadd.f32 %v1320, %v1424
      %v1434 = vadd.f32 %v1325, %v1424
      %v1435 = vadd.f32 %v1328, %v1424
      %v1436 = vadd.f32 %v1333, %v1424
      %v1437 = vadd.f32 %v1336, %v1424
      %v1438 = vadd.f32 %v1341, %v1424
      %v1439 = vadd.f32 %v1344, %v1424
      %v1440 = vadd.f32 %v1349, %v1424
      %v1441 = vadd.f32 %v1352, %v1424
      %v1442 = vadd.f32 %v1357, %v1424
      %v1443 = vadd.f32 %v1360, %v1424
      %v1444 = vadd.f32 %v1365, %v1424
      %v1445 = vadd.f32 %v1368, %v1424
      %v1446 = vadd.f32 %v1373, %v1424
      %v1447 = vadd.f32 %v1376, %v1424
      %v1448 = vadd.f32 %v1381, %v1424
      %v1449 = vadd.f32 %v1384, %v1424
      %v1450 = vadd.f32 %v1389, %v1424
      %v1451 = vadd.f32 %v1392, %v1424
      %v1452 = vadd.f32 %v1397, %v1424
      %v1453 = vadd.f32 %v1400, %v1424
      %v1454 = vadd.f32 %v1405, %v1424
      %v1455 = vadd.f32 %v1408, %v1424
      %v1456 = vadd.f32 %v1413, %v1424
      %v1457 = vadd.f32 %v1416, %v1424
      %v1458 = vlaneseq
      %v1459 = vand.u32 %v1458, 127
      %vm1460 = vcmp.ge.s32.totalorder %v1459, 18
      %v1461 = vxor.u32 %v1426, 2147483648
      %v1462 = vxor.u32 %v1427, 2147483648
      %v1463 = vxor.u32 %v1428, 2147483648
      %v1464 = vxor.u32 %v1429, 2147483648
      %v1465 = vxor.u32 %v1430, 2147483648
      %v1466 = vxor.u32 %v1431, 2147483648
      %v1467 = vxor.u32 %v1432, 2147483648
      %v1468 = vxor.u32 %v1433, 2147483648
      %v1469 = vxor.u32 %v1434, 2147483648
      %v1470 = vxor.u32 %v1435, 2147483648
      %v1471 = vxor.u32 %v1436, 2147483648
      %v1472 = vxor.u32 %v1437, 2147483648
      %v1473 = vxor.u32 %v1438, 2147483648
      %v1474 = vxor.u32 %v1439, 2147483648
      %v1475 = vxor.u32 %v1440, 2147483648
      %v1476 = vxor.u32 %v1441, 2147483648
      %v1477 = vxor.u32 %v1442, 2147483648
      %v1478 = vxor.u32 %v1443, 2147483648
      %v1479 = vxor.u32 %v1444, 2147483648
      %v1480 = vxor.u32 %v1445, 2147483648
      %v1481 = vxor.u32 %v1446, 2147483648
      %v1482 = vxor.u32 %v1447, 2147483648
      %v1483 = vxor.u32 %v1448, 2147483648
      %v1484 = vxor.u32 %v1449, 2147483648
      %v1485 = vxor.u32 %v1450, 2147483648
      %v1486 = vxor.u32 %v1451, 2147483648
      %v1487 = vxor.u32 %v1452, 2147483648
      %v1488 = vxor.u32 %v1453, 2147483648
      %v1489 = vxor.u32 %v1454, 2147483648
      %v1490 = vxor.u32 %v1455, 2147483648
      %v1491 = vxor.u32 %v1456, 2147483648
      %v1492 = vxor.u32 %v1457, 2147483648
      %v1493 = vmul.f32 %v1461, 1.442695
      %v1494 = vpow.pop %v1493
      %v1495 = vmul.f32 %v1462, 1.442695
      %v1496 = vpow.pop %v1495
      %v1497 = vmul.f32 %v1463, 1.442695
      %v1498 = vpow.pop %v1497
      %v1499 = vmul.f32 %v1464, 1.442695
      %v1500 = vpow.pop %v1499
      %v1501 = vmul.f32 %v1465, 1.442695
      %v1502 = vpow.pop %v1501
      %v1503 = vmul.f32 %v1466, 1.442695
      %v1504 = vpow.pop %v1503
      %v1505 = vmul.f32 %v1467, 1.442695
      %v1506 = vpow.pop %v1505
      %v1507 = vmul.f32 %v1468, 1.442695
      %v1508 = vpow.pop %v1507
      %v1509 = vmul.f32 %v1469, 1.442695
      %v1510 = vpow.pop %v1509
      %v1511 = vmul.f32 %v1470, 1.442695
      %v1512 = vpow.pop %v1511
      %v1513 = vmul.f32 %v1471, 1.442695
      %v1514 = vpow.pop %v1513
      %v1515 = vmul.f32 %v1472, 1.442695
      %v1516 = vpow.pop %v1515
      %v1517 = vmul.f32 %v1473, 1.442695
      %v1518 = vpow.pop %v1517
      %v1519 = vmul.f32 %v1474, 1.442695
      %v1520 = vpow.pop %v1519
      %v1521 = vmul.f32 %v1475, 1.442695
      %v1522 = vpow.pop %v1521
      %v1523 = vmul.f32 %v1476, 1.442695
      %v1524 = vpow.pop %v1523
      %v1525 = vmul.f32 %v1477, 1.442695
      %v1526 = vpow.pop %v1525
      %v1527 = vmul.f32 %v1478, 1.442695
      %v1528 = vpow.pop %v1527
      %v1529 = vmul.f32 %v1479, 1.442695
      %v1530 = vpow.pop %v1529
      %v1531 = vmul.f32 %v1480, 1.442695
      %v1532 = vpow.pop %v1531
      %v1533 = vmul.f32 %v1481, 1.442695
      %v1534 = vpow.pop %v1533
      %v1535 = vmul.f32 %v1482, 1.442695
      %v1536 = vpow.pop %v1535
      %v1537 = vmul.f32 %v1483, 1.442695
      %v1538 = vpow.pop %v1537
      %v1539 = vmul.f32 %v1484, 1.442695
      %v1540 = vpow.pop %v1539
      %v1541 = vmul.f32 %v1485, 1.442695
      %v1542 = vpow.pop %v1541
      %v1543 = vmul.f32 %v1486, 1.442695
      %v1544 = vpow.pop %v1543
      %v1545 = vmul.f32 %v1487, 1.442695
      %v1546 = vpow.pop %v1545
      %v1547 = vmul.f32 %v1488, 1.442695
      %v1548 = vpow.pop %v1547
      %v1549 = vmul.f32 %v1489, 1.442695
      %v1550 = vpow.pop %v1549
      %v1551 = vmul.f32 %v1490, 1.442695
      %v1552 = vpow.pop %v1551
      %v1553 = vmul.f32 %v1491, 1.442695
      %v1554 = vpow.pop %v1553
      %v1555 = vmul.f32 %v1492, 1.442695
      %v1556 = vpow.pop %v1555
      %v1557 = vadd.f32 %v1494, 1.0
      %v1558 = vadd.f32 %v1496, 1.0
      %v1559 = vadd.f32 %v1498, 1.0
      %v1560 = vadd.f32 %v1500, 1.0
      %v1561 = vadd.f32 %v1502, 1.0
      %v1562 = vadd.f32 %v1504, 1.0
      %v1563 = vadd.f32 %v1506, 1.0
      %v1564 = vadd.f32 %v1508, 1.0
      %v1565 = vadd.f32 %v1510, 1.0
      %v1566 = vadd.f32 %v1512, 1.0
      %v1567 = vadd.f32 %v1514, 1.0
      %v1568 = vadd.f32 %v1516, 1.0
      %v1569 = vadd.f32 %v1518, 1.0
      %v1570 = vadd.f32 %v1520, 1.0
      %v1571 = vadd.f32 %v1522, 1.0
      %v1572 = vadd.f32 %v1524, 1.0
      %v1573 = vadd.f32 %v1526, 1.0
      %v1574 = vadd.f32 %v1528, 1.0
      %v1575 = vadd.f32 %v1530, 1.0
      %v1576 = vadd.f32 %v1532, 1.0
      %v1577 = vadd.f32 %v1534, 1.0
      %v1578 = vadd.f32 %v1536, 1.0
      %v1579 = vadd.f32 %v1538, 1.0
      %v1580 = vadd.f32 %v1540, 1.0
      %v1581 = vadd.f32 %v1542, 1.0
      %v1582 = vadd.f32 %v1544, 1.0
      %v1583 = vadd.f32 %v1546, 1.0
      %v1584 = vadd.f32 %v1548, 1.0
      %v1585 = vadd.f32 %v1550, 1.0
      %v1586 = vadd.f32 %v1552, 1.0
      %v1587 = vadd.f32 %v1554, 1.0
      %v1588 = vadd.f32 %v1556, 1.0
      %v1589 = vrcp.pop %v1557
      %v1590 = vmul.f32 1.0, %v1589
      %v1591 = vrcp.pop %v1558
      %v1592 = vmul.f32 1.0, %v1591
      %v1593 = vrcp.pop %v1559
      %v1594 = vmul.f32 1.0, %v1593
      %v1595 = vrcp.pop %v1560
      %v1596 = vmul.f32 1.0, %v1595
      %v1597 = vrcp.pop %v1561
      %v1598 = vmul.f32 1.0, %v1597
      %v1599 = vrcp.pop %v1562
      %v1600 = vmul.f32 1.0, %v1599
      %v1601 = vrcp.pop %v1563
      %v1602 = vmul.f32 1.0, %v1601
      %v1603 = vrcp.pop %v1564
      %v1604 = vmul.f32 1.0, %v1603
      %v1605 = vrcp.pop %v1565
      %v1606 = vmul.f32 1.0, %v1605
      %v1607 = vrcp.pop %v1566
      %v1608 = vmul.f32 1.0, %v1607
      %v1609 = vrcp.pop %v1567
      %v1610 = vmul.f32 1.0, %v1609
      %v1611 = vrcp.pop %v1568
      %v1612 = vmul.f32 1.0, %v1611
      %v1613 = vrcp.pop %v1569
      %v1614 = vmul.f32 1.0, %v1613
      %v1615 = vrcp.pop %v1570
      %v1616 = vmul.f32 1.0, %v1615
      %v1617 = vrcp.pop %v1571
      %v1618 = vmul.f32 1.0, %v1617
      %v1619 = vrcp.pop %v1572
      %v1620 = vmul.f32 1.0, %v1619
      %v1621 = vrcp.pop %v1573
      %v1622 = vmul.f32 1.0, %v1621
      %v1623 = vrcp.pop %v1574
      %v1624 = vmul.f32 1.0, %v1623
      %v1625 = vrcp.pop %v1575
      %v1626 = vmul.f32 1.0, %v1625
      %v1627 = vrcp.pop %v1576
      %v1628 = vmul.f32 1.0, %v1627
      %v1629 = vrcp.pop %v1577
      %v1630 = vmul.f32 1.0, %v1629
      %v1631 = vrcp.pop %v1578
      %v1632 = vmul.f32 1.0, %v1631
      %v1633 = vrcp.pop %v1579
      %v1634 = vmul.f32 1.0, %v1633
      %v1635 = vrcp.pop %v1580
      %v1636 = vmul.f32 1.0, %v1635
      %v1637 = vrcp.pop %v1581
      %v1638 = vmul.f32 1.0, %v1637
      %v1639 = vrcp.pop %v1582
      %v1640 = vmul.f32 1.0, %v1639
      %v1641 = vrcp.pop %v1583
      %v1642 = vmul.f32 1.0, %v1641
      %v1643 = vrcp.pop %v1584
      %v1644 = vmul.f32 1.0, %v1643
      %v1645 = vrcp.pop %v1585
      %v1646 = vmul.f32 1.0, %v1645
      %v1647 = vrcp.pop %v1586
      %v1648 = vmul.f32 1.0, %v1647
      %v1649 = vrcp.pop %v1587
      %v1650 = vmul.f32 1.0, %v1649
      %v1651 = vrcp.pop %v1588
      %v1652 = vmul.f32 1.0, %v1651
      %v1653 = vmul.f32 %v1590, 2.0
      %v1654 = vmul.f32 %v1592, 2.0
      %v1655 = vmul.f32 %v1594, 2.0
      %v1656 = vmul.f32 %v1596, 2.0
      %v1657 = vmul.f32 %v1598, 2.0
      %v1658 = vmul.f32 %v1600, 2.0
      %v1659 = vmul.f32 %v1602, 2.0
      %v1660 = vmul.f32 %v1604, 2.0
      %v1661 = vmul.f32 %v1606, 2.0
      %v1662 = vmul.f32 %v1608, 2.0
      %v1663 = vmul.f32 %v1610, 2.0
      %v1664 = vmul.f32 %v1612, 2.0
      %v1665 = vmul.f32 %v1614, 2.0
      %v1666 = vmul.f32 %v1616, 2.0
      %v1667 = vmul.f32 %v1618, 2.0
      %v1668 = vmul.f32 %v1620, 2.0
      %v1669 = vmul.f32 %v1622, 2.0
      %v1670 = vmul.f32 %v1624, 2.0
      %v1671 = vmul.f32 %v1626, 2.0
      %v1672 = vmul.f32 %v1628, 2.0
      %v1673 = vmul.f32 %v1630, 2.0
      %v1674 = vmul.f32 %v1632, 2.0
      %v1675 = vmul.f32 %v1634, 2.0
      %v1676 = vmul.f32 %v1636, 2.0
      %v1677 = vmul.f32 %v1638, 2.0
      %v1678 = vmul.f32 %v1640, 2.0
      %v1679 = vmul.f32 %v1642, 2.0
      %v1680 = vmul.f32 %v1644, 2.0
      %v1681 = vmul.f32 %v1646, 2.0
      %v1682 = vmul.f32 %v1648, 2.0
      %v1683 = vmul.f32 %v1650, 2.0
      %v1684 = vmul.f32 %v1652, 2.0
      %v1685 = vsel %vm1460, %v1653, %v1426
      %v1686 = vsel %vm1460, %v1654, %v1427
      %v1687 = vsel %vm1460, %v1655, %v1428
      %v1688 = vsel %vm1460, %v1656, %v1429
      %v1689 = vsel %vm1460, %v1657, %v1430
      %v1690 = vsel %vm1460, %v1658, %v1431
      %v1691 = vsel %vm1460, %v1659, %v1432
      %v1692 = vsel %vm1460, %v1660, %v1433
      %v1693 = vsel %vm1460, %v1661, %v1434
      %v1694 = vsel %vm1460, %v1662, %v1435
      %v1695 = vsel %vm1460, %v1663, %v1436
      %v1696 = vsel %vm1460, %v1664, %v1437
      %v1697 = vsel %vm1460, %v1665, %v1438
      %v1698 = vsel %vm1460, %v1666, %v1439
      %v1699 = vsel %vm1460, %v1667, %v1440
      %v1700 = vsel %vm1460, %v1668, %v1441
      %v1701 = vsel %vm1460, %v1669, %v1442
      %v1702 = vsel %vm1460, %v1670, %v1443
      %v1703 = vsel %vm1460, %v1671, %v1444
      %v1704 = vsel %vm1460, %v1672, %v1445
      %v1705 = vsel %vm1460, %v1673, %v1446
      %v1706 = vsel %vm1460, %v1674, %v1447
      %v1707 = vsel %vm1460, %v1675, %v1448
      %v1708 = vsel %vm1460, %v1676, %v1449
      %v1709 = vsel %vm1460, %v1677, %v1450
      %v1710 = vsel %vm1460, %v1678, %v1451
      %v1711 = vsel %vm1460, %v1679, %v1452
      %v1712 = vsel %vm1460, %v1680, %v1453
      %v1713 = vsel %vm1460, %v1681, %v1454
      %v1714 = vsel %vm1460, %v1682, %v1455
      %v1715 = vsel %vm1460, %v1683, %v1456
      %v1716 = vsel %vm1460, %v1684, %v1457
      %vm1717 = vcmask 220160
      %1718 = vst.msk [vmem:[%s251] sm:$0xff] %vm1717, %v1685
      %1719 = vst.msk [vmem:[%s251 + $0x8] sm:$0xff] %vm1717, %v1686
      %1720 = vst.msk [vmem:[%s251 + $0x10] sm:$0xff] %vm1717, %v1687
      %1721 = vst.msk [vmem:[%s251 + $0x18] sm:$0xff] %vm1717, %v1688
      %1722 = vst.msk [vmem:[%s251 + $0x20] sm:$0xff] %vm1717, %v1689
      %1723 = vst.msk [vmem:[%s251 + $0x28] sm:$0xff] %vm1717, %v1690
      %1724 = vst.msk [vmem:[%s251 + $0x30] sm:$0xff] %vm1717, %v1691
      %1725 = vst.msk [vmem:[%s251 + $0x38] sm:$0xff] %vm1717, %v1692
      %1726 = vst.msk [vmem:[%s251 + $0x40] sm:$0xff] %vm1717, %v1693
      %1727 = vst.msk [vmem:[%s251 + $0x48] sm:$0xff] %vm1717, %v1694
      %1728 = vst.msk [vmem:[%s251 + $0x50] sm:$0xff] %vm1717, %v1695
      %1729 = vst.msk [vmem:[%s251 + $0x58] sm:$0xff] %vm1717, %v1696
      %1730 = vst.msk [vmem:[%s251 + $0x60] sm:$0xff] %vm1717, %v1697
      %1731 = vst.msk [vmem:[%s251 + $0x68] sm:$0xff] %vm1717, %v1698
      %1732 = vst.msk [vmem:[%s251 + $0x70] sm:$0xff] %vm1717, %v1699
      %1733 = vst.msk [vmem:[%s251 + $0x78] sm:$0xff] %vm1717, %v1700
      %1734 = vst.msk [vmem:[%s251 + $0x80] sm:$0xff] %vm1717, %v1701
      %1735 = vst.msk [vmem:[%s251 + $0x88] sm:$0xff] %vm1717, %v1702
      %1736 = vst.msk [vmem:[%s251 + $0x90] sm:$0xff] %vm1717, %v1703
      %1737 = vst.msk [vmem:[%s251 + $0x98] sm:$0xff] %vm1717, %v1704
      %1738 = vst.msk [vmem:[%s251 + $0xa0] sm:$0xff] %vm1717, %v1705
      %1739 = vst.msk [vmem:[%s251 + $0xa8] sm:$0xff] %vm1717, %v1706
      %1740 = vst.msk [vmem:[%s251 + $0xb0] sm:$0xff] %vm1717, %v1707
      %1741 = vst.msk [vmem:[%s251 + $0xb8] sm:$0xff] %vm1717, %v1708
      %1742 = vst.msk [vmem:[%s251 + $0xc0] sm:$0xff] %vm1717, %v1709
      %1743 = vst.msk [vmem:[%s251 + $0xc8] sm:$0xff] %vm1717, %v1710
      %1744 = vst.msk [vmem:[%s251 + $0xd0] sm:$0xff] %vm1717, %v1711
      %1745 = vst.msk [vmem:[%s251 + $0xd8] sm:$0xff] %vm1717, %v1712
      %1746 = vst.msk [vmem:[%s251 + $0xe0] sm:$0xff] %vm1717, %v1713
      %1747 = vst.msk [vmem:[%s251 + $0xe8] sm:$0xff] %vm1717, %v1714
      %1748 = vst.msk [vmem:[%s251 + $0xf0] sm:$0xff] %vm1717, %v1715
      %1749 = vst.msk [vmem:[%s251 + $0xf8] sm:$0xff] %vm1717, %v1716
      %s1750 = smul.u32 32, %s16
      %p1751 = scmp.lt.s32.totalorder %s1750, 63
      %s1752 = scalar_select %p1751, %s1750, 63
      %s1753 = smul.addr %s1752, 8
      %s1754 = scalar_lea.vmem %s5, %s1753
      // Predicated region
      $region41: #{mduvsr_forward.15} parent=39 // pred_check
        %p1755 = pneg %p149
      $region42: #{mduvsr_forward.15} parent=39 // pred_check_branch
        %1757 = sbr.rel (%p1755) target = $region44
      $region43: #{mduvsr_forward.15} parent=39 // pred_region
        %s1758 = smul.u32 32, %s16
      $region44: #{mduvsr_forward.15} parent=39 // pred_fallthru
        _
    $region40: #{mduvsr_forward.15} parent=5 // pred_fallthru
      _
    %p1759 = scmp.le.s32.totalorder 2, %s11
    // Predicated region
    $region45: #{mduvsr_forward.15} parent=5 // pred_check
      %p1760 = pneg %p1759
    $region46: #{mduvsr_forward.15} parent=5 // pred_check_branch
      %1762 = sbr.rel (%p1760) target = $region48
    $region47: #{mduvsr_forward.15} parent=5 // pred_region
      %s1763 = ssub.s32 %s11, 2
      // Predicated region
      $region49: #{mduvsr_forward.15} parent=47 // pred_check
        %p1764 = pneg %p155
      $region50: #{mduvsr_forward.15} parent=47 // pred_check_branch
        %1766 = sbr.rel (%p1764) target = $region52
      $region51: #{mduvsr_forward.15} parent=47 // pred_region
        %s1767 = smul.u32 32, %s17
        %p1768 = scmp.lt.s32.totalorder %s1767, 63
        %s1769 = scalar_select %p1768, %s1767, 63
        %s1770 = smul.addr %s1769, 8
        %s1771 = scalar_lea.vmem %s5, %s1770
      $region52: #{mduvsr_forward.15} parent=47 // pred_fallthru
        _
    $region48: #{mduvsr_forward.15} parent=5 // pred_fallthru
      _
  $region6: #{mduvsr_forward.15} parent=0 // loop_footer
    %s15 = sadd.s32 1, %s11
  $region7: #{mduvsr_forward.15} parent=0 // loop_footer_branch
    %10 = sbr.rel target = $region3
  $region8: #{mduvsr_forward.15} parent=0 // loop_exit
    _

// kernel: mduvsr_forward.16
$region0: #{mduvsr_forward.16}
  #allocation0 [shape = 'u32[]', space=smem, size = 0x4, offset = 0x4, fixed_abs, tag = 'smem constant byte address 0x4 - core index']
  #allocation1 [shape = 'u32[144,128]{1,0:T(1,128)}', space=vmem, size = 0x12000, scoped, tag = 'internal scratch']
  %s0 = inlined_call_operand.vmem [shape: bf16[512,324], index: 0, kind: input, shape index: {}]
  %s1 = inlined_call_operand.vmem [shape: bf16[324,32], index: 1, kind: input, shape index: {}]
  %s2 = inlined_call_operand.vmem [shape: f32[1,32], index: 2, kind: input, shape index: {}]
  %s3 = inlined_call_operand.vmem [shape: bf16[512,32], index: 3, kind: output, shape index: {}]
  %s4 = sld [smem:[#allocation0]]
  $region45: #{mduvsr_forward.16} parent=0
    _
  %s6 = ssub.s32 1, %s4
  %s7 = scalar_select 0, %s6, %s4
  loop: start=0, step=1, limit=4
  $region2: #{mduvsr_forward.16} parent=0 // loop_pre_header
    _
  $region3: #{mduvsr_forward.16} parent=0 // loop_header
    %s9 = sphi 0, %s13
    %p10 = scmp.ge.s32.totalorder %s9, 4
    %s19 = sphi 0, %s21
    %s22 = sphi 0, %s19
    %s23 = sphi 0, %s22
    %s39 = sphi 0, %s23
    %s43 = sphi 0, %s43
    %s45 = sphi 0, %s43
    %s46 = sphi 0, %s45
    %s60 = sphi 0, %s46
    %s64 = sphi 0, %s64
    %s66 = sphi 0, %s64
    %s67 = sphi 0, %s66
    %s81 = sphi 0, %s67
    %s87 = sphi 0, %s89
    %s90 = sphi 0, %s87
    %s91 = sphi 0, %s90
    %s107 = sphi 0, %s91
  $region4: #{mduvsr_forward.16} parent=0 // loop_header_branch
    %12 = sbr.rel (%p10) target = $region8
  $region5: #{mduvsr_forward.16} parent=0 // loop_body
    %s14 = ssub.s32 %s9, 1
    %s15 = ssub.s32 %s9, 2
    %s16 = sadd.s32 %s9, 1
    %s17 = ssub.s32 %s9, %s16
    %p18 = scmp.eq.s32.totalorder %s17, 0
    %s20 = sadd.s32 %s19, 1
    %s21 = scalar_select %p18, %s19, %s20
    %p24 = pneg %p18
    %p25 = scmp.eq.s32.totalorder %s9, 1
    %p26 = por %p24, %p25
    %p27 = scmp.ne.s32.totalorder %s19, %s22
    %p28 = scmp.eq.s32.totalorder %s9, 0
    %p29 = por %p27, %p28
    %p30 = scmp.ne.s32.totalorder %s19, %s22
    %p31 = scmp.eq.s32.totalorder %s14, 1
    %p32 = por %p30, %p31
    %p33 = scmp.ne.s32.totalorder %s22, %s23
    %p34 = scmp.eq.s32.totalorder %s14, 0
    %p35 = por %p33, %p34
    %p36 = scmp.ne.s32.totalorder %s22, %s23
    %p37 = scmp.eq.s32.totalorder %s15, 1
    %p38 = por %p36, %p37
    %p40 = scmp.ne.s32.totalorder %s23, %s39
    %p41 = scmp.eq.s32.totalorder %s15, 0
    %p42 = por %p40, %p41
    %s44 = sadd.s32 %s43, 1
    %p47 = scmp.eq.s32.totalorder %s9, 1
    %p48 = scmp.ne.s32.totalorder %s43, %s45
    %p49 = scmp.eq.s32.totalorder %s9, 0
    %p50 = por %p48, %p49
    %p51 = scmp.ne.s32.totalorder %s43, %s45
    %p52 = scmp.eq.s32.totalorder %s14, 1
    %p53 = por %p51, %p52
    %p54 = scmp.ne.s32.totalorder %s45, %s46
    %p55 = scmp.eq.s32.totalorder %s14, 0
    %p56 = por %p54, %p55
    %p57 = scmp.ne.s32.totalorder %s45, %s46
    %p58 = scmp.eq.s32.totalorder %s15, 1
    %p59 = por %p57, %p58
    %p61 = scmp.ne.s32.totalorder %s46, %s60
    %p62 = scmp.eq.s32.totalorder %s15, 0
    %p63 = por %p61, %p62
    %s65 = sadd.s32 %s64, 1
    %p68 = scmp.eq.s32.totalorder %s9, 1
    %p69 = scmp.ne.s32.totalorder %s64, %s66
    %p70 = scmp.eq.s32.totalorder %s9, 0
    %p71 = por %p69, %p70
    %p72 = scmp.ne.s32.totalorder %s64, %s66
    %p73 = scmp.eq.s32.totalorder %s14, 1
    %p74 = por %p72, %p73
    %p75 = scmp.ne.s32.totalorder %s66, %s67
    %p76 = scmp.eq.s32.totalorder %s14, 0
    %p77 = por %p75, %p76
    %p78 = scmp.ne.s32.totalorder %s66, %s67
    %p79 = scmp.eq.s32.totalorder %s15, 1
    %p80 = por %p78, %p79
    %p82 = scmp.ne.s32.totalorder %s67, %s81
    %p83 = scmp.eq.s32.totalorder %s15, 0
    %p84 = por %p82, %p83
    %s85 = ssub.s32 %s9, %s16
    %p86 = scmp.eq.s32.totalorder %s85, 0
    %s88 = sadd.s32 %s87, 1
    %s89 = scalar_select %p86, %s87, %s88
    %p92 = pneg %p86
    %p93 = scmp.eq.s32.totalorder %s9, 1
    %p94 = por %p92, %p93
    %p95 = scmp.ne.s32.totalorder %s87, %s90
    %p96 = scmp.eq.s32.totalorder %s9, 0
    %p97 = por %p95, %p96
    %p98 = scmp.ne.s32.totalorder %s87, %s90
    %p99 = scmp.eq.s32.totalorder %s14, 1
    %p100 = por %p98, %p99
    %p101 = scmp.ne.s32.totalorder %s90, %s91
    %p102 = scmp.eq.s32.totalorder %s14, 0
    %p103 = por %p101, %p102
    %p104 = scmp.ne.s32.totalorder %s90, %s91
    %p105 = scmp.eq.s32.totalorder %s15, 1
    %p106 = por %p104, %p105
    %p108 = scmp.ne.s32.totalorder %s91, %s107
    %p109 = scmp.eq.s32.totalorder %s15, 0
    %p110 = por %p108, %p109
    %p111 = scmp.le.s32.totalorder 1, %s9
    %p112 = scmp.lt.s32.totalorder %s9, 3
    %p113 = pnand %p111, %p112
    %p114 = pneg %p113
    // Predicated region
    $region9: #{mduvsr_forward.16} parent=5 // pred_check
      _
    $region10: #{mduvsr_forward.16} parent=5 // pred_check_branch
      %116 = sbr.rel (%p113) target = $region12
    $region11: #{mduvsr_forward.16} parent=5 // pred_region
      %s117 = ssub.s32 %s9, 1
      // Predicated region
      $region13: #{mduvsr_forward.16} parent=11 // pred_check
        %p118 = pneg %p56
      $region14: #{mduvsr_forward.16} parent=11 // pred_check_branch
        %120 = sbr.rel (%p118) target = $region16
      $region15: #{mduvsr_forward.16} parent=11 // pred_region
        _
      $region16: #{mduvsr_forward.16} parent=11 // pred_fallthru
        _
      // Predicated region
      $region17: #{mduvsr_forward.16} parent=11 // pred_check
        %p121 = pneg %p77
      $region18: #{mduvsr_forward.16} parent=11 // pred_check_branch
        %123 = sbr.rel (%p121) target = $region20
      $region19: #{mduvsr_forward.16} parent=11 // pred_region
        _
      $region20: #{mduvsr_forward.16} parent=11 // pred_fallthru
        _
    $region12: #{mduvsr_forward.16} parent=5 // pred_fallthru
      _
    %p124 = scmp.lt.s32.totalorder %s9, 2
    // Predicated region
    $region21: #{mduvsr_forward.16} parent=5 // pred_check
      %p125 = pneg %p124
    $region22: #{mduvsr_forward.16} parent=5 // pred_check_branch
      %127 = sbr.rel (%p125) target = $region24
    $region23: #{mduvsr_forward.16} parent=5 // pred_region
      // Predicated region
      $region25: #{mduvsr_forward.16} parent=23 // pred_check
        %p128 = pneg %p29
      $region26: #{mduvsr_forward.16} parent=23 // pred_check_branch
        %130 = sbr.rel (%p128) target = $region28
      $region27: #{mduvsr_forward.16} parent=23 // pred_region
        %s131 = smul.u32 32, %s9
        %p132 = scmp.lt.s32.totalorder %s131, 63
        %s133 = scalar_select %p132, %s131, 63
        %s134 = smul.addr %s133, 3
        %s135 = smul.addr %s134, 4
        %s136 = scalar_lea.vmem %s0, %s135
        %s137 = smul.u32 32, %s9
      $region28: #{mduvsr_forward.16} parent=23 // pred_fallthru
        _
    $region24: #{mduvsr_forward.16} parent=5 // pred_fallthru
      _
    %p138 = scmp.le.s32.totalorder 1, %s9
    %p139 = scmp.lt.s32.totalorder %s9, 3
    %p140 = pnand %p138, %p139
    %p141 = pneg %p140
    // Predicated region
    $region29: #{mduvsr_forward.16} parent=5 // pred_check
      _
    $region30: #{mduvsr_forward.16} parent=5 // pred_check_branch
      %143 = sbr.rel (%p140) target = $region32
    $region31: #{mduvsr_forward.16} parent=5 // pred_region
      %s144 = ssub.s32 %s9, 1
      %s145 = smul.u32 32, %s14
      %p146 = scmp.lt.s32.totalorder %s145, 63
      %s147 = scalar_select %p146, %s145, 63
      %s148 = smul.addr %s147, 3
      %s149 = smul.addr %s148, 4
      %s150 = scalar_lea.vmem %s0, %s149
      %p151 = pneg %p35
      %p152 = pneg %p32
      %p153 = pneg %p56
      %p154 = pneg %p53
      %p155 = pneg %p77
      %p156 = pneg %p74
      %p157 = pneg %p103
      %p158 = pneg %p100
      %s159 = smul.u32 32, %s14
      %p160 = scmp.lt.s32.totalorder %s159, 63
      %s161 = scalar_select %p160, %s159, 63
      %s162 = smul.addr %s161, 4
      %s163 = scalar_lea.vmem %s3, %s162
      %s164 = smul.u32 32, %s14
      %p165 = scmp.lt.s32.totalorder %s164, 63
      %s166 = scalar_select %p165, %s164, 63
      %s167 = smul.addr %s166, 3
      %s168 = smul.addr %s167, 4
      %s169 = scalar_lea.vmem %s0, %s168
      %s170 = smul.u32 32, %s14
      %s171 = smul.u32 32, %s14
      %p172 = scmp.lt.s32.totalorder %s171, 63
      %s173 = scalar_select %p172, %s171, 63
      %s174 = smul.addr %s173, 4
      %s175 = scalar_lea.vmem %s3, %s174
      %s176 = smul.u32 32, %s14
      %v178 = vld [vmem:[%s169] sm:$0xff]
      %v179 = vld [vmem:[%s169 + $0x8] sm:$0xf]
      %v180 = vld [vmem:[%s169 + $0xc] sm:$0xff]
      %v181 = vld [vmem:[%s169 + $0x14] sm:$0xf]
      %v182 = vld [vmem:[%s169 + $0x18] sm:$0xff]
      %v183 = vld [vmem:[%s169 + $0x20] sm:$0xf]
      %v184 = vld [vmem:[%s169 + $0x24] sm:$0xff]
      %v185 = vld [vmem:[%s169 + $0x2c] sm:$0xf]
      %v186 = vld [vmem:[%s169 + $0x30] sm:$0xff]
      %v187 = vld [vmem:[%s169 + $0x38] sm:$0xf]
      %v188 = vld [vmem:[%s169 + $0x3c] sm:$0xff]
      %v189 = vld [vmem:[%s169 + $0x44] sm:$0xf]
      %v190 = vld [vmem:[%s169 + $0x48] sm:$0xff]
      %v191 = vld [vmem:[%s169 + $0x50] sm:$0xf]
      %v192 = vld [vmem:[%s169 + $0x54] sm:$0xff]
      %v193 = vld [vmem:[%s169 + $0x5c] sm:$0xf]
      %v194 = vld [vmem:[%s169 + $0x60] sm:$0xff]
      %v195 = vld [vmem:[%s169 + $0x68] sm:$0xf]
      %v196 = vld [vmem:[%s169 + $0x6c] sm:$0xff]
      %v197 = vld [vmem:[%s169 + $0x74] sm:$0xf]
      %v198 = vld [vmem:[%s169 + $0x78] sm:$0xff]
      %v199 = vld [vmem:[%s169 + $0x80] sm:$0xf]
      %v200 = vld [vmem:[%s169 + $0x84] sm:$0xff]
      %v201 = vld [vmem:[%s169 + $0x8c] sm:$0xf]
      %v202 = vld [vmem:[%s169 + $0x90] sm:$0xff]
      %v203 = vld [vmem:[%s169 + $0x98] sm:$0xf]
      %v204 = vld [vmem:[%s169 + $0x9c] sm:$0xff]
      %v205 = vld [vmem:[%s169 + $0xa4] sm:$0xf]
      %v206 = vld [vmem:[%s169 + $0xa8] sm:$0xff]
      %v207 = vld [vmem:[%s169 + $0xb0] sm:$0xf]
      %v208 = vld [vmem:[%s169 + $0xb4] sm:$0xff]
      %v209 = vld [vmem:[%s169 + $0xbc] sm:$0xf]
      %v210 = vld [vmem:[%s169 + $0xc0] sm:$0xff]
      %v211 = vld [vmem:[%s169 + $0xc8] sm:$0xf]
      %v212 = vld [vmem:[%s169 + $0xcc] sm:$0xff]
      %v213 = vld [vmem:[%s169 + $0xd4] sm:$0xf]
      %v214 = vld [vmem:[%s169 + $0xd8] sm:$0xff]
      %v215 = vld [vmem:[%s169 + $0xe0] sm:$0xf]
      %v216 = vld [vmem:[%s169 + $0xe4] sm:$0xff]
      %v217 = vld [vmem:[%s169 + $0xec] sm:$0xf]
      %v218 = vld [vmem:[%s169 + $0xf0] sm:$0xff]
      %v219 = vld [vmem:[%s169 + $0xf8] sm:$0xf]
      %v220 = vld [vmem:[%s169 + $0xfc] sm:$0xff]
      %v221 = vld [vmem:[%s169 + $0x104] sm:$0xf]
      %v222 = vld [vmem:[%s169 + $0x108] sm:$0xff]
      %v223 = vld [vmem:[%s169 + $0x110] sm:$0xf]
      %v224 = vld [vmem:[%s169 + $0x114] sm:$0xff]
      %v225 = vld [vmem:[%s169 + $0x11c] sm:$0xf]
      %v226 = vld [vmem:[%s169 + $0x120] sm:$0xff]
      %v227 = vld [vmem:[%s169 + $0x128] sm:$0xf]
      %v228 = vld [vmem:[%s169 + $0x12c] sm:$0xff]
      %v229 = vld [vmem:[%s169 + $0x134] sm:$0xf]
      %v230 = vld [vmem:[%s169 + $0x138] sm:$0xff]
      %v231 = vld [vmem:[%s169 + $0x140] sm:$0xf]
      %v232 = vld [vmem:[%s169 + $0x144] sm:$0xff]
      %v233 = vld [vmem:[%s169 + $0x14c] sm:$0xf]
      %v234 = vld [vmem:[%s169 + $0x150] sm:$0xff]
      %v235 = vld [vmem:[%s169 + $0x158] sm:$0xf]
      %v236 = vld [vmem:[%s169 + $0x15c] sm:$0xff]
      %v237 = vld [vmem:[%s169 + $0x164] sm:$0xf]
      %v238 = vld [vmem:[%s169 + $0x168] sm:$0xff]
      %v239 = vld [vmem:[%s169 + $0x170] sm:$0xf]
      %v240 = vld [vmem:[%s169 + $0x174] sm:$0xff]
      %v241 = vld [vmem:[%s169 + $0x17c] sm:$0xf]
      %v242 = vld [vmem:[%s1] sm:$0xf]
      %v243 = vld [vmem:[%s1 + $0x4] sm:$0xf]
      %v244 = vld [vmem:[%s1 + $0x8] sm:$0xf]
      %v245 = vld [vmem:[%s1 + $0xc] sm:$0xf]
      %v246 = vld [vmem:[%s1 + $0x10] sm:$0xf]
      %v247 = vld [vmem:[%s1 + $0x14] sm:$0xf]
      %v248 = vld [vmem:[%s1 + $0x18] sm:$0xf]
      %v249 = vld [vmem:[%s1 + $0x1c] sm:$0xf]
      %v250 = vld [vmem:[%s1 + $0x20] sm:$0xf]
      %v251 = vld [vmem:[%s1 + $0x24] sm:$0xf]
      %v252 = vld [vmem:[%s1 + $0x28] sm:$0xf]
      %v253 = vld [vmem:[%s1 + $0x2c] sm:$0xf]
      %v254 = vld [vmem:[%s1 + $0x30] sm:$0xf]
      %v255 = vld [vmem:[%s1 + $0x34] sm:$0xf]
      %v256 = vld [vmem:[%s1 + $0x38] sm:$0xf]
      %v257 = vld [vmem:[%s1 + $0x3c] sm:$0xf]
      %v258 = vld [vmem:[%s1 + $0x40] sm:$0xf]
      %v259 = vld [vmem:[%s1 + $0x44] sm:$0xf]
      %v260 = vld [vmem:[%s1 + $0x48] sm:$0xf]
      %v261 = vld [vmem:[%s1 + $0x4c] sm:$0xf]
      %v262 = vld [vmem:[%s1 + $0x50] sm:$0xf]
      %v263 = vld [vmem:[%s1 + $0x54] sm:$0xf]
      %v264 = vld [vmem:[%s1 + $0x58] sm:$0xf]
      %v265 = vld [vmem:[%s1 + $0x5c] sm:$0xf]
      %v266 = vld [vmem:[%s1 + $0x60] sm:$0xf]
      %v267 = vld [vmem:[%s1 + $0x64] sm:$0xf]
      %v268 = vld [vmem:[%s1 + $0x68] sm:$0xf]
      %v269 = vld [vmem:[%s1 + $0x6c] sm:$0xf]
      %v270 = vld [vmem:[%s1 + $0x70] sm:$0xf]
      %v271 = vld [vmem:[%s1 + $0x74] sm:$0xf]
      %v272 = vld [vmem:[%s1 + $0x78] sm:$0xf]
      %v273 = vld [vmem:[%s1 + $0x7c] sm:$0xf]
      %v274 = vld [vmem:[%s1 + $0x80] sm:$0xf]
      %v275 = vld [vmem:[%s1 + $0x84] sm:$0xf]
      %v276 = vld [vmem:[%s1 + $0x88] sm:$0xf]
      %v277 = vld [vmem:[%s1 + $0x8c] sm:$0xf]
      %v278 = vld [vmem:[%s1 + $0x90] sm:$0xf]
      %v279 = vld [vmem:[%s1 + $0x94] sm:$0xf]
      %v280 = vld [vmem:[%s1 + $0x98] sm:$0xf]
      %v281 = vld [vmem:[%s1 + $0x9c] sm:$0xf]
      %v282 = vld [vmem:[%s1 + $0xa0] sm:$0x3]
      %v283 = vld [vmem:[%s2] sm:$0x1]
      %v285 = vlaneseq
      %v286 = vshrl.u32 %v285, 7
      %v287 = vsub.s32 0, %v286
      %v288 = vrot.slane %v283, %v287
      %v354 = vunpack.c.l.b16 %v178
      %v355 = vunpack.c.h.b16 %v178
      %v356 = vunpack.c.l.b16 %v179
      %v357 = vunpack.c.l.b16 %v180
      %v358 = vunpack.c.h.b16 %v180
      %v359 = vunpack.c.l.b16 %v181
      %v360 = vunpack.c.l.b16 %v182
      %v361 = vunpack.c.h.b16 %v182
      %v362 = vunpack.c.l.b16 %v183
      %v363 = vunpack.c.l.b16 %v184
      %v364 = vunpack.c.h.b16 %v184
      %v365 = vunpack.c.l.b16 %v185
      %v366 = vunpack.c.l.b16 %v186
      %v367 = vunpack.c.h.b16 %v186
      %v368 = vunpack.c.l.b16 %v187
      %v369 = vunpack.c.l.b16 %v188
      %v370 = vunpack.c.h.b16 %v188
      %v371 = vunpack.c.l.b16 %v189
      %v372 = vunpack.c.l.b16 %v190
      %v373 = vunpack.c.h.b16 %v190
      %v374 = vunpack.c.l.b16 %v191
      %v375 = vunpack.c.l.b16 %v192
      %v376 = vunpack.c.h.b16 %v192
      %v377 = vunpack.c.l.b16 %v193
      %v378 = vunpack.c.l.b16 %v194
      %v379 = vunpack.c.h.b16 %v194
      %v380 = vunpack.c.l.b16 %v195
      %v381 = vunpack.c.l.b16 %v196
      %v382 = vunpack.c.h.b16 %v196
      %v383 = vunpack.c.l.b16 %v197
      %v384 = vunpack.c.l.b16 %v198
      %v385 = vunpack.c.h.b16 %v198
      %v386 = vunpack.c.l.b16 %v199
      %v387 = vunpack.c.l.b16 %v200
      %v388 = vunpack.c.h.b16 %v200
      %v389 = vunpack.c.l.b16 %v201
      %v390 = vunpack.c.l.b16 %v202
      %v391 = vunpack.c.h.b16 %v202
      %v392 = vunpack.c.l.b16 %v203
      %v393 = vunpack.c.l.b16 %v204
      %v394 = vunpack.c.h.b16 %v204
      %v395 = vunpack.c.l.b16 %v205
      %v396 = vunpack.c.l.b16 %v206
      %v397 = vunpack.c.h.b16 %v206
      %v398 = vunpack.c.l.b16 %v207
      %v399 = vunpack.c.l.b16 %v208
      %v400 = vunpack.c.h.b16 %v208
      %v401 = vunpack.c.l.b16 %v209
      %v402 = vunpack.c.l.b16 %v210
      %v403 = vunpack.c.h.b16 %v210
      %v404 = vunpack.c.l.b16 %v211
      %v405 = vunpack.c.l.b16 %v212
      %v406 = vunpack.c.h.b16 %v212
      %v407 = vunpack.c.l.b16 %v213
      %v408 = vunpack.c.l.b16 %v214
      %v409 = vunpack.c.h.b16 %v214
      %v410 = vunpack.c.l.b16 %v215
      %v411 = vunpack.c.l.b16 %v216
      %v412 = vunpack.c.h.b16 %v216
      %v413 = vunpack.c.l.b16 %v217
      %v414 = vunpack.c.l.b16 %v218
      %v415 = vunpack.c.h.b16 %v218
      %v416 = vunpack.c.l.b16 %v219
      %v417 = vunpack.c.l.b16 %v220
      %v418 = vunpack.c.h.b16 %v220
      %v419 = vunpack.c.l.b16 %v221
      %v420 = vunpack.c.l.b16 %v222
      %v421 = vunpack.c.h.b16 %v222
      %v422 = vunpack.c.l.b16 %v223
      %v423 = vunpack.c.l.b16 %v224
      %v424 = vunpack.c.h.b16 %v224
      %v425 = vunpack.c.l.b16 %v225
      %v426 = vunpack.c.l.b16 %v226
      %v427 = vunpack.c.h.b16 %v226
      %v428 = vunpack.c.l.b16 %v227
      %v429 = vunpack.c.l.b16 %v228
      %v430 = vunpack.c.h.b16 %v228
      %v431 = vunpack.c.l.b16 %v229
      %v432 = vunpack.c.l.b16 %v230
      %v433 = vunpack.c.h.b16 %v230
      %v434 = vunpack.c.l.b16 %v231
      %v435 = vunpack.c.l.b16 %v232
      %v436 = vunpack.c.h.b16 %v232
      %v437 = vunpack.c.l.b16 %v233
      %v438 = vunpack.c.l.b16 %v234
      %v439 = vunpack.c.h.b16 %v234
      %v440 = vunpack.c.l.b16 %v235
      %v441 = vunpack.c.l.b16 %v236
      %v442 = vunpack.c.h.b16 %v236
      %v443 = vunpack.c.l.b16 %v237
      %v444 = vunpack.c.l.b16 %v238
      %v445 = vunpack.c.h.b16 %v238
      %v446 = vunpack.c.l.b16 %v239
      %v447 = vunpack.c.l.b16 %v240
      %v448 = vunpack.c.h.b16 %v240
      %v449 = vunpack.c.l.b16 %v241
      %v450 = vpack.c.b16 %v357, %v354
      %v451 = vpack.c.b16 %v358, %v355
      %v452 = vpack.c.b16 %v359, %v356
      %v453 = vpack.c.b16 %v363, %v360
      %v454 = vpack.c.b16 %v364, %v361
      %v455 = vpack.c.b16 %v365, %v362
      %v456 = vpack.c.b16 %v369, %v366
      %v457 = vpack.c.b16 %v370, %v367
      %v458 = vpack.c.b16 %v371, %v368
      %v459 = vpack.c.b16 %v375, %v372
      %v460 = vpack.c.b16 %v376, %v373
      %v461 = vpack.c.b16 %v377, %v374
      %v462 = vpack.c.b16 %v381, %v378
      %v463 = vpack.c.b16 %v382, %v379
      %v464 = vpack.c.b16 %v383, %v380
      %v465 = vpack.c.b16 %v387, %v384
      %v466 = vpack.c.b16 %v388, %v385
      %v467 = vpack.c.b16 %v389, %v386
      %v468 = vpack.c.b16 %v393, %v390
      %v469 = vpack.c.b16 %v394, %v391
      %v470 = vpack.c.b16 %v395, %v392
      %v471 = vpack.c.b16 %v399, %v396
      %v472 = vpack.c.b16 %v400, %v397
      %v473 = vpack.c.b16 %v401, %v398
      %v474 = vpack.c.b16 %v405, %v402
      %v475 = vpack.c.b16 %v406, %v403
      %v476 = vpack.c.b16 %v407, %v404
      %v477 = vpack.c.b16 %v411, %v408
      %v478 = vpack.c.b16 %v412, %v409
      %v479 = vpack.c.b16 %v413, %v410
      %v480 = vpack.c.b16 %v417, %v414
      %v481 = vpack.c.b16 %v418, %v415
      %v482 = vpack.c.b16 %v419, %v416
      %v483 = vpack.c.b16 %v423, %v420
      %v484 = vpack.c.b16 %v424, %v421
      %v485 = vpack.c.b16 %v425, %v422
      %v486 = vpack.c.b16 %v429, %v426
      %v487 = vpack.c.b16 %v430, %v427
      %v488 = vpack.c.b16 %v431, %v428
      %v489 = vpack.c.b16 %v435, %v432
      %v490 = vpack.c.b16 %v436, %v433
      %v491 = vpack.c.b16 %v437, %v434
      %v492 = vpack.c.b16 %v441, %v438
      %v493 = vpack.c.b16 %v442, %v439
      %v494 = vpack.c.b16 %v443, %v440
      %v495 = vpack.c.b16 %v447, %v444
      %v496 = vpack.c.b16 %v448, %v445
      %v497 = vpack.c.b16 %v449, %v446
      %v571 = vunpack.c.l.b16 %v242
      %v572 = vunpack.c.l.b16 %v243
      %v573 = vunpack.c.l.b16 %v244
      %v574 = vunpack.c.l.b16 %v245
      %v575 = vunpack.c.l.b16 %v246
      %v576 = vunpack.c.l.b16 %v247
      %v577 = vunpack.c.l.b16 %v248
      %v578 = vunpack.c.l.b16 %v249
      %v579 = vunpack.c.l.b16 %v250
      %v580 = vunpack.c.l.b16 %v251
      %v581 = vunpack.c.l.b16 %v252
      %v582 = vunpack.c.l.b16 %v253
      %v583 = vunpack.c.l.b16 %v254
      %v584 = vunpack.c.l.b16 %v255
      %v585 = vunpack.c.l.b16 %v256
      %v586 = vunpack.c.l.b16 %v257
      %v587 = vunpack.c.l.b16 %v258
      %v588 = vunpack.c.l.b16 %v259
      %v589 = vunpack.c.l.b16 %v260
      %v590 = vunpack.c.l.b16 %v261
      %v591 = vunpack.c.l.b16 %v262
      %v592 = vunpack.c.l.b16 %v263
      %v593 = vunpack.c.l.b16 %v264
      %v594 = vunpack.c.l.b16 %v265
      %v595 = vunpack.c.l.b16 %v266
      %v596 = vunpack.c.l.b16 %v267
      %v597 = vunpack.c.l.b16 %v268
      %v598 = vunpack.c.l.b16 %v269
      %v599 = vunpack.c.l.b16 %v270
      %v600 = vunpack.c.l.b16 %v271
      %v601 = vunpack.c.l.b16 %v272
      %v602 = vunpack.c.l.b16 %v273
      %v603 = vunpack.c.l.b16 %v274
      %v604 = vunpack.c.l.b16 %v275
      %v605 = vunpack.c.l.b16 %v276
      %v606 = vunpack.c.l.b16 %v277
      %v607 = vunpack.c.l.b16 %v278
      %v608 = vunpack.c.l.b16 %v279
      %v609 = vunpack.c.l.b16 %v280
      %v610 = vunpack.c.l.b16 %v281
      %v611 = vunpack.c.l.b16 %v282
      %v612 = vpack.c.b16 %v572, %v571
      %v613 = vpack.c.b16 %v574, %v573
      %v614 = vpack.c.b16 %v576, %v575
      %v615 = vpack.c.b16 %v578, %v577
      %v616 = vpack.c.b16 %v580, %v579
      %v617 = vpack.c.b16 %v582, %v581
      %v618 = vpack.c.b16 %v584, %v583
      %v619 = vpack.c.b16 %v586, %v585
      %v620 = vpack.c.b16 %v588, %v587
      %v621 = vpack.c.b16 %v590, %v589
      %v622 = vpack.c.b16 %v592, %v591
      %v623 = vpack.c.b16 %v594, %v593
      %v624 = vpack.c.b16 %v596, %v595
      %v625 = vpack.c.b16 %v598, %v597
      %v626 = vpack.c.b16 %v600, %v599
      %v627 = vpack.c.b16 %v602, %v601
      %v628 = vpack.c.b16 %v604, %v603
      %v629 = vpack.c.b16 %v606, %v605
      %v630 = vpack.c.b16 %v608, %v607
      %v631 = vpack.c.b16 %v610, %v609
      %v632 = vpack.c.b16 %v611, %v611
      %vm653 = vcmask 556032
      %v655 = vsel %vm653, %v452, 0
      %v658 = vsel %vm653, %v455, 0
      %v661 = vsel %vm653, %v458, 0
      %v664 = vsel %vm653, %v461, 0
      %v667 = vsel %vm653, %v464, 0
      %v670 = vsel %vm653, %v467, 0
      %v673 = vsel %vm653, %v470, 0
      %v676 = vsel %vm653, %v473, 0
      %v679 = vsel %vm653, %v476, 0
      %v682 = vsel %vm653, %v479, 0
      %v685 = vsel %vm653, %v482, 0
      %v688 = vsel %vm653, %v485, 0
      %v691 = vsel %vm653, %v488, 0
      %v694 = vsel %vm653, %v491, 0
      %v697 = vsel %vm653, %v494, 0
      %v700 = vsel %vm653, %v497, 0
      %vm702 = vcmask 1041408
      %v704 = vsel %vm702, %v632, 0
      %706 = vmatprep.subr.bf16.mxu0 0
      %707 = vmatpush1.bf16.msra.mxu0 %v619
      %708 = vmatprep.subr.bf16.mxu0 0
      %709 = vmatpush1.bf16.msra.mxu0 %v618
      %710 = vmatprep.subr.bf16.mxu0 0
      %711 = vmatpush1.bf16.msra.mxu0 %v617
      %712 = vmatprep.subr.bf16.mxu0 0
      %713 = vmatpush1.bf16.msra.mxu0 %v616
      %714 = vmatprep.subr.bf16.mxu0 0
      %715 = vmatpush1.bf16.msra.mxu0 %v615
      %716 = vmatprep.subr.bf16.mxu0 0
      %717 = vmatpush1.bf16.msra.mxu0 %v614
      %718 = vmatprep.subr.bf16.mxu0 0
      %719 = vmatpush1.bf16.msra.mxu0 %v613
      %720 = vmatprep.subr.bf16.mxu0 0
      %721 = vmatpush1.bf16.msra.mxu0 %v612
      %722 = vmatprep.subr.bf16.mxu0 0
      %723 = vmatpush2.bf16.msra.mxu0 %v627
      %724 = vmatprep.subr.bf16.mxu0 0
      %725 = vmatpush2.bf16.msra.mxu0 %v626
      %726 = vmatprep.subr.bf16.mxu0 0
      %727 = vmatpush2.bf16.msra.mxu0 %v625
      %728 = vmatprep.subr.bf16.mxu0 0
      %729 = vmatpush2.bf16.msra.mxu0 %v624
      %730 = vmatprep.subr.bf16.mxu0 0
      %731 = vmatpush2.bf16.msra.mxu0 %v623
      %732 = vmatprep.subr.bf16.mxu0 0
      %733 = vmatpush2.bf16.msra.mxu0 %v622
      %734 = vmatprep.subr.bf16.mxu0 0
      %735 = vmatpush2.bf16.msra.mxu0 %v621
      %736 = vmatprep.subr.bf16.mxu0 0
      %737 = vmatpush2.bf16.msra.mxu0 %v620
      %738 = vmatprep.mubr.bf16.mxu0 %v451
      %739 = vmatmul.mubr.bf16.gmra.mxu0 %v450
      %v740 = vpop.f32.mrf.mxu0
      %v741 = vadd.f32 %v288, %v740
      %v742 = vpop.f32.mrf.mxu0
      %v743 = vpop.f32.mrf.mxu0
      %v744 = vadd.f32 %v288, %v743
      %v745 = vpop.f32.mrf.mxu0
      %746 = vmatprep.mubr.bf16.mxu0 %v454
      %747 = vmatmul.mubr.bf16.gmra.mxu0 %v453
      %v748 = vpop.f32.mrf.mxu0
      %v749 = vadd.f32 %v288, %v748
      %v750 = vpop.f32.mrf.mxu0
      %v751 = vpop.f32.mrf.mxu0
      %v752 = vadd.f32 %v288, %v751
      %v753 = vpop.f32.mrf.mxu0
      %754 = vmatprep.mubr.bf16.mxu0 %v457
      %755 = vmatmul.mubr.bf16.gmra.mxu0 %v456
      %v756 = vpop.f32.mrf.mxu0
      %v757 = vadd.f32 %v288, %v756
      %v758 = vpop.f32.mrf.mxu0
      %v759 = vpop.f32.mrf.mxu0
      %v760 = vadd.f32 %v288, %v759
      %v761 = vpop.f32.mrf.mxu0
      %762 = vmatprep.mubr.bf16.mxu0 %v460
      %763 = vmatmul.mubr.bf16.gmra.mxu0 %v459
      %v764 = vpop.f32.mrf.mxu0
      %v765 = vadd.f32 %v288, %v764
      %v766 = vpop.f32.mrf.mxu0
      %v767 = vpop.f32.mrf.mxu0
      %v768 = vadd.f32 %v288, %v767
      %v769 = vpop.f32.mrf.mxu0
      %770 = vmatprep.mubr.bf16.mxu0 %v463
      %771 = vmatmul.mubr.bf16.gmra.mxu0 %v462
      %v772 = vpop.f32.mrf.mxu0
      %v773 = vadd.f32 %v288, %v772
      %v774 = vpop.f32.mrf.mxu0
      %v775 = vpop.f32.mrf.mxu0
      %v776 = vadd.f32 %v288, %v775
      %v777 = vpop.f32.mrf.mxu0
      %778 = vmatprep.mubr.bf16.mxu0 %v466
      %779 = vmatmul.mubr.bf16.gmra.mxu0 %v465
      %v780 = vpop.f32.mrf.mxu0
      %v781 = vadd.f32 %v288, %v780
      %v782 = vpop.f32.mrf.mxu0
      %v783 = vpop.f32.mrf.mxu0
      %v784 = vadd.f32 %v288, %v783
      %v785 = vpop.f32.mrf.mxu0
      %786 = vmatprep.mubr.bf16.mxu0 %v469
      %787 = vmatmul.mubr.bf16.gmra.mxu0 %v468
      %v788 = vpop.f32.mrf.mxu0
      %v789 = vadd.f32 %v288, %v788
      %v790 = vpop.f32.mrf.mxu0
      %v791 = vpop.f32.mrf.mxu0
      %v792 = vadd.f32 %v288, %v791
      %v793 = vpop.f32.mrf.mxu0
      %794 = vmatprep.mubr.bf16.mxu0 %v472
      %795 = vmatmul.mubr.bf16.gmra.mxu0 %v471
      %v796 = vpop.f32.mrf.mxu0
      %v797 = vadd.f32 %v288, %v796
      %v798 = vpop.f32.mrf.mxu0
      %v799 = vpop.f32.mrf.mxu0
      %v800 = vadd.f32 %v288, %v799
      %v801 = vpop.f32.mrf.mxu0
      %802 = vmatprep.mubr.bf16.mxu0 %v475
      %803 = vmatmul.mubr.bf16.gmra.mxu0 %v474
      %v804 = vpop.f32.mrf.mxu0
      %v805 = vadd.f32 %v288, %v804
      %v806 = vpop.f32.mrf.mxu0
      %v807 = vpop.f32.mrf.mxu0
      %v808 = vadd.f32 %v288, %v807
      %v809 = vpop.f32.mrf.mxu0
      %810 = vmatprep.mubr.bf16.mxu0 %v478
      %811 = vmatmul.mubr.bf16.gmra.mxu0 %v477
      %v812 = vpop.f32.mrf.mxu0
      %v813 = vadd.f32 %v288, %v812
      %v814 = vpop.f32.mrf.mxu0
      %v815 = vpop.f32.mrf.mxu0
      %v816 = vadd.f32 %v288, %v815
      %v817 = vpop.f32.mrf.mxu0
      %818 = vmatprep.mubr.bf16.mxu0 %v481
      %819 = vmatmul.mubr.bf16.gmra.mxu0 %v480
      %v820 = vpop.f32.mrf.mxu0
      %v821 = vadd.f32 %v288, %v820
      %v822 = vpop.f32.mrf.mxu0
      %v823 = vpop.f32.mrf.mxu0
      %v824 = vadd.f32 %v288, %v823
      %v825 = vpop.f32.mrf.mxu0
      %826 = vmatprep.mubr.bf16.mxu0 %v484
      %827 = vmatmul.mubr.bf16.gmra.mxu0 %v483
      %v828 = vpop.f32.mrf.mxu0
      %v829 = vadd.f32 %v288, %v828
      %v830 = vpop.f32.mrf.mxu0
      %v831 = vpop.f32.mrf.mxu0
      %v832 = vadd.f32 %v288, %v831
      %v833 = vpop.f32.mrf.mxu0
      %834 = vmatprep.mubr.bf16.mxu0 %v487
      %835 = vmatmul.mubr.bf16.gmra.mxu0 %v486
      %v836 = vpop.f32.mrf.mxu0
      %v837 = vadd.f32 %v288, %v836
      %v838 = vpop.f32.mrf.mxu0
      %v839 = vpop.f32.mrf.mxu0
      %v840 = vadd.f32 %v288, %v839
      %v841 = vpop.f32.mrf.mxu0
      %842 = vmatprep.mubr.bf16.mxu0 %v490
      %843 = vmatmul.mubr.bf16.gmra.mxu0 %v489
      %v844 = vpop.f32.mrf.mxu0
      %v845 = vadd.f32 %v288, %v844
      %v846 = vpop.f32.mrf.mxu0
      %v847 = vpop.f32.mrf.mxu0
      %v848 = vadd.f32 %v288, %v847
      %v849 = vpop.f32.mrf.mxu0
      %850 = vmatprep.mubr.bf16.mxu0 %v493
      %851 = vmatmul.mubr.bf16.gmra.mxu0 %v492
      %v852 = vpop.f32.mrf.mxu0
      %v853 = vadd.f32 %v288, %v852
      %v854 = vpop.f32.mrf.mxu0
      %v855 = vpop.f32.mrf.mxu0
      %v856 = vadd.f32 %v288, %v855
      %v857 = vpop.f32.mrf.mxu0
      %858 = vmatprep.mubr.bf16.mxu0 %v496
      %859 = vmatmul.mubr.bf16.gmra.mxu0 %v495
      %v860 = vpop.f32.mrf.mxu0
      %v861 = vadd.f32 %v288, %v860
      %v862 = vpop.f32.mrf.mxu0
      %v863 = vpop.f32.mrf.mxu0
      %v864 = vadd.f32 %v288, %v863
      %v865 = vpop.f32.mrf.mxu0
      %866 = vdwg.mxu0
      %867 = vmatprep.subr.bf16.mxu0 0
      %868 = vmatpush1.bf16.msra.mxu0 0
      %869 = vmatprep.subr.bf16.mxu0 0
      %870 = vmatpush1.bf16.msra.mxu0 0
      %871 = vmatprep.subr.bf16.mxu0 0
      %872 = vmatpush1.bf16.msra.mxu0 0
      %873 = vmatprep.subr.bf16.mxu0 0
      %874 = vmatpush1.bf16.msra.mxu0 %v704
      %875 = vmatprep.subr.bf16.mxu0 0
      %876 = vmatpush1.bf16.msra.mxu0 %v631
      %877 = vmatprep.subr.bf16.mxu0 0
      %878 = vmatpush1.bf16.msra.mxu0 %v630
      %879 = vmatprep.subr.bf16.mxu0 0
      %880 = vmatpush1.bf16.msra.mxu0 %v629
      %881 = vmatprep.subr.bf16.mxu0 0
      %882 = vmatpush1.bf16.msra.mxu0 %v628
      %883 = vmatprep.subr.bf16.mxu0 0
      %884 = vmatpush2.bf16.msra.mxu0 0
      %885 = vmatprep.subr.bf16.mxu0 0
      %886 = vmatpush2.bf16.msra.mxu0 0
      %887 = vmatprep.subr.bf16.mxu0 0
      %888 = vmatpush2.bf16.msra.mxu0 0
      %889 = vmatprep.subr.bf16.mxu0 0
      %890 = vmatpush2.bf16.msra.mxu0 0
      %891 = vmatprep.subr.bf16.mxu0 0
      %892 = vmatpush2.bf16.msra.mxu0 0
      %893 = vmatprep.subr.bf16.mxu0 0
      %894 = vmatpush2.bf16.msra.mxu0 0
      %895 = vmatprep.subr.bf16.mxu0 0
      %896 = vmatpush2.bf16.msra.mxu0 0
      %897 = vmatprep.subr.bf16.mxu0 0
      %898 = vmatpush2.bf16.msra.mxu0 0
      %899 = vmatprep.mubr.bf16.mxu0 0
      %900 = vmatmul.mubr.bf16.gmra.mxu0 %v655
      %v901 = vpop.f32.mrf.mxu0
      %v902 = vadd.f32 %v741, %v901
      %v903 = vpop.f32.mrf.mxu0
      %v904 = vpop.f32.mrf.mxu0
      %v905 = vadd.f32 %v744, %v904
      %v906 = vpop.f32.mrf.mxu0
      %907 = vmatprep.mubr.bf16.mxu0 0
      %908 = vmatmul.mubr.bf16.gmra.mxu0 %v658
      %v909 = vpop.f32.mrf.mxu0
      %v910 = vadd.f32 %v749, %v909
      %v911 = vpop.f32.mrf.mxu0
      %v912 = vpop.f32.mrf.mxu0
      %v913 = vadd.f32 %v752, %v912
      %v914 = vpop.f32.mrf.mxu0
      %915 = vmatprep.mubr.bf16.mxu0 0
      %916 = vmatmul.mubr.bf16.gmra.mxu0 %v661
      %v917 = vpop.f32.mrf.mxu0
      %v918 = vadd.f32 %v757, %v917
      %v919 = vpop.f32.mrf.mxu0
      %v920 = vpop.f32.mrf.mxu0
      %v921 = vadd.f32 %v760, %v920
      %v922 = vpop.f32.mrf.mxu0
      %923 = vmatprep.mubr.bf16.mxu0 0
      %924 = vmatmul.mubr.bf16.gmra.mxu0 %v664
      %v925 = vpop.f32.mrf.mxu0
      %v926 = vadd.f32 %v765, %v925
      %v927 = vpop.f32.mrf.mxu0
      %v928 = vpop.f32.mrf.mxu0
      %v929 = vadd.f32 %v768, %v928
      %v930 = vpop.f32.mrf.mxu0
      %931 = vmatprep.mubr.bf16.mxu0 0
      %932 = vmatmul.mubr.bf16.gmra.mxu0 %v667
      %v933 = vpop.f32.mrf.mxu0
      %v934 = vadd.f32 %v773, %v933
      %v935 = vpop.f32.mrf.mxu0
      %v936 = vpop.f32.mrf.mxu0
      %v937 = vadd.f32 %v776, %v936
      %v938 = vpop.f32.mrf.mxu0
      %939 = vmatprep.mubr.bf16.mxu0 0
      %940 = vmatmul.mubr.bf16.gmra.mxu0 %v670
      %v941 = vpop.f32.mrf.mxu0
      %v942 = vadd.f32 %v781, %v941
      %v943 = vpop.f32.mrf.mxu0
      %v944 = vpop.f32.mrf.mxu0
      %v945 = vadd.f32 %v784, %v944
      %v946 = vpop.f32.mrf.mxu0
      %947 = vmatprep.mubr.bf16.mxu0 0
      %948 = vmatmul.mubr.bf16.gmra.mxu0 %v673
      %v949 = vpop.f32.mrf.mxu0
      %v950 = vadd.f32 %v789, %v949
      %v951 = vpop.f32.mrf.mxu0
      %v952 = vpop.f32.mrf.mxu0
      %v953 = vadd.f32 %v792, %v952
      %v954 = vpop.f32.mrf.mxu0
      %955 = vmatprep.mubr.bf16.mxu0 0
      %956 = vmatmul.mubr.bf16.gmra.mxu0 %v676
      %v957 = vpop.f32.mrf.mxu0
      %v958 = vadd.f32 %v797, %v957
      %v959 = vpop.f32.mrf.mxu0
      %v960 = vpop.f32.mrf.mxu0
      %v961 = vadd.f32 %v800, %v960
      %v962 = vpop.f32.mrf.mxu0
      %963 = vmatprep.mubr.bf16.mxu0 0
      %964 = vmatmul.mubr.bf16.gmra.mxu0 %v679
      %v965 = vpop.f32.mrf.mxu0
      %v966 = vadd.f32 %v805, %v965
      %v967 = vpop.f32.mrf.mxu0
      %v968 = vpop.f32.mrf.mxu0
      %v969 = vadd.f32 %v808, %v968
      %v970 = vpop.f32.mrf.mxu0
      %971 = vmatprep.mubr.bf16.mxu0 0
      %972 = vmatmul.mubr.bf16.gmra.mxu0 %v682
      %v973 = vpop.f32.mrf.mxu0
      %v974 = vadd.f32 %v813, %v973
      %v975 = vpop.f32.mrf.mxu0
      %v976 = vpop.f32.mrf.mxu0
      %v977 = vadd.f32 %v816, %v976
      %v978 = vpop.f32.mrf.mxu0
      %979 = vmatprep.mubr.bf16.mxu0 0
      %980 = vmatmul.mubr.bf16.gmra.mxu0 %v685
      %v981 = vpop.f32.mrf.mxu0
      %v982 = vadd.f32 %v821, %v981
      %v983 = vpop.f32.mrf.mxu0
      %v984 = vpop.f32.mrf.mxu0
      %v985 = vadd.f32 %v824, %v984
      %v986 = vpop.f32.mrf.mxu0
      %987 = vmatprep.mubr.bf16.mxu0 0
      %988 = vmatmul.mubr.bf16.gmra.mxu0 %v688
      %v989 = vpop.f32.mrf.mxu0
      %v990 = vadd.f32 %v829, %v989
      %v991 = vpop.f32.mrf.mxu0
      %v992 = vpop.f32.mrf.mxu0
      %v993 = vadd.f32 %v832, %v992
      %v994 = vpop.f32.mrf.mxu0
      %995 = vmatprep.mubr.bf16.mxu0 0
      %996 = vmatmul.mubr.bf16.gmra.mxu0 %v691
      %v997 = vpop.f32.mrf.mxu0
      %v998 = vadd.f32 %v837, %v997
      %v999 = vpop.f32.mrf.mxu0
      %v1000 = vpop.f32.mrf.mxu0
      %v1001 = vadd.f32 %v840, %v1000
      %v1002 = vpop.f32.mrf.mxu0
      %1003 = vmatprep.mubr.bf16.mxu0 0
      %1004 = vmatmul.mubr.bf16.gmra.mxu0 %v694
      %v1005 = vpop.f32.mrf.mxu0
      %v1006 = vadd.f32 %v845, %v1005
      %v1007 = vpop.f32.mrf.mxu0
      %v1008 = vpop.f32.mrf.mxu0
      %v1009 = vadd.f32 %v848, %v1008
      %v1010 = vpop.f32.mrf.mxu0
      %1011 = vmatprep.mubr.bf16.mxu0 0
      %1012 = vmatmul.mubr.bf16.gmra.mxu0 %v697
      %v1013 = vpop.f32.mrf.mxu0
      %v1014 = vadd.f32 %v853, %v1013
      %v1015 = vpop.f32.mrf.mxu0
      %v1016 = vpop.f32.mrf.mxu0
      %v1017 = vadd.f32 %v856, %v1016
      %v1018 = vpop.f32.mrf.mxu0
      %1019 = vmatprep.mubr.bf16.mxu0 0
      %1020 = vmatmul.mubr.bf16.gmra.mxu0 %v700
      %v1021 = vpop.f32.mrf.mxu0
      %v1022 = vadd.f32 %v861, %v1021
      %v1023 = vpop.f32.mrf.mxu0
      %v1024 = vpop.f32.mrf.mxu0
      %v1025 = vadd.f32 %v864, %v1024
      %v1026 = vpop.f32.mrf.mxu0
      %1027 = vdwg.mxu0
      %v1028 = vpack.c.bf16 %v905, %v902
      %v1029 = vpack.c.bf16 %v913, %v910
      %v1030 = vpack.c.bf16 %v921, %v918
      %v1031 = vpack.c.bf16 %v929, %v926
      %v1032 = vpack.c.bf16 %v937, %v934
      %v1033 = vpack.c.bf16 %v945, %v942
      %v1034 = vpack.c.bf16 %v953, %v950
      %v1035 = vpack.c.bf16 %v961, %v958
      %v1036 = vpack.c.bf16 %v969, %v966
      %v1037 = vpack.c.bf16 %v977, %v974
      %v1038 = vpack.c.bf16 %v985, %v982
      %v1039 = vpack.c.bf16 %v993, %v990
      %v1040 = vpack.c.bf16 %v1001, %v998
      %v1041 = vpack.c.bf16 %v1009, %v1006
      %v1042 = vpack.c.bf16 %v1017, %v1014
      %v1043 = vpack.c.bf16 %v1025, %v1022
      %v1060 = vunpack.c.l.b16 %v1028
      %v1061 = vunpack.c.h.b16 %v1028
      %v1062 = vunpack.c.l.b16 %v1029
      %v1063 = vunpack.c.h.b16 %v1029
      %v1064 = vunpack.c.l.b16 %v1030
      %v1065 = vunpack.c.h.b16 %v1030
      %v1066 = vunpack.c.l.b16 %v1031
      %v1067 = vunpack.c.h.b16 %v1031
      %v1068 = vunpack.c.l.b16 %v1032
      %v1069 = vunpack.c.h.b16 %v1032
      %v1070 = vunpack.c.l.b16 %v1033
      %v1071 = vunpack.c.h.b16 %v1033
      %v1072 = vunpack.c.l.b16 %v1034
      %v1073 = vunpack.c.h.b16 %v1034
      %v1074 = vunpack.c.l.b16 %v1035
      %v1075 = vunpack.c.h.b16 %v1035
      %v1076 = vunpack.c.l.b16 %v1036
      %v1077 = vunpack.c.h.b16 %v1036
      %v1078 = vunpack.c.l.b16 %v1037
      %v1079 = vunpack.c.h.b16 %v1037
      %v1080 = vunpack.c.l.b16 %v1038
      %v1081 = vunpack.c.h.b16 %v1038
      %v1082 = vunpack.c.l.b16 %v1039
      %v1083 = vunpack.c.h.b16 %v1039
      %v1084 = vunpack.c.l.b16 %v1040
      %v1085 = vunpack.c.h.b16 %v1040
      %v1086 = vunpack.c.l.b16 %v1041
      %v1087 = vunpack.c.h.b16 %v1041
      %v1088 = vunpack.c.l.b16 %v1042
      %v1089 = vunpack.c.h.b16 %v1042
      %v1090 = vunpack.c.l.b16 %v1043
      %v1091 = vunpack.c.h.b16 %v1043
      %v1092 = vpack.c.b16 %v1060, %v1060
      %v1093 = vpack.c.b16 %v1061, %v1061
      %v1094 = vpack.c.b16 %v1062, %v1062
      %v1095 = vpack.c.b16 %v1063, %v1063
      %v1096 = vpack.c.b16 %v1064, %v1064
      %v1097 = vpack.c.b16 %v1065, %v1065
      %v1098 = vpack.c.b16 %v1066, %v1066
      %v1099 = vpack.c.b16 %v1067, %v1067
      %v1100 = vpack.c.b16 %v1068, %v1068
      %v1101 = vpack.c.b16 %v1069, %v1069
      %v1102 = vpack.c.b16 %v1070, %v1070
      %v1103 = vpack.c.b16 %v1071, %v1071
      %v1104 = vpack.c.b16 %v1072, %v1072
      %v1105 = vpack.c.b16 %v1073, %v1073
      %v1106 = vpack.c.b16 %v1074, %v1074
      %v1107 = vpack.c.b16 %v1075, %v1075
      %v1108 = vpack.c.b16 %v1076, %v1076
      %v1109 = vpack.c.b16 %v1077, %v1077
      %v1110 = vpack.c.b16 %v1078, %v1078
      %v1111 = vpack.c.b16 %v1079, %v1079
      %v1112 = vpack.c.b16 %v1080, %v1080
      %v1113 = vpack.c.b16 %v1081, %v1081
      %v1114 = vpack.c.b16 %v1082, %v1082
      %v1115 = vpack.c.b16 %v1083, %v1083
      %v1116 = vpack.c.b16 %v1084, %v1084
      %v1117 = vpack.c.b16 %v1085, %v1085
      %v1118 = vpack.c.b16 %v1086, %v1086
      %v1119 = vpack.c.b16 %v1087, %v1087
      %v1120 = vpack.c.b16 %v1088, %v1088
      %v1121 = vpack.c.b16 %v1089, %v1089
      %v1122 = vpack.c.b16 %v1090, %v1090
      %v1123 = vpack.c.b16 %v1091, %v1091
      %vm1156 = vcmask 257024
      %1157 = vst.msk [vmem:[%s175] sm:$0xf] %vm1156, %v1092
      %1158 = vst.msk [vmem:[%s175 + $0x4] sm:$0xf] %vm1156, %v1093
      %1159 = vst.msk [vmem:[%s175 + $0x8] sm:$0xf] %vm1156, %v1094
      %1160 = vst.msk [vmem:[%s175 + $0xc] sm:$0xf] %vm1156, %v1095
      %1161 = vst.msk [vmem:[%s175 + $0x10] sm:$0xf] %vm1156, %v1096
      %1162 = vst.msk [vmem:[%s175 + $0x14] sm:$0xf] %vm1156, %v1097
      %1163 = vst.msk [vmem:[%s175 + $0x18] sm:$0xf] %vm1156, %v1098
      %1164 = vst.msk [vmem:[%s175 + $0x1c] sm:$0xf] %vm1156, %v1099
      %1165 = vst.msk [vmem:[%s175 + $0x20] sm:$0xf] %vm1156, %v1100
      %1166 = vst.msk [vmem:[%s175 + $0x24] sm:$0xf] %vm1156, %v1101
      %1167 = vst.msk [vmem:[%s175 + $0x28] sm:$0xf] %vm1156, %v1102
      %1168 = vst.msk [vmem:[%s175 + $0x2c] sm:$0xf] %vm1156, %v1103
      %1169 = vst.msk [vmem:[%s175 + $0x30] sm:$0xf] %vm1156, %v1104
      %1170 = vst.msk [vmem:[%s175 + $0x34] sm:$0xf] %vm1156, %v1105
      %1171 = vst.msk [vmem:[%s175 + $0x38] sm:$0xf] %vm1156, %v1106
      %1172 = vst.msk [vmem:[%s175 + $0x3c] sm:$0xf] %vm1156, %v1107
      %1173 = vst.msk [vmem:[%s175 + $0x40] sm:$0xf] %vm1156, %v1108
      %1174 = vst.msk [vmem:[%s175 + $0x44] sm:$0xf] %vm1156, %v1109
      %1175 = vst.msk [vmem:[%s175 + $0x48] sm:$0xf] %vm1156, %v1110
      %1176 = vst.msk [vmem:[%s175 + $0x4c] sm:$0xf] %vm1156, %v1111
      %1177 = vst.msk [vmem:[%s175 + $0x50] sm:$0xf] %vm1156, %v1112
      %1178 = vst.msk [vmem:[%s175 + $0x54] sm:$0xf] %vm1156, %v1113
      %1179 = vst.msk [vmem:[%s175 + $0x58] sm:$0xf] %vm1156, %v1114
      %1180 = vst.msk [vmem:[%s175 + $0x5c] sm:$0xf] %vm1156, %v1115
      %1181 = vst.msk [vmem:[%s175 + $0x60] sm:$0xf] %vm1156, %v1116
      %1182 = vst.msk [vmem:[%s175 + $0x64] sm:$0xf] %vm1156, %v1117
      %1183 = vst.msk [vmem:[%s175 + $0x68] sm:$0xf] %vm1156, %v1118
      %1184 = vst.msk [vmem:[%s175 + $0x6c] sm:$0xf] %vm1156, %v1119
      %1185 = vst.msk [vmem:[%s175 + $0x70] sm:$0xf] %vm1156, %v1120
      %1186 = vst.msk [vmem:[%s175 + $0x74] sm:$0xf] %vm1156, %v1121
      %1187 = vst.msk [vmem:[%s175 + $0x78] sm:$0xf] %vm1156, %v1122
      %1188 = vst.msk [vmem:[%s175 + $0x7c] sm:$0xf] %vm1156, %v1123
      %s1189 = smul.u32 32, %s14
      %p1190 = scmp.lt.s32.totalorder %s1189, 63
      %s1191 = scalar_select %p1190, %s1189, 63
      %s1192 = smul.addr %s1191, 4
      %s1193 = scalar_lea.vmem %s3, %s1192
      // Predicated region
      $region33: #{mduvsr_forward.16} parent=31 // pred_check
        %p1194 = pneg %p100
      $region34: #{mduvsr_forward.16} parent=31 // pred_check_branch
        %1196 = sbr.rel (%p1194) target = $region36
      $region35: #{mduvsr_forward.16} parent=31 // pred_region
        %s1197 = smul.u32 32, %s14
      $region36: #{mduvsr_forward.16} parent=31 // pred_fallthru
        _
    $region32: #{mduvsr_forward.16} parent=5 // pred_fallthru
      _
    %p1198 = scmp.le.s32.totalorder 2, %s9
    // Predicated region
    $region37: #{mduvsr_forward.16} parent=5 // pred_check
      %p1199 = pneg %p1198
    $region38: #{mduvsr_forward.16} parent=5 // pred_check_branch
      %1201 = sbr.rel (%p1199) target = $region40
    $region39: #{mduvsr_forward.16} parent=5 // pred_region
      %s1202 = ssub.s32 %s9, 2
      // Predicated region
      $region41: #{mduvsr_forward.16} parent=39 // pred_check
        %p1203 = pneg %p106
      $region42: #{mduvsr_forward.16} parent=39 // pred_check_branch
        %1205 = sbr.rel (%p1203) target = $region44
      $region43: #{mduvsr_forward.16} parent=39 // pred_region
        %s1206 = smul.u32 32, %s15
        %p1207 = scmp.lt.s32.totalorder %s1206, 63
        %s1208 = scalar_select %p1207, %s1206, 63
        %s1209 = smul.addr %s1208, 4
        %s1210 = scalar_lea.vmem %s3, %s1209
      $region44: #{mduvsr_forward.16} parent=39 // pred_fallthru
        _
    $region40: #{mduvsr_forward.16} parent=5 // pred_fallthru
      _
  $region6: #{mduvsr_forward.16} parent=0 // loop_footer
    %s13 = sadd.s32 1, %s9
  $region7: #{mduvsr_forward.16} parent=0 // loop_footer_branch
    %8 = sbr.rel target = $region3
  $region8: #{mduvsr_forward.16} parent=0 // loop_exit
    _

// kernel: mduvsr_forward.27
$region0: #{mduvsr_forward.27}
  #allocation0 [shape = 'u32[]', space=smem, size = 0x4, offset = 0x4, fixed_abs, tag = 'smem constant byte address 0x4 - core index']
  #allocation1 [shape = 'u32[144,128]{1,0:T(1,128)}', space=vmem, size = 0x12000, scoped, tag = 'internal scratch']
  %s0 = inlined_call_operand.vmem [shape: bf16[512,288], index: 0, kind: input, shape index: {}]
  %s1 = inlined_call_operand.vmem [shape: bf16[512,36], index: 1, kind: input, shape index: {}]
  %s2 = inlined_call_operand.vmem [shape: bf16[288,16], index: 2, kind: input, shape index: {}]
  %s3 = inlined_call_operand.vmem [shape: bf16[36,16], index: 3, kind: input, shape index: {}]
  %s4 = inlined_call_operand.vmem [shape: f32[1,16], index: 4, kind: input, shape index: {}]
  %s5 = inlined_call_operand.vmem [shape: f32[512,16], index: 5, kind: output, shape index: {}]
  %s6 = sld [smem:[#allocation0]]
  $region53: #{mduvsr_forward.27} parent=0
    _
  %s8 = ssub.s32 1, %s6
  %s9 = scalar_select 0, %s8, %s6
  loop: start=0, step=1, limit=4
  $region2: #{mduvsr_forward.27} parent=0 // loop_pre_header
    _
  $region3: #{mduvsr_forward.27} parent=0 // loop_header
    %s11 = sphi 0, %s15
    %p12 = scmp.ge.s32.totalorder %s11, 4
    %s21 = sphi 0, %s23
    %s24 = sphi 0, %s21
    %s25 = sphi 0, %s24
    %s41 = sphi 0, %s25
    %s47 = sphi 0, %s49
    %s50 = sphi 0, %s47
    %s51 = sphi 0, %s50
    %s67 = sphi 0, %s51
    %s71 = sphi 0, %s71
    %s73 = sphi 0, %s71
    %s74 = sphi 0, %s73
    %s88 = sphi 0, %s74
    %s92 = sphi 0, %s92
    %s94 = sphi 0, %s92
    %s95 = sphi 0, %s94
    %s109 = sphi 0, %s95
    %s113 = sphi 0, %s113
    %s115 = sphi 0, %s113
    %s116 = sphi 0, %s115
    %s130 = sphi 0, %s116
    %s136 = sphi 0, %s138
    %s139 = sphi 0, %s136
    %s140 = sphi 0, %s139
    %s156 = sphi 0, %s140
  $region4: #{mduvsr_forward.27} parent=0 // loop_header_branch
    %14 = sbr.rel (%p12) target = $region8
  $region5: #{mduvsr_forward.27} parent=0 // loop_body
    %s16 = ssub.s32 %s11, 1
    %s17 = ssub.s32 %s11, 2
    %s18 = sadd.s32 %s11, 1
    %s19 = ssub.s32 %s11, %s18
    %p20 = scmp.eq.s32.totalorder %s19, 0
    %s22 = sadd.s32 %s21, 1
    %s23 = scalar_select %p20, %s21, %s22
    %p26 = pneg %p20
    %p27 = scmp.eq.s32.totalorder %s11, 1
    %p28 = por %p26, %p27
    %p29 = scmp.ne.s32.totalorder %s21, %s24
    %p30 = scmp.eq.s32.totalorder %s11, 0
    %p31 = por %p29, %p30
    %p32 = scmp.ne.s32.totalorder %s21, %s24
    %p33 = scmp.eq.s32.totalorder %s16, 1
    %p34 = por %p32, %p33
    %p35 = scmp.ne.s32.totalorder %s24, %s25
    %p36 = scmp.eq.s32.totalorder %s16, 0
    %p37 = por %p35, %p36
    %p38 = scmp.ne.s32.totalorder %s24, %s25
    %p39 = scmp.eq.s32.totalorder %s17, 1
    %p40 = por %p38, %p39
    %p42 = scmp.ne.s32.totalorder %s25, %s41
    %p43 = scmp.eq.s32.totalorder %s17, 0
    %p44 = por %p42, %p43
    %s45 = ssub.s32 %s11, %s18
    %p46 = scmp.eq.s32.totalorder %s45, 0
    %s48 = sadd.s32 %s47, 1
    %s49 = scalar_select %p46, %s47, %s48
    %p52 = pneg %p46
    %p53 = scmp.eq.s32.totalorder %s11, 1
    %p54 = por %p52, %p53
    %p55 = scmp.ne.s32.totalorder %s47, %s50
    %p56 = scmp.eq.s32.totalorder %s11, 0
    %p57 = por %p55, %p56
    %p58 = scmp.ne.s32.totalorder %s47, %s50
    %p59 = scmp.eq.s32.totalorder %s16, 1
    %p60 = por %p58, %p59
    %p61 = scmp.ne.s32.totalorder %s50, %s51
    %p62 = scmp.eq.s32.totalorder %s16, 0
    %p63 = por %p61, %p62
    %p64 = scmp.ne.s32.totalorder %s50, %s51
    %p65 = scmp.eq.s32.totalorder %s17, 1
    %p66 = por %p64, %p65
    %p68 = scmp.ne.s32.totalorder %s51, %s67
    %p69 = scmp.eq.s32.totalorder %s17, 0
    %p70 = por %p68, %p69
    %s72 = sadd.s32 %s71, 1
    %p75 = scmp.eq.s32.totalorder %s11, 1
    %p76 = scmp.ne.s32.totalorder %s71, %s73
    %p77 = scmp.eq.s32.totalorder %s11, 0
    %p78 = por %p76, %p77
    %p79 = scmp.ne.s32.totalorder %s71, %s73
    %p80 = scmp.eq.s32.totalorder %s16, 1
    %p81 = por %p79, %p80
    %p82 = scmp.ne.s32.totalorder %s73, %s74
    %p83 = scmp.eq.s32.totalorder %s16, 0
    %p84 = por %p82, %p83
    %p85 = scmp.ne.s32.totalorder %s73, %s74
    %p86 = scmp.eq.s32.totalorder %s17, 1
    %p87 = por %p85, %p86
    %p89 = scmp.ne.s32.totalorder %s74, %s88
    %p90 = scmp.eq.s32.totalorder %s17, 0
    %p91 = por %p89, %p90
    %s93 = sadd.s32 %s92, 1
    %p96 = scmp.eq.s32.totalorder %s11, 1
    %p97 = scmp.ne.s32.totalorder %s92, %s94
    %p98 = scmp.eq.s32.totalorder %s11, 0
    %p99 = por %p97, %p98
    %p100 = scmp.ne.s32.totalorder %s92, %s94
    %p101 = scmp.eq.s32.totalorder %s16, 1
    %p102 = por %p100, %p101
    %p103 = scmp.ne.s32.totalorder %s94, %s95
    %p104 = scmp.eq.s32.totalorder %s16, 0
    %p105 = por %p103, %p104
    %p106 = scmp.ne.s32.totalorder %s94, %s95
    %p107 = scmp.eq.s32.totalorder %s17, 1
    %p108 = por %p106, %p107
    %p110 = scmp.ne.s32.totalorder %s95, %s109
    %p111 = scmp.eq.s32.totalorder %s17, 0
    %p112 = por %p110, %p111
    %s114 = sadd.s32 %s113, 1
    %p117 = scmp.eq.s32.totalorder %s11, 1
    %p118 = scmp.ne.s32.totalorder %s113, %s115
    %p119 = scmp.eq.s32.totalorder %s11, 0
    %p120 = por %p118, %p119
    %p121 = scmp.ne.s32.totalorder %s113, %s115
    %p122 = scmp.eq.s32.totalorder %s16, 1
    %p123 = por %p121, %p122
    %p124 = scmp.ne.s32.totalorder %s115, %s116
    %p125 = scmp.eq.s32.totalorder %s16, 0
    %p126 = por %p124, %p125
    %p127 = scmp.ne.s32.totalorder %s115, %s116
    %p128 = scmp.eq.s32.totalorder %s17, 1
    %p129 = por %p127, %p128
    %p131 = scmp.ne.s32.totalorder %s116, %s130
    %p132 = scmp.eq.s32.totalorder %s17, 0
    %p133 = por %p131, %p132
    %s134 = ssub.s32 %s11, %s18
    %p135 = scmp.eq.s32.totalorder %s134, 0
    %s137 = sadd.s32 %s136, 1
    %s138 = scalar_select %p135, %s136, %s137
    %p141 = pneg %p135
    %p142 = scmp.eq.s32.totalorder %s11, 1
    %p143 = por %p141, %p142
    %p144 = scmp.ne.s32.totalorder %s136, %s139
    %p145 = scmp.eq.s32.totalorder %s11, 0
    %p146 = por %p144, %p145
    %p147 = scmp.ne.s32.totalorder %s136, %s139
    %p148 = scmp.eq.s32.totalorder %s16, 1
    %p149 = por %p147, %p148
    %p150 = scmp.ne.s32.totalorder %s139, %s140
    %p151 = scmp.eq.s32.totalorder %s16, 0
    %p152 = por %p150, %p151
    %p153 = scmp.ne.s32.totalorder %s139, %s140
    %p154 = scmp.eq.s32.totalorder %s17, 1
    %p155 = por %p153, %p154
    %p157 = scmp.ne.s32.totalorder %s140, %s156
    %p158 = scmp.eq.s32.totalorder %s17, 0
    %p159 = por %p157, %p158
    %p160 = scmp.le.s32.totalorder 1, %s11
    %p161 = scmp.lt.s32.totalorder %s11, 3
    %p162 = pnand %p160, %p161
    %p163 = pneg %p162
    // Predicated region
    $region9: #{mduvsr_forward.27} parent=5 // pred_check
      _
    $region10: #{mduvsr_forward.27} parent=5 // pred_check_branch
      %165 = sbr.rel (%p162) target = $region12
    $region11: #{mduvsr_forward.27} parent=5 // pred_region
      %s166 = ssub.s32 %s11, 1
      // Predicated region
      $region13: #{mduvsr_forward.27} parent=11 // pred_check
        %p167 = pneg %p84
      $region14: #{mduvsr_forward.27} parent=11 // pred_check_branch
        %169 = sbr.rel (%p167) target = $region16
      $region15: #{mduvsr_forward.27} parent=11 // pred_region
        _
      $region16: #{mduvsr_forward.27} parent=11 // pred_fallthru
        _
      // Predicated region
      $region17: #{mduvsr_forward.27} parent=11 // pred_check
        %p170 = pneg %p105
      $region18: #{mduvsr_forward.27} parent=11 // pred_check_branch
        %172 = sbr.rel (%p170) target = $region20
      $region19: #{mduvsr_forward.27} parent=11 // pred_region
        _
      $region20: #{mduvsr_forward.27} parent=11 // pred_fallthru
        _
      // Predicated region
      $region21: #{mduvsr_forward.27} parent=11 // pred_check
        %p173 = pneg %p126
      $region22: #{mduvsr_forward.27} parent=11 // pred_check_branch
        %175 = sbr.rel (%p173) target = $region24
      $region23: #{mduvsr_forward.27} parent=11 // pred_region
        _
      $region24: #{mduvsr_forward.27} parent=11 // pred_fallthru
        _
    $region12: #{mduvsr_forward.27} parent=5 // pred_fallthru
      _
    %p176 = scmp.lt.s32.totalorder %s11, 2
    // Predicated region
    $region25: #{mduvsr_forward.27} parent=5 // pred_check
      %p177 = pneg %p176
    $region26: #{mduvsr_forward.27} parent=5 // pred_check_branch
      %179 = sbr.rel (%p177) target = $region28
    $region27: #{mduvsr_forward.27} parent=5 // pred_region
      // Predicated region
      $region29: #{mduvsr_forward.27} parent=27 // pred_check
        %p180 = pneg %p31
      $region30: #{mduvsr_forward.27} parent=27 // pred_check_branch
        %182 = sbr.rel (%p180) target = $region32
      $region31: #{mduvsr_forward.27} parent=27 // pred_region
        %s183 = smul.u32 32, %s11
        %p184 = scmp.lt.s32.totalorder %s183, 63
        %s185 = scalar_select %p184, %s183, 63
        %s186 = smul.addr %s185, 3
        %s187 = smul.addr %s186, 4
        %s188 = scalar_lea.vmem %s0, %s187
        %s189 = smul.u32 32, %s11
      $region32: #{mduvsr_forward.27} parent=27 // pred_fallthru
        _
      // Predicated region
      $region33: #{mduvsr_forward.27} parent=27 // pred_check
        %p190 = pneg %p57
      $region34: #{mduvsr_forward.27} parent=27 // pred_check_branch
        %192 = sbr.rel (%p190) target = $region36
      $region35: #{mduvsr_forward.27} parent=27 // pred_region
        %s193 = smul.u32 32, %s11
        %p194 = scmp.lt.s32.totalorder %s193, 63
        %s195 = scalar_select %p194, %s193, 63
        %s196 = smul.addr %s195, 4
        %s197 = scalar_lea.vmem %s1, %s196
        %s198 = smul.u32 32, %s11
      $region36: #{mduvsr_forward.27} parent=27 // pred_fallthru
        _
    $region28: #{mduvsr_forward.27} parent=5 // pred_fallthru
      _
    %p199 = scmp.le.s32.totalorder 1, %s11
    %p200 = scmp.lt.s32.totalorder %s11, 3
    %p201 = pnand %p199, %p200
    %p202 = pneg %p201
    // Predicated region
    $region37: #{mduvsr_forward.27} parent=5 // pred_check
      _
    $region38: #{mduvsr_forward.27} parent=5 // pred_check_branch
      %204 = sbr.rel (%p201) target = $region40
    $region39: #{mduvsr_forward.27} parent=5 // pred_region
      %s205 = ssub.s32 %s11, 1
      %s206 = smul.u32 32, %s16
      %p207 = scmp.lt.s32.totalorder %s206, 63
      %s208 = scalar_select %p207, %s206, 63
      %s209 = smul.addr %s208, 3
      %s210 = smul.addr %s209, 4
      %s211 = scalar_lea.vmem %s0, %s210
      %p212 = pneg %p37
      %p213 = pneg %p34
      %s214 = smul.u32 32, %s16
      %p215 = scmp.lt.s32.totalorder %s214, 63
      %s216 = scalar_select %p215, %s214, 63
      %s217 = smul.addr %s216, 4
      %s218 = scalar_lea.vmem %s1, %s217
      %p219 = pneg %p63
      %p220 = pneg %p60
      %p221 = pneg %p84
      %p222 = pneg %p81
      %p223 = pneg %p105
      %p224 = pneg %p102
      %p225 = pneg %p126
      %p226 = pneg %p123
      %p227 = pneg %p152
      %p228 = pneg %p149
      %s229 = smul.u32 32, %s16
      %p230 = scmp.lt.s32.totalorder %s229, 63
      %s231 = scalar_select %p230, %s229, 63
      %s232 = smul.addr %s231, 8
      %s233 = scalar_lea.vmem %s5, %s232
      %s234 = smul.u32 32, %s16
      %p235 = scmp.lt.s32.totalorder %s234, 63
      %s236 = scalar_select %p235, %s234, 63
      %s237 = smul.addr %s236, 3
      %s238 = smul.addr %s237, 4
      %s239 = scalar_lea.vmem %s0, %s238
      %s240 = smul.u32 32, %s16
      %s241 = smul.u32 32, %s16
      %p242 = scmp.lt.s32.totalorder %s241, 63
      %s243 = scalar_select %p242, %s241, 63
      %s244 = smul.addr %s243, 4
      %s245 = scalar_lea.vmem %s1, %s244
      %s246 = smul.u32 32, %s16
      %s247 = smul.u32 32, %s16
      %p248 = scmp.lt.s32.totalorder %s247, 63
      %s249 = scalar_select %p248, %s247, 63
      %s250 = smul.addr %s249, 8
      %s251 = scalar_lea.vmem %s5, %s250
      %s252 = smul.u32 32, %s16
      %v254 = vld [vmem:[%s239] sm:$0xff]
      %v255 = vld [vmem:[%s239 + $0x8] sm:$0xf]
      %v256 = vld [vmem:[%s239 + $0xc] sm:$0xff]
      %v257 = vld [vmem:[%s239 + $0x14] sm:$0xf]
      %v258 = vld [vmem:[%s239 + $0x18] sm:$0xff]
      %v259 = vld [vmem:[%s239 + $0x20] sm:$0xf]
      %v260 = vld [vmem:[%s239 + $0x24] sm:$0xff]
      %v261 = vld [vmem:[%s239 + $0x2c] sm:$0xf]
      %v262 = vld [vmem:[%s239 + $0x30] sm:$0xff]
      %v263 = vld [vmem:[%s239 + $0x38] sm:$0xf]
      %v264 = vld [vmem:[%s239 + $0x3c] sm:$0xff]
      %v265 = vld [vmem:[%s239 + $0x44] sm:$0xf]
      %v266 = vld [vmem:[%s239 + $0x48] sm:$0xff]
      %v267 = vld [vmem:[%s239 + $0x50] sm:$0xf]
      %v268 = vld [vmem:[%s239 + $0x54] sm:$0xff]
      %v269 = vld [vmem:[%s239 + $0x5c] sm:$0xf]
      %v270 = vld [vmem:[%s239 + $0x60] sm:$0xff]
      %v271 = vld [vmem:[%s239 + $0x68] sm:$0xf]
      %v272 = vld [vmem:[%s239 + $0x6c] sm:$0xff]
      %v273 = vld [vmem:[%s239 + $0x74] sm:$0xf]
      %v274 = vld [vmem:[%s239 + $0x78] sm:$0xff]
      %v275 = vld [vmem:[%s239 + $0x80] sm:$0xf]
      %v276 = vld [vmem:[%s239 + $0x84] sm:$0xff]
      %v277 = vld [vmem:[%s239 + $0x8c] sm:$0xf]
      %v278 = vld [vmem:[%s239 + $0x90] sm:$0xff]
      %v279 = vld [vmem:[%s239 + $0x98] sm:$0xf]
      %v280 = vld [vmem:[%s239 + $0x9c] sm:$0xff]
      %v281 = vld [vmem:[%s239 + $0xa4] sm:$0xf]
      %v282 = vld [vmem:[%s239 + $0xa8] sm:$0xff]
      %v283 = vld [vmem:[%s239 + $0xb0] sm:$0xf]
      %v284 = vld [vmem:[%s239 + $0xb4] sm:$0xff]
      %v285 = vld [vmem:[%s239 + $0xbc] sm:$0xf]
      %v286 = vld [vmem:[%s239 + $0xc0] sm:$0xff]
      %v287 = vld [vmem:[%s239 + $0xc8] sm:$0xf]
      %v288 = vld [vmem:[%s239 + $0xcc] sm:$0xff]
      %v289 = vld [vmem:[%s239 + $0xd4] sm:$0xf]
      %v290 = vld [vmem:[%s239 + $0xd8] sm:$0xff]
      %v291 = vld [vmem:[%s239 + $0xe0] sm:$0xf]
      %v292 = vld [vmem:[%s239 + $0xe4] sm:$0xff]
      %v293 = vld [vmem:[%s239 + $0xec] sm:$0xf]
      %v294 = vld [vmem:[%s239 + $0xf0] sm:$0xff]
      %v295 = vld [vmem:[%s239 + $0xf8] sm:$0xf]
      %v296 = vld [vmem:[%s239 + $0xfc] sm:$0xff]
      %v297 = vld [vmem:[%s239 + $0x104] sm:$0xf]
      %v298 = vld [vmem:[%s239 + $0x108] sm:$0xff]
      %v299 = vld [vmem:[%s239 + $0x110] sm:$0xf]
      %v300 = vld [vmem:[%s239 + $0x114] sm:$0xff]
      %v301 = vld [vmem:[%s239 + $0x11c] sm:$0xf]
      %v302 = vld [vmem:[%s239 + $0x120] sm:$0xff]
      %v303 = vld [vmem:[%s239 + $0x128] sm:$0xf]
      %v304 = vld [vmem:[%s239 + $0x12c] sm:$0xff]
      %v305 = vld [vmem:[%s239 + $0x134] sm:$0xf]
      %v306 = vld [vmem:[%s239 + $0x138] sm:$0xff]
      %v307 = vld [vmem:[%s239 + $0x140] sm:$0xf]
      %v308 = vld [vmem:[%s239 + $0x144] sm:$0xff]
      %v309 = vld [vmem:[%s239 + $0x14c] sm:$0xf]
      %v310 = vld [vmem:[%s239 + $0x150] sm:$0xff]
      %v311 = vld [vmem:[%s239 + $0x158] sm:$0xf]
      %v312 = vld [vmem:[%s239 + $0x15c] sm:$0xff]
      %v313 = vld [vmem:[%s239 + $0x164] sm:$0xf]
      %v314 = vld [vmem:[%s239 + $0x168] sm:$0xff]
      %v315 = vld [vmem:[%s239 + $0x170] sm:$0xf]
      %v316 = vld [vmem:[%s239 + $0x174] sm:$0xff]
      %v317 = vld [vmem:[%s239 + $0x17c] sm:$0xf]
      %v318 = vld [vmem:[%s2] sm:$0xf]
      %v319 = vld [vmem:[%s2 + $0x4] sm:$0xf]
      %v320 = vld [vmem:[%s2 + $0x8] sm:$0xf]
      %v321 = vld [vmem:[%s2 + $0xc] sm:$0xf]
      %v322 = vld [vmem:[%s2 + $0x10] sm:$0xf]
      %v323 = vld [vmem:[%s2 + $0x14] sm:$0xf]
      %v324 = vld [vmem:[%s2 + $0x18] sm:$0xf]
      %v325 = vld [vmem:[%s2 + $0x1c] sm:$0xf]
      %v326 = vld [vmem:[%s2 + $0x20] sm:$0xf]
      %v327 = vld [vmem:[%s2 + $0x24] sm:$0xf]
      %v328 = vld [vmem:[%s2 + $0x28] sm:$0xf]
      %v329 = vld [vmem:[%s2 + $0x2c] sm:$0xf]
      %v330 = vld [vmem:[%s2 + $0x30] sm:$0xf]
      %v331 = vld [vmem:[%s2 + $0x34] sm:$0xf]
      %v332 = vld [vmem:[%s2 + $0x38] sm:$0xf]
      %v333 = vld [vmem:[%s2 + $0x3c] sm:$0xf]
      %v334 = vld [vmem:[%s2 + $0x40] sm:$0xf]
      %v335 = vld [vmem:[%s2 + $0x44] sm:$0xf]
      %v336 = vld [vmem:[%s2 + $0x48] sm:$0xf]
      %v337 = vld [vmem:[%s2 + $0x4c] sm:$0xf]
      %v338 = vld [vmem:[%s2 + $0x50] sm:$0xf]
      %v339 = vld [vmem:[%s2 + $0x54] sm:$0xf]
      %v340 = vld [vmem:[%s2 + $0x58] sm:$0xf]
      %v341 = vld [vmem:[%s2 + $0x5c] sm:$0xf]
      %v342 = vld [vmem:[%s2 + $0x60] sm:$0xf]
      %v343 = vld [vmem:[%s2 + $0x64] sm:$0xf]
      %v344 = vld [vmem:[%s2 + $0x68] sm:$0xf]
      %v345 = vld [vmem:[%s2 + $0x6c] sm:$0xf]
      %v346 = vld [vmem:[%s2 + $0x70] sm:$0xf]
      %v347 = vld [vmem:[%s2 + $0x74] sm:$0xf]
      %v348 = vld [vmem:[%s2 + $0x78] sm:$0xf]
      %v349 = vld [vmem:[%s2 + $0x7c] sm:$0xf]
      %v350 = vld [vmem:[%s2 + $0x80] sm:$0xf]
      %v351 = vld [vmem:[%s2 + $0x84] sm:$0xf]
      %v352 = vld [vmem:[%s2 + $0x88] sm:$0xf]
      %v353 = vld [vmem:[%s2 + $0x8c] sm:$0xf]
      %v354 = vld [vmem:[%s245] sm:$0xf]
      %v355 = vld [vmem:[%s245 + $0x4] sm:$0xf]
      %v356 = vld [vmem:[%s245 + $0x8] sm:$0xf]
      %v357 = vld [vmem:[%s245 + $0xc] sm:$0xf]
      %v358 = vld [vmem:[%s245 + $0x10] sm:$0xf]
      %v359 = vld [vmem:[%s245 + $0x14] sm:$0xf]
      %v360 = vld [vmem:[%s245 + $0x18] sm:$0xf]
      %v361 = vld [vmem:[%s245 + $0x1c] sm:$0xf]
      %v362 = vld [vmem:[%s245 + $0x20] sm:$0xf]
      %v363 = vld [vmem:[%s245 + $0x24] sm:$0xf]
      %v364 = vld [vmem:[%s245 + $0x28] sm:$0xf]
      %v365 = vld [vmem:[%s245 + $0x2c] sm:$0xf]
      %v366 = vld [vmem:[%s245 + $0x30] sm:$0xf]
      %v367 = vld [vmem:[%s245 + $0x34] sm:$0xf]
      %v368 = vld [vmem:[%s245 + $0x38] sm:$0xf]
      %v369 = vld [vmem:[%s245 + $0x3c] sm:$0xf]
      %v370 = vld [vmem:[%s245 + $0x40] sm:$0xf]
      %v371 = vld [vmem:[%s245 + $0x44] sm:$0xf]
      %v372 = vld [vmem:[%s245 + $0x48] sm:$0xf]
      %v373 = vld [vmem:[%s245 + $0x4c] sm:$0xf]
      %v374 = vld [vmem:[%s245 + $0x50] sm:$0xf]
      %v375 = vld [vmem:[%s245 + $0x54] sm:$0xf]
      %v376 = vld [vmem:[%s245 + $0x58] sm:$0xf]
      %v377 = vld [vmem:[%s245 + $0x5c] sm:$0xf]
      %v378 = vld [vmem:[%s245 + $0x60] sm:$0xf]
      %v379 = vld [vmem:[%s245 + $0x64] sm:$0xf]
      %v380 = vld [vmem:[%s245 + $0x68] sm:$0xf]
      %v381 = vld [vmem:[%s245 + $0x6c] sm:$0xf]
      %v382 = vld [vmem:[%s245 + $0x70] sm:$0xf]
      %v383 = vld [vmem:[%s245 + $0x74] sm:$0xf]
      %v384 = vld [vmem:[%s245 + $0x78] sm:$0xf]
      %v385 = vld [vmem:[%s245 + $0x7c] sm:$0xf]
      %v386 = vld [vmem:[%s3] sm:$0xf]
      %v387 = vld [vmem:[%s3 + $0x4] sm:$0xf]
      %v388 = vld [vmem:[%s3 + $0x8] sm:$0xf]
      %v389 = vld [vmem:[%s3 + $0xc] sm:$0xf]
      %v390 = vld [vmem:[%s3 + $0x10] sm:$0x3]
      %v423 = vunpack.c.l.b16 %v354
      %v424 = vunpack.c.l.b16 %v355
      %v425 = vunpack.c.l.b16 %v356
      %v426 = vunpack.c.l.b16 %v357
      %v427 = vunpack.c.l.b16 %v358
      %v428 = vunpack.c.l.b16 %v359
      %v429 = vunpack.c.l.b16 %v360
      %v430 = vunpack.c.l.b16 %v361
      %v431 = vunpack.c.l.b16 %v362
      %v432 = vunpack.c.l.b16 %v363
      %v433 = vunpack.c.l.b16 %v364
      %v434 = vunpack.c.l.b16 %v365
      %v435 = vunpack.c.l.b16 %v366
      %v436 = vunpack.c.l.b16 %v367
      %v437 = vunpack.c.l.b16 %v368
      %v438 = vunpack.c.l.b16 %v369
      %v439 = vunpack.c.l.b16 %v370
      %v440 = vunpack.c.l.b16 %v371
      %v441 = vunpack.c.l.b16 %v372
      %v442 = vunpack.c.l.b16 %v373
      %v443 = vunpack.c.l.b16 %v374
      %v444 = vunpack.c.l.b16 %v375
      %v445 = vunpack.c.l.b16 %v376
      %v446 = vunpack.c.l.b16 %v377
      %v447 = vunpack.c.l.b16 %v378
      %v448 = vunpack.c.l.b16 %v379
      %v449 = vunpack.c.l.b16 %v380
      %v450 = vunpack.c.l.b16 %v381
      %v451 = vunpack.c.l.b16 %v382
      %v452 = vunpack.c.l.b16 %v383
      %v453 = vunpack.c.l.b16 %v384
      %v454 = vunpack.c.l.b16 %v385
      %v455 = vpack.c.b16 %v424, %v423
      %v456 = vpack.c.b16 %v426, %v425
      %v457 = vpack.c.b16 %v428, %v427
      %v458 = vpack.c.b16 %v430, %v429
      %v459 = vpack.c.b16 %v432, %v431
      %v460 = vpack.c.b16 %v434, %v433
      %v461 = vpack.c.b16 %v436, %v435
      %v462 = vpack.c.b16 %v438, %v437
      %v463 = vpack.c.b16 %v440, %v439
      %v464 = vpack.c.b16 %v442, %v441
      %v465 = vpack.c.b16 %v444, %v443
      %v466 = vpack.c.b16 %v446, %v445
      %v467 = vpack.c.b16 %v448, %v447
      %v468 = vpack.c.b16 %v450, %v449
      %v469 = vpack.c.b16 %v452, %v451
      %v470 = vpack.c.b16 %v454, %v453
      %v476 = vunpack.c.l.b16 %v386
      %v477 = vunpack.c.l.b16 %v387
      %v478 = vunpack.c.l.b16 %v388
      %v479 = vunpack.c.l.b16 %v389
      %v480 = vunpack.c.l.b16 %v390
      %v481 = vpack.c.b16 %v477, %v476
      %v482 = vpack.c.b16 %v479, %v478
      %v483 = vpack.c.b16 %v480, %v480
      %vm486 = vcmask 293888
      %v488 = vsel %vm486, %v455, 0
      %v491 = vsel %vm486, %v456, 0
      %v494 = vsel %vm486, %v457, 0
      %v497 = vsel %vm486, %v458, 0
      %v500 = vsel %vm486, %v459, 0
      %v503 = vsel %vm486, %v460, 0
      %v506 = vsel %vm486, %v461, 0
      %v509 = vsel %vm486, %v462, 0
      %v512 = vsel %vm486, %v463, 0
      %v515 = vsel %vm486, %v464, 0
      %v518 = vsel %vm486, %v465, 0
      %v521 = vsel %vm486, %v466, 0
      %v524 = vsel %vm486, %v467, 0
      %v527 = vsel %vm486, %v468, 0
      %v530 = vsel %vm486, %v469, 0
      %v533 = vsel %vm486, %v470, 0
      %vm535 = vcmask 1041408
      %v537 = vsel %vm535, %v483, 0
      %539 = vmatprep.subr.bf16.mxu0 0
      %540 = vmatpush1.bf16.msra.mxu0 0
      %541 = vmatprep.subr.bf16.mxu0 0
      %542 = vmatpush1.bf16.msra.mxu0 0
      %543 = vmatprep.subr.bf16.mxu0 0
      %544 = vmatpush1.bf16.msra.mxu0 0
      %545 = vmatprep.subr.bf16.mxu0 0
      %546 = vmatpush1.bf16.msra.mxu0 0
      %547 = vmatprep.subr.bf16.mxu0 0
      %548 = vmatpush1.bf16.msra.mxu0 0
      %549 = vmatprep.subr.bf16.mxu0 0
      %550 = vmatpush1.bf16.msra.mxu0 %v537
      %551 = vmatprep.subr.bf16.mxu0 0
      %552 = vmatpush1.bf16.msra.mxu0 %v482
      %553 = vmatprep.subr.bf16.mxu0 0
      %554 = vmatpush1.bf16.msra.mxu0 %v481
      %555 = vmatprep.subr.bf16.mxu0 0
      %556 = vmatpush2.bf16.msra.mxu0 0
      %557 = vmatprep.subr.bf16.mxu0 0
      %558 = vmatpush2.bf16.msra.mxu0 0
      %559 = vmatprep.subr.bf16.mxu0 0
      %560 = vmatpush2.bf16.msra.mxu0 0
      %561 = vmatprep.subr.bf16.mxu0 0
      %562 = vmatpush2.bf16.msra.mxu0 0
      %563 = vmatprep.subr.bf16.mxu0 0
      %564 = vmatpush2.bf16.msra.mxu0 0
      %565 = vmatprep.subr.bf16.mxu0 0
      %566 = vmatpush2.bf16.msra.mxu0 0
      %567 = vmatprep.subr.bf16.mxu0 0
      %568 = vmatpush2.bf16.msra.mxu0 0
      %569 = vmatprep.subr.bf16.mxu0 0
      %570 = vmatpush2.bf16.msra.mxu0 0
      %571 = vmatprep.mubr.bf16.mxu0 0
      %572 = vmatmul.mubr.bf16.gmra.mxu0 %v488
      %v573 = vpop.f32.mrf.mxu0
      %v574 = vadd.f32 0.0, %v573
      %v575 = vpop.f32.mrf.mxu0
      %v576 = vpop.f32.mrf.mxu0
      %v577 = vadd.f32 0.0, %v576
      %v578 = vpop.f32.mrf.mxu0
      %579 = vmatprep.mubr.bf16.mxu0 0
      %580 = vmatmul.mubr.bf16.gmra.mxu0 %v491
      %v581 = vpop.f32.mrf.mxu0
      %v582 = vadd.f32 0.0, %v581
      %v583 = vpop.f32.mrf.mxu0
      %v584 = vpop.f32.mrf.mxu0
      %v585 = vadd.f32 0.0, %v584
      %v586 = vpop.f32.mrf.mxu0
      %587 = vmatprep.mubr.bf16.mxu0 0
      %588 = vmatmul.mubr.bf16.gmra.mxu0 %v494
      %v589 = vpop.f32.mrf.mxu0
      %v590 = vadd.f32 0.0, %v589
      %v591 = vpop.f32.mrf.mxu0
      %v592 = vpop.f32.mrf.mxu0
      %v593 = vadd.f32 0.0, %v592
      %v594 = vpop.f32.mrf.mxu0
      %595 = vmatprep.mubr.bf16.mxu0 0
      %596 = vmatmul.mubr.bf16.gmra.mxu0 %v497
      %v597 = vpop.f32.mrf.mxu0
      %v598 = vadd.f32 0.0, %v597
      %v599 = vpop.f32.mrf.mxu0
      %v600 = vpop.f32.mrf.mxu0
      %v601 = vadd.f32 0.0, %v600
      %v602 = vpop.f32.mrf.mxu0
      %603 = vmatprep.mubr.bf16.mxu0 0
      %604 = vmatmul.mubr.bf16.gmra.mxu0 %v500
      %v605 = vpop.f32.mrf.mxu0
      %v606 = vadd.f32 0.0, %v605
      %v607 = vpop.f32.mrf.mxu0
      %v608 = vpop.f32.mrf.mxu0
      %v609 = vadd.f32 0.0, %v608
      %v610 = vpop.f32.mrf.mxu0
      %611 = vmatprep.mubr.bf16.mxu0 0
      %612 = vmatmul.mubr.bf16.gmra.mxu0 %v503
      %v613 = vpop.f32.mrf.mxu0
      %v614 = vadd.f32 0.0, %v613
      %v615 = vpop.f32.mrf.mxu0
      %v616 = vpop.f32.mrf.mxu0
      %v617 = vadd.f32 0.0, %v616
      %v618 = vpop.f32.mrf.mxu0
      %619 = vmatprep.mubr.bf16.mxu0 0
      %620 = vmatmul.mubr.bf16.gmra.mxu0 %v506
      %v621 = vpop.f32.mrf.mxu0
      %v622 = vadd.f32 0.0, %v621
      %v623 = vpop.f32.mrf.mxu0
      %v624 = vpop.f32.mrf.mxu0
      %v625 = vadd.f32 0.0, %v624
      %v626 = vpop.f32.mrf.mxu0
      %627 = vmatprep.mubr.bf16.mxu0 0
      %628 = vmatmul.mubr.bf16.gmra.mxu0 %v509
      %v629 = vpop.f32.mrf.mxu0
      %v630 = vadd.f32 0.0, %v629
      %v631 = vpop.f32.mrf.mxu0
      %v632 = vpop.f32.mrf.mxu0
      %v633 = vadd.f32 0.0, %v632
      %v634 = vpop.f32.mrf.mxu0
      %635 = vmatprep.mubr.bf16.mxu0 0
      %636 = vmatmul.mubr.bf16.gmra.mxu0 %v512
      %v637 = vpop.f32.mrf.mxu0
      %v638 = vadd.f32 0.0, %v637
      %v639 = vpop.f32.mrf.mxu0
      %v640 = vpop.f32.mrf.mxu0
      %v641 = vadd.f32 0.0, %v640
      %v642 = vpop.f32.mrf.mxu0
      %643 = vmatprep.mubr.bf16.mxu0 0
      %644 = vmatmul.mubr.bf16.gmra.mxu0 %v515
      %v645 = vpop.f32.mrf.mxu0
      %v646 = vadd.f32 0.0, %v645
      %v647 = vpop.f32.mrf.mxu0
      %v648 = vpop.f32.mrf.mxu0
      %v649 = vadd.f32 0.0, %v648
      %v650 = vpop.f32.mrf.mxu0
      %651 = vmatprep.mubr.bf16.mxu0 0
      %652 = vmatmul.mubr.bf16.gmra.mxu0 %v518
      %v653 = vpop.f32.mrf.mxu0
      %v654 = vadd.f32 0.0, %v653
      %v655 = vpop.f32.mrf.mxu0
      %v656 = vpop.f32.mrf.mxu0
      %v657 = vadd.f32 0.0, %v656
      %v658 = vpop.f32.mrf.mxu0
      %659 = vmatprep.mubr.bf16.mxu0 0
      %660 = vmatmul.mubr.bf16.gmra.mxu0 %v521
      %v661 = vpop.f32.mrf.mxu0
      %v662 = vadd.f32 0.0, %v661
      %v663 = vpop.f32.mrf.mxu0
      %v664 = vpop.f32.mrf.mxu0
      %v665 = vadd.f32 0.0, %v664
      %v666 = vpop.f32.mrf.mxu0
      %667 = vmatprep.mubr.bf16.mxu0 0
      %668 = vmatmul.mubr.bf16.gmra.mxu0 %v524
      %v669 = vpop.f32.mrf.mxu0
      %v670 = vadd.f32 0.0, %v669
      %v671 = vpop.f32.mrf.mxu0
      %v672 = vpop.f32.mrf.mxu0
      %v673 = vadd.f32 0.0, %v672
      %v674 = vpop.f32.mrf.mxu0
      %675 = vmatprep.mubr.bf16.mxu0 0
      %676 = vmatmul.mubr.bf16.gmra.mxu0 %v527
      %v677 = vpop.f32.mrf.mxu0
      %v678 = vadd.f32 0.0, %v677
      %v679 = vpop.f32.mrf.mxu0
      %v680 = vpop.f32.mrf.mxu0
      %v681 = vadd.f32 0.0, %v680
      %v682 = vpop.f32.mrf.mxu0
      %683 = vmatprep.mubr.bf16.mxu0 0
      %684 = vmatmul.mubr.bf16.gmra.mxu0 %v530
      %v685 = vpop.f32.mrf.mxu0
      %v686 = vadd.f32 0.0, %v685
      %v687 = vpop.f32.mrf.mxu0
      %v688 = vpop.f32.mrf.mxu0
      %v689 = vadd.f32 0.0, %v688
      %v690 = vpop.f32.mrf.mxu0
      %691 = vmatprep.mubr.bf16.mxu0 0
      %692 = vmatmul.mubr.bf16.gmra.mxu0 %v533
      %v693 = vpop.f32.mrf.mxu0
      %v694 = vadd.f32 0.0, %v693
      %v695 = vpop.f32.mrf.mxu0
      %v696 = vpop.f32.mrf.mxu0
      %v697 = vadd.f32 0.0, %v696
      %v698 = vpop.f32.mrf.mxu0
      %699 = vdwg.mxu0
      %v764 = vunpack.c.l.b16 %v254
      %v765 = vunpack.c.h.b16 %v254
      %v766 = vunpack.c.l.b16 %v255
      %v767 = vunpack.c.l.b16 %v256
      %v768 = vunpack.c.h.b16 %v256
      %v769 = vunpack.c.l.b16 %v257
      %v770 = vunpack.c.l.b16 %v258
      %v771 = vunpack.c.h.b16 %v258
      %v772 = vunpack.c.l.b16 %v259
      %v773 = vunpack.c.l.b16 %v260
      %v774 = vunpack.c.h.b16 %v260
      %v775 = vunpack.c.l.b16 %v261
      %v776 = vunpack.c.l.b16 %v262
      %v777 = vunpack.c.h.b16 %v262
      %v778 = vunpack.c.l.b16 %v263
      %v779 = vunpack.c.l.b16 %v264
      %v780 = vunpack.c.h.b16 %v264
      %v781 = vunpack.c.l.b16 %v265
      %v782 = vunpack.c.l.b16 %v266
      %v783 = vunpack.c.h.b16 %v266
      %v784 = vunpack.c.l.b16 %v267
      %v785 = vunpack.c.l.b16 %v268
      %v786 = vunpack.c.h.b16 %v268
      %v787 = vunpack.c.l.b16 %v269
      %v788 = vunpack.c.l.b16 %v270
      %v789 = vunpack.c.h.b16 %v270
      %v790 = vunpack.c.l.b16 %v271
      %v791 = vunpack.c.l.b16 %v272
      %v792 = vunpack.c.h.b16 %v272
      %v793 = vunpack.c.l.b16 %v273
      %v794 = vunpack.c.l.b16 %v274
      %v795 = vunpack.c.h.b16 %v274
      %v796 = vunpack.c.l.b16 %v275
      %v797 = vunpack.c.l.b16 %v276
      %v798 = vunpack.c.h.b16 %v276
      %v799 = vunpack.c.l.b16 %v277
      %v800 = vunpack.c.l.b16 %v278
      %v801 = vunpack.c.h.b16 %v278
      %v802 = vunpack.c.l.b16 %v279
      %v803 = vunpack.c.l.b16 %v280
      %v804 = vunpack.c.h.b16 %v280
      %v805 = vunpack.c.l.b16 %v281
      %v806 = vunpack.c.l.b16 %v282
      %v807 = vunpack.c.h.b16 %v282
      %v808 = vunpack.c.l.b16 %v283
      %v809 = vunpack.c.l.b16 %v284
      %v810 = vunpack.c.h.b16 %v284
      %v811 = vunpack.c.l.b16 %v285
      %v812 = vunpack.c.l.b16 %v286
      %v813 = vunpack.c.h.b16 %v286
      %v814 = vunpack.c.l.b16 %v287
      %v815 = vunpack.c.l.b16 %v288
      %v816 = vunpack.c.h.b16 %v288
      %v817 = vunpack.c.l.b16 %v289
      %v818 = vunpack.c.l.b16 %v290
      %v819 = vunpack.c.h.b16 %v290
      %v820 = vunpack.c.l.b16 %v291
      %v821 = vunpack.c.l.b16 %v292
      %v822 = vunpack.c.h.b16 %v292
      %v823 = vunpack.c.l.b16 %v293
      %v824 = vunpack.c.l.b16 %v294
      %v825 = vunpack.c.h.b16 %v294
      %v826 = vunpack.c.l.b16 %v295
      %v827 = vunpack.c.l.b16 %v296
      %v828 = vunpack.c.h.b16 %v296
      %v829 = vunpack.c.l.b16 %v297
      %v830 = vunpack.c.l.b16 %v298
      %v831 = vunpack.c.h.b16 %v298
      %v832 = vunpack.c.l.b16 %v299
      %v833 = vunpack.c.l.b16 %v300
      %v834 = vunpack.c.h.b16 %v300
      %v835 = vunpack.c.l.b16 %v301
      %v836 = vunpack.c.l.b16 %v302
      %v837 = vunpack.c.h.b16 %v302
      %v838 = vunpack.c.l.b16 %v303
      %v839 = vunpack.c.l.b16 %v304
      %v840 = vunpack.c.h.b16 %v304
      %v841 = vunpack.c.l.b16 %v305
      %v842 = vunpack.c.l.b16 %v306
      %v843 = vunpack.c.h.b16 %v306
      %v844 = vunpack.c.l.b16 %v307
      %v845 = vunpack.c.l.b16 %v308
      %v846 = vunpack.c.h.b16 %v308
      %v847 = vunpack.c.l.b16 %v309
      %v848 = vunpack.c.l.b16 %v310
      %v849 = vunpack.c.h.b16 %v310
      %v850 = vunpack.c.l.b16 %v311
      %v851 = vunpack.c.l.b16 %v312
      %v852 = vunpack.c.h.b16 %v312
      %v853 = vunpack.c.l.b16 %v313
      %v854 = vunpack.c.l.b16 %v314
      %v855 = vunpack.c.h.b16 %v314
      %v856 = vunpack.c.l.b16 %v315
      %v857 = vunpack.c.l.b16 %v316
      %v858 = vunpack.c.h.b16 %v316
      %v859 = vunpack.c.l.b16 %v317
      %v860 = vpack.c.b16 %v767, %v764
      %v861 = vpack.c.b16 %v768, %v765
      %v862 = vpack.c.b16 %v769, %v766
      %v863 = vpack.c.b16 %v773, %v770
      %v864 = vpack.c.b16 %v774, %v771
      %v865 = vpack.c.b16 %v775, %v772
      %v866 = vpack.c.b16 %v779, %v776
      %v867 = vpack.c.b16 %v780, %v777
      %v868 = vpack.c.b16 %v781, %v778
      %v869 = vpack.c.b16 %v785, %v782
      %v870 = vpack.c.b16 %v786, %v783
      %v871 = vpack.c.b16 %v787, %v784
      %v872 = vpack.c.b16 %v791, %v788
      %v873 = vpack.c.b16 %v792, %v789
      %v874 = vpack.c.b16 %v793, %v790
      %v875 = vpack.c.b16 %v797, %v794
      %v876 = vpack.c.b16 %v798, %v795
      %v877 = vpack.c.b16 %v799, %v796
      %v878 = vpack.c.b16 %v803, %v800
      %v879 = vpack.c.b16 %v804, %v801
      %v880 = vpack.c.b16 %v805, %v802
      %v881 = vpack.c.b16 %v809, %v806
      %v882 = vpack.c.b16 %v810, %v807
      %v883 = vpack.c.b16 %v811, %v808
      %v884 = vpack.c.b16 %v815, %v812
      %v885 = vpack.c.b16 %v816, %v813
      %v886 = vpack.c.b16 %v817, %v814
      %v887 = vpack.c.b16 %v821, %v818
      %v888 = vpack.c.b16 %v822, %v819
      %v889 = vpack.c.b16 %v823, %v820
      %v890 = vpack.c.b16 %v827, %v824
      %v891 = vpack.c.b16 %v828, %v825
      %v892 = vpack.c.b16 %v829, %v826
      %v893 = vpack.c.b16 %v833, %v830
      %v894 = vpack.c.b16 %v834, %v831
      %v895 = vpack.c.b16 %v835, %v832
      %v896 = vpack.c.b16 %v839, %v836
      %v897 = vpack.c.b16 %v840, %v837
      %v898 = vpack.c.b16 %v841, %v838
      %v899 = vpack.c.b16 %v845, %v842
      %v900 = vpack.c.b16 %v846, %v843
      %v901 = vpack.c.b16 %v847, %v844
      %v902 = vpack.c.b16 %v851, %v848
      %v903 = vpack.c.b16 %v852, %v849
      %v904 = vpack.c.b16 %v853, %v850
      %v905 = vpack.c.b16 %v857, %v854
      %v906 = vpack.c.b16 %v858, %v855
      %v907 = vpack.c.b16 %v859, %v856
      %v976 = vunpack.c.l.b16 %v318
      %v977 = vunpack.c.l.b16 %v319
      %v978 = vunpack.c.l.b16 %v320
      %v979 = vunpack.c.l.b16 %v321
      %v980 = vunpack.c.l.b16 %v322
      %v981 = vunpack.c.l.b16 %v323
      %v982 = vunpack.c.l.b16 %v324
      %v983 = vunpack.c.l.b16 %v325
      %v984 = vunpack.c.l.b16 %v326
      %v985 = vunpack.c.l.b16 %v327
      %v986 = vunpack.c.l.b16 %v328
      %v987 = vunpack.c.l.b16 %v329
      %v988 = vunpack.c.l.b16 %v330
      %v989 = vunpack.c.l.b16 %v331
      %v990 = vunpack.c.l.b16 %v332
      %v991 = vunpack.c.l.b16 %v333
      %v992 = vunpack.c.l.b16 %v334
      %v993 = vunpack.c.l.b16 %v335
      %v994 = vunpack.c.l.b16 %v336
      %v995 = vunpack.c.l.b16 %v337
      %v996 = vunpack.c.l.b16 %v338
      %v997 = vunpack.c.l.b16 %v339
      %v998 = vunpack.c.l.b16 %v340
      %v999 = vunpack.c.l.b16 %v341
      %v1000 = vunpack.c.l.b16 %v342
      %v1001 = vunpack.c.l.b16 %v343
      %v1002 = vunpack.c.l.b16 %v344
      %v1003 = vunpack.c.l.b16 %v345
      %v1004 = vunpack.c.l.b16 %v346
      %v1005 = vunpack.c.l.b16 %v347
      %v1006 = vunpack.c.l.b16 %v348
      %v1007 = vunpack.c.l.b16 %v349
      %v1008 = vunpack.c.l.b16 %v350
      %v1009 = vunpack.c.l.b16 %v351
      %v1010 = vunpack.c.l.b16 %v352
      %v1011 = vunpack.c.l.b16 %v353
      %v1012 = vpack.c.b16 %v977, %v976
      %v1013 = vpack.c.b16 %v979, %v978
      %v1014 = vpack.c.b16 %v981, %v980
      %v1015 = vpack.c.b16 %v983, %v982
      %v1016 = vpack.c.b16 %v985, %v984
      %v1017 = vpack.c.b16 %v987, %v986
      %v1018 = vpack.c.b16 %v989, %v988
      %v1019 = vpack.c.b16 %v991, %v990
      %v1020 = vpack.c.b16 %v993, %v992
      %v1021 = vpack.c.b16 %v995, %v994
      %v1022 = vpack.c.b16 %v997, %v996
      %v1023 = vpack.c.b16 %v999, %v998
      %v1024 = vpack.c.b16 %v1001, %v1000
      %v1025 = vpack.c.b16 %v1003, %v1002
      %v1026 = vpack.c.b16 %v1005, %v1004
      %v1027 = vpack.c.b16 %v1007, %v1006
      %v1028 = vpack.c.b16 %v1009, %v1008
      %v1029 = vpack.c.b16 %v1011, %v1010
      %vm1048 = vcmask 261120
      %v1050 = vsel %vm1048, %v862, 0
      %v1053 = vsel %vm1048, %v865, 0
      %v1056 = vsel %vm1048, %v868, 0
      %v1059 = vsel %vm1048, %v871, 0
      %v1062 = vsel %vm1048, %v874, 0
      %v1065 = vsel %vm1048, %v877, 0
      %v1068 = vsel %vm1048, %v880, 0
      %v1071 = vsel %vm1048, %v883, 0
      %v1074 = vsel %vm1048, %v886, 0
      %v1077 = vsel %vm1048, %v889, 0
      %v1080 = vsel %vm1048, %v892, 0
      %v1083 = vsel %vm1048, %v895, 0
      %v1086 = vsel %vm1048, %v898, 0
      %v1089 = vsel %vm1048, %v901, 0
      %v1092 = vsel %vm1048, %v904, 0
      %v1095 = vsel %vm1048, %v907, 0
      %1097 = vmatprep.subr.bf16.mxu0 0
      %1098 = vmatpush1.bf16.msra.mxu0 %v1019
      %1099 = vmatprep.subr.bf16.mxu0 0
      %1100 = vmatpush1.bf16.msra.mxu0 %v1018
      %1101 = vmatprep.subr.bf16.mxu0 0
      %1102 = vmatpush1.bf16.msra.mxu0 %v1017
      %1103 = vmatprep.subr.bf16.mxu0 0
      %1104 = vmatpush1.bf16.msra.mxu0 %v1016
      %1105 = vmatprep.subr.bf16.mxu0 0
      %1106 = vmatpush1.bf16.msra.mxu0 %v1015
      %1107 = vmatprep.subr.bf16.mxu0 0
      %1108 = vmatpush1.bf16.msra.mxu0 %v1014
      %1109 = vmatprep.subr.bf16.mxu0 0
      %1110 = vmatpush1.bf16.msra.mxu0 %v1013
      %1111 = vmatprep.subr.bf16.mxu0 0
      %1112 = vmatpush1.bf16.msra.mxu0 %v1012
      %1113 = vmatprep.subr.bf16.mxu0 0
      %1114 = vmatpush2.bf16.msra.mxu0 %v1027
      %1115 = vmatprep.subr.bf16.mxu0 0
      %1116 = vmatpush2.bf16.msra.mxu0 %v1026
      %1117 = vmatprep.subr.bf16.mxu0 0
      %1118 = vmatpush2.bf16.msra.mxu0 %v1025
      %1119 = vmatprep.subr.bf16.mxu0 0
      %1120 = vmatpush2.bf16.msra.mxu0 %v1024
      %1121 = vmatprep.subr.bf16.mxu0 0
      %1122 = vmatpush2.bf16.msra.mxu0 %v1023
      %1123 = vmatprep.subr.bf16.mxu0 0
      %1124 = vmatpush2.bf16.msra.mxu0 %v1022
      %1125 = vmatprep.subr.bf16.mxu0 0
      %1126 = vmatpush2.bf16.msra.mxu0 %v1021
      %1127 = vmatprep.subr.bf16.mxu0 0
      %1128 = vmatpush2.bf16.msra.mxu0 %v1020
      %1129 = vmatprep.mubr.bf16.mxu0 %v861
      %1130 = vmatmul.mubr.bf16.gmra.mxu0 %v860
      %v1131 = vpop.f32.mrf.mxu0
      %v1132 = vadd.f32 %v574, %v1131
      %v1133 = vpop.f32.mrf.mxu0
      %v1134 = vpop.f32.mrf.mxu0
      %v1135 = vadd.f32 %v577, %v1134
      %v1136 = vpop.f32.mrf.mxu0
      %1137 = vmatprep.mubr.bf16.mxu0 %v864
      %1138 = vmatmul.mubr.bf16.gmra.mxu0 %v863
      %v1139 = vpop.f32.mrf.mxu0
      %v1140 = vadd.f32 %v582, %v1139
      %v1141 = vpop.f32.mrf.mxu0
      %v1142 = vpop.f32.mrf.mxu0
      %v1143 = vadd.f32 %v585, %v1142
      %v1144 = vpop.f32.mrf.mxu0
      %1145 = vmatprep.mubr.bf16.mxu0 %v867
      %1146 = vmatmul.mubr.bf16.gmra.mxu0 %v866
      %v1147 = vpop.f32.mrf.mxu0
      %v1148 = vadd.f32 %v590, %v1147
      %v1149 = vpop.f32.mrf.mxu0
      %v1150 = vpop.f32.mrf.mxu0
      %v1151 = vadd.f32 %v593, %v1150
      %v1152 = vpop.f32.mrf.mxu0
      %1153 = vmatprep.mubr.bf16.mxu0 %v870
      %1154 = vmatmul.mubr.bf16.gmra.mxu0 %v869
      %v1155 = vpop.f32.mrf.mxu0
      %v1156 = vadd.f32 %v598, %v1155
      %v1157 = vpop.f32.mrf.mxu0
      %v1158 = vpop.f32.mrf.mxu0
      %v1159 = vadd.f32 %v601, %v1158
      %v1160 = vpop.f32.mrf.mxu0
      %1161 = vmatprep.mubr.bf16.mxu0 %v873
      %1162 = vmatmul.mubr.bf16.gmra.mxu0 %v872
      %v1163 = vpop.f32.mrf.mxu0
      %v1164 = vadd.f32 %v606, %v1163
      %v1165 = vpop.f32.mrf.mxu0
      %v1166 = vpop.f32.mrf.mxu0
      %v1167 = vadd.f32 %v609, %v1166
      %v1168 = vpop.f32.mrf.mxu0
      %1169 = vmatprep.mubr.bf16.mxu0 %v876
      %1170 = vmatmul.mubr.bf16.gmra.mxu0 %v875
      %v1171 = vpop.f32.mrf.mxu0
      %v1172 = vadd.f32 %v614, %v1171
      %v1173 = vpop.f32.mrf.mxu0
      %v1174 = vpop.f32.mrf.mxu0
      %v1175 = vadd.f32 %v617, %v1174
      %v1176 = vpop.f32.mrf.mxu0
      %1177 = vmatprep.mubr.bf16.mxu0 %v879
      %1178 = vmatmul.mubr.bf16.gmra.mxu0 %v878
      %v1179 = vpop.f32.mrf.mxu0
      %v1180 = vadd.f32 %v622, %v1179
      %v1181 = vpop.f32.mrf.mxu0
      %v1182 = vpop.f32.mrf.mxu0
      %v1183 = vadd.f32 %v625, %v1182
      %v1184 = vpop.f32.mrf.mxu0
      %1185 = vmatprep.mubr.bf16.mxu0 %v882
      %1186 = vmatmul.mubr.bf16.gmra.mxu0 %v881
      %v1187 = vpop.f32.mrf.mxu0
      %v1188 = vadd.f32 %v630, %v1187
      %v1189 = vpop.f32.mrf.mxu0
      %v1190 = vpop.f32.mrf.mxu0
      %v1191 = vadd.f32 %v633, %v1190
      %v1192 = vpop.f32.mrf.mxu0
      %1193 = vmatprep.mubr.bf16.mxu0 %v885
      %1194 = vmatmul.mubr.bf16.gmra.mxu0 %v884
      %v1195 = vpop.f32.mrf.mxu0
      %v1196 = vadd.f32 %v638, %v1195
      %v1197 = vpop.f32.mrf.mxu0
      %v1198 = vpop.f32.mrf.mxu0
      %v1199 = vadd.f32 %v641, %v1198
      %v1200 = vpop.f32.mrf.mxu0
      %1201 = vmatprep.mubr.bf16.mxu0 %v888
      %1202 = vmatmul.mubr.bf16.gmra.mxu0 %v887
      %v1203 = vpop.f32.mrf.mxu0
      %v1204 = vadd.f32 %v646, %v1203
      %v1205 = vpop.f32.mrf.mxu0
      %v1206 = vpop.f32.mrf.mxu0
      %v1207 = vadd.f32 %v649, %v1206
      %v1208 = vpop.f32.mrf.mxu0
      %1209 = vmatprep.mubr.bf16.mxu0 %v891
      %1210 = vmatmul.mubr.bf16.gmra.mxu0 %v890
      %v1211 = vpop.f32.mrf.mxu0
      %v1212 = vadd.f32 %v654, %v1211
      %v1213 = vpop.f32.mrf.mxu0
      %v1214 = vpop.f32.mrf.mxu0
      %v1215 = vadd.f32 %v657, %v1214
      %v1216 = vpop.f32.mrf.mxu0
      %1217 = vmatprep.mubr.bf16.mxu0 %v894
      %1218 = vmatmul.mubr.bf16.gmra.mxu0 %v893
      %v1219 = vpop.f32.mrf.mxu0
      %v1220 = vadd.f32 %v662, %v1219
      %v1221 = vpop.f32.mrf.mxu0
      %v1222 = vpop.f32.mrf.mxu0
      %v1223 = vadd.f32 %v665, %v1222
      %v1224 = vpop.f32.mrf.mxu0
      %1225 = vmatprep.mubr.bf16.mxu0 %v897
      %1226 = vmatmul.mubr.bf16.gmra.mxu0 %v896
      %v1227 = vpop.f32.mrf.mxu0
      %v1228 = vadd.f32 %v670, %v1227
      %v1229 = vpop.f32.mrf.mxu0
      %v1230 = vpop.f32.mrf.mxu0
      %v1231 = vadd.f32 %v673, %v1230
      %v1232 = vpop.f32.mrf.mxu0
      %1233 = vmatprep.mubr.bf16.mxu0 %v900
      %1234 = vmatmul.mubr.bf16.gmra.mxu0 %v899
      %v1235 = vpop.f32.mrf.mxu0
      %v1236 = vadd.f32 %v678, %v1235
      %v1237 = vpop.f32.mrf.mxu0
      %v1238 = vpop.f32.mrf.mxu0
      %v1239 = vadd.f32 %v681, %v1238
      %v1240 = vpop.f32.mrf.mxu0
      %1241 = vmatprep.mubr.bf16.mxu0 %v903
      %1242 = vmatmul.mubr.bf16.gmra.mxu0 %v902
      %v1243 = vpop.f32.mrf.mxu0
      %v1244 = vadd.f32 %v686, %v1243
      %v1245 = vpop.f32.mrf.mxu0
      %v1246 = vpop.f32.mrf.mxu0
      %v1247 = vadd.f32 %v689, %v1246
      %v1248 = vpop.f32.mrf.mxu0
      %1249 = vmatprep.mubr.bf16.mxu0 %v906
      %1250 = vmatmul.mubr.bf16.gmra.mxu0 %v905
      %v1251 = vpop.f32.mrf.mxu0
      %v1252 = vadd.f32 %v694, %v1251
      %v1253 = vpop.f32.mrf.mxu0
      %v1254 = vpop.f32.mrf.mxu0
      %v1255 = vadd.f32 %v697, %v1254
      %v1256 = vpop.f32.mrf.mxu0
      %1257 = vdwg.mxu0
      %1258 = vmatprep.subr.bf16.mxu0 0
      %1259 = vmatpush1.bf16.msra.mxu0 0
      %1260 = vmatprep.subr.bf16.mxu0 0
      %1261 = vmatpush1.bf16.msra.mxu0 0
      %1262 = vmatprep.subr.bf16.mxu0 0
      %1263 = vmatpush1.bf16.msra.mxu0 0
      %1264 = vmatprep.subr.bf16.mxu0 0
      %1265 = vmatpush1.bf16.msra.mxu0 0
      %1266 = vmatprep.subr.bf16.mxu0 0
      %1267 = vmatpush1.bf16.msra.mxu0 0
      %1268 = vmatprep.subr.bf16.mxu0 0
      %1269 = vmatpush1.bf16.msra.mxu0 0
      %1270 = vmatprep.subr.bf16.mxu0 0
      %1271 = vmatpush1.bf16.msra.mxu0 %v1029
      %1272 = vmatprep.subr.bf16.mxu0 0
      %1273 = vmatpush1.bf16.msra.mxu0 %v1028
      %1274 = vmatprep.subr.bf16.mxu0 0
      %1275 = vmatpush2.bf16.msra.mxu0 0
      %1276 = vmatprep.subr.bf16.mxu0 0
      %1277 = vmatpush2.bf16.msra.mxu0 0
      %1278 = vmatprep.subr.bf16.mxu0 0
      %1279 = vmatpush2.bf16.msra.mxu0 0
      %1280 = vmatprep.subr.bf16.mxu0 0
      %1281 = vmatpush2.bf16.msra.mxu0 0
      %1282 = vmatprep.subr.bf16.mxu0 0
      %1283 = vmatpush2.bf16.msra.mxu0 0
      %1284 = vmatprep.subr.bf16.mxu0 0
      %1285 = vmatpush2.bf16.msra.mxu0 0
      %1286 = vmatprep.subr.bf16.mxu0 0
      %1287 = vmatpush2.bf16.msra.mxu0 0
      %1288 = vmatprep.subr.bf16.mxu0 0
      %1289 = vmatpush2.bf16.msra.mxu0 0
      %1290 = vmatprep.mubr.bf16.mxu0 0
      %1291 = vmatmul.mubr.bf16.gmra.mxu0 %v1050
      %v1292 = vpop.f32.mrf.mxu0
      %v1293 = vadd.f32 %v1132, %v1292
      %v1294 = vpop.f32.mrf.mxu0
      %v1295 = vpop.f32.mrf.mxu0
      %v1296 = vadd.f32 %v1135, %v1295
      %v1297 = vpop.f32.mrf.mxu0
      %1298 = vmatprep.mubr.bf16.mxu0 0
      %1299 = vmatmul.mubr.bf16.gmra.mxu0 %v1053
      %v1300 = vpop.f32.mrf.mxu0
      %v1301 = vadd.f32 %v1140, %v1300
      %v1302 = vpop.f32.mrf.mxu0
      %v1303 = vpop.f32.mrf.mxu0
      %v1304 = vadd.f32 %v1143, %v1303
      %v1305 = vpop.f32.mrf.mxu0
      %1306 = vmatprep.mubr.bf16.mxu0 0
      %1307 = vmatmul.mubr.bf16.gmra.mxu0 %v1056
      %v1308 = vpop.f32.mrf.mxu0
      %v1309 = vadd.f32 %v1148, %v1308
      %v1310 = vpop.f32.mrf.mxu0
      %v1311 = vpop.f32.mrf.mxu0
      %v1312 = vadd.f32 %v1151, %v1311
      %v1313 = vpop.f32.mrf.mxu0
      %1314 = vmatprep.mubr.bf16.mxu0 0
      %1315 = vmatmul.mubr.bf16.gmra.mxu0 %v1059
      %v1316 = vpop.f32.mrf.mxu0
      %v1317 = vadd.f32 %v1156, %v1316
      %v1318 = vpop.f32.mrf.mxu0
      %v1319 = vpop.f32.mrf.mxu0
      %v1320 = vadd.f32 %v1159, %v1319
      %v1321 = vpop.f32.mrf.mxu0
      %1322 = vmatprep.mubr.bf16.mxu0 0
      %1323 = vmatmul.mubr.bf16.gmra.mxu0 %v1062
      %v1324 = vpop.f32.mrf.mxu0
      %v1325 = vadd.f32 %v1164, %v1324
      %v1326 = vpop.f32.mrf.mxu0
      %v1327 = vpop.f32.mrf.mxu0
      %v1328 = vadd.f32 %v1167, %v1327
      %v1329 = vpop.f32.mrf.mxu0
      %1330 = vmatprep.mubr.bf16.mxu0 0
      %1331 = vmatmul.mubr.bf16.gmra.mxu0 %v1065
      %v1332 = vpop.f32.mrf.mxu0
      %v1333 = vadd.f32 %v1172, %v1332
      %v1334 = vpop.f32.mrf.mxu0
      %v1335 = vpop.f32.mrf.mxu0
      %v1336 = vadd.f32 %v1175, %v1335
      %v1337 = vpop.f32.mrf.mxu0
      %1338 = vmatprep.mubr.bf16.mxu0 0
      %1339 = vmatmul.mubr.bf16.gmra.mxu0 %v1068
      %v1340 = vpop.f32.mrf.mxu0
      %v1341 = vadd.f32 %v1180, %v1340
      %v1342 = vpop.f32.mrf.mxu0
      %v1343 = vpop.f32.mrf.mxu0
      %v1344 = vadd.f32 %v1183, %v1343
      %v1345 = vpop.f32.mrf.mxu0
      %1346 = vmatprep.mubr.bf16.mxu0 0
      %1347 = vmatmul.mubr.bf16.gmra.mxu0 %v1071
      %v1348 = vpop.f32.mrf.mxu0
      %v1349 = vadd.f32 %v1188, %v1348
      %v1350 = vpop.f32.mrf.mxu0
      %v1351 = vpop.f32.mrf.mxu0
      %v1352 = vadd.f32 %v1191, %v1351
      %v1353 = vpop.f32.mrf.mxu0
      %1354 = vmatprep.mubr.bf16.mxu0 0
      %1355 = vmatmul.mubr.bf16.gmra.mxu0 %v1074
      %v1356 = vpop.f32.mrf.mxu0
      %v1357 = vadd.f32 %v1196, %v1356
      %v1358 = vpop.f32.mrf.mxu0
      %v1359 = vpop.f32.mrf.mxu0
      %v1360 = vadd.f32 %v1199, %v1359
      %v1361 = vpop.f32.mrf.mxu0
      %1362 = vmatprep.mubr.bf16.mxu0 0
      %1363 = vmatmul.mubr.bf16.gmra.mxu0 %v1077
      %v1364 = vpop.f32.mrf.mxu0
      %v1365 = vadd.f32 %v1204, %v1364
      %v1366 = vpop.f32.mrf.mxu0
      %v1367 = vpop.f32.mrf.mxu0
      %v1368 = vadd.f32 %v1207, %v1367
      %v1369 = vpop.f32.mrf.mxu0
      %1370 = vmatprep.mubr.bf16.mxu0 0
      %1371 = vmatmul.mubr.bf16.gmra.mxu0 %v1080
      %v1372 = vpop.f32.mrf.mxu0
      %v1373 = vadd.f32 %v1212, %v1372
      %v1374 = vpop.f32.mrf.mxu0
      %v1375 = vpop.f32.mrf.mxu0
      %v1376 = vadd.f32 %v1215, %v1375
      %v1377 = vpop.f32.mrf.mxu0
      %1378 = vmatprep.mubr.bf16.mxu0 0
      %1379 = vmatmul.mubr.bf16.gmra.mxu0 %v1083
      %v1380 = vpop.f32.mrf.mxu0
      %v1381 = vadd.f32 %v1220, %v1380
      %v1382 = vpop.f32.mrf.mxu0
      %v1383 = vpop.f32.mrf.mxu0
      %v1384 = vadd.f32 %v1223, %v1383
      %v1385 = vpop.f32.mrf.mxu0
      %1386 = vmatprep.mubr.bf16.mxu0 0
      %1387 = vmatmul.mubr.bf16.gmra.mxu0 %v1086
      %v1388 = vpop.f32.mrf.mxu0
      %v1389 = vadd.f32 %v1228, %v1388
      %v1390 = vpop.f32.mrf.mxu0
      %v1391 = vpop.f32.mrf.mxu0
      %v1392 = vadd.f32 %v1231, %v1391
      %v1393 = vpop.f32.mrf.mxu0
      %1394 = vmatprep.mubr.bf16.mxu0 0
      %1395 = vmatmul.mubr.bf16.gmra.mxu0 %v1089
      %v1396 = vpop.f32.mrf.mxu0
      %v1397 = vadd.f32 %v1236, %v1396
      %v1398 = vpop.f32.mrf.mxu0
      %v1399 = vpop.f32.mrf.mxu0
      %v1400 = vadd.f32 %v1239, %v1399
      %v1401 = vpop.f32.mrf.mxu0
      %1402 = vmatprep.mubr.bf16.mxu0 0
      %1403 = vmatmul.mubr.bf16.gmra.mxu0 %v1092
      %v1404 = vpop.f32.mrf.mxu0
      %v1405 = vadd.f32 %v1244, %v1404
      %v1406 = vpop.f32.mrf.mxu0
      %v1407 = vpop.f32.mrf.mxu0
      %v1408 = vadd.f32 %v1247, %v1407
      %v1409 = vpop.f32.mrf.mxu0
      %1410 = vmatprep.mubr.bf16.mxu0 0
      %1411 = vmatmul.mubr.bf16.gmra.mxu0 %v1095
      %v1412 = vpop.f32.mrf.mxu0
      %v1413 = vadd.f32 %v1252, %v1412
      %v1414 = vpop.f32.mrf.mxu0
      %v1415 = vpop.f32.mrf.mxu0
      %v1416 = vadd.f32 %v1255, %v1415
      %v1417 = vpop.f32.mrf.mxu0
      %1418 = vdwg.mxu0
      %v1419 = vld [vmem:[%s4] sm:$0x1]
      %v1421 = vlaneseq
      %v1422 = vshrl.u32 %v1421, 7
      %v1423 = vsub.s32 0, %v1422
      %v1424 = vrot.slane %v1419, %v1423
      %v1426 = vadd.f32 %v1293, %v1424
      %v1427 = vadd.f32 %v1296, %v1424
      %v1428 = vadd.f32 %v1301, %v1424
      %v1429 = vadd.f32 %v1304, %v1424
      %v1430 = vadd.f32 %v1309, %v1424
      %v1431 = vadd.f32 %v1312, %v1424
      %v1432 = vadd.f32 %v1317, %v1424
      %v1433 = vadd.f32 %v1320, %v1424
      %v1434 = vadd.f32 %v1325, %v1424
      %v1435 = vadd.f32 %v1328, %v1424
      %v1436 = vadd.f32 %v1333, %v1424
      %v1437 = vadd.f32 %v1336, %v1424
      %v1438 = vadd.f32 %v1341, %v1424
      %v1439 = vadd.f32 %v1344, %v1424
      %v1440 = vadd.f32 %v1349, %v1424
      %v1441 = vadd.f32 %v1352, %v1424
      %v1442 = vadd.f32 %v1357, %v1424
      %v1443 = vadd.f32 %v1360, %v1424
      %v1444 = vadd.f32 %v1365, %v1424
      %v1445 = vadd.f32 %v1368, %v1424
      %v1446 = vadd.f32 %v1373, %v1424
      %v1447 = vadd.f32 %v1376, %v1424
      %v1448 = vadd.f32 %v1381, %v1424
      %v1449 = vadd.f32 %v1384, %v1424
      %v1450 = vadd.f32 %v1389, %v1424
      %v1451 = vadd.f32 %v1392, %v1424
      %v1452 = vadd.f32 %v1397, %v1424
      %v1453 = vadd.f32 %v1400, %v1424
      %v1454 = vadd.f32 %v1405, %v1424
      %v1455 = vadd.f32 %v1408, %v1424
      %v1456 = vadd.f32 %v1413, %v1424
      %v1457 = vadd.f32 %v1416, %v1424
      %v1458 = vmax.f32 %v1426, 0.0
      %v1459 = vmax.f32 %v1427, 0.0
      %v1460 = vmax.f32 %v1428, 0.0
      %v1461 = vmax.f32 %v1429, 0.0
      %v1462 = vmax.f32 %v1430, 0.0
      %v1463 = vmax.f32 %v1431, 0.0
      %v1464 = vmax.f32 %v1432, 0.0
      %v1465 = vmax.f32 %v1433, 0.0
      %v1466 = vmax.f32 %v1434, 0.0
      %v1467 = vmax.f32 %v1435, 0.0
      %v1468 = vmax.f32 %v1436, 0.0
      %v1469 = vmax.f32 %v1437, 0.0
      %v1470 = vmax.f32 %v1438, 0.0
      %v1471 = vmax.f32 %v1439, 0.0
      %v1472 = vmax.f32 %v1440, 0.0
      %v1473 = vmax.f32 %v1441, 0.0
      %v1474 = vmax.f32 %v1442, 0.0
      %v1475 = vmax.f32 %v1443, 0.0
      %v1476 = vmax.f32 %v1444, 0.0
      %v1477 = vmax.f32 %v1445, 0.0
      %v1478 = vmax.f32 %v1446, 0.0
      %v1479 = vmax.f32 %v1447, 0.0
      %v1480 = vmax.f32 %v1448, 0.0
      %v1481 = vmax.f32 %v1449, 0.0
      %v1482 = vmax.f32 %v1450, 0.0
      %v1483 = vmax.f32 %v1451, 0.0
      %v1484 = vmax.f32 %v1452, 0.0
      %v1485 = vmax.f32 %v1453, 0.0
      %v1486 = vmax.f32 %v1454, 0.0
      %v1487 = vmax.f32 %v1455, 0.0
      %v1488 = vmax.f32 %v1456, 0.0
      %v1489 = vmax.f32 %v1457, 0.0
      %v1490 = vmin.f32 %v1458, 255.0
      %v1491 = vmin.f32 %v1459, 255.0
      %v1492 = vmin.f32 %v1460, 255.0
      %v1493 = vmin.f32 %v1461, 255.0
      %v1494 = vmin.f32 %v1462, 255.0
      %v1495 = vmin.f32 %v1463, 255.0
      %v1496 = vmin.f32 %v1464, 255.0
      %v1497 = vmin.f32 %v1465, 255.0
      %v1498 = vmin.f32 %v1466, 255.0
      %v1499 = vmin.f32 %v1467, 255.0
      %v1500 = vmin.f32 %v1468, 255.0
      %v1501 = vmin.f32 %v1469, 255.0
      %v1502 = vmin.f32 %v1470, 255.0
      %v1503 = vmin.f32 %v1471, 255.0
      %v1504 = vmin.f32 %v1472, 255.0
      %v1505 = vmin.f32 %v1473, 255.0
      %v1506 = vmin.f32 %v1474, 255.0
      %v1507 = vmin.f32 %v1475, 255.0
      %v1508 = vmin.f32 %v1476, 255.0
      %v1509 = vmin.f32 %v1477, 255.0
      %v1510 = vmin.f32 %v1478, 255.0
      %v1511 = vmin.f32 %v1479, 255.0
      %v1512 = vmin.f32 %v1480, 255.0
      %v1513 = vmin.f32 %v1481, 255.0
      %v1514 = vmin.f32 %v1482, 255.0
      %v1515 = vmin.f32 %v1483, 255.0
      %v1516 = vmin.f32 %v1484, 255.0
      %v1517 = vmin.f32 %v1485, 255.0
      %v1518 = vmin.f32 %v1486, 255.0
      %v1519 = vmin.f32 %v1487, 255.0
      %v1520 = vmin.f32 %v1488, 255.0
      %v1521 = vmin.f32 %v1489, 255.0
      %vm1522 = vcmask 130048
      %1523 = vst.msk [vmem:[%s251] sm:$0xff] %vm1522, %v1490
      %1524 = vst.msk [vmem:[%s251 + $0x8] sm:$0xff] %vm1522, %v1491
      %1525 = vst.msk [vmem:[%s251 + $0x10] sm:$0xff] %vm1522, %v1492
      %1526 = vst.msk [vmem:[%s251 + $0x18] sm:$0xff] %vm1522, %v1493
      %1527 = vst.msk [vmem:[%s251 + $0x20] sm:$0xff] %vm1522, %v1494
      %1528 = vst.msk [vmem:[%s251 + $0x28] sm:$0xff] %vm1522, %v1495
      %1529 = vst.msk [vmem:[%s251 + $0x30] sm:$0xff] %vm1522, %v1496
      %1530 = vst.msk [vmem:[%s251 + $0x38] sm:$0xff] %vm1522, %v1497
      %1531 = vst.msk [vmem:[%s251 + $0x40] sm:$0xff] %vm1522, %v1498
      %1532 = vst.msk [vmem:[%s251 + $0x48] sm:$0xff] %vm1522, %v1499
      %1533 = vst.msk [vmem:[%s251 + $0x50] sm:$0xff] %vm1522, %v1500
      %1534 = vst.msk [vmem:[%s251 + $0x58] sm:$0xff] %vm1522, %v1501
      %1535 = vst.msk [vmem:[%s251 + $0x60] sm:$0xff] %vm1522, %v1502
      %1536 = vst.msk [vmem:[%s251 + $0x68] sm:$0xff] %vm1522, %v1503
      %1537 = vst.msk [vmem:[%s251 + $0x70] sm:$0xff] %vm1522, %v1504
      %1538 = vst.msk [vmem:[%s251 + $0x78] sm:$0xff] %vm1522, %v1505
      %1539 = vst.msk [vmem:[%s251 + $0x80] sm:$0xff] %vm1522, %v1506
      %1540 = vst.msk [vmem:[%s251 + $0x88] sm:$0xff] %vm1522, %v1507
      %1541 = vst.msk [vmem:[%s251 + $0x90] sm:$0xff] %vm1522, %v1508
      %1542 = vst.msk [vmem:[%s251 + $0x98] sm:$0xff] %vm1522, %v1509
      %1543 = vst.msk [vmem:[%s251 + $0xa0] sm:$0xff] %vm1522, %v1510
      %1544 = vst.msk [vmem:[%s251 + $0xa8] sm:$0xff] %vm1522, %v1511
      %1545 = vst.msk [vmem:[%s251 + $0xb0] sm:$0xff] %vm1522, %v1512
      %1546 = vst.msk [vmem:[%s251 + $0xb8] sm:$0xff] %vm1522, %v1513
      %1547 = vst.msk [vmem:[%s251 + $0xc0] sm:$0xff] %vm1522, %v1514
      %1548 = vst.msk [vmem:[%s251 + $0xc8] sm:$0xff] %vm1522, %v1515
      %1549 = vst.msk [vmem:[%s251 + $0xd0] sm:$0xff] %vm1522, %v1516
      %1550 = vst.msk [vmem:[%s251 + $0xd8] sm:$0xff] %vm1522, %v1517
      %1551 = vst.msk [vmem:[%s251 + $0xe0] sm:$0xff] %vm1522, %v1518
      %1552 = vst.msk [vmem:[%s251 + $0xe8] sm:$0xff] %vm1522, %v1519
      %1553 = vst.msk [vmem:[%s251 + $0xf0] sm:$0xff] %vm1522, %v1520
      %1554 = vst.msk [vmem:[%s251 + $0xf8] sm:$0xff] %vm1522, %v1521
      %s1555 = smul.u32 32, %s16
      %p1556 = scmp.lt.s32.totalorder %s1555, 63
      %s1557 = scalar_select %p1556, %s1555, 63
      %s1558 = smul.addr %s1557, 8
      %s1559 = scalar_lea.vmem %s5, %s1558
      // Predicated region
      $region41: #{mduvsr_forward.27} parent=39 // pred_check
        %p1560 = pneg %p149
      $region42: #{mduvsr_forward.27} parent=39 // pred_check_branch
        %1562 = sbr.rel (%p1560) target = $region44
      $region43: #{mduvsr_forward.27} parent=39 // pred_region
        %s1563 = smul.u32 32, %s16
      $region44: #{mduvsr_forward.27} parent=39 // pred_fallthru
        _
    $region40: #{mduvsr_forward.27} parent=5 // pred_fallthru
      _
    %p1564 = scmp.le.s32.totalorder 2, %s11
    // Predicated region
    $region45: #{mduvsr_forward.27} parent=5 // pred_check
      %p1565 = pneg %p1564
    $region46: #{mduvsr_forward.27} parent=5 // pred_check_branch
      %1567 = sbr.rel (%p1565) target = $region48
    $region47: #{mduvsr_forward.27} parent=5 // pred_region
      %s1568 = ssub.s32 %s11, 2
      // Predicated region
      $region49: #{mduvsr_forward.27} parent=47 // pred_check
        %p1569 = pneg %p155
      $region50: #{mduvsr_forward.27} parent=47 // pred_check_branch
        %1571 = sbr.rel (%p1569) target = $region52
      $region51: #{mduvsr_forward.27} parent=47 // pred_region
        %s1572 = smul.u32 32, %s17
        %p1573 = scmp.lt.s32.totalorder %s1572, 63
        %s1574 = scalar_select %p1573, %s1572, 63
        %s1575 = smul.addr %s1574, 8
        %s1576 = scalar_lea.vmem %s5, %s1575
      $region52: #{mduvsr_forward.27} parent=47 // pred_fallthru
        _
    $region48: #{mduvsr_forward.27} parent=5 // pred_fallthru
      _
  $region6: #{mduvsr_forward.27} parent=0 // loop_footer
    %s15 = sadd.s32 1, %s11
  $region7: #{mduvsr_forward.27} parent=0 // loop_footer_branch
    %10 = sbr.rel target = $region3
  $region8: #{mduvsr_forward.27} parent=0 // loop_exit
    _

</llo_original>
